<compile_context>
chip_gen: v6e
topology: v6e:2x2x1
jax: 0.10.0
libtpu: 0.0.40
codegen_flags: <defaults>
</compile_context>

<pallas_src>
import math
import functools

import jax
import jax.numpy as jnp
from jax.experimental import pallas as pl
from jax.experimental.pallas import tpu as pltpu

# ----- hyper-parameters (FastAttentionConfig + PolicyNetworkWithAttention args) -----
STATE_DIM = 20
ACTION_DIM = 6
HIDDEN_DIM = 32
SEQ_LEN = 8

D_MODEL = 32
D_KEY = 16              # == d_query == lsh_key_dim (the torch code implicitly requires this)
D_QUERY = 16
N_HEADS = 2
RANK = 8
RFF_DIM = 32
K_MAX = 4
LSH_BUCKETS = 1         # degenerate LSH: every key collides -> candidates are always [0..K_MAX-1]
LSH_BANDWIDTH = 4.0
LSH_KEY_DIM = 16
N_LSH_HASHES = 2
INTERMEDIATE_DIM = 64
USE_RFF = True
LN_EPS = 1e-5

OUT_PAD = 128           # lane-dense packed output width (mean|std|value|zero-pad)
POL_COLS = 2 * ACTION_DIM
TILE_B_MAX = 128        # max sequences per grid step (bound VMEM residency on v7x)


def optimized_sqrt(n: int) -> float:
    if n & (n - 1) == 0:
        k = n.bit_length() - 1
        return 2 ** (k / 2)
    return math.sqrt(n)


RFF_SCALE = math.sqrt(2.0 / RFF_DIM)
SIM_SCALE = optimized_sqrt(RFF_DIM) if USE_RFF else optimized_sqrt(D_KEY)


def _round_up(x: int, m: int) -> int:
    return (x + m - 1) // m * m


# -------------------------- fused Pallas kernel --------------------------
def _layernorm(x, g, b):
    mu = jnp.mean(x, axis=-1, keepdims=True)
    var = jnp.mean((x - mu) ** 2, axis=-1, keepdims=True)
    return (x - mu) * jax.lax.rsqrt(var + LN_EPS) * g + b


def _policy_kernel(state_ref, enc_w_ref, enc_b_ref,
                   ln1_g_ref, ln1_b_ref,
                   wqkv_ref, bqkv_ref,
                   omega_ref, rffb_ref,
                   w_av_ref, bo_ref,
                   ln2_g_ref, ln2_b_ref,
                   ffn_w1_ref, ffn_b1_ref, ffn_w2_ref, ffn_b2_ref,
                   hw1_ref, hb1_ref, hw2_ref, hb2_ref, hw3_ref, hb3_ref,
                   out_ref, *, tile_b):
    f32 = jnp.float32
    bl = tile_b * SEQ_LEN

    # ---- state encoder ----
    x0 = jnp.dot(state_ref[...], enc_w_ref[...], preferred_element_type=f32) + enc_b_ref[...]

    # ---- encoder layer: pre-norm + FastAttention ----
    xn = _layernorm(x0, ln1_g_ref[...], ln1_b_ref[...])

    # fused QKV projection: one MXU matmul, static lane slices below
    qkv = jnp.dot(xn, wqkv_ref[...], preferred_element_type=f32) + bqkv_ref[...]
    q_all = qkv[:, :N_HEADS * D_QUERY]                                        # (bl, 32)
    k_all = qkv[:, N_HEADS * D_QUERY:N_HEADS * (D_QUERY + D_KEY)]             # (bl, 32)
    v_all = qkv[:, N_HEADS * (D_QUERY + D_KEY):]                              # (bl, 32)

    # packed RFF across heads (block-diagonal omega): one matmul + one cos for Q and for K
    phi_q = jnp.cos(jnp.dot(q_all, omega_ref[...], preferred_element_type=f32)
                    + rffb_ref[...]) * RFF_SCALE                              # (bl, 2*rff)
    phi_k = jnp.cos(jnp.dot(k_all, omega_ref[...], preferred_element_type=f32)
                    + rffb_ref[...]) * RFF_SCALE                              # (bl, 2*rff)

    # Degenerate LSH (lsh_buckets == 1): every key collides, so each query's candidates are the
    # first K_MAX keys of its own sequence -> candidate-only (tile_b, L, K_MAX) scores.
    phi_q3 = phi_q.reshape(tile_b, SEQ_LEN, N_HEADS * RFF_DIM)
    phi_k3 = phi_k.reshape(tile_b, SEQ_LEN, N_HEADS * RFF_DIM)[:, :K_MAX, :]  # (tb, K, 2*rff)
    v_cand = v_all.reshape(tile_b, SEQ_LEN, N_HEADS * D_KEY)[:, :K_MAX, :]    # (tb, K, 2*dk)

    inv_scale = 1.0 / SIM_SCALE
    wcv_heads = []
    for h in range(N_HEADS):                                   # static unroll over heads
        pq = phi_q3[:, :, h * RFF_DIM:(h + 1) * RFF_DIM]       # (tb, L, rff)
        pk = phi_k3[:, :, h * RFF_DIM:(h + 1) * RFF_DIM]       # (tb, K, rff)
        vh = v_cand[:, :, h * D_KEY:(h + 1) * D_KEY]           # (tb, K, dk)

        s = jnp.einsum('blr,bkr->blk', pq, pk,
                       preferred_element_type=f32) * inv_scale                # (tb, L, K)
        m = jnp.max(s, axis=-1, keepdims=True)
        e = jnp.exp(s - m)
        w = e / jnp.sum(e, axis=-1, keepdims=True)             # exact softmax (parity w/ torch)

        wcv = jnp.einsum('blk,bkd->bld', w, vh, preferred_element_type=f32)   # (tb, L, dk)
        wcv_heads.append(wcv.reshape(bl, D_KEY))

    # constant-folded low-rank value path + output projection: [wcv_h0 | wcv_h1] @ (U·V·Wo)
    wcv_cat = jnp.concatenate(wcv_heads, axis=-1)                             # (bl, 32)
    attn = jnp.dot(wcv_cat, w_av_ref[...], preferred_element_type=f32) + bo_ref[...]
    x1 = x0 + attn

    # ---- FFN sub-layer ----
    xn2 = _layernorm(x1, ln2_g_ref[...], ln2_b_ref[...])
    hmid = jnp.maximum(jnp.dot(xn2, ffn_w1_ref[...], preferred_element_type=f32)
                       + ffn_b1_ref[...], 0.0)
    ffn = jnp.dot(hmid, ffn_w2_ref[...], preferred_element_type=f32) + ffn_b2_ref[...]
    x2 = x1 + ffn

    # ---- mean-pool over the sequence (free leading-dim reshape + sublane reduce) ----
    feat = jnp.mean(x2.reshape(tile_b, SEQ_LEN, D_MODEL), axis=1)             # (tb, d_model)

    # ---- fused policy + value heads (block-diagonal weights, lane-dense padded output) ----
    h1 = jnp.maximum(jnp.dot(feat, hw1_ref[...], preferred_element_type=f32) + hb1_ref[...], 0.0)
    h2 = jnp.maximum(jnp.dot(h1, hw2_ref[...], preferred_element_type=f32) + hb2_ref[...], 0.0)
    out = jnp.dot(h2, hw3_ref[...], preferred_element_type=f32) + hb3_ref[...]  # (tb, 128)

    # fused epilogue: std = exp(clip(log_std, -20, 2)) on the log_std lanes (EUP, free slot)
    lane = jax.lax.broadcasted_iota(jnp.int32, out.shape, 1)
    is_std = (lane >= ACTION_DIM) & (lane < POL_COLS)
    std_branch = jnp.exp(jnp.clip(out, -20.0, 2.0))
    out_ref[...] = jnp.where(is_std, std_branch, out).astype(out_ref.dtype)


# -------------------------- wrapper --------------------------
def policy_forward(p, state):
    # state: (batch*seq_len, state_dim) -- the 2-D path of the PyTorch forward
    bt, sd = state.shape
    assert sd == STATE_DIM
    assert bt % SEQ_LEN == 0, "number of state rows must be a multiple of seq_len"
    B = bt // SEQ_LEN

    if LSH_BUCKETS != 1 or SEQ_LEN < K_MAX:
        # TODO(synk): general data-dependent LSH candidate search (nonzero()/first-k fill) would
        #             need scalar-prefetch indices + in-kernel gather; only the degenerate
        #             lsh_buckets=1 config used here is fused.
        raise NotImplementedError("only the degenerate lsh_buckets=1 configuration is fused")

    f32 = jnp.float32
    row = lambda b: b.reshape(1, -1).astype(f32)

    # batch tiling: sublane-dense output rows, bounded VMEM per grid step, megacore-parallel
    tile_b = min(TILE_B_MAX, _round_up(B, 8))
    B_pad = _round_up(B, tile_b)
    grid = (B_pad // tile_b,)
    state_p = jnp.pad(state.astype(f32), ((0, (B_pad - B) * SEQ_LEN), (0, 0)))

    # fused QKV weights (one MXU matmul in-kernel)
    wqkv = jnp.concatenate([p["Wq"], p["Wk"], p["Wv"]], axis=1)               # (32, 96)
    bqkv = jnp.concatenate([p["bq"], p["bk"], p["bv"]])                       # (96,)

    # RFF packed across heads: block-diagonal omega + concatenated bias
    omega_blk = jnp.zeros((N_HEADS * D_KEY, N_HEADS * RFF_DIM), f32)
    for h in range(N_HEADS):
        omega_blk = omega_blk.at[h * D_KEY:(h + 1) * D_KEY,
                                 h * RFF_DIM:(h + 1) * RFF_DIM].set(p["rff_omega"][h])
    rffb = p["rff_bias"].reshape(1, N_HEADS * RFF_DIM)                        # (1, 64)

    # constant-fold low-rank + output projection: W_av = stack_h( U[h] @ V[h] @ Wo[h] )
    w_av = jnp.concatenate(
        [p["U"][h] @ p["V"][h] @ p["Wo"][h * D_MODEL:(h + 1) * D_MODEL, :]
         for h in range(N_HEADS)], axis=0)                                    # (32, 32)

    # policy & value heads packed block-diagonally; final layer padded to a lane-dense 128 slab:
    #   cols [0:6) = mean, [6:12) = std (exp'd in-kernel), col 12 = value, rest zero
    z = jnp.zeros((HIDDEN_DIM, HIDDEN_DIM), f32)
    hw1 = jnp.concatenate([p["pol_W1"], p["val_W1"]], axis=1)                 # (32, 64)
    hb1 = jnp.concatenate([p["pol_b1"], p["val_b1"]])                         # (64,)
    hw2 = jnp.concatenate([jnp.concatenate([p["pol_W2"], z], axis=1),
                           jnp.concatenate([z, p["val_W2"]], axis=1)], axis=0)  # (64, 64)
    hb2 = jnp.concatenate([p["pol_b2"], p["val_b2"]])                         # (64,)
    hw3 = jnp.concatenate(
        [jnp.pad(p["pol_W3"], ((0, 0), (0, OUT_PAD - POL_COLS))),
         jnp.pad(p["val_W3"], ((0, 0), (POL_COLS, OUT_PAD - POL_COLS - 1)))], axis=0)  # (64, 128)
    hb3 = (jnp.pad(p["pol_b3"], (0, OUT_PAD - POL_COLS)) +
           jnp.pad(p["val_b3"], (POL_COLS, OUT_PAD - POL_COLS - 1)))          # (128,)

    args = (state_p,
            p["enc_W"], row(p["enc_b"]),
            row(p["ln1_g"]), row(p["ln1_b"]),
            wqkv, row(bqkv),
            omega_blk, rffb,
            w_av, row(p["bo"]),
            row(p["ln2_g"]), row(p["ln2_b"]),
            p["ffn_W1"], row(p["ffn_b1"]), p["ffn_W2"], row(p["ffn_b2"]),
            hw1, row(hb1), hw2, row(hb2), hw3, row(hb3))

    def _resident_spec(a):
        # whole weight stays VMEM-resident across the batch grid (block index never changes)
        return pl.BlockSpec(a.shape, lambda i: (0,) * a.ndim)

    state_spec = pl.BlockSpec((tile_b * SEQ_LEN, STATE_DIM), lambda i: (i, 0))
    out_spec = pl.BlockSpec((tile_b, OUT_PAD), lambda i: (i, 0))

    # rough cost estimate (lets XLA schedule around the custom call)
    bl_tot = B_pad * SEQ_LEN
    qkv_cols = N_HEADS * (D_QUERY + 2 * D_KEY)
    flops = 2 * bl_tot * (
        STATE_DIM * D_MODEL
        + D_MODEL * qkv_cols
        + 2 * (N_HEADS * D_QUERY) * (N_HEADS * RFF_DIM)
        + N_HEADS * K_MAX * RFF_DIM
        + N_HEADS * K_MAX * D_KEY
        + (N_HEADS * D_KEY) * D_MODEL
        + 2 * D_MODEL * INTERMEDIATE_DIM)
    flops += 2 * B_pad * (D_MODEL * 2 * HIDDEN_DIM
                          + (2 * HIDDEN_DIM) * (2 * HIDDEN_DIM)
                          + (2 * HIDDEN_DIM) * OUT_PAD)
    transcendentals = bl_tot * (2 * N_HEADS * RFF_DIM + N_HEADS * K_MAX) + B_pad * OUT_PAD
    bytes_accessed = sum(int(a.size) * a.dtype.itemsize for a in args) + B_pad * OUT_PAD * 4

    out = pl.pallas_call(
        functools.partial(_policy_kernel, tile_b=tile_b),
        out_shape=jax.ShapeDtypeStruct((B_pad, OUT_PAD), f32),
        grid=grid,
        in_specs=[state_spec] + [_resident_spec(a) for a in args[1:]],
        out_specs=out_spec,
        compiler_params=pltpu.CompilerParams(
            dimension_semantics=("parallel",),
            vmem_limit_bytes=32 * 1024 * 1024),
        cost_estimate=pl.CostEstimate(flops=int(flops),
                                      transcendentals=int(transcendentals),
                                      bytes_accessed=int(bytes_accessed)),
    )(*args)

    mean = out[:B, :ACTION_DIM]
    std = out[:B, ACTION_DIM:POL_COLS]
    value = out[:B, POL_COLS]
    return mean, std, value


# -------------------------- deterministic parameter init --------------------------
def init_params(key):
    p = {}

    def nxt():
        nonlocal key
        key, sub = jax.random.split(key)
        return sub

    def lin(fan_in, fan_out):
        w = jax.random.normal(nxt(), (fan_in, fan_out), jnp.float32) / math.sqrt(fan_in)
        b = jnp.zeros((fan_out,), jnp.float32)
        return w, b

    p["enc_W"], p["enc_b"] = lin(STATE_DIM, D_MODEL)
    p["Wq"], p["bq"] = lin(D_MODEL, D_QUERY * N_HEADS)
    p["Wk"], p["bk"] = lin(D_MODEL, D_KEY * N_HEADS)
    p["Wv"], p["bv"] = lin(D_MODEL, D_KEY * N_HEADS)
    p["Wo"], p["bo"] = lin(D_MODEL * N_HEADS, D_MODEL)
    p["U"] = jax.random.normal(nxt(), (N_HEADS, D_KEY, RANK), jnp.float32) * 0.02
    p["V"] = jax.random.normal(nxt(), (N_HEADS, RANK, D_MODEL), jnp.float32) * 0.02
    p["rff_omega"] = jax.random.normal(nxt(), (N_HEADS, D_KEY, RFF_DIM), jnp.float32)
    p["rff_bias"] = jax.random.uniform(nxt(), (N_HEADS, RFF_DIM), jnp.float32) * 2.0 * math.pi
    p["lsh_rv"] = jax.random.normal(nxt(), (N_HEADS, LSH_KEY_DIM, N_LSH_HASHES), jnp.float32)
    p["ln1_g"] = jnp.ones((D_MODEL,), jnp.float32)
    p["ln1_b"] = jnp.zeros((D_MODEL,), jnp.float32)
    p["ln2_g"] = jnp.ones((D_MODEL,), jnp.float32)
    p["ln2_b"] = jnp.zeros((D_MODEL,), jnp.float32)
    p["ffn_W1"], p["ffn_b1"] = lin(D_MODEL, INTERMEDIATE_DIM)
    p["ffn_W2"], p["ffn_b2"] = lin(INTERMEDIATE_DIM, D_MODEL)
    p["pol_W1"], p["pol_b1"] = lin(D_MODEL, HIDDEN_DIM)
    p["pol_W2"], p["pol_b2"] = lin(HIDDEN_DIM, HIDDEN_DIM)
    p["pol_W3"], p["pol_b3"] = lin(HIDDEN_DIM, 2 * ACTION_DIM)
    p["val_W1"], p["val_b1"] = lin(D_MODEL, HIDDEN_DIM)
    p["val_W2"], p["val_b2"] = lin(HIDDEN_DIM, HIDDEN_DIM)
    p["val_W3"], p["val_b3"] = lin(HIDDEN_DIM, 1)
    return p


if __name__ == "__main__":
    root = jax.random.PRNGKey(0)
    pkey, xkey = jax.random.split(root)
    params = init_params(pkey)
    state = jax.random.normal(xkey, (2 * SEQ_LEN, STATE_DIM), jnp.float32)  # batch=2 sequences of len 8

    fwd = jax.jit(policy_forward)
    mean, std, value = fwd(params, state)
    jax.block_until_ready((mean, std, value))

    assert mean.shape == (2, ACTION_DIM)
    assert std.shape == (2, ACTION_DIM)
    assert value.shape == (2,)
    assert bool(jnp.all(jnp.isfinite(mean)))
    assert bool(jnp.all(jnp.isfinite(std)))
    assert bool(jnp.all(jnp.all(std > 0.0)))
    assert bool(jnp.all(jnp.isfinite(value)))
    print("KERNEL_OK")
</pallas_src>

<mosaic_0001>
module attributes {stable_mosaic.version = 11 : i64} {
  func.func @_policy_kernel(%arg0: i32, %arg1: memref<64x20xf32, #tpu.memory_space<vmem>>, %arg2: memref<20x32xf32, #tpu.memory_space<vmem>>, %arg3: memref<1x32xf32, #tpu.memory_space<vmem>>, %arg4: memref<1x32xf32, #tpu.memory_space<vmem>>, %arg5: memref<1x32xf32, #tpu.memory_space<vmem>>, %arg6: memref<32x96xf32, #tpu.memory_space<vmem>>, %arg7: memref<1x96xf32, #tpu.memory_space<vmem>>, %arg8: memref<32x64xf32, #tpu.memory_space<vmem>>, %arg9: memref<1x64xf32, #tpu.memory_space<vmem>>, %arg10: memref<32x32xf32, #tpu.memory_space<vmem>>, %arg11: memref<1x32xf32, #tpu.memory_space<vmem>>, %arg12: memref<1x32xf32, #tpu.memory_space<vmem>>, %arg13: memref<1x32xf32, #tpu.memory_space<vmem>>, %arg14: memref<32x64xf32, #tpu.memory_space<vmem>>, %arg15: memref<1x64xf32, #tpu.memory_space<vmem>>, %arg16: memref<64x32xf32, #tpu.memory_space<vmem>>, %arg17: memref<1x32xf32, #tpu.memory_space<vmem>>, %arg18: memref<32x64xf32, #tpu.memory_space<vmem>>, %arg19: memref<1x64xf32, #tpu.memory_space<vmem>>, %arg20: memref<64x64xf32, #tpu.memory_space<vmem>>, %arg21: memref<1x64xf32, #tpu.memory_space<vmem>>, %arg22: memref<64x128xf32, #tpu.memory_space<vmem>>, %arg23: memref<1x128xf32, #tpu.memory_space<vmem>>, %arg24: memref<8x128xf32, #tpu.memory_space<vmem>>) attributes {dimension_semantics = [#tpu.dimension_semantics<parallel>], iteration_bounds = array<i64: 1>, scalar_prefetch = 0 : i64, scratch_operands = 0 : i64, tpu.core_type = #tpu.core_type<tc>, window_params = [{transform_indices = @transform_0, window_bounds = array<i64: 64, 20>}, {pipeline_mode = #tpu.pipeline_mode<synchronous>, transform_indices = @transform_1, window_bounds = array<i64: 20, 32>}, {pipeline_mode = #tpu.pipeline_mode<synchronous>, transform_indices = @transform_2, window_bounds = array<i64: 1, 32>}, {pipeline_mode = #tpu.pipeline_mode<synchronous>, transform_indices = @transform_3, window_bounds = array<i64: 1, 32>}, {pipeline_mode = #tpu.pipeline_mode<synchronous>, transform_indices = @transform_4, window_bounds = array<i64: 1, 32>}, {pipeline_mode = #tpu.pipeline_mode<synchronous>, transform_indices = @transform_5, window_bounds = array<i64: 32, 96>}, {pipeline_mode = #tpu.pipeline_mode<synchronous>, transform_indices = @transform_6, window_bounds = array<i64: 1, 96>}, {pipeline_mode = #tpu.pipeline_mode<synchronous>, transform_indices = @transform_7, window_bounds = array<i64: 32, 64>}, {pipeline_mode = #tpu.pipeline_mode<synchronous>, transform_indices = @transform_8, window_bounds = array<i64: 1, 64>}, {pipeline_mode = #tpu.pipeline_mode<synchronous>, transform_indices = @transform_9, window_bounds = array<i64: 32, 32>}, {pipeline_mode = #tpu.pipeline_mode<synchronous>, transform_indices = @transform_10, window_bounds = array<i64: 1, 32>}, {pipeline_mode = #tpu.pipeline_mode<synchronous>, transform_indices = @transform_11, window_bounds = array<i64: 1, 32>}, {pipeline_mode = #tpu.pipeline_mode<synchronous>, transform_indices = @transform_12, window_bounds = array<i64: 1, 32>}, {pipeline_mode = #tpu.pipeline_mode<synchronous>, transform_indices = @transform_13, window_bounds = array<i64: 32, 64>}, {pipeline_mode = #tpu.pipeline_mode<synchronous>, transform_indices = @transform_14, window_bounds = array<i64: 1, 64>}, {pipeline_mode = #tpu.pipeline_mode<synchronous>, transform_indices = @transform_15, window_bounds = array<i64: 64, 32>}, {pipeline_mode = #tpu.pipeline_mode<synchronous>, transform_indices = @transform_16, window_bounds = array<i64: 1, 32>}, {pipeline_mode = #tpu.pipeline_mode<synchronous>, transform_indices = @transform_17, window_bounds = array<i64: 32, 64>}, {pipeline_mode = #tpu.pipeline_mode<synchronous>, transform_indices = @transform_18, window_bounds = array<i64: 1, 64>}, {pipeline_mode = #tpu.pipeline_mode<synchronous>, transform_indices = @transform_19, window_bounds = array<i64: 64, 64>}, {pipeline_mode = #tpu.pipeline_mode<synchronous>, transform_indices = @transform_20, window_bounds = array<i64: 1, 64>}, {pipeline_mode = #tpu.pipeline_mode<synchronous>, transform_indices = @transform_21, window_bounds = array<i64: 64, 128>}, {pipeline_mode = #tpu.pipeline_mode<synchronous>, transform_indices = @transform_22, window_bounds = array<i64: 1, 128>}, {transform_indices = @transform_23, window_bounds = array<i64: 8, 128>}]} {
    %c0 = arith.constant 0 : index
    %c0_0 = arith.constant 0 : index
    %0 = vector.load %arg1[%c0, %c0_0] : memref<64x20xf32, #tpu.memory_space<vmem>>, vector<64x20xf32>
    %c0_1 = arith.constant 0 : index
    %c0_2 = arith.constant 0 : index
    %1 = vector.load %arg2[%c0_1, %c0_2] : memref<20x32xf32, #tpu.memory_space<vmem>>, vector<20x32xf32>
    %cst = arith.constant dense<0.000000e+00> : vector<64x32xf32>
    %2 = tpu.matmul %0, %1, %cst {dimension_numbers = #tpu.dot_dimension_numbers<[1], [0], [0], [1], [0, 0, 1, 1], [], []>} : vector<64x20xf32>, vector<20x32xf32>, vector<64x32xf32> -> vector<64x32xf32>
    %c0_3 = arith.constant 0 : index
    %c0_4 = arith.constant 0 : index
    %3 = vector.load %arg3[%c0_3, %c0_4] : memref<1x32xf32, #tpu.memory_space<vmem>>, vector<1x32xf32>
    %4 = vector.broadcast %3 : vector<1x32xf32> to vector<64x32xf32>
    %5 = arith.addf %2, %4 : vector<64x32xf32>
    %c0_5 = arith.constant 0 : index
    %c0_6 = arith.constant 0 : index
    %6 = vector.load %arg4[%c0_5, %c0_6] : memref<1x32xf32, #tpu.memory_space<vmem>>, vector<1x32xf32>
    %c0_7 = arith.constant 0 : index
    %c0_8 = arith.constant 0 : index
    %7 = vector.load %arg5[%c0_7, %c0_8] : memref<1x32xf32, #tpu.memory_space<vmem>>, vector<1x32xf32>
    %cst_9 = arith.constant dense<0.000000e+00> : vector<64xf32>
    %8 = vector.multi_reduction <add>, %5, %cst_9 [1] : vector<64x32xf32> to vector<64xf32>
    %9 = vector.shape_cast %8 : vector<64xf32> to vector<64x1xf32>
    %cst_10 = arith.constant 3.200000e+01 : f32
    %10 = vector.broadcast %cst_10 : f32 to vector<64x1xf32>
    %11 = arith.divf %9, %10 : vector<64x1xf32>
    %12 = vector.broadcast %11 : vector<64x1xf32> to vector<64x32xf32>
    %13 = arith.subf %5, %12 : vector<64x32xf32>
    %14 = arith.mulf %13, %13 : vector<64x32xf32>
    %cst_11 = arith.constant dense<0.000000e+00> : vector<64xf32>
    %15 = vector.multi_reduction <add>, %14, %cst_11 [1] : vector<64x32xf32> to vector<64xf32>
    %16 = vector.shape_cast %15 : vector<64xf32> to vector<64x1xf32>
    %cst_12 = arith.constant 3.200000e+01 : f32
    %17 = vector.broadcast %cst_12 : f32 to vector<64x1xf32>
    %18 = arith.divf %16, %17 : vector<64x1xf32>
    %19 = vector.broadcast %11 : vector<64x1xf32> to vector<64x32xf32>
    %20 = arith.subf %5, %19 : vector<64x32xf32>
    %cst_13 = arith.constant 9.99999974E-6 : f32
    %21 = vector.broadcast %cst_13 : f32 to vector<64x1xf32>
    %22 = arith.addf %18, %21 : vector<64x1xf32>
    %23 = math.rsqrt %22 : vector<64x1xf32>
    %24 = vector.broadcast %23 : vector<64x1xf32> to vector<64x32xf32>
    %25 = arith.mulf %20, %24 : vector<64x32xf32>
    %26 = vector.broadcast %6 : vector<1x32xf32> to vector<64x32xf32>
    %27 = arith.mulf %25, %26 : vector<64x32xf32>
    %28 = vector.broadcast %7 : vector<1x32xf32> to vector<64x32xf32>
    %29 = arith.addf %27, %28 : vector<64x32xf32>
    %c0_14 = arith.constant 0 : index
    %c0_15 = arith.constant 0 : index
    %30 = vector.load %arg6[%c0_14, %c0_15] : memref<32x96xf32, #tpu.memory_space<vmem>>, vector<32x96xf32>
    %cst_16 = arith.constant dense<0.000000e+00> : vector<64x96xf32>
    %31 = tpu.matmul %29, %30, %cst_16 {dimension_numbers = #tpu.dot_dimension_numbers<[1], [0], [0], [1], [0, 0, 1, 1], [], []>} : vector<64x32xf32>, vector<32x96xf32>, vector<64x96xf32> -> vector<64x96xf32>
    %c0_17 = arith.constant 0 : index
    %c0_18 = arith.constant 0 : index
    %32 = vector.load %arg7[%c0_17, %c0_18] : memref<1x96xf32, #tpu.memory_space<vmem>>, vector<1x96xf32>
    %33 = vector.broadcast %32 : vector<1x96xf32> to vector<64x96xf32>
    %34 = arith.addf %31, %33 : vector<64x96xf32>
    %35 = vector.extract_strided_slice %34 {offsets = [0, 0], sizes = [64, 32], strides = [1, 1]} : vector<64x96xf32> to vector<64x32xf32>
    %36 = vector.extract_strided_slice %34 {offsets = [0, 32], sizes = [64, 32], strides = [1, 1]} : vector<64x96xf32> to vector<64x32xf32>
    %37 = vector.extract_strided_slice %34 {offsets = [0, 64], sizes = [64, 32], strides = [1, 1]} : vector<64x96xf32> to vector<64x32xf32>
    %c0_19 = arith.constant 0 : index
    %c0_20 = arith.constant 0 : index
    %38 = vector.load %arg8[%c0_19, %c0_20] : memref<32x64xf32, #tpu.memory_space<vmem>>, vector<32x64xf32>
    %cst_21 = arith.constant dense<0.000000e+00> : vector<64x64xf32>
    %39 = tpu.matmul %35, %38, %cst_21 {dimension_numbers = #tpu.dot_dimension_numbers<[1], [0], [0], [1], [0, 0, 1, 1], [], []>} : vector<64x32xf32>, vector<32x64xf32>, vector<64x64xf32> -> vector<64x64xf32>
    %c0_22 = arith.constant 0 : index
    %c0_23 = arith.constant 0 : index
    %40 = vector.load %arg9[%c0_22, %c0_23] : memref<1x64xf32, #tpu.memory_space<vmem>>, vector<1x64xf32>
    %41 = vector.broadcast %40 : vector<1x64xf32> to vector<64x64xf32>
    %42 = arith.addf %39, %41 : vector<64x64xf32>
    %43 = math.cos %42 : vector<64x64xf32>
    %cst_24 = arith.constant 2.500000e-01 : f32
    %44 = vector.broadcast %cst_24 : f32 to vector<64x64xf32>
    %45 = arith.mulf %43, %44 : vector<64x64xf32>
    %c0_25 = arith.constant 0 : index
    %c0_26 = arith.constant 0 : index
    %46 = vector.load %arg8[%c0_25, %c0_26] : memref<32x64xf32, #tpu.memory_space<vmem>>, vector<32x64xf32>
    %cst_27 = arith.constant dense<0.000000e+00> : vector<64x64xf32>
    %47 = tpu.matmul %36, %46, %cst_27 {dimension_numbers = #tpu.dot_dimension_numbers<[1], [0], [0], [1], [0, 0, 1, 1], [], []>} : vector<64x32xf32>, vector<32x64xf32>, vector<64x64xf32> -> vector<64x64xf32>
    %c0_28 = arith.constant 0 : index
    %c0_29 = arith.constant 0 : index
    %48 = vector.load %arg9[%c0_28, %c0_29] : memref<1x64xf32, #tpu.memory_space<vmem>>, vector<1x64xf32>
    %49 = vector.broadcast %48 : vector<1x64xf32> to vector<64x64xf32>
    %50 = arith.addf %47, %49 : vector<64x64xf32>
    %51 = math.cos %50 : vector<64x64xf32>
    %cst_30 = arith.constant 2.500000e-01 : f32
    %52 = vector.broadcast %cst_30 : f32 to vector<64x64xf32>
    %53 = arith.mulf %51, %52 : vector<64x64xf32>
    %54 = vector.shape_cast %45 : vector<64x64xf32> to vector<8x8x64xf32>
    %55 = vector.shape_cast %53 : vector<64x64xf32> to vector<8x8x64xf32>
    %56 = vector.extract_strided_slice %55 {offsets = [0, 0, 0], sizes = [8, 4, 64], strides = [1, 1, 1]} : vector<8x8x64xf32> to vector<8x4x64xf32>
    %57 = vector.shape_cast %37 : vector<64x32xf32> to vector<8x8x32xf32>
    %58 = vector.extract_strided_slice %57 {offsets = [0, 0, 0], sizes = [8, 4, 32], strides = [1, 1, 1]} : vector<8x8x32xf32> to vector<8x4x32xf32>
    %59 = vector.extract_strided_slice %54 {offsets = [0, 0, 0], sizes = [8, 8, 32], strides = [1, 1, 1]} : vector<8x8x64xf32> to vector<8x8x32xf32>
    %60 = vector.extract_strided_slice %56 {offsets = [0, 0, 0], sizes = [8, 4, 32], strides = [1, 1, 1]} : vector<8x4x64xf32> to vector<8x4x32xf32>
    %61 = vector.extract_strided_slice %58 {offsets = [0, 0, 0], sizes = [8, 4, 16], strides = [1, 1, 1]} : vector<8x4x32xf32> to vector<8x4x16xf32>
    "tpu.trace_start"() <{level = 10 : i32, message = "blr,bkr->blk"}> : () -> ()
    %cst_31 = arith.constant dense<0.000000e+00> : vector<8x8x4xf32>
    %62 = tpu.matmul %59, %60, %cst_31 {dimension_numbers = #tpu.dot_dimension_numbers<[2], [2], [1], [1], [0, 0, 0, 1, 1, 1], [0], [0]>} : vector<8x8x32xf32>, vector<8x4x32xf32>, vector<8x8x4xf32> -> vector<8x8x4xf32>
    "tpu.trace_stop"() : () -> ()
    %cst_32 = arith.constant 0.176776692 : f32
    %63 = vector.broadcast %cst_32 : f32 to vector<8x8x4xf32>
    %64 = arith.mulf %62, %63 : vector<8x8x4xf32>
    %cst_33 = arith.constant dense<0xFF800000> : vector<8x8xf32>
    %65 = vector.multi_reduction <maximumf>, %64, %cst_33 [2] : vector<8x8x4xf32> to vector<8x8xf32>
    %66 = vector.shape_cast %65 : vector<8x8xf32> to vector<8x8x1xf32>
    %67 = vector.broadcast %66 : vector<8x8x1xf32> to vector<8x8x4xf32>
    %68 = arith.subf %64, %67 : vector<8x8x4xf32>
    %69 = math.exp %68 : vector<8x8x4xf32>
    %cst_34 = arith.constant dense<0.000000e+00> : vector<8x8xf32>
    %70 = vector.multi_reduction <add>, %69, %cst_34 [2] : vector<8x8x4xf32> to vector<8x8xf32>
    %71 = vector.shape_cast %70 : vector<8x8xf32> to vector<8x8x1xf32>
    %72 = vector.broadcast %71 : vector<8x8x1xf32> to vector<8x8x4xf32>
    %73 = arith.divf %69, %72 : vector<8x8x4xf32>
    "tpu.trace_start"() <{level = 10 : i32, message = "blk,bkd->bld"}> : () -> ()
    %cst_35 = arith.constant dense<0.000000e+00> : vector<8x8x16xf32>
    %74 = tpu.matmul %73, %61, %cst_35 {dimension_numbers = #tpu.dot_dimension_numbers<[2], [1], [1], [2], [0, 0, 0, 1, 1, 2], [0], [0]>} : vector<8x8x4xf32>, vector<8x4x16xf32>, vector<8x8x16xf32> -> vector<8x8x16xf32>
    "tpu.trace_stop"() : () -> ()
    %75 = vector.shape_cast %74 : vector<8x8x16xf32> to vector<64x16xf32>
    %76 = vector.extract_strided_slice %54 {offsets = [0, 0, 32], sizes = [8, 8, 32], strides = [1, 1, 1]} : vector<8x8x64xf32> to vector<8x8x32xf32>
    %77 = vector.extract_strided_slice %56 {offsets = [0, 0, 32], sizes = [8, 4, 32], strides = [1, 1, 1]} : vector<8x4x64xf32> to vector<8x4x32xf32>
    %78 = vector.extract_strided_slice %58 {offsets = [0, 0, 16], sizes = [8, 4, 16], strides = [1, 1, 1]} : vector<8x4x32xf32> to vector<8x4x16xf32>
    "tpu.trace_start"() <{level = 10 : i32, message = "blr,bkr->blk"}> : () -> ()
    %cst_36 = arith.constant dense<0.000000e+00> : vector<8x8x4xf32>
    %79 = tpu.matmul %76, %77, %cst_36 {dimension_numbers = #tpu.dot_dimension_numbers<[2], [2], [1], [1], [0, 0, 0, 1, 1, 1], [0], [0]>} : vector<8x8x32xf32>, vector<8x4x32xf32>, vector<8x8x4xf32> -> vector<8x8x4xf32>
    "tpu.trace_stop"() : () -> ()
    %cst_37 = arith.constant 0.176776692 : f32
    %80 = vector.broadcast %cst_37 : f32 to vector<8x8x4xf32>
    %81 = arith.mulf %79, %80 : vector<8x8x4xf32>
    %cst_38 = arith.constant dense<0xFF800000> : vector<8x8xf32>
    %82 = vector.multi_reduction <maximumf>, %81, %cst_38 [2] : vector<8x8x4xf32> to vector<8x8xf32>
    %83 = vector.shape_cast %82 : vector<8x8xf32> to vector<8x8x1xf32>
    %84 = vector.broadcast %83 : vector<8x8x1xf32> to vector<8x8x4xf32>
    %85 = arith.subf %81, %84 : vector<8x8x4xf32>
    %86 = math.exp %85 : vector<8x8x4xf32>
    %cst_39 = arith.constant dense<0.000000e+00> : vector<8x8xf32>
    %87 = vector.multi_reduction <add>, %86, %cst_39 [2] : vector<8x8x4xf32> to vector<8x8xf32>
    %88 = vector.shape_cast %87 : vector<8x8xf32> to vector<8x8x1xf32>
    %89 = vector.broadcast %88 : vector<8x8x1xf32> to vector<8x8x4xf32>
    %90 = arith.divf %86, %89 : vector<8x8x4xf32>
    "tpu.trace_start"() <{level = 10 : i32, message = "blk,bkd->bld"}> : () -> ()
    %cst_40 = arith.constant dense<0.000000e+00> : vector<8x8x16xf32>
    %91 = tpu.matmul %90, %78, %cst_40 {dimension_numbers = #tpu.dot_dimension_numbers<[2], [1], [1], [2], [0, 0, 0, 1, 1, 2], [0], [0]>} : vector<8x8x4xf32>, vector<8x4x16xf32>, vector<8x8x16xf32> -> vector<8x8x16xf32>
    "tpu.trace_stop"() : () -> ()
    %92 = vector.shape_cast %91 : vector<8x8x16xf32> to vector<64x16xf32>
    %93 = tpu.concatenate %75, %92 in 1 : vector<64x16xf32>, vector<64x16xf32> -> vector<64x32xf32>
    %c0_41 = arith.constant 0 : index
    %c0_42 = arith.constant 0 : index
    %94 = vector.load %arg10[%c0_41, %c0_42] : memref<32x32xf32, #tpu.memory_space<vmem>>, vector<32x32xf32>
    %cst_43 = arith.constant dense<0.000000e+00> : vector<64x32xf32>
    %95 = tpu.matmul %93, %94, %cst_43 {dimension_numbers = #tpu.dot_dimension_numbers<[1], [0], [0], [1], [0, 0, 1, 1], [], []>} : vector<64x32xf32>, vector<32x32xf32>, vector<64x32xf32> -> vector<64x32xf32>
    %c0_44 = arith.constant 0 : index
    %c0_45 = arith.constant 0 : index
    %96 = vector.load %arg11[%c0_44, %c0_45] : memref<1x32xf32, #tpu.memory_space<vmem>>, vector<1x32xf32>
    %97 = vector.broadcast %96 : vector<1x32xf32> to vector<64x32xf32>
    %98 = arith.addf %95, %97 : vector<64x32xf32>
    %99 = arith.addf %5, %98 : vector<64x32xf32>
    %c0_46 = arith.constant 0 : index
    %c0_47 = arith.constant 0 : index
    %100 = vector.load %arg12[%c0_46, %c0_47] : memref<1x32xf32, #tpu.memory_space<vmem>>, vector<1x32xf32>
    %c0_48 = arith.constant 0 : index
    %c0_49 = arith.constant 0 : index
    %101 = vector.load %arg13[%c0_48, %c0_49] : memref<1x32xf32, #tpu.memory_space<vmem>>, vector<1x32xf32>
    %cst_50 = arith.constant dense<0.000000e+00> : vector<64xf32>
    %102 = vector.multi_reduction <add>, %99, %cst_50 [1] : vector<64x32xf32> to vector<64xf32>
    %103 = vector.shape_cast %102 : vector<64xf32> to vector<64x1xf32>
    %cst_51 = arith.constant 3.200000e+01 : f32
    %104 = vector.broadcast %cst_51 : f32 to vector<64x1xf32>
    %105 = arith.divf %103, %104 : vector<64x1xf32>
    %106 = vector.broadcast %105 : vector<64x1xf32> to vector<64x32xf32>
    %107 = arith.subf %99, %106 : vector<64x32xf32>
    %108 = arith.mulf %107, %107 : vector<64x32xf32>
    %cst_52 = arith.constant dense<0.000000e+00> : vector<64xf32>
    %109 = vector.multi_reduction <add>, %108, %cst_52 [1] : vector<64x32xf32> to vector<64xf32>
    %110 = vector.shape_cast %109 : vector<64xf32> to vector<64x1xf32>
    %cst_53 = arith.constant 3.200000e+01 : f32
    %111 = vector.broadcast %cst_53 : f32 to vector<64x1xf32>
    %112 = arith.divf %110, %111 : vector<64x1xf32>
    %113 = vector.broadcast %105 : vector<64x1xf32> to vector<64x32xf32>
    %114 = arith.subf %99, %113 : vector<64x32xf32>
    %cst_54 = arith.constant 9.99999974E-6 : f32
    %115 = vector.broadcast %cst_54 : f32 to vector<64x1xf32>
    %116 = arith.addf %112, %115 : vector<64x1xf32>
    %117 = math.rsqrt %116 : vector<64x1xf32>
    %118 = vector.broadcast %117 : vector<64x1xf32> to vector<64x32xf32>
    %119 = arith.mulf %114, %118 : vector<64x32xf32>
    %120 = vector.broadcast %100 : vector<1x32xf32> to vector<64x32xf32>
    %121 = arith.mulf %119, %120 : vector<64x32xf32>
    %122 = vector.broadcast %101 : vector<1x32xf32> to vector<64x32xf32>
    %123 = arith.addf %121, %122 : vector<64x32xf32>
    %c0_55 = arith.constant 0 : index
    %c0_56 = arith.constant 0 : index
    %124 = vector.load %arg14[%c0_55, %c0_56] : memref<32x64xf32, #tpu.memory_space<vmem>>, vector<32x64xf32>
    %cst_57 = arith.constant dense<0.000000e+00> : vector<64x64xf32>
    %125 = tpu.matmul %123, %124, %cst_57 {dimension_numbers = #tpu.dot_dimension_numbers<[1], [0], [0], [1], [0, 0, 1, 1], [], []>} : vector<64x32xf32>, vector<32x64xf32>, vector<64x64xf32> -> vector<64x64xf32>
    %c0_58 = arith.constant 0 : index
    %c0_59 = arith.constant 0 : index
    %126 = vector.load %arg15[%c0_58, %c0_59] : memref<1x64xf32, #tpu.memory_space<vmem>>, vector<1x64xf32>
    %127 = vector.broadcast %126 : vector<1x64xf32> to vector<64x64xf32>
    %128 = arith.addf %125, %127 : vector<64x64xf32>
    %cst_60 = arith.constant 0.000000e+00 : f32
    %129 = vector.broadcast %cst_60 : f32 to vector<64x64xf32>
    %130 = arith.maximumf %128, %129 : vector<64x64xf32>
    %c0_61 = arith.constant 0 : index
    %c0_62 = arith.constant 0 : index
    %131 = vector.load %arg16[%c0_61, %c0_62] : memref<64x32xf32, #tpu.memory_space<vmem>>, vector<64x32xf32>
    %cst_63 = arith.constant dense<0.000000e+00> : vector<64x32xf32>
    %132 = tpu.matmul %130, %131, %cst_63 {dimension_numbers = #tpu.dot_dimension_numbers<[1], [0], [0], [1], [0, 0, 1, 1], [], []>} : vector<64x64xf32>, vector<64x32xf32>, vector<64x32xf32> -> vector<64x32xf32>
    %c0_64 = arith.constant 0 : index
    %c0_65 = arith.constant 0 : index
    %133 = vector.load %arg17[%c0_64, %c0_65] : memref<1x32xf32, #tpu.memory_space<vmem>>, vector<1x32xf32>
    %134 = vector.broadcast %133 : vector<1x32xf32> to vector<64x32xf32>
    %135 = arith.addf %132, %134 : vector<64x32xf32>
    %136 = arith.addf %99, %135 : vector<64x32xf32>
    %137 = vector.shape_cast %136 : vector<64x32xf32> to vector<8x8x32xf32>
    %cst_66 = arith.constant dense<0.000000e+00> : vector<8x32xf32>
    %138 = vector.multi_reduction <add>, %137, %cst_66 [1] : vector<8x8x32xf32> to vector<8x32xf32>
    %cst_67 = arith.constant 8.000000e+00 : f32
    %139 = vector.broadcast %cst_67 : f32 to vector<8x32xf32>
    %140 = arith.divf %138, %139 : vector<8x32xf32>
    %c0_68 = arith.constant 0 : index
    %c0_69 = arith.constant 0 : index
    %141 = vector.load %arg18[%c0_68, %c0_69] : memref<32x64xf32, #tpu.memory_space<vmem>>, vector<32x64xf32>
    %cst_70 = arith.constant dense<0.000000e+00> : vector<8x64xf32>
    %142 = tpu.matmul %140, %141, %cst_70 {dimension_numbers = #tpu.dot_dimension_numbers<[1], [0], [0], [1], [0, 0, 1, 1], [], []>} : vector<8x32xf32>, vector<32x64xf32>, vector<8x64xf32> -> vector<8x64xf32>
    %c0_71 = arith.constant 0 : index
    %c0_72 = arith.constant 0 : index
    %143 = vector.load %arg19[%c0_71, %c0_72] : memref<1x64xf32, #tpu.memory_space<vmem>>, vector<1x64xf32>
    %144 = vector.broadcast %143 : vector<1x64xf32> to vector<8x64xf32>
    %145 = arith.addf %142, %144 : vector<8x64xf32>
    %cst_73 = arith.constant 0.000000e+00 : f32
    %146 = vector.broadcast %cst_73 : f32 to vector<8x64xf32>
    %147 = arith.maximumf %145, %146 : vector<8x64xf32>
    %c0_74 = arith.constant 0 : index
    %c0_75 = arith.constant 0 : index
    %148 = vector.load %arg20[%c0_74, %c0_75] : memref<64x64xf32, #tpu.memory_space<vmem>>, vector<64x64xf32>
    %cst_76 = arith.constant dense<0.000000e+00> : vector<8x64xf32>
    %149 = tpu.matmul %147, %148, %cst_76 {dimension_numbers = #tpu.dot_dimension_numbers<[1], [0], [0], [1], [0, 0, 1, 1], [], []>} : vector<8x64xf32>, vector<64x64xf32>, vector<8x64xf32> -> vector<8x64xf32>
    %c0_77 = arith.constant 0 : index
    %c0_78 = arith.constant 0 : index
    %150 = vector.load %arg21[%c0_77, %c0_78] : memref<1x64xf32, #tpu.memory_space<vmem>>, vector<1x64xf32>
    %151 = vector.broadcast %150 : vector<1x64xf32> to vector<8x64xf32>
    %152 = arith.addf %149, %151 : vector<8x64xf32>
    %cst_79 = arith.constant 0.000000e+00 : f32
    %153 = vector.broadcast %cst_79 : f32 to vector<8x64xf32>
    %154 = arith.maximumf %152, %153 : vector<8x64xf32>
    %c0_80 = arith.constant 0 : index
    %c0_81 = arith.constant 0 : index
    %155 = vector.load %arg22[%c0_80, %c0_81] : memref<64x128xf32, #tpu.memory_space<vmem>>, vector<64x128xf32>
    %cst_82 = arith.constant dense<0.000000e+00> : vector<8x128xf32>
    %156 = tpu.matmul %154, %155, %cst_82 {dimension_numbers = #tpu.dot_dimension_numbers<[1], [0], [0], [1], [0, 0, 1, 1], [], []>} : vector<8x64xf32>, vector<64x128xf32>, vector<8x128xf32> -> vector<8x128xf32>
    %c0_83 = arith.constant 0 : index
    %c0_84 = arith.constant 0 : index
    %157 = vector.load %arg23[%c0_83, %c0_84] : memref<1x128xf32, #tpu.memory_space<vmem>>, vector<1x128xf32>
    %158 = vector.broadcast %157 : vector<1x128xf32> to vector<8x128xf32>
    %159 = arith.addf %156, %158 : vector<8x128xf32>
    %160 = tpu.iota {dimensions = array<i32: 1>} : vector<8x128xi32>
    %c6_i32 = arith.constant 6 : i32
    %161 = vector.broadcast %c6_i32 : i32 to vector<8x128xi32>
    %162 = arith.cmpi sge, %160, %161 : vector<8x128xi32>
    %c12_i32 = arith.constant 12 : i32
    %163 = vector.broadcast %c12_i32 : i32 to vector<8x128xi32>
    %164 = arith.cmpi slt, %160, %163 : vector<8x128xi32>
    %165 = arith.andi %162, %164 : vector<8x128xi1>
    %cst_85 = arith.constant -2.000000e+01 : f32
    %cst_86 = arith.constant 2.000000e+00 : f32
    %166 = vector.broadcast %cst_85 : f32 to vector<8x128xf32>
    %167 = arith.maximumf %166, %159 : vector<8x128xf32>
    %168 = vector.broadcast %cst_86 : f32 to vector<8x128xf32>
    %169 = arith.minimumf %168, %167 : vector<8x128xf32>
    %170 = math.exp %169 : vector<8x128xf32>
    %171 = arith.select %165, %170, %159 : vector<8x128xi1>, vector<8x128xf32>
    %c0_87 = arith.constant 0 : index
    %c0_88 = arith.constant 0 : index
    %172 = vector.load %arg24[%c0_87, %c0_88] : memref<8x128xf32, #tpu.memory_space<vmem>>, vector<8x128xf32>
    tpu.vector_store %arg24[%c0_87, %c0_88], %171 {strides = array<i32>} : memref<8x128xf32, #tpu.memory_space<vmem>>, vector<8x128xf32>,
    return
  }
  func.func @transform_0(%arg0: i32) -> (i32, i32) {
    %c0_i32 = arith.constant 0 : i32
    %c0_i32_0 = arith.constant 0 : i32
    return %arg0, %c0_i32 : i32, i32
  }
  func.func @transform_1(%arg0: i32) -> (i32, i32) {
    %c0_i32 = arith.constant 0 : i32
    %c0_i32_0 = arith.constant 0 : i32
    %c0_i32_1 = arith.constant 0 : i32
    return %c0_i32, %c0_i32_0 : i32, i32
  }
  func.func @transform_2(%arg0: i32) -> (i32, i32) {
    %c0_i32 = arith.constant 0 : i32
    %c0_i32_0 = arith.constant 0 : i32
    %c0_i32_1 = arith.constant 0 : i32
    return %c0_i32, %c0_i32_0 : i32, i32
  }
  func.func @transform_3(%arg0: i32) -> (i32, i32) {
    %c0_i32 = arith.constant 0 : i32
    %c0_i32_0 = arith.constant 0 : i32
    %c0_i32_1 = arith.constant 0 : i32
    return %c0_i32, %c0_i32_0 : i32, i32
  }
  func.func @transform_4(%arg0: i32) -> (i32, i32) {
    %c0_i32 = arith.constant 0 : i32
    %c0_i32_0 = arith.constant 0 : i32
    %c0_i32_1 = arith.constant 0 : i32
    return %c0_i32, %c0_i32_0 : i32, i32
  }
  func.func @transform_5(%arg0: i32) -> (i32, i32) {
    %c0_i32 = arith.constant 0 : i32
    %c0_i32_0 = arith.constant 0 : i32
    %c0_i32_1 = arith.constant 0 : i32
    return %c0_i32, %c0_i32_0 : i32, i32
  }
  func.func @transform_6(%arg0: i32) -> (i32, i32) {
    %c0_i32 = arith.constant 0 : i32
    %c0_i32_0 = arith.constant 0 : i32
    %c0_i32_1 = arith.constant 0 : i32
    return %c0_i32, %c0_i32_0 : i32, i32
  }
  func.func @transform_7(%arg0: i32) -> (i32, i32) {
    %c0_i32 = arith.constant 0 : i32
    %c0_i32_0 = arith.constant 0 : i32
    %c0_i32_1 = arith.constant 0 : i32
    return %c0_i32, %c0_i32_0 : i32, i32
  }
  func.func @transform_8(%arg0: i32) -> (i32, i32) {
    %c0_i32 = arith.constant 0 : i32
    %c0_i32_0 = arith.constant 0 : i32
    %c0_i32_1 = arith.constant 0 : i32
    return %c0_i32, %c0_i32_0 : i32, i32
  }
  func.func @transform_9(%arg0: i32) -> (i32, i32) {
    %c0_i32 = arith.constant 0 : i32
    %c0_i32_0 = arith.constant 0 : i32
    %c0_i32_1 = arith.constant 0 : i32
    return %c0_i32, %c0_i32_0 : i32, i32
  }
  func.func @transform_10(%arg0: i32) -> (i32, i32) {
    %c0_i32 = arith.constant 0 : i32
    %c0_i32_0 = arith.constant 0 : i32
    %c0_i32_1 = arith.constant 0 : i32
    return %c0_i32, %c0_i32_0 : i32, i32
  }
  func.func @transform_11(%arg0: i32) -> (i32, i32) {
    %c0_i32 = arith.constant 0 : i32
    %c0_i32_0 = arith.constant 0 : i32
    %c0_i32_1 = arith.constant 0 : i32
    return %c0_i32, %c0_i32_0 : i32, i32
  }
  func.func @transform_12(%arg0: i32) -> (i32, i32) {
    %c0_i32 = arith.constant 0 : i32
    %c0_i32_0 = arith.constant 0 : i32
    %c0_i32_1 = arith.constant 0 : i32
    return %c0_i32, %c0_i32_0 : i32, i32
  }
  func.func @transform_13(%arg0: i32) -> (i32, i32) {
    %c0_i32 = arith.constant 0 : i32
    %c0_i32_0 = arith.constant 0 : i32
    %c0_i32_1 = arith.constant 0 : i32
    return %c0_i32, %c0_i32_0 : i32, i32
  }
  func.func @transform_14(%arg0: i32) -> (i32, i32) {
    %c0_i32 = arith.constant 0 : i32
    %c0_i32_0 = arith.constant 0 : i32
    %c0_i32_1 = arith.constant 0 : i32
    return %c0_i32, %c0_i32_0 : i32, i32
  }
  func.func @transform_15(%arg0: i32) -> (i32, i32) {
    %c0_i32 = arith.constant 0 : i32
    %c0_i32_0 = arith.constant 0 : i32
    %c0_i32_1 = arith.constant 0 : i32
    return %c0_i32, %c0_i32_0 : i32, i32
  }
  func.func @transform_16(%arg0: i32) -> (i32, i32) {
    %c0_i32 = arith.constant 0 : i32
    %c0_i32_0 = arith.constant 0 : i32
    %c0_i32_1 = arith.constant 0 : i32
    return %c0_i32, %c0_i32_0 : i32, i32
  }
  func.func @transform_17(%arg0: i32) -> (i32, i32) {
    %c0_i32 = arith.constant 0 : i32
    %c0_i32_0 = arith.constant 0 : i32
    %c0_i32_1 = arith.constant 0 : i32
    return %c0_i32, %c0_i32_0 : i32, i32
  }
  func.func @transform_18(%arg0: i32) -> (i32, i32) {
    %c0_i32 = arith.constant 0 : i32
    %c0_i32_0 = arith.constant 0 : i32
    %c0_i32_1 = arith.constant 0 : i32
    return %c0_i32, %c0_i32_0 : i32, i32
  }
  func.func @transform_19(%arg0: i32) -> (i32, i32) {
    %c0_i32 = arith.constant 0 : i32
    %c0_i32_0 = arith.constant 0 : i32
    %c0_i32_1 = arith.constant 0 : i32
    return %c0_i32, %c0_i32_0 : i32, i32
  }
  func.func @transform_20(%arg0: i32) -> (i32, i32) {
    %c0_i32 = arith.constant 0 : i32
    %c0_i32_0 = arith.constant 0 : i32
    %c0_i32_1 = arith.constant 0 : i32
    return %c0_i32, %c0_i32_0 : i32, i32
  }
  func.func @transform_21(%arg0: i32) -> (i32, i32) {
    %c0_i32 = arith.constant 0 : i32
    %c0_i32_0 = arith.constant 0 : i32
    %c0_i32_1 = arith.constant 0 : i32
    return %c0_i32, %c0_i32_0 : i32, i32
  }
  func.func @transform_22(%arg0: i32) -> (i32, i32) {
    %c0_i32 = arith.constant 0 : i32
    %c0_i32_0 = arith.constant 0 : i32
    %c0_i32_1 = arith.constant 0 : i32
    return %c0_i32, %c0_i32_0 : i32, i32
  }
  func.func @transform_23(%arg0: i32) -> (i32, i32) {
    %c0_i32 = arith.constant 0 : i32
    %c0_i32_0 = arith.constant 0 : i32
    return %arg0, %c0_i32 : i32, i32
  }
}

</mosaic_0001>

<llo_original>
// kernel: policy_forward.1
$region0: #{policy_forward.1}
  #allocation0 [shape = 'u32[]', space=smem, size = 0x4, offset = 0x4, fixed_abs, tag = 'smem constant byte address 0x4 - core index']
  #allocation1 [shape = 'u32[144,128]{1,0:T(1,128)}', space=vmem, size = 0x12000, scoped, tag = 'internal scratch']
  %s0 = inlined_call_operand.vmem [shape: f32[64,20], index: 0, kind: input, shape index: {}]
  %s1 = inlined_call_operand.vmem [shape: f32[20,32], index: 1, kind: input, shape index: {}]
  %s2 = inlined_call_operand.vmem [shape: f32[1,32], index: 2, kind: input, shape index: {}]
  %s3 = inlined_call_operand.vmem [shape: f32[1,32], index: 3, kind: input, shape index: {}]
  %s4 = inlined_call_operand.vmem [shape: f32[1,32], index: 4, kind: input, shape index: {}]
  %s5 = inlined_call_operand.vmem [shape: f32[32,96], index: 5, kind: input, shape index: {}]
  %s6 = inlined_call_operand.vmem [shape: f32[1,96], index: 6, kind: input, shape index: {}]
  %s7 = inlined_call_operand.vmem [shape: f32[32,64], index: 7, kind: input, shape index: {}]
  %s8 = inlined_call_operand.vmem [shape: f32[1,64], index: 8, kind: input, shape index: {}]
  %s9 = inlined_call_operand.vmem [shape: f32[32,32], index: 9, kind: input, shape index: {}]
  %s10 = inlined_call_operand.vmem [shape: f32[1,32], index: 10, kind: input, shape index: {}]
  %s11 = inlined_call_operand.vmem [shape: f32[1,32], index: 11, kind: input, shape index: {}]
  %s12 = inlined_call_operand.vmem [shape: f32[1,32], index: 12, kind: input, shape index: {}]
  %s13 = inlined_call_operand.vmem [shape: f32[32,64], index: 13, kind: input, shape index: {}]
  %s14 = inlined_call_operand.vmem [shape: f32[1,64], index: 14, kind: input, shape index: {}]
  %s15 = inlined_call_operand.vmem [shape: f32[64,32], index: 15, kind: input, shape index: {}]
  %s16 = inlined_call_operand.vmem [shape: f32[1,32], index: 16, kind: input, shape index: {}]
  %s17 = inlined_call_operand.vmem [shape: f32[32,64], index: 17, kind: input, shape index: {}]
  %s18 = inlined_call_operand.vmem [shape: f32[1,64], index: 18, kind: input, shape index: {}]
  %s19 = inlined_call_operand.vmem [shape: f32[64,64], index: 19, kind: input, shape index: {}]
  %s20 = inlined_call_operand.vmem [shape: f32[1,64], index: 20, kind: input, shape index: {}]
  %s21 = inlined_call_operand.vmem [shape: f32[64,128], index: 21, kind: input, shape index: {}]
  %s22 = inlined_call_operand.vmem [shape: f32[1,128], index: 22, kind: input, shape index: {}]
  %s23 = inlined_call_operand.vmem [shape: f32[8,128], index: 23, kind: output, shape index: {}]
  %s24 = sld [smem:[#allocation0]]
  $region102: #{policy_forward.1} parent=0
    _
  %s26 = ssub.s32 1, %s24
  %s27 = scalar_select 0, %s26, %s24
  // Predicated region
  $region2: #{policy_forward.1} parent=0 // pred_check
    _
  $region3: #{policy_forward.1} parent=0 // pred_check_branch
    %29 = sbr.rel (0) target = $region5
  $region4: #{policy_forward.1} parent=0 // pred_region
    _
  $region5: #{policy_forward.1} parent=0 // pred_fallthru
    _
  // Predicated region
  $region6: #{policy_forward.1} parent=0 // pred_check
    _
  $region7: #{policy_forward.1} parent=0 // pred_check_branch
    %31 = sbr.rel (0) target = $region9
  $region8: #{policy_forward.1} parent=0 // pred_region
    _
  $region9: #{policy_forward.1} parent=0 // pred_fallthru
    _
  // Predicated region
  $region10: #{policy_forward.1} parent=0 // pred_check
    _
  $region11: #{policy_forward.1} parent=0 // pred_check_branch
    %33 = sbr.rel (0) target = $region13
  $region12: #{policy_forward.1} parent=0 // pred_region
    _
  $region13: #{policy_forward.1} parent=0 // pred_fallthru
    _
  // Predicated region
  $region14: #{policy_forward.1} parent=0 // pred_check
    _
  $region15: #{policy_forward.1} parent=0 // pred_check_branch
    %35 = sbr.rel (0) target = $region17
  $region16: #{policy_forward.1} parent=0 // pred_region
    _
  $region17: #{policy_forward.1} parent=0 // pred_fallthru
    _
  // Predicated region
  $region18: #{policy_forward.1} parent=0 // pred_check
    _
  $region19: #{policy_forward.1} parent=0 // pred_check_branch
    %37 = sbr.rel (0) target = $region21
  $region20: #{policy_forward.1} parent=0 // pred_region
    _
  $region21: #{policy_forward.1} parent=0 // pred_fallthru
    _
  // Predicated region
  $region22: #{policy_forward.1} parent=0 // pred_check
    _
  $region23: #{policy_forward.1} parent=0 // pred_check_branch
    %39 = sbr.rel (0) target = $region25
  $region24: #{policy_forward.1} parent=0 // pred_region
    _
  $region25: #{policy_forward.1} parent=0 // pred_fallthru
    _
  // Predicated region
  $region26: #{policy_forward.1} parent=0 // pred_check
    _
  $region27: #{policy_forward.1} parent=0 // pred_check_branch
    %41 = sbr.rel (0) target = $region29
  $region28: #{policy_forward.1} parent=0 // pred_region
    _
  $region29: #{policy_forward.1} parent=0 // pred_fallthru
    _
  // Predicated region
  $region30: #{policy_forward.1} parent=0 // pred_check
    _
  $region31: #{policy_forward.1} parent=0 // pred_check_branch
    %43 = sbr.rel (0) target = $region33
  $region32: #{policy_forward.1} parent=0 // pred_region
    _
  $region33: #{policy_forward.1} parent=0 // pred_fallthru
    _
  // Predicated region
  $region34: #{policy_forward.1} parent=0 // pred_check
    _
  $region35: #{policy_forward.1} parent=0 // pred_check_branch
    %45 = sbr.rel (0) target = $region37
  $region36: #{policy_forward.1} parent=0 // pred_region
    _
  $region37: #{policy_forward.1} parent=0 // pred_fallthru
    _
  // Predicated region
  $region38: #{policy_forward.1} parent=0 // pred_check
    _
  $region39: #{policy_forward.1} parent=0 // pred_check_branch
    %47 = sbr.rel (0) target = $region41
  $region40: #{policy_forward.1} parent=0 // pred_region
    _
  $region41: #{policy_forward.1} parent=0 // pred_fallthru
    _
  // Predicated region
  $region42: #{policy_forward.1} parent=0 // pred_check
    _
  $region43: #{policy_forward.1} parent=0 // pred_check_branch
    %49 = sbr.rel (0) target = $region45
  $region44: #{policy_forward.1} parent=0 // pred_region
    _
  $region45: #{policy_forward.1} parent=0 // pred_fallthru
    _
  // Predicated region
  $region46: #{policy_forward.1} parent=0 // pred_check
    _
  $region47: #{policy_forward.1} parent=0 // pred_check_branch
    %51 = sbr.rel (0) target = $region49
  $region48: #{policy_forward.1} parent=0 // pred_region
    _
  $region49: #{policy_forward.1} parent=0 // pred_fallthru
    _
  // Predicated region
  $region50: #{policy_forward.1} parent=0 // pred_check
    _
  $region51: #{policy_forward.1} parent=0 // pred_check_branch
    %53 = sbr.rel (0) target = $region53
  $region52: #{policy_forward.1} parent=0 // pred_region
    _
  $region53: #{policy_forward.1} parent=0 // pred_fallthru
    _
  // Predicated region
  $region54: #{policy_forward.1} parent=0 // pred_check
    _
  $region55: #{policy_forward.1} parent=0 // pred_check_branch
    %55 = sbr.rel (0) target = $region57
  $region56: #{policy_forward.1} parent=0 // pred_region
    _
  $region57: #{policy_forward.1} parent=0 // pred_fallthru
    _
  // Predicated region
  $region58: #{policy_forward.1} parent=0 // pred_check
    _
  $region59: #{policy_forward.1} parent=0 // pred_check_branch
    %57 = sbr.rel (0) target = $region61
  $region60: #{policy_forward.1} parent=0 // pred_region
    _
  $region61: #{policy_forward.1} parent=0 // pred_fallthru
    _
  // Predicated region
  $region62: #{policy_forward.1} parent=0 // pred_check
    _
  $region63: #{policy_forward.1} parent=0 // pred_check_branch
    %59 = sbr.rel (0) target = $region65
  $region64: #{policy_forward.1} parent=0 // pred_region
    _
  $region65: #{policy_forward.1} parent=0 // pred_fallthru
    _
  // Predicated region
  $region66: #{policy_forward.1} parent=0 // pred_check
    _
  $region67: #{policy_forward.1} parent=0 // pred_check_branch
    %61 = sbr.rel (0) target = $region69
  $region68: #{policy_forward.1} parent=0 // pred_region
    _
  $region69: #{policy_forward.1} parent=0 // pred_fallthru
    _
  // Predicated region
  $region70: #{policy_forward.1} parent=0 // pred_check
    _
  $region71: #{policy_forward.1} parent=0 // pred_check_branch
    %63 = sbr.rel (0) target = $region73
  $region72: #{policy_forward.1} parent=0 // pred_region
    _
  $region73: #{policy_forward.1} parent=0 // pred_fallthru
    _
  // Predicated region
  $region74: #{policy_forward.1} parent=0 // pred_check
    _
  $region75: #{policy_forward.1} parent=0 // pred_check_branch
    %65 = sbr.rel (0) target = $region77
  $region76: #{policy_forward.1} parent=0 // pred_region
    _
  $region77: #{policy_forward.1} parent=0 // pred_fallthru
    _
  // Predicated region
  $region78: #{policy_forward.1} parent=0 // pred_check
    _
  $region79: #{policy_forward.1} parent=0 // pred_check_branch
    %67 = sbr.rel (0) target = $region81
  $region80: #{policy_forward.1} parent=0 // pred_region
    _
  $region81: #{policy_forward.1} parent=0 // pred_fallthru
    _
  // Predicated region
  $region82: #{policy_forward.1} parent=0 // pred_check
    _
  $region83: #{policy_forward.1} parent=0 // pred_check_branch
    %69 = sbr.rel (0) target = $region85
  $region84: #{policy_forward.1} parent=0 // pred_region
    _
  $region85: #{policy_forward.1} parent=0 // pred_fallthru
    _
  // Predicated region
  $region86: #{policy_forward.1} parent=0 // pred_check
    _
  $region87: #{policy_forward.1} parent=0 // pred_check_branch
    %71 = sbr.rel (0) target = $region89
  $region88: #{policy_forward.1} parent=0 // pred_region
    _
  $region89: #{policy_forward.1} parent=0 // pred_fallthru
    _
  // Predicated region
  $region90: #{policy_forward.1} parent=0 // pred_check
    _
  $region91: #{policy_forward.1} parent=0 // pred_check_branch
    %73 = sbr.rel (0) target = $region93
  $region92: #{policy_forward.1} parent=0 // pred_region
    _
  $region93: #{policy_forward.1} parent=0 // pred_fallthru
    _
  %v74 = vld [vmem:[%s0] sm:$0xff]
  %v75 = vld [vmem:[%s0 + $0x8] sm:$0xff]
  %v76 = vld [vmem:[%s0 + $0x10] sm:$0xff]
  %v77 = vld [vmem:[%s0 + $0x18] sm:$0xff]
  %v78 = vld [vmem:[%s0 + $0x20] sm:$0xff]
  %v79 = vld [vmem:[%s0 + $0x28] sm:$0xff]
  %v80 = vld [vmem:[%s0 + $0x30] sm:$0xff]
  %v81 = vld [vmem:[%s0 + $0x38] sm:$0xff]
  %v82 = vld [vmem:[%s1] sm:$0xff]
  %v83 = vld [vmem:[%s1 + $0x8] sm:$0xff]
  %v84 = vld [vmem:[%s1 + $0x10] sm:$0xf]
  %v85 = vld [vmem:[%s2] sm:$0x1]
  %v87 = vlaneseq
  %v88 = vshrl.u32 %v87, 7
  %v89 = vsub.s32 0, %v88
  %v90 = vrot.slane %v85, %v89
  %vm92 = vcmask 162816
  %v94 = vsel %vm92, %v74, 0
  %v97 = vsel %vm92, %v75, 0
  %v100 = vsel %vm92, %v76, 0
  %v103 = vsel %vm92, %v77, 0
  %v106 = vsel %vm92, %v78, 0
  %v109 = vsel %vm92, %v79, 0
  %v112 = vsel %vm92, %v80, 0
  %v115 = vsel %vm92, %v81, 0
  %vm117 = vcmask 1043456
  %v119 = vsel %vm117, %v84, 0
  %121 = vmatprep.subr.mxu0 0.0
  %122 = vmatpush1.msra.mxu0 0.0
  %123 = vmatprep.subr.mxu0 0.0
  %124 = vmatpush1.msra.mxu0 0.0
  %125 = vmatprep.subr.mxu0 0.0
  %126 = vmatpush1.msra.mxu0 0.0
  %127 = vmatprep.subr.mxu0 0.0
  %128 = vmatpush1.msra.mxu0 0.0
  %129 = vmatprep.subr.mxu0 0.0
  %130 = vmatpush1.msra.mxu0 0.0
  %131 = vmatprep.subr.mxu0 0.0
  %132 = vmatpush1.msra.mxu0 0.0
  %133 = vmatprep.subr.mxu0 0.0
  %134 = vmatpush1.msra.mxu0 0.0
  %135 = vmatprep.subr.mxu0 0.0
  %136 = vmatpush1.msra.mxu0 0.0
  %137 = vmatprep.subr.mxu0 0.0
  %138 = vmatpush1.msra.mxu0 0.0
  %139 = vmatprep.subr.mxu0 0.0
  %140 = vmatpush1.msra.mxu0 0.0
  %141 = vmatprep.subr.mxu0 0.0
  %142 = vmatpush1.msra.mxu0 0.0
  %143 = vmatprep.subr.mxu0 0.0
  %144 = vmatpush1.msra.mxu0 0.0
  %145 = vmatprep.subr.mxu0 0.0
  %146 = vmatpush1.msra.mxu0 0.0
  %147 = vmatprep.subr.mxu0 0.0
  %148 = vmatpush1.msra.mxu0 %v119
  %149 = vmatprep.subr.mxu0 0.0
  %150 = vmatpush1.msra.mxu0 %v83
  %151 = vmatprep.subr.mxu0 0.0
  %152 = vmatpush1.msra.mxu0 %v82
  %153 = vmatprep.subr.mxu0 0.0
  %154 = vmatpush2.msra.mxu0 0.0
  %155 = vmatprep.subr.mxu0 0.0
  %156 = vmatpush2.msra.mxu0 0.0
  %157 = vmatprep.subr.mxu0 0.0
  %158 = vmatpush2.msra.mxu0 0.0
  %159 = vmatprep.subr.mxu0 0.0
  %160 = vmatpush2.msra.mxu0 0.0
  %161 = vmatprep.subr.mxu0 0.0
  %162 = vmatpush2.msra.mxu0 0.0
  %163 = vmatprep.subr.mxu0 0.0
  %164 = vmatpush2.msra.mxu0 0.0
  %165 = vmatprep.subr.mxu0 0.0
  %166 = vmatpush2.msra.mxu0 0.0
  %167 = vmatprep.subr.mxu0 0.0
  %168 = vmatpush2.msra.mxu0 0.0
  %169 = vmatprep.subr.mxu0 0.0
  %170 = vmatpush2.msra.mxu0 0.0
  %171 = vmatprep.subr.mxu0 0.0
  %172 = vmatpush2.msra.mxu0 0.0
  %173 = vmatprep.subr.mxu0 0.0
  %174 = vmatpush2.msra.mxu0 0.0
  %175 = vmatprep.subr.mxu0 0.0
  %176 = vmatpush2.msra.mxu0 0.0
  %177 = vmatprep.subr.mxu0 0.0
  %178 = vmatpush2.msra.mxu0 0.0
  %179 = vmatprep.subr.mxu0 0.0
  %180 = vmatpush2.msra.mxu0 0.0
  %181 = vmatprep.subr.mxu0 0.0
  %182 = vmatpush2.msra.mxu0 0.0
  %183 = vmatprep.subr.mxu0 0.0
  %184 = vmatpush2.msra.mxu0 0.0
  %185 = vmatprep.mubr.f32.mxu0 0.0
  %186 = vmatmul.mubr.f32.gmra.mxu0 %v94
  %v187 = vpop.f32.mrf.mxu0
  %v188 = vadd.f32 %v90, %v187
  %v189 = vpop.f32.mrf.mxu0
  %190 = vmatprep.mubr.f32.mxu0 0.0
  %191 = vmatmul.mubr.f32.gmra.mxu0 %v97
  %v192 = vpop.f32.mrf.mxu0
  %v193 = vadd.f32 %v90, %v192
  %v194 = vpop.f32.mrf.mxu0
  %195 = vmatprep.mubr.f32.mxu0 0.0
  %196 = vmatmul.mubr.f32.gmra.mxu0 %v100
  %v197 = vpop.f32.mrf.mxu0
  %v198 = vadd.f32 %v90, %v197
  %v199 = vpop.f32.mrf.mxu0
  %200 = vmatprep.mubr.f32.mxu0 0.0
  %201 = vmatmul.mubr.f32.gmra.mxu0 %v103
  %v202 = vpop.f32.mrf.mxu0
  %v203 = vadd.f32 %v90, %v202
  %v204 = vpop.f32.mrf.mxu0
  %205 = vmatprep.mubr.f32.mxu0 0.0
  %206 = vmatmul.mubr.f32.gmra.mxu0 %v106
  %v207 = vpop.f32.mrf.mxu0
  %v208 = vadd.f32 %v90, %v207
  %v209 = vpop.f32.mrf.mxu0
  %210 = vmatprep.mubr.f32.mxu0 0.0
  %211 = vmatmul.mubr.f32.gmra.mxu0 %v109
  %v212 = vpop.f32.mrf.mxu0
  %v213 = vadd.f32 %v90, %v212
  %v214 = vpop.f32.mrf.mxu0
  %215 = vmatprep.mubr.f32.mxu0 0.0
  %216 = vmatmul.mubr.f32.gmra.mxu0 %v112
  %v217 = vpop.f32.mrf.mxu0
  %v218 = vadd.f32 %v90, %v217
  %v219 = vpop.f32.mrf.mxu0
  %220 = vmatprep.mubr.f32.mxu0 0.0
  %221 = vmatmul.mubr.f32.gmra.mxu0 %v115
  %v222 = vpop.f32.mrf.mxu0
  %v223 = vadd.f32 %v90, %v222
  %v224 = vpop.f32.mrf.mxu0
  %225 = vdwg.mxu0
  %v226 = vld [vmem:[%s3] sm:$0x1]
  %v227 = vld [vmem:[%s4] sm:$0x1]
  %vm228 = vcmask 261120
  %v229 = vsel %vm228, %v188, 0.0
  %230 = vadd.xlane.f32.xlu0 %v229
  %v231 = vpop.xlane.xlu0 %230
  %v232 = vsel %vm228, %v193, 0.0
  %233 = vadd.xlane.f32.xlu0 %v232
  %v234 = vpop.xlane.xlu0 %233
  %v235 = vsel %vm228, %v198, 0.0
  %236 = vadd.xlane.f32.xlu0 %v235
  %v237 = vpop.xlane.xlu0 %236
  %v238 = vsel %vm228, %v203, 0.0
  %239 = vadd.xlane.f32.xlu0 %v238
  %v240 = vpop.xlane.xlu0 %239
  %v241 = vsel %vm228, %v208, 0.0
  %242 = vadd.xlane.f32.xlu0 %v241
  %v243 = vpop.xlane.xlu0 %242
  %v244 = vsel %vm228, %v213, 0.0
  %245 = vadd.xlane.f32.xlu0 %v244
  %v246 = vpop.xlane.xlu0 %245
  %v247 = vsel %vm228, %v218, 0.0
  %248 = vadd.xlane.f32.xlu0 %v247
  %v249 = vpop.xlane.xlu0 %248
  %v250 = vsel %vm228, %v223, 0.0
  %251 = vadd.xlane.f32.xlu0 %v250
  %v252 = vpop.xlane.xlu0 %251
  %v253 = vrcp.pop 32.0
  %v254 = vmul.f32 %v231, %v253
  %v255 = vmul.f32 %v234, %v253
  %v256 = vmul.f32 %v237, %v253
  %v257 = vmul.f32 %v240, %v253
  %v258 = vmul.f32 %v243, %v253
  %v259 = vmul.f32 %v246, %v253
  %v260 = vmul.f32 %v249, %v253
  %v261 = vmul.f32 %v252, %v253
  %v262 = vsub.f32 %v188, %v254
  %v263 = vsub.f32 %v193, %v255
  %v264 = vsub.f32 %v198, %v256
  %v265 = vsub.f32 %v203, %v257
  %v266 = vsub.f32 %v208, %v258
  %v267 = vsub.f32 %v213, %v259
  %v268 = vsub.f32 %v218, %v260
  %v269 = vsub.f32 %v223, %v261
  %v270 = vmul.f32 %v262, %v262
  %v271 = vmul.f32 %v263, %v263
  %v272 = vmul.f32 %v264, %v264
  %v273 = vmul.f32 %v265, %v265
  %v274 = vmul.f32 %v266, %v266
  %v275 = vmul.f32 %v267, %v267
  %v276 = vmul.f32 %v268, %v268
  %v277 = vmul.f32 %v269, %v269
  %v278 = vsel %vm228, %v270, 0.0
  %279 = vadd.xlane.f32.xlu0 %v278
  %v280 = vpop.xlane.xlu0 %279
  %v281 = vsel %vm228, %v271, 0.0
  %282 = vadd.xlane.f32.xlu0 %v281
  %v283 = vpop.xlane.xlu0 %282
  %v284 = vsel %vm228, %v272, 0.0
  %285 = vadd.xlane.f32.xlu0 %v284
  %v286 = vpop.xlane.xlu0 %285
  %v287 = vsel %vm228, %v273, 0.0
  %288 = vadd.xlane.f32.xlu0 %v287
  %v289 = vpop.xlane.xlu0 %288
  %v290 = vsel %vm228, %v274, 0.0
  %291 = vadd.xlane.f32.xlu0 %v290
  %v292 = vpop.xlane.xlu0 %291
  %v293 = vsel %vm228, %v275, 0.0
  %294 = vadd.xlane.f32.xlu0 %v293
  %v295 = vpop.xlane.xlu0 %294
  %v296 = vsel %vm228, %v276, 0.0
  %297 = vadd.xlane.f32.xlu0 %v296
  %v298 = vpop.xlane.xlu0 %297
  %v299 = vsel %vm228, %v277, 0.0
  %300 = vadd.xlane.f32.xlu0 %v299
  %v301 = vpop.xlane.xlu0 %300
  %v302 = vmul.f32 %v280, %v253
  %v303 = vmul.f32 %v283, %v253
  %v304 = vmul.f32 %v286, %v253
  %v305 = vmul.f32 %v289, %v253
  %v306 = vmul.f32 %v292, %v253
  %v307 = vmul.f32 %v295, %v253
  %v308 = vmul.f32 %v298, %v253
  %v309 = vmul.f32 %v301, %v253
  %v310 = vadd.f32 %v302, 1e-05
  %v311 = vadd.f32 %v303, 1e-05
  %v312 = vadd.f32 %v304, 1e-05
  %v313 = vadd.f32 %v305, 1e-05
  %v314 = vadd.f32 %v306, 1e-05
  %v315 = vadd.f32 %v307, 1e-05
  %v316 = vadd.f32 %v308, 1e-05
  %v317 = vadd.f32 %v309, 1e-05
  %v318 = vrsqrt.pop %v310
  %v319 = vrsqrt.pop %v311
  %v320 = vrsqrt.pop %v312
  %v321 = vrsqrt.pop %v313
  %v322 = vrsqrt.pop %v314
  %v323 = vrsqrt.pop %v315
  %v324 = vrsqrt.pop %v316
  %v325 = vrsqrt.pop %v317
  %v326 = vmul.f32 %v262, %v318
  %v327 = vmul.f32 %v263, %v319
  %v328 = vmul.f32 %v264, %v320
  %v329 = vmul.f32 %v265, %v321
  %v330 = vmul.f32 %v266, %v322
  %v331 = vmul.f32 %v267, %v323
  %v332 = vmul.f32 %v268, %v324
  %v333 = vmul.f32 %v269, %v325
  %v335 = vlaneseq
  %v336 = vshrl.u32 %v335, 7
  %v337 = vsub.s32 0, %v336
  %v338 = vrot.slane %v226, %v337
  %v340 = vmul.f32 %v326, %v338
  %v341 = vmul.f32 %v327, %v338
  %v342 = vmul.f32 %v328, %v338
  %v343 = vmul.f32 %v329, %v338
  %v344 = vmul.f32 %v330, %v338
  %v345 = vmul.f32 %v331, %v338
  %v346 = vmul.f32 %v332, %v338
  %v347 = vmul.f32 %v333, %v338
  %v349 = vlaneseq
  %v350 = vshrl.u32 %v349, 7
  %v351 = vsub.s32 0, %v350
  %v352 = vrot.slane %v227, %v351
  %v354 = vadd.f32 %v340, %v352
  %v355 = vadd.f32 %v341, %v352
  %v356 = vadd.f32 %v342, %v352
  %v357 = vadd.f32 %v343, %v352
  %v358 = vadd.f32 %v344, %v352
  %v359 = vadd.f32 %v345, %v352
  %v360 = vadd.f32 %v346, %v352
  %v361 = vadd.f32 %v347, %v352
  %v362 = vld [vmem:[%s5] sm:$0xff]
  %v363 = vld [vmem:[%s5 + $0x8] sm:$0xff]
  %v364 = vld [vmem:[%s5 + $0x10] sm:$0xff]
  %v365 = vld [vmem:[%s5 + $0x18] sm:$0xff]
  %v366 = vld [vmem:[%s6] sm:$0x1]
  %v368 = vlaneseq
  %v369 = vshrl.u32 %v368, 7
  %v370 = vsub.s32 0, %v369
  %v371 = vrot.slane %v366, %v370
  %v374 = vsel %vm228, %v354, 0
  %v377 = vsel %vm228, %v355, 0
  %v380 = vsel %vm228, %v356, 0
  %v383 = vsel %vm228, %v357, 0
  %v386 = vsel %vm228, %v358, 0
  %v389 = vsel %vm228, %v359, 0
  %v392 = vsel %vm228, %v360, 0
  %v395 = vsel %vm228, %v361, 0
  %397 = vmatprep.subr.mxu0 0.0
  %398 = vmatpush1.msra.mxu0 0.0
  %399 = vmatprep.subr.mxu0 0.0
  %400 = vmatpush1.msra.mxu0 0.0
  %401 = vmatprep.subr.mxu0 0.0
  %402 = vmatpush1.msra.mxu0 0.0
  %403 = vmatprep.subr.mxu0 0.0
  %404 = vmatpush1.msra.mxu0 0.0
  %405 = vmatprep.subr.mxu0 0.0
  %406 = vmatpush1.msra.mxu0 0.0
  %407 = vmatprep.subr.mxu0 0.0
  %408 = vmatpush1.msra.mxu0 0.0
  %409 = vmatprep.subr.mxu0 0.0
  %410 = vmatpush1.msra.mxu0 0.0
  %411 = vmatprep.subr.mxu0 0.0
  %412 = vmatpush1.msra.mxu0 0.0
  %413 = vmatprep.subr.mxu0 0.0
  %414 = vmatpush1.msra.mxu0 0.0
  %415 = vmatprep.subr.mxu0 0.0
  %416 = vmatpush1.msra.mxu0 0.0
  %417 = vmatprep.subr.mxu0 0.0
  %418 = vmatpush1.msra.mxu0 0.0
  %419 = vmatprep.subr.mxu0 0.0
  %420 = vmatpush1.msra.mxu0 0.0
  %421 = vmatprep.subr.mxu0 0.0
  %422 = vmatpush1.msra.mxu0 %v365
  %423 = vmatprep.subr.mxu0 0.0
  %424 = vmatpush1.msra.mxu0 %v364
  %425 = vmatprep.subr.mxu0 0.0
  %426 = vmatpush1.msra.mxu0 %v363
  %427 = vmatprep.subr.mxu0 0.0
  %428 = vmatpush1.msra.mxu0 %v362
  %429 = vmatprep.subr.mxu0 0.0
  %430 = vmatpush2.msra.mxu0 0.0
  %431 = vmatprep.subr.mxu0 0.0
  %432 = vmatpush2.msra.mxu0 0.0
  %433 = vmatprep.subr.mxu0 0.0
  %434 = vmatpush2.msra.mxu0 0.0
  %435 = vmatprep.subr.mxu0 0.0
  %436 = vmatpush2.msra.mxu0 0.0
  %437 = vmatprep.subr.mxu0 0.0
  %438 = vmatpush2.msra.mxu0 0.0
  %439 = vmatprep.subr.mxu0 0.0
  %440 = vmatpush2.msra.mxu0 0.0
  %441 = vmatprep.subr.mxu0 0.0
  %442 = vmatpush2.msra.mxu0 0.0
  %443 = vmatprep.subr.mxu0 0.0
  %444 = vmatpush2.msra.mxu0 0.0
  %445 = vmatprep.subr.mxu0 0.0
  %446 = vmatpush2.msra.mxu0 0.0
  %447 = vmatprep.subr.mxu0 0.0
  %448 = vmatpush2.msra.mxu0 0.0
  %449 = vmatprep.subr.mxu0 0.0
  %450 = vmatpush2.msra.mxu0 0.0
  %451 = vmatprep.subr.mxu0 0.0
  %452 = vmatpush2.msra.mxu0 0.0
  %453 = vmatprep.subr.mxu0 0.0
  %454 = vmatpush2.msra.mxu0 0.0
  %455 = vmatprep.subr.mxu0 0.0
  %456 = vmatpush2.msra.mxu0 0.0
  %457 = vmatprep.subr.mxu0 0.0
  %458 = vmatpush2.msra.mxu0 0.0
  %459 = vmatprep.subr.mxu0 0.0
  %460 = vmatpush2.msra.mxu0 0.0
  %461 = vmatprep.mubr.f32.mxu0 0.0
  %462 = vmatmul.mubr.f32.gmra.mxu0 %v374
  %v463 = vpop.f32.mrf.mxu0
  %v464 = vadd.f32 %v371, %v463
  %v465 = vpop.f32.mrf.mxu0
  %466 = vmatprep.mubr.f32.mxu0 0.0
  %467 = vmatmul.mubr.f32.gmra.mxu0 %v377
  %v468 = vpop.f32.mrf.mxu0
  %v469 = vadd.f32 %v371, %v468
  %v470 = vpop.f32.mrf.mxu0
  %471 = vmatprep.mubr.f32.mxu0 0.0
  %472 = vmatmul.mubr.f32.gmra.mxu0 %v380
  %v473 = vpop.f32.mrf.mxu0
  %v474 = vadd.f32 %v371, %v473
  %v475 = vpop.f32.mrf.mxu0
  %476 = vmatprep.mubr.f32.mxu0 0.0
  %477 = vmatmul.mubr.f32.gmra.mxu0 %v383
  %v478 = vpop.f32.mrf.mxu0
  %v479 = vadd.f32 %v371, %v478
  %v480 = vpop.f32.mrf.mxu0
  %481 = vmatprep.mubr.f32.mxu0 0.0
  %482 = vmatmul.mubr.f32.gmra.mxu0 %v386
  %v483 = vpop.f32.mrf.mxu0
  %v484 = vadd.f32 %v371, %v483
  %v485 = vpop.f32.mrf.mxu0
  %486 = vmatprep.mubr.f32.mxu0 0.0
  %487 = vmatmul.mubr.f32.gmra.mxu0 %v389
  %v488 = vpop.f32.mrf.mxu0
  %v489 = vadd.f32 %v371, %v488
  %v490 = vpop.f32.mrf.mxu0
  %491 = vmatprep.mubr.f32.mxu0 0.0
  %492 = vmatmul.mubr.f32.gmra.mxu0 %v392
  %v493 = vpop.f32.mrf.mxu0
  %v494 = vadd.f32 %v371, %v493
  %v495 = vpop.f32.mrf.mxu0
  %496 = vmatprep.mubr.f32.mxu0 0.0
  %497 = vmatmul.mubr.f32.gmra.mxu0 %v395
  %v498 = vpop.f32.mrf.mxu0
  %v499 = vadd.f32 %v371, %v498
  %v500 = vpop.f32.mrf.mxu0
  %501 = vdwg.mxu0
  %v502 = vld [vmem:[%s7] sm:$0xff]
  %v503 = vld [vmem:[%s7 + $0x8] sm:$0xff]
  %v504 = vld [vmem:[%s7 + $0x10] sm:$0xff]
  %v505 = vld [vmem:[%s7 + $0x18] sm:$0xff]
  %v506 = vld [vmem:[%s8] sm:$0x1]
  %v508 = vlaneseq
  %v509 = vshrl.u32 %v508, 7
  %v510 = vsub.s32 0, %v509
  %v511 = vrot.slane %v506, %v510
  %v514 = vsel %vm228, %v464, 0
  %v517 = vsel %vm228, %v469, 0
  %v520 = vsel %vm228, %v474, 0
  %v523 = vsel %vm228, %v479, 0
  %v526 = vsel %vm228, %v484, 0
  %v529 = vsel %vm228, %v489, 0
  %v532 = vsel %vm228, %v494, 0
  %v535 = vsel %vm228, %v499, 0
  %537 = vmatprep.subr.mxu0 0.0
  %538 = vmatpush1.msra.mxu0 0.0
  %539 = vmatprep.subr.mxu0 0.0
  %540 = vmatpush1.msra.mxu0 0.0
  %541 = vmatprep.subr.mxu0 0.0
  %542 = vmatpush1.msra.mxu0 0.0
  %543 = vmatprep.subr.mxu0 0.0
  %544 = vmatpush1.msra.mxu0 0.0
  %545 = vmatprep.subr.mxu0 0.0
  %546 = vmatpush1.msra.mxu0 0.0
  %547 = vmatprep.subr.mxu0 0.0
  %548 = vmatpush1.msra.mxu0 0.0
  %549 = vmatprep.subr.mxu0 0.0
  %550 = vmatpush1.msra.mxu0 0.0
  %551 = vmatprep.subr.mxu0 0.0
  %552 = vmatpush1.msra.mxu0 0.0
  %553 = vmatprep.subr.mxu0 0.0
  %554 = vmatpush1.msra.mxu0 0.0
  %555 = vmatprep.subr.mxu0 0.0
  %556 = vmatpush1.msra.mxu0 0.0
  %557 = vmatprep.subr.mxu0 0.0
  %558 = vmatpush1.msra.mxu0 0.0
  %559 = vmatprep.subr.mxu0 0.0
  %560 = vmatpush1.msra.mxu0 0.0
  %561 = vmatprep.subr.mxu0 0.0
  %562 = vmatpush1.msra.mxu0 %v505
  %563 = vmatprep.subr.mxu0 0.0
  %564 = vmatpush1.msra.mxu0 %v504
  %565 = vmatprep.subr.mxu0 0.0
  %566 = vmatpush1.msra.mxu0 %v503
  %567 = vmatprep.subr.mxu0 0.0
  %568 = vmatpush1.msra.mxu0 %v502
  %569 = vmatprep.subr.mxu0 0.0
  %570 = vmatpush2.msra.mxu0 0.0
  %571 = vmatprep.subr.mxu0 0.0
  %572 = vmatpush2.msra.mxu0 0.0
  %573 = vmatprep.subr.mxu0 0.0
  %574 = vmatpush2.msra.mxu0 0.0
  %575 = vmatprep.subr.mxu0 0.0
  %576 = vmatpush2.msra.mxu0 0.0
  %577 = vmatprep.subr.mxu0 0.0
  %578 = vmatpush2.msra.mxu0 0.0
  %579 = vmatprep.subr.mxu0 0.0
  %580 = vmatpush2.msra.mxu0 0.0
  %581 = vmatprep.subr.mxu0 0.0
  %582 = vmatpush2.msra.mxu0 0.0
  %583 = vmatprep.subr.mxu0 0.0
  %584 = vmatpush2.msra.mxu0 0.0
  %585 = vmatprep.subr.mxu0 0.0
  %586 = vmatpush2.msra.mxu0 0.0
  %587 = vmatprep.subr.mxu0 0.0
  %588 = vmatpush2.msra.mxu0 0.0
  %589 = vmatprep.subr.mxu0 0.0
  %590 = vmatpush2.msra.mxu0 0.0
  %591 = vmatprep.subr.mxu0 0.0
  %592 = vmatpush2.msra.mxu0 0.0
  %593 = vmatprep.subr.mxu0 0.0
  %594 = vmatpush2.msra.mxu0 0.0
  %595 = vmatprep.subr.mxu0 0.0
  %596 = vmatpush2.msra.mxu0 0.0
  %597 = vmatprep.subr.mxu0 0.0
  %598 = vmatpush2.msra.mxu0 0.0
  %599 = vmatprep.subr.mxu0 0.0
  %600 = vmatpush2.msra.mxu0 0.0
  %601 = vmatprep.mubr.f32.mxu0 0.0
  %602 = vmatmul.mubr.f32.gmra.mxu0 %v514
  %v603 = vpop.f32.mrf.mxu0
  %v604 = vadd.f32 %v511, %v603
  %v605 = vpop.f32.mrf.mxu0
  %606 = vmatprep.mubr.f32.mxu0 0.0
  %607 = vmatmul.mubr.f32.gmra.mxu0 %v517
  %v608 = vpop.f32.mrf.mxu0
  %v609 = vadd.f32 %v511, %v608
  %v610 = vpop.f32.mrf.mxu0
  %611 = vmatprep.mubr.f32.mxu0 0.0
  %612 = vmatmul.mubr.f32.gmra.mxu0 %v520
  %v613 = vpop.f32.mrf.mxu0
  %v614 = vadd.f32 %v511, %v613
  %v615 = vpop.f32.mrf.mxu0
  %616 = vmatprep.mubr.f32.mxu0 0.0
  %617 = vmatmul.mubr.f32.gmra.mxu0 %v523
  %v618 = vpop.f32.mrf.mxu0
  %v619 = vadd.f32 %v511, %v618
  %v620 = vpop.f32.mrf.mxu0
  %621 = vmatprep.mubr.f32.mxu0 0.0
  %622 = vmatmul.mubr.f32.gmra.mxu0 %v526
  %v623 = vpop.f32.mrf.mxu0
  %v624 = vadd.f32 %v511, %v623
  %v625 = vpop.f32.mrf.mxu0
  %626 = vmatprep.mubr.f32.mxu0 0.0
  %627 = vmatmul.mubr.f32.gmra.mxu0 %v529
  %v628 = vpop.f32.mrf.mxu0
  %v629 = vadd.f32 %v511, %v628
  %v630 = vpop.f32.mrf.mxu0
  %631 = vmatprep.mubr.f32.mxu0 0.0
  %632 = vmatmul.mubr.f32.gmra.mxu0 %v532
  %v633 = vpop.f32.mrf.mxu0
  %v634 = vadd.f32 %v511, %v633
  %v635 = vpop.f32.mrf.mxu0
  %636 = vmatprep.mubr.f32.mxu0 0.0
  %637 = vmatmul.mubr.f32.gmra.mxu0 %v535
  %v638 = vpop.f32.mrf.mxu0
  %v639 = vadd.f32 %v511, %v638
  %v640 = vpop.f32.mrf.mxu0
  %641 = vdwg.mxu0
  %v642 = vand.u32 2147483647, %v604
  %vm643 = vcmp.le.f32.partialorder %v642, 0.7853982
  %vm644 = vcmp.lt.s32.totalorder %v604, 0
  %v645 = vand.u32 %v604, 2139095040
  %v646 = vshrl.u32 %v645, 23
  %v647 = vsub.s32 %v646, 127
  %v648 = vand.u32 2147483647, %v604
  %v649 = vand.u32 %v648, 8388607
  %v650 = vor.u32 %v649, 8388608
  %v651 = vsub.s32 0, %v650
  %v652 = vadd.s32 %v647, 1
  %vm653 = vcmp.gt.s32.totalorder %v652, 0
  %v654 = vsel %vm653, %v652, 0
  %v655 = vshrl.u32 %v654, 5
  %v656 = vand.u32 %v654, 31
  %v657 = vsub.s32 32, %v656
  %v658 = vshrl.u32 683565275, %v657
  %v659 = vshll.u32 683565275, %v656
  %v660 = vshrl.u32 2475754826, %v657
  %v661 = vor.u32 %v659, %v660
  %v662 = vshll.u32 2475754826, %v656
  %v663 = vshrl.u32 2131351028, %v657
  %v664 = vor.u32 %v662, %v663
  %v665 = vshll.u32 2131351028, %v656
  %v666 = vshrl.u32 2102212464, %v657
  %v667 = vor.u32 %v665, %v666
  %v668 = vshll.u32 2102212464, %v656
  %v669 = vshrl.u32 920167782, %v657
  %v670 = vor.u32 %v668, %v669
  %v671 = vshll.u32 920167782, %v656
  %v672 = vshrl.u32 1326507024, %v657
  %v673 = vor.u32 %v671, %v672
  %vm674 = vcmp.lt.s32.totalorder %v655, 1
  %vm675 = vcmp.lt.s32.totalorder %v655, 2
  %vm676 = vcmp.lt.s32.totalorder %v655, 3
  %vm677 = vcmp.lt.s32.totalorder %v655, 4
  %v678 = vsel %vm674, %v658, %v661
  %v679 = vsel %vm677, %v667, 2102212464
  %v680 = vsel %vm676, %v664, %v679
  %v681 = vsel %vm675, %v678, %v680
  %v682 = vsel %vm674, %v661, %v664
  %v683 = vsel %vm677, %v670, 920167782
  %v684 = vsel %vm676, %v667, %v683
  %v685 = vsel %vm675, %v682, %v684
  %v686 = vsel %vm674, %v664, %v667
  %v687 = vsel %vm677, %v673, 1326507024
  %v688 = vsel %vm676, %v670, %v687
  %v689 = vsel %vm675, %v686, %v688
  %v690 = vshll.u32 %v650, 8
  %v691 = vmul.u32.u64.compose %v690, %v689
  %v692 = vextract.low.u32 %v691
  %v693 = vextract.high.u32 %v691
  %v694 = vmul.u32.u64.compose %v690, %v685
  %v695 = vextract.low.u32 %v694
  %v696 = vextract.high.u32 %v694
  %v697 = vmul.u32 %v690, %v681
  %v698 = vadd.s32 %v693, %v695
  %vm699 = vc.u32 %v693, %v695
  %v700 = vadd.s32 %v696, 1
  %v701 = vsel %vm699, %v700, %v696
  %v702 = vadd.s32 %v697, %v701
  %v703 = vadd.s32 %v702, 536870912
  %v704 = vshrl.u32 %v703, 30
  %v705 = vshll.u32 %v704, 30
  %v706 = vsub.s32 %v702, %v705
  %vm707 = vcmp.lt.s32.totalorder %v706, 0
  %v708 = vsub.s32 0, %v706
  %v709 = vsel %vm707, %v708, %v706
  %v710 = vclz %v709
  %v711 = vsub.s32 %v710, 2
  %vm712 = vcmp.gt.s32.totalorder 0, %v711
  %v713 = vsel %vm712, 0, %v711
  %v714 = vsub.s32 32, %v713
  %v715 = vshll.u32 %v706, %v713
  %v716 = vshrl.u32 %v698, %v714
  %v717 = vor.u32 %v715, %v716
  %v718 = vsub.s32 4294967266, %v713
  %v719 = vadd.s32 %v718, 127
  %v720 = vshll.u32 %v719, 23
  %v721 = vor.u32 4788187, %v720
  %v722 = vand.u32 2147483647, %v721
  %v724 = vcvt.s32.f32 %v717
  %v725 = vmul.f32 %v724, %v722
  %v726 = vxor.u32 %v725, 2147483648
  %v727 = vsel %vm644, %v726, %v725
  %v728 = vsub.s32 4, %v704
  %v729 = vsel %vm644, %v728, %v704
  %v730 = vsel %vm643, %v604, %v727
  %v731 = vsel %vm643, 0, %v729
  %v732 = vcosq.f32.pop %v730
  %v733 = vsinq.f32.pop %v730
  %vm734 = vweird.f32 %v604
  %v735 = vand.u32 %v731, 3
  %vm736 = vcmp.lt.s32.totalorder %v735, 2
  %vm737 = vcmp.eq.s32.totalorder %v735, 0
  %v738 = vxor.u32 %v733, 2147483648
  %v739 = vsel %vm737, %v732, %v738
  %vm740 = vcmp.eq.s32.totalorder %v735, 2
  %v741 = vxor.u32 %v732, 2147483648
  %v742 = vsel %vm740, %v741, %v733
  %v743 = vsel %vm736, %v739, %v742
  %v744 = vsel %vm734, nan, %v743
  %v745 = vand.u32 2147483647, %v609
  %vm746 = vcmp.le.f32.partialorder %v745, 0.7853982
  %vm747 = vcmp.lt.s32.totalorder %v609, 0
  %v748 = vand.u32 %v609, 2139095040
  %v749 = vshrl.u32 %v748, 23
  %v750 = vsub.s32 %v749, 127
  %v751 = vand.u32 2147483647, %v609
  %v752 = vand.u32 %v751, 8388607
  %v753 = vor.u32 %v752, 8388608
  %v754 = vsub.s32 0, %v753
  %v755 = vadd.s32 %v750, 1
  %vm756 = vcmp.gt.s32.totalorder %v755, 0
  %v757 = vsel %vm756, %v755, 0
  %v758 = vshrl.u32 %v757, 5
  %v759 = vand.u32 %v757, 31
  %v760 = vsub.s32 32, %v759
  %v761 = vshrl.u32 683565275, %v760
  %v762 = vshll.u32 683565275, %v759
  %v763 = vshrl.u32 2475754826, %v760
  %v764 = vor.u32 %v762, %v763
  %v765 = vshll.u32 2475754826, %v759
  %v766 = vshrl.u32 2131351028, %v760
  %v767 = vor.u32 %v765, %v766
  %v768 = vshll.u32 2131351028, %v759
  %v769 = vshrl.u32 2102212464, %v760
  %v770 = vor.u32 %v768, %v769
  %v771 = vshll.u32 2102212464, %v759
  %v772 = vshrl.u32 920167782, %v760
  %v773 = vor.u32 %v771, %v772
  %v774 = vshll.u32 920167782, %v759
  %v775 = vshrl.u32 1326507024, %v760
  %v776 = vor.u32 %v774, %v775
  %vm777 = vcmp.lt.s32.totalorder %v758, 1
  %vm778 = vcmp.lt.s32.totalorder %v758, 2
  %vm779 = vcmp.lt.s32.totalorder %v758, 3
  %vm780 = vcmp.lt.s32.totalorder %v758, 4
  %v781 = vsel %vm777, %v761, %v764
  %v782 = vsel %vm780, %v770, 2102212464
  %v783 = vsel %vm779, %v767, %v782
  %v784 = vsel %vm778, %v781, %v783
  %v785 = vsel %vm777, %v764, %v767
  %v786 = vsel %vm780, %v773, 920167782
  %v787 = vsel %vm779, %v770, %v786
  %v788 = vsel %vm778, %v785, %v787
  %v789 = vsel %vm777, %v767, %v770
  %v790 = vsel %vm780, %v776, 1326507024
  %v791 = vsel %vm779, %v773, %v790
  %v792 = vsel %vm778, %v789, %v791
  %v793 = vshll.u32 %v753, 8
  %v794 = vmul.u32.u64.compose %v793, %v792
  %v795 = vextract.low.u32 %v794
  %v796 = vextract.high.u32 %v794
  %v797 = vmul.u32.u64.compose %v793, %v788
  %v798 = vextract.low.u32 %v797
  %v799 = vextract.high.u32 %v797
  %v800 = vmul.u32 %v793, %v784
  %v801 = vadd.s32 %v796, %v798
  %vm802 = vc.u32 %v796, %v798
  %v803 = vadd.s32 %v799, 1
  %v804 = vsel %vm802, %v803, %v799
  %v805 = vadd.s32 %v800, %v804
  %v806 = vadd.s32 %v805, 536870912
  %v807 = vshrl.u32 %v806, 30
  %v808 = vshll.u32 %v807, 30
  %v809 = vsub.s32 %v805, %v808
  %vm810 = vcmp.lt.s32.totalorder %v809, 0
  %v811 = vsub.s32 0, %v809
  %v812 = vsel %vm810, %v811, %v809
  %v813 = vclz %v812
  %v814 = vsub.s32 %v813, 2
  %vm815 = vcmp.gt.s32.totalorder 0, %v814
  %v816 = vsel %vm815, 0, %v814
  %v817 = vsub.s32 32, %v816
  %v818 = vshll.u32 %v809, %v816
  %v819 = vshrl.u32 %v801, %v817
  %v820 = vor.u32 %v818, %v819
  %v821 = vsub.s32 4294967266, %v816
  %v822 = vadd.s32 %v821, 127
  %v823 = vshll.u32 %v822, 23
  %v824 = vor.u32 4788187, %v823
  %v825 = vand.u32 2147483647, %v824
  %v827 = vcvt.s32.f32 %v820
  %v828 = vmul.f32 %v827, %v825
  %v829 = vxor.u32 %v828, 2147483648
  %v830 = vsel %vm747, %v829, %v828
  %v831 = vsub.s32 4, %v807
  %v832 = vsel %vm747, %v831, %v807
  %v833 = vsel %vm746, %v609, %v830
  %v834 = vsel %vm746, 0, %v832
  %v835 = vcosq.f32.pop %v833
  %v836 = vsinq.f32.pop %v833
  %vm837 = vweird.f32 %v609
  %v838 = vand.u32 %v834, 3
  %vm839 = vcmp.lt.s32.totalorder %v838, 2
  %vm840 = vcmp.eq.s32.totalorder %v838, 0
  %v841 = vxor.u32 %v836, 2147483648
  %v842 = vsel %vm840, %v835, %v841
  %vm843 = vcmp.eq.s32.totalorder %v838, 2
  %v844 = vxor.u32 %v835, 2147483648
  %v845 = vsel %vm843, %v844, %v836
  %v846 = vsel %vm839, %v842, %v845
  %v847 = vsel %vm837, nan, %v846
  %v848 = vand.u32 2147483647, %v614
  %vm849 = vcmp.le.f32.partialorder %v848, 0.7853982
  %vm850 = vcmp.lt.s32.totalorder %v614, 0
  %v851 = vand.u32 %v614, 2139095040
  %v852 = vshrl.u32 %v851, 23
  %v853 = vsub.s32 %v852, 127
  %v854 = vand.u32 2147483647, %v614
  %v855 = vand.u32 %v854, 8388607
  %v856 = vor.u32 %v855, 8388608
  %v857 = vsub.s32 0, %v856
  %v858 = vadd.s32 %v853, 1
  %vm859 = vcmp.gt.s32.totalorder %v858, 0
  %v860 = vsel %vm859, %v858, 0
  %v861 = vshrl.u32 %v860, 5
  %v862 = vand.u32 %v860, 31
  %v863 = vsub.s32 32, %v862
  %v864 = vshrl.u32 683565275, %v863
  %v865 = vshll.u32 683565275, %v862
  %v866 = vshrl.u32 2475754826, %v863
  %v867 = vor.u32 %v865, %v866
  %v868 = vshll.u32 2475754826, %v862
  %v869 = vshrl.u32 2131351028, %v863
  %v870 = vor.u32 %v868, %v869
  %v871 = vshll.u32 2131351028, %v862
  %v872 = vshrl.u32 2102212464, %v863
  %v873 = vor.u32 %v871, %v872
  %v874 = vshll.u32 2102212464, %v862
  %v875 = vshrl.u32 920167782, %v863
  %v876 = vor.u32 %v874, %v875
  %v877 = vshll.u32 920167782, %v862
  %v878 = vshrl.u32 1326507024, %v863
  %v879 = vor.u32 %v877, %v878
  %vm880 = vcmp.lt.s32.totalorder %v861, 1
  %vm881 = vcmp.lt.s32.totalorder %v861, 2
  %vm882 = vcmp.lt.s32.totalorder %v861, 3
  %vm883 = vcmp.lt.s32.totalorder %v861, 4
  %v884 = vsel %vm880, %v864, %v867
  %v885 = vsel %vm883, %v873, 2102212464
  %v886 = vsel %vm882, %v870, %v885
  %v887 = vsel %vm881, %v884, %v886
  %v888 = vsel %vm880, %v867, %v870
  %v889 = vsel %vm883, %v876, 920167782
  %v890 = vsel %vm882, %v873, %v889
  %v891 = vsel %vm881, %v888, %v890
  %v892 = vsel %vm880, %v870, %v873
  %v893 = vsel %vm883, %v879, 1326507024
  %v894 = vsel %vm882, %v876, %v893
  %v895 = vsel %vm881, %v892, %v894
  %v896 = vshll.u32 %v856, 8
  %v897 = vmul.u32.u64.compose %v896, %v895
  %v898 = vextract.low.u32 %v897
  %v899 = vextract.high.u32 %v897
  %v900 = vmul.u32.u64.compose %v896, %v891
  %v901 = vextract.low.u32 %v900
  %v902 = vextract.high.u32 %v900
  %v903 = vmul.u32 %v896, %v887
  %v904 = vadd.s32 %v899, %v901
  %vm905 = vc.u32 %v899, %v901
  %v906 = vadd.s32 %v902, 1
  %v907 = vsel %vm905, %v906, %v902
  %v908 = vadd.s32 %v903, %v907
  %v909 = vadd.s32 %v908, 536870912
  %v910 = vshrl.u32 %v909, 30
  %v911 = vshll.u32 %v910, 30
  %v912 = vsub.s32 %v908, %v911
  %vm913 = vcmp.lt.s32.totalorder %v912, 0
  %v914 = vsub.s32 0, %v912
  %v915 = vsel %vm913, %v914, %v912
  %v916 = vclz %v915
  %v917 = vsub.s32 %v916, 2
  %vm918 = vcmp.gt.s32.totalorder 0, %v917
  %v919 = vsel %vm918, 0, %v917
  %v920 = vsub.s32 32, %v919
  %v921 = vshll.u32 %v912, %v919
  %v922 = vshrl.u32 %v904, %v920
  %v923 = vor.u32 %v921, %v922
  %v924 = vsub.s32 4294967266, %v919
  %v925 = vadd.s32 %v924, 127
  %v926 = vshll.u32 %v925, 23
  %v927 = vor.u32 4788187, %v926
  %v928 = vand.u32 2147483647, %v927
  %v930 = vcvt.s32.f32 %v923
  %v931 = vmul.f32 %v930, %v928
  %v932 = vxor.u32 %v931, 2147483648
  %v933 = vsel %vm850, %v932, %v931
  %v934 = vsub.s32 4, %v910
  %v935 = vsel %vm850, %v934, %v910
  %v936 = vsel %vm849, %v614, %v933
  %v937 = vsel %vm849, 0, %v935
  %v938 = vcosq.f32.pop %v936
  %v939 = vsinq.f32.pop %v936
  %vm940 = vweird.f32 %v614
  %v941 = vand.u32 %v937, 3
  %vm942 = vcmp.lt.s32.totalorder %v941, 2
  %vm943 = vcmp.eq.s32.totalorder %v941, 0
  %v944 = vxor.u32 %v939, 2147483648
  %v945 = vsel %vm943, %v938, %v944
  %vm946 = vcmp.eq.s32.totalorder %v941, 2
  %v947 = vxor.u32 %v938, 2147483648
  %v948 = vsel %vm946, %v947, %v939
  %v949 = vsel %vm942, %v945, %v948
  %v950 = vsel %vm940, nan, %v949
  %v951 = vand.u32 2147483647, %v619
  %vm952 = vcmp.le.f32.partialorder %v951, 0.7853982
  %vm953 = vcmp.lt.s32.totalorder %v619, 0
  %v954 = vand.u32 %v619, 2139095040
  %v955 = vshrl.u32 %v954, 23
  %v956 = vsub.s32 %v955, 127
  %v957 = vand.u32 2147483647, %v619
  %v958 = vand.u32 %v957, 8388607
  %v959 = vor.u32 %v958, 8388608
  %v960 = vsub.s32 0, %v959
  %v961 = vadd.s32 %v956, 1
  %vm962 = vcmp.gt.s32.totalorder %v961, 0
  %v963 = vsel %vm962, %v961, 0
  %v964 = vshrl.u32 %v963, 5
  %v965 = vand.u32 %v963, 31
  %v966 = vsub.s32 32, %v965
  %v967 = vshrl.u32 683565275, %v966
  %v968 = vshll.u32 683565275, %v965
  %v969 = vshrl.u32 2475754826, %v966
  %v970 = vor.u32 %v968, %v969
  %v971 = vshll.u32 2475754826, %v965
  %v972 = vshrl.u32 2131351028, %v966
  %v973 = vor.u32 %v971, %v972
  %v974 = vshll.u32 2131351028, %v965
  %v975 = vshrl.u32 2102212464, %v966
  %v976 = vor.u32 %v974, %v975
  %v977 = vshll.u32 2102212464, %v965
  %v978 = vshrl.u32 920167782, %v966
  %v979 = vor.u32 %v977, %v978
  %v980 = vshll.u32 920167782, %v965
  %v981 = vshrl.u32 1326507024, %v966
  %v982 = vor.u32 %v980, %v981
  %vm983 = vcmp.lt.s32.totalorder %v964, 1
  %vm984 = vcmp.lt.s32.totalorder %v964, 2
  %vm985 = vcmp.lt.s32.totalorder %v964, 3
  %vm986 = vcmp.lt.s32.totalorder %v964, 4
  %v987 = vsel %vm983, %v967, %v970
  %v988 = vsel %vm986, %v976, 2102212464
  %v989 = vsel %vm985, %v973, %v988
  %v990 = vsel %vm984, %v987, %v989
  %v991 = vsel %vm983, %v970, %v973
  %v992 = vsel %vm986, %v979, 920167782
  %v993 = vsel %vm985, %v976, %v992
  %v994 = vsel %vm984, %v991, %v993
  %v995 = vsel %vm983, %v973, %v976
  %v996 = vsel %vm986, %v982, 1326507024
  %v997 = vsel %vm985, %v979, %v996
  %v998 = vsel %vm984, %v995, %v997
  %v999 = vshll.u32 %v959, 8
  %v1000 = vmul.u32.u64.compose %v999, %v998
  %v1001 = vextract.low.u32 %v1000
  %v1002 = vextract.high.u32 %v1000
  %v1003 = vmul.u32.u64.compose %v999, %v994
  %v1004 = vextract.low.u32 %v1003
  %v1005 = vextract.high.u32 %v1003
  %v1006 = vmul.u32 %v999, %v990
  %v1007 = vadd.s32 %v1002, %v1004
  %vm1008 = vc.u32 %v1002, %v1004
  %v1009 = vadd.s32 %v1005, 1
  %v1010 = vsel %vm1008, %v1009, %v1005
  %v1011 = vadd.s32 %v1006, %v1010
  %v1012 = vadd.s32 %v1011, 536870912
  %v1013 = vshrl.u32 %v1012, 30
  %v1014 = vshll.u32 %v1013, 30
  %v1015 = vsub.s32 %v1011, %v1014
  %vm1016 = vcmp.lt.s32.totalorder %v1015, 0
  %v1017 = vsub.s32 0, %v1015
  %v1018 = vsel %vm1016, %v1017, %v1015
  %v1019 = vclz %v1018
  %v1020 = vsub.s32 %v1019, 2
  %vm1021 = vcmp.gt.s32.totalorder 0, %v1020
  %v1022 = vsel %vm1021, 0, %v1020
  %v1023 = vsub.s32 32, %v1022
  %v1024 = vshll.u32 %v1015, %v1022
  %v1025 = vshrl.u32 %v1007, %v1023
  %v1026 = vor.u32 %v1024, %v1025
  %v1027 = vsub.s32 4294967266, %v1022
  %v1028 = vadd.s32 %v1027, 127
  %v1029 = vshll.u32 %v1028, 23
  %v1030 = vor.u32 4788187, %v1029
  %v1031 = vand.u32 2147483647, %v1030
  %v1033 = vcvt.s32.f32 %v1026
  %v1034 = vmul.f32 %v1033, %v1031
  %v1035 = vxor.u32 %v1034, 2147483648
  %v1036 = vsel %vm953, %v1035, %v1034
  %v1037 = vsub.s32 4, %v1013
  %v1038 = vsel %vm953, %v1037, %v1013
  %v1039 = vsel %vm952, %v619, %v1036
  %v1040 = vsel %vm952, 0, %v1038
  %v1041 = vcosq.f32.pop %v1039
  %v1042 = vsinq.f32.pop %v1039
  %vm1043 = vweird.f32 %v619
  %v1044 = vand.u32 %v1040, 3
  %vm1045 = vcmp.lt.s32.totalorder %v1044, 2
  %vm1046 = vcmp.eq.s32.totalorder %v1044, 0
  %v1047 = vxor.u32 %v1042, 2147483648
  %v1048 = vsel %vm1046, %v1041, %v1047
  %vm1049 = vcmp.eq.s32.totalorder %v1044, 2
  %v1050 = vxor.u32 %v1041, 2147483648
  %v1051 = vsel %vm1049, %v1050, %v1042
  %v1052 = vsel %vm1045, %v1048, %v1051
  %v1053 = vsel %vm1043, nan, %v1052
  %v1054 = vand.u32 2147483647, %v624
  %vm1055 = vcmp.le.f32.partialorder %v1054, 0.7853982
  %vm1056 = vcmp.lt.s32.totalorder %v624, 0
  %v1057 = vand.u32 %v624, 2139095040
  %v1058 = vshrl.u32 %v1057, 23
  %v1059 = vsub.s32 %v1058, 127
  %v1060 = vand.u32 2147483647, %v624
  %v1061 = vand.u32 %v1060, 8388607
  %v1062 = vor.u32 %v1061, 8388608
  %v1063 = vsub.s32 0, %v1062
  %v1064 = vadd.s32 %v1059, 1
  %vm1065 = vcmp.gt.s32.totalorder %v1064, 0
  %v1066 = vsel %vm1065, %v1064, 0
  %v1067 = vshrl.u32 %v1066, 5
  %v1068 = vand.u32 %v1066, 31
  %v1069 = vsub.s32 32, %v1068
  %v1070 = vshrl.u32 683565275, %v1069
  %v1071 = vshll.u32 683565275, %v1068
  %v1072 = vshrl.u32 2475754826, %v1069
  %v1073 = vor.u32 %v1071, %v1072
  %v1074 = vshll.u32 2475754826, %v1068
  %v1075 = vshrl.u32 2131351028, %v1069
  %v1076 = vor.u32 %v1074, %v1075
  %v1077 = vshll.u32 2131351028, %v1068
  %v1078 = vshrl.u32 2102212464, %v1069
  %v1079 = vor.u32 %v1077, %v1078
  %v1080 = vshll.u32 2102212464, %v1068
  %v1081 = vshrl.u32 920167782, %v1069
  %v1082 = vor.u32 %v1080, %v1081
  %v1083 = vshll.u32 920167782, %v1068
  %v1084 = vshrl.u32 1326507024, %v1069
  %v1085 = vor.u32 %v1083, %v1084
  %vm1086 = vcmp.lt.s32.totalorder %v1067, 1
  %vm1087 = vcmp.lt.s32.totalorder %v1067, 2
  %vm1088 = vcmp.lt.s32.totalorder %v1067, 3
  %vm1089 = vcmp.lt.s32.totalorder %v1067, 4
  %v1090 = vsel %vm1086, %v1070, %v1073
  %v1091 = vsel %vm1089, %v1079, 2102212464
  %v1092 = vsel %vm1088, %v1076, %v1091
  %v1093 = vsel %vm1087, %v1090, %v1092
  %v1094 = vsel %vm1086, %v1073, %v1076
  %v1095 = vsel %vm1089, %v1082, 920167782
  %v1096 = vsel %vm1088, %v1079, %v1095
  %v1097 = vsel %vm1087, %v1094, %v1096
  %v1098 = vsel %vm1086, %v1076, %v1079
  %v1099 = vsel %vm1089, %v1085, 1326507024
  %v1100 = vsel %vm1088, %v1082, %v1099
  %v1101 = vsel %vm1087, %v1098, %v1100
  %v1102 = vshll.u32 %v1062, 8
  %v1103 = vmul.u32.u64.compose %v1102, %v1101
  %v1104 = vextract.low.u32 %v1103
  %v1105 = vextract.high.u32 %v1103
  %v1106 = vmul.u32.u64.compose %v1102, %v1097
  %v1107 = vextract.low.u32 %v1106
  %v1108 = vextract.high.u32 %v1106
  %v1109 = vmul.u32 %v1102, %v1093
  %v1110 = vadd.s32 %v1105, %v1107
  %vm1111 = vc.u32 %v1105, %v1107
  %v1112 = vadd.s32 %v1108, 1
  %v1113 = vsel %vm1111, %v1112, %v1108
  %v1114 = vadd.s32 %v1109, %v1113
  %v1115 = vadd.s32 %v1114, 536870912
  %v1116 = vshrl.u32 %v1115, 30
  %v1117 = vshll.u32 %v1116, 30
  %v1118 = vsub.s32 %v1114, %v1117
  %vm1119 = vcmp.lt.s32.totalorder %v1118, 0
  %v1120 = vsub.s32 0, %v1118
  %v1121 = vsel %vm1119, %v1120, %v1118
  %v1122 = vclz %v1121
  %v1123 = vsub.s32 %v1122, 2
  %vm1124 = vcmp.gt.s32.totalorder 0, %v1123
  %v1125 = vsel %vm1124, 0, %v1123
  %v1126 = vsub.s32 32, %v1125
  %v1127 = vshll.u32 %v1118, %v1125
  %v1128 = vshrl.u32 %v1110, %v1126
  %v1129 = vor.u32 %v1127, %v1128
  %v1130 = vsub.s32 4294967266, %v1125
  %v1131 = vadd.s32 %v1130, 127
  %v1132 = vshll.u32 %v1131, 23
  %v1133 = vor.u32 4788187, %v1132
  %v1134 = vand.u32 2147483647, %v1133
  %v1136 = vcvt.s32.f32 %v1129
  %v1137 = vmul.f32 %v1136, %v1134
  %v1138 = vxor.u32 %v1137, 2147483648
  %v1139 = vsel %vm1056, %v1138, %v1137
  %v1140 = vsub.s32 4, %v1116
  %v1141 = vsel %vm1056, %v1140, %v1116
  %v1142 = vsel %vm1055, %v624, %v1139
  %v1143 = vsel %vm1055, 0, %v1141
  %v1144 = vcosq.f32.pop %v1142
  %v1145 = vsinq.f32.pop %v1142
  %vm1146 = vweird.f32 %v624
  %v1147 = vand.u32 %v1143, 3
  %vm1148 = vcmp.lt.s32.totalorder %v1147, 2
  %vm1149 = vcmp.eq.s32.totalorder %v1147, 0
  %v1150 = vxor.u32 %v1145, 2147483648
  %v1151 = vsel %vm1149, %v1144, %v1150
  %vm1152 = vcmp.eq.s32.totalorder %v1147, 2
  %v1153 = vxor.u32 %v1144, 2147483648
  %v1154 = vsel %vm1152, %v1153, %v1145
  %v1155 = vsel %vm1148, %v1151, %v1154
  %v1156 = vsel %vm1146, nan, %v1155
  %v1157 = vand.u32 2147483647, %v629
  %vm1158 = vcmp.le.f32.partialorder %v1157, 0.7853982
  %vm1159 = vcmp.lt.s32.totalorder %v629, 0
  %v1160 = vand.u32 %v629, 2139095040
  %v1161 = vshrl.u32 %v1160, 23
  %v1162 = vsub.s32 %v1161, 127
  %v1163 = vand.u32 2147483647, %v629
  %v1164 = vand.u32 %v1163, 8388607
  %v1165 = vor.u32 %v1164, 8388608
  %v1166 = vsub.s32 0, %v1165
  %v1167 = vadd.s32 %v1162, 1
  %vm1168 = vcmp.gt.s32.totalorder %v1167, 0
  %v1169 = vsel %vm1168, %v1167, 0
  %v1170 = vshrl.u32 %v1169, 5
  %v1171 = vand.u32 %v1169, 31
  %v1172 = vsub.s32 32, %v1171
  %v1173 = vshrl.u32 683565275, %v1172
  %v1174 = vshll.u32 683565275, %v1171
  %v1175 = vshrl.u32 2475754826, %v1172
  %v1176 = vor.u32 %v1174, %v1175
  %v1177 = vshll.u32 2475754826, %v1171
  %v1178 = vshrl.u32 2131351028, %v1172
  %v1179 = vor.u32 %v1177, %v1178
  %v1180 = vshll.u32 2131351028, %v1171
  %v1181 = vshrl.u32 2102212464, %v1172
  %v1182 = vor.u32 %v1180, %v1181
  %v1183 = vshll.u32 2102212464, %v1171
  %v1184 = vshrl.u32 920167782, %v1172
  %v1185 = vor.u32 %v1183, %v1184
  %v1186 = vshll.u32 920167782, %v1171
  %v1187 = vshrl.u32 1326507024, %v1172
  %v1188 = vor.u32 %v1186, %v1187
  %vm1189 = vcmp.lt.s32.totalorder %v1170, 1
  %vm1190 = vcmp.lt.s32.totalorder %v1170, 2
  %vm1191 = vcmp.lt.s32.totalorder %v1170, 3
  %vm1192 = vcmp.lt.s32.totalorder %v1170, 4
  %v1193 = vsel %vm1189, %v1173, %v1176
  %v1194 = vsel %vm1192, %v1182, 2102212464
  %v1195 = vsel %vm1191, %v1179, %v1194
  %v1196 = vsel %vm1190, %v1193, %v1195
  %v1197 = vsel %vm1189, %v1176, %v1179
  %v1198 = vsel %vm1192, %v1185, 920167782
  %v1199 = vsel %vm1191, %v1182, %v1198
  %v1200 = vsel %vm1190, %v1197, %v1199
  %v1201 = vsel %vm1189, %v1179, %v1182
  %v1202 = vsel %vm1192, %v1188, 1326507024
  %v1203 = vsel %vm1191, %v1185, %v1202
  %v1204 = vsel %vm1190, %v1201, %v1203
  %v1205 = vshll.u32 %v1165, 8
  %v1206 = vmul.u32.u64.compose %v1205, %v1204
  %v1207 = vextract.low.u32 %v1206
  %v1208 = vextract.high.u32 %v1206
  %v1209 = vmul.u32.u64.compose %v1205, %v1200
  %v1210 = vextract.low.u32 %v1209
  %v1211 = vextract.high.u32 %v1209
  %v1212 = vmul.u32 %v1205, %v1196
  %v1213 = vadd.s32 %v1208, %v1210
  %vm1214 = vc.u32 %v1208, %v1210
  %v1215 = vadd.s32 %v1211, 1
  %v1216 = vsel %vm1214, %v1215, %v1211
  %v1217 = vadd.s32 %v1212, %v1216
  %v1218 = vadd.s32 %v1217, 536870912
  %v1219 = vshrl.u32 %v1218, 30
  %v1220 = vshll.u32 %v1219, 30
  %v1221 = vsub.s32 %v1217, %v1220
  %vm1222 = vcmp.lt.s32.totalorder %v1221, 0
  %v1223 = vsub.s32 0, %v1221
  %v1224 = vsel %vm1222, %v1223, %v1221
  %v1225 = vclz %v1224
  %v1226 = vsub.s32 %v1225, 2
  %vm1227 = vcmp.gt.s32.totalorder 0, %v1226
  %v1228 = vsel %vm1227, 0, %v1226
  %v1229 = vsub.s32 32, %v1228
  %v1230 = vshll.u32 %v1221, %v1228
  %v1231 = vshrl.u32 %v1213, %v1229
  %v1232 = vor.u32 %v1230, %v1231
  %v1233 = vsub.s32 4294967266, %v1228
  %v1234 = vadd.s32 %v1233, 127
  %v1235 = vshll.u32 %v1234, 23
  %v1236 = vor.u32 4788187, %v1235
  %v1237 = vand.u32 2147483647, %v1236
  %v1239 = vcvt.s32.f32 %v1232
  %v1240 = vmul.f32 %v1239, %v1237
  %v1241 = vxor.u32 %v1240, 2147483648
  %v1242 = vsel %vm1159, %v1241, %v1240
  %v1243 = vsub.s32 4, %v1219
  %v1244 = vsel %vm1159, %v1243, %v1219
  %v1245 = vsel %vm1158, %v629, %v1242
  %v1246 = vsel %vm1158, 0, %v1244
  %v1247 = vcosq.f32.pop %v1245
  %v1248 = vsinq.f32.pop %v1245
  %vm1249 = vweird.f32 %v629
  %v1250 = vand.u32 %v1246, 3
  %vm1251 = vcmp.lt.s32.totalorder %v1250, 2
  %vm1252 = vcmp.eq.s32.totalorder %v1250, 0
  %v1253 = vxor.u32 %v1248, 2147483648
  %v1254 = vsel %vm1252, %v1247, %v1253
  %vm1255 = vcmp.eq.s32.totalorder %v1250, 2
  %v1256 = vxor.u32 %v1247, 2147483648
  %v1257 = vsel %vm1255, %v1256, %v1248
  %v1258 = vsel %vm1251, %v1254, %v1257
  %v1259 = vsel %vm1249, nan, %v1258
  %v1260 = vand.u32 2147483647, %v634
  %vm1261 = vcmp.le.f32.partialorder %v1260, 0.7853982
  %vm1262 = vcmp.lt.s32.totalorder %v634, 0
  %v1263 = vand.u32 %v634, 2139095040
  %v1264 = vshrl.u32 %v1263, 23
  %v1265 = vsub.s32 %v1264, 127
  %v1266 = vand.u32 2147483647, %v634
  %v1267 = vand.u32 %v1266, 8388607
  %v1268 = vor.u32 %v1267, 8388608
  %v1269 = vsub.s32 0, %v1268
  %v1270 = vadd.s32 %v1265, 1
  %vm1271 = vcmp.gt.s32.totalorder %v1270, 0
  %v1272 = vsel %vm1271, %v1270, 0
  %v1273 = vshrl.u32 %v1272, 5
  %v1274 = vand.u32 %v1272, 31
  %v1275 = vsub.s32 32, %v1274
  %v1276 = vshrl.u32 683565275, %v1275
  %v1277 = vshll.u32 683565275, %v1274
  %v1278 = vshrl.u32 2475754826, %v1275
  %v1279 = vor.u32 %v1277, %v1278
  %v1280 = vshll.u32 2475754826, %v1274
  %v1281 = vshrl.u32 2131351028, %v1275
  %v1282 = vor.u32 %v1280, %v1281
  %v1283 = vshll.u32 2131351028, %v1274
  %v1284 = vshrl.u32 2102212464, %v1275
  %v1285 = vor.u32 %v1283, %v1284
  %v1286 = vshll.u32 2102212464, %v1274
  %v1287 = vshrl.u32 920167782, %v1275
  %v1288 = vor.u32 %v1286, %v1287
  %v1289 = vshll.u32 920167782, %v1274
  %v1290 = vshrl.u32 1326507024, %v1275
  %v1291 = vor.u32 %v1289, %v1290
  %vm1292 = vcmp.lt.s32.totalorder %v1273, 1
  %vm1293 = vcmp.lt.s32.totalorder %v1273, 2
  %vm1294 = vcmp.lt.s32.totalorder %v1273, 3
  %vm1295 = vcmp.lt.s32.totalorder %v1273, 4
  %v1296 = vsel %vm1292, %v1276, %v1279
  %v1297 = vsel %vm1295, %v1285, 2102212464
  %v1298 = vsel %vm1294, %v1282, %v1297
  %v1299 = vsel %vm1293, %v1296, %v1298
  %v1300 = vsel %vm1292, %v1279, %v1282
  %v1301 = vsel %vm1295, %v1288, 920167782
  %v1302 = vsel %vm1294, %v1285, %v1301
  %v1303 = vsel %vm1293, %v1300, %v1302
  %v1304 = vsel %vm1292, %v1282, %v1285
  %v1305 = vsel %vm1295, %v1291, 1326507024
  %v1306 = vsel %vm1294, %v1288, %v1305
  %v1307 = vsel %vm1293, %v1304, %v1306
  %v1308 = vshll.u32 %v1268, 8
  %v1309 = vmul.u32.u64.compose %v1308, %v1307
  %v1310 = vextract.low.u32 %v1309
  %v1311 = vextract.high.u32 %v1309
  %v1312 = vmul.u32.u64.compose %v1308, %v1303
  %v1313 = vextract.low.u32 %v1312
  %v1314 = vextract.high.u32 %v1312
  %v1315 = vmul.u32 %v1308, %v1299
  %v1316 = vadd.s32 %v1311, %v1313
  %vm1317 = vc.u32 %v1311, %v1313
  %v1318 = vadd.s32 %v1314, 1
  %v1319 = vsel %vm1317, %v1318, %v1314
  %v1320 = vadd.s32 %v1315, %v1319
  %v1321 = vadd.s32 %v1320, 536870912
  %v1322 = vshrl.u32 %v1321, 30
  %v1323 = vshll.u32 %v1322, 30
  %v1324 = vsub.s32 %v1320, %v1323
  %vm1325 = vcmp.lt.s32.totalorder %v1324, 0
  %v1326 = vsub.s32 0, %v1324
  %v1327 = vsel %vm1325, %v1326, %v1324
  %v1328 = vclz %v1327
  %v1329 = vsub.s32 %v1328, 2
  %vm1330 = vcmp.gt.s32.totalorder 0, %v1329
  %v1331 = vsel %vm1330, 0, %v1329
  %v1332 = vsub.s32 32, %v1331
  %v1333 = vshll.u32 %v1324, %v1331
  %v1334 = vshrl.u32 %v1316, %v1332
  %v1335 = vor.u32 %v1333, %v1334
  %v1336 = vsub.s32 4294967266, %v1331
  %v1337 = vadd.s32 %v1336, 127
  %v1338 = vshll.u32 %v1337, 23
  %v1339 = vor.u32 4788187, %v1338
  %v1340 = vand.u32 2147483647, %v1339
  %v1342 = vcvt.s32.f32 %v1335
  %v1343 = vmul.f32 %v1342, %v1340
  %v1344 = vxor.u32 %v1343, 2147483648
  %v1345 = vsel %vm1262, %v1344, %v1343
  %v1346 = vsub.s32 4, %v1322
  %v1347 = vsel %vm1262, %v1346, %v1322
  %v1348 = vsel %vm1261, %v634, %v1345
  %v1349 = vsel %vm1261, 0, %v1347
  %v1350 = vcosq.f32.pop %v1348
  %v1351 = vsinq.f32.pop %v1348
  %vm1352 = vweird.f32 %v634
  %v1353 = vand.u32 %v1349, 3
  %vm1354 = vcmp.lt.s32.totalorder %v1353, 2
  %vm1355 = vcmp.eq.s32.totalorder %v1353, 0
  %v1356 = vxor.u32 %v1351, 2147483648
  %v1357 = vsel %vm1355, %v1350, %v1356
  %vm1358 = vcmp.eq.s32.totalorder %v1353, 2
  %v1359 = vxor.u32 %v1350, 2147483648
  %v1360 = vsel %vm1358, %v1359, %v1351
  %v1361 = vsel %vm1354, %v1357, %v1360
  %v1362 = vsel %vm1352, nan, %v1361
  %v1363 = vand.u32 2147483647, %v639
  %vm1364 = vcmp.le.f32.partialorder %v1363, 0.7853982
  %vm1365 = vcmp.lt.s32.totalorder %v639, 0
  %v1366 = vand.u32 %v639, 2139095040
  %v1367 = vshrl.u32 %v1366, 23
  %v1368 = vsub.s32 %v1367, 127
  %v1369 = vand.u32 2147483647, %v639
  %v1370 = vand.u32 %v1369, 8388607
  %v1371 = vor.u32 %v1370, 8388608
  %v1372 = vsub.s32 0, %v1371
  %v1373 = vadd.s32 %v1368, 1
  %vm1374 = vcmp.gt.s32.totalorder %v1373, 0
  %v1375 = vsel %vm1374, %v1373, 0
  %v1376 = vshrl.u32 %v1375, 5
  %v1377 = vand.u32 %v1375, 31
  %v1378 = vsub.s32 32, %v1377
  %v1379 = vshrl.u32 683565275, %v1378
  %v1380 = vshll.u32 683565275, %v1377
  %v1381 = vshrl.u32 2475754826, %v1378
  %v1382 = vor.u32 %v1380, %v1381
  %v1383 = vshll.u32 2475754826, %v1377
  %v1384 = vshrl.u32 2131351028, %v1378
  %v1385 = vor.u32 %v1383, %v1384
  %v1386 = vshll.u32 2131351028, %v1377
  %v1387 = vshrl.u32 2102212464, %v1378
  %v1388 = vor.u32 %v1386, %v1387
  %v1389 = vshll.u32 2102212464, %v1377
  %v1390 = vshrl.u32 920167782, %v1378
  %v1391 = vor.u32 %v1389, %v1390
  %v1392 = vshll.u32 920167782, %v1377
  %v1393 = vshrl.u32 1326507024, %v1378
  %v1394 = vor.u32 %v1392, %v1393
  %vm1395 = vcmp.lt.s32.totalorder %v1376, 1
  %vm1396 = vcmp.lt.s32.totalorder %v1376, 2
  %vm1397 = vcmp.lt.s32.totalorder %v1376, 3
  %vm1398 = vcmp.lt.s32.totalorder %v1376, 4
  %v1399 = vsel %vm1395, %v1379, %v1382
  %v1400 = vsel %vm1398, %v1388, 2102212464
  %v1401 = vsel %vm1397, %v1385, %v1400
  %v1402 = vsel %vm1396, %v1399, %v1401
  %v1403 = vsel %vm1395, %v1382, %v1385
  %v1404 = vsel %vm1398, %v1391, 920167782
  %v1405 = vsel %vm1397, %v1388, %v1404
  %v1406 = vsel %vm1396, %v1403, %v1405
  %v1407 = vsel %vm1395, %v1385, %v1388
  %v1408 = vsel %vm1398, %v1394, 1326507024
  %v1409 = vsel %vm1397, %v1391, %v1408
  %v1410 = vsel %vm1396, %v1407, %v1409
  %v1411 = vshll.u32 %v1371, 8
  %v1412 = vmul.u32.u64.compose %v1411, %v1410
  %v1413 = vextract.low.u32 %v1412
  %v1414 = vextract.high.u32 %v1412
  %v1415 = vmul.u32.u64.compose %v1411, %v1406
  %v1416 = vextract.low.u32 %v1415
  %v1417 = vextract.high.u32 %v1415
  %v1418 = vmul.u32 %v1411, %v1402
  %v1419 = vadd.s32 %v1414, %v1416
  %vm1420 = vc.u32 %v1414, %v1416
  %v1421 = vadd.s32 %v1417, 1
  %v1422 = vsel %vm1420, %v1421, %v1417
  %v1423 = vadd.s32 %v1418, %v1422
  %v1424 = vadd.s32 %v1423, 536870912
  %v1425 = vshrl.u32 %v1424, 30
  %v1426 = vshll.u32 %v1425, 30
  %v1427 = vsub.s32 %v1423, %v1426
  %vm1428 = vcmp.lt.s32.totalorder %v1427, 0
  %v1429 = vsub.s32 0, %v1427
  %v1430 = vsel %vm1428, %v1429, %v1427
  %v1431 = vclz %v1430
  %v1432 = vsub.s32 %v1431, 2
  %vm1433 = vcmp.gt.s32.totalorder 0, %v1432
  %v1434 = vsel %vm1433, 0, %v1432
  %v1435 = vsub.s32 32, %v1434
  %v1436 = vshll.u32 %v1427, %v1434
  %v1437 = vshrl.u32 %v1419, %v1435
  %v1438 = vor.u32 %v1436, %v1437
  %v1439 = vsub.s32 4294967266, %v1434
  %v1440 = vadd.s32 %v1439, 127
  %v1441 = vshll.u32 %v1440, 23
  %v1442 = vor.u32 4788187, %v1441
  %v1443 = vand.u32 2147483647, %v1442
  %v1445 = vcvt.s32.f32 %v1438
  %v1446 = vmul.f32 %v1445, %v1443
  %v1447 = vxor.u32 %v1446, 2147483648
  %v1448 = vsel %vm1365, %v1447, %v1446
  %v1449 = vsub.s32 4, %v1425
  %v1450 = vsel %vm1365, %v1449, %v1425
  %v1451 = vsel %vm1364, %v639, %v1448
  %v1452 = vsel %vm1364, 0, %v1450
  %v1453 = vcosq.f32.pop %v1451
  %v1454 = vsinq.f32.pop %v1451
  %vm1455 = vweird.f32 %v639
  %v1456 = vand.u32 %v1452, 3
  %vm1457 = vcmp.lt.s32.totalorder %v1456, 2
  %vm1458 = vcmp.eq.s32.totalorder %v1456, 0
  %v1459 = vxor.u32 %v1454, 2147483648
  %v1460 = vsel %vm1458, %v1453, %v1459
  %vm1461 = vcmp.eq.s32.totalorder %v1456, 2
  %v1462 = vxor.u32 %v1453, 2147483648
  %v1463 = vsel %vm1461, %v1462, %v1454
  %v1464 = vsel %vm1457, %v1460, %v1463
  %v1465 = vsel %vm1455, nan, %v1464
  %v1466 = vmul.f32 %v744, 0.25
  %v1467 = vmul.f32 %v847, 0.25
  %v1468 = vmul.f32 %v950, 0.25
  %v1469 = vmul.f32 %v1053, 0.25
  %v1470 = vmul.f32 %v1156, 0.25
  %v1471 = vmul.f32 %v1259, 0.25
  %v1472 = vmul.f32 %v1362, 0.25
  %v1473 = vmul.f32 %v1465, 0.25
  %1474 = vrot.lane.b32.xlu0 %v464, 96
  %v1475 = vpop.permute.xlu0 %1474
  %1476 = vrot.lane.b32.xlu0 %v469, 96
  %v1477 = vpop.permute.xlu0 %1476
  %1478 = vrot.lane.b32.xlu0 %v474, 96
  %v1479 = vpop.permute.xlu0 %1478
  %1480 = vrot.lane.b32.xlu0 %v479, 96
  %v1481 = vpop.permute.xlu0 %1480
  %1482 = vrot.lane.b32.xlu0 %v484, 96
  %v1483 = vpop.permute.xlu0 %1482
  %1484 = vrot.lane.b32.xlu0 %v489, 96
  %v1485 = vpop.permute.xlu0 %1484
  %1486 = vrot.lane.b32.xlu0 %v494, 96
  %v1487 = vpop.permute.xlu0 %1486
  %1488 = vrot.lane.b32.xlu0 %v499, 96
  %v1489 = vpop.permute.xlu0 %1488
  %v1490 = vsel %vm228, %v1475, 0
  %v1492 = vsel %vm228, %v1477, 0
  %v1494 = vsel %vm228, %v1479, 0
  %v1496 = vsel %vm228, %v1481, 0
  %v1498 = vsel %vm228, %v1483, 0
  %v1500 = vsel %vm228, %v1485, 0
  %v1502 = vsel %vm228, %v1487, 0
  %v1504 = vsel %vm228, %v1489, 0
  %1506 = vmatprep.subr.mxu0 0.0
  %1507 = vmatpush1.msra.mxu0 0.0
  %1508 = vmatprep.subr.mxu0 0.0
  %1509 = vmatpush1.msra.mxu0 0.0
  %1510 = vmatprep.subr.mxu0 0.0
  %1511 = vmatpush1.msra.mxu0 0.0
  %1512 = vmatprep.subr.mxu0 0.0
  %1513 = vmatpush1.msra.mxu0 0.0
  %1514 = vmatprep.subr.mxu0 0.0
  %1515 = vmatpush1.msra.mxu0 0.0
  %1516 = vmatprep.subr.mxu0 0.0
  %1517 = vmatpush1.msra.mxu0 0.0
  %1518 = vmatprep.subr.mxu0 0.0
  %1519 = vmatpush1.msra.mxu0 0.0
  %1520 = vmatprep.subr.mxu0 0.0
  %1521 = vmatpush1.msra.mxu0 0.0
  %1522 = vmatprep.subr.mxu0 0.0
  %1523 = vmatpush1.msra.mxu0 0.0
  %1524 = vmatprep.subr.mxu0 0.0
  %1525 = vmatpush1.msra.mxu0 0.0
  %1526 = vmatprep.subr.mxu0 0.0
  %1527 = vmatpush1.msra.mxu0 0.0
  %1528 = vmatprep.subr.mxu0 0.0
  %1529 = vmatpush1.msra.mxu0 0.0
  %1530 = vmatprep.subr.mxu0 0.0
  %1531 = vmatpush1.msra.mxu0 %v505
  %1532 = vmatprep.subr.mxu0 0.0
  %1533 = vmatpush1.msra.mxu0 %v504
  %1534 = vmatprep.subr.mxu0 0.0
  %1535 = vmatpush1.msra.mxu0 %v503
  %1536 = vmatprep.subr.mxu0 0.0
  %1537 = vmatpush1.msra.mxu0 %v502
  %1538 = vmatprep.subr.mxu0 0.0
  %1539 = vmatpush2.msra.mxu0 0.0
  %1540 = vmatprep.subr.mxu0 0.0
  %1541 = vmatpush2.msra.mxu0 0.0
  %1542 = vmatprep.subr.mxu0 0.0
  %1543 = vmatpush2.msra.mxu0 0.0
  %1544 = vmatprep.subr.mxu0 0.0
  %1545 = vmatpush2.msra.mxu0 0.0
  %1546 = vmatprep.subr.mxu0 0.0
  %1547 = vmatpush2.msra.mxu0 0.0
  %1548 = vmatprep.subr.mxu0 0.0
  %1549 = vmatpush2.msra.mxu0 0.0
  %1550 = vmatprep.subr.mxu0 0.0
  %1551 = vmatpush2.msra.mxu0 0.0
  %1552 = vmatprep.subr.mxu0 0.0
  %1553 = vmatpush2.msra.mxu0 0.0
  %1554 = vmatprep.subr.mxu0 0.0
  %1555 = vmatpush2.msra.mxu0 0.0
  %1556 = vmatprep.subr.mxu0 0.0
  %1557 = vmatpush2.msra.mxu0 0.0
  %1558 = vmatprep.subr.mxu0 0.0
  %1559 = vmatpush2.msra.mxu0 0.0
  %1560 = vmatprep.subr.mxu0 0.0
  %1561 = vmatpush2.msra.mxu0 0.0
  %1562 = vmatprep.subr.mxu0 0.0
  %1563 = vmatpush2.msra.mxu0 0.0
  %1564 = vmatprep.subr.mxu0 0.0
  %1565 = vmatpush2.msra.mxu0 0.0
  %1566 = vmatprep.subr.mxu0 0.0
  %1567 = vmatpush2.msra.mxu0 0.0
  %1568 = vmatprep.subr.mxu0 0.0
  %1569 = vmatpush2.msra.mxu0 0.0
  %1570 = vmatprep.mubr.f32.mxu0 0.0
  %1571 = vmatmul.mubr.f32.gmra.mxu0 %v1490
  %v1572 = vpop.f32.mrf.mxu0
  %v1573 = vadd.f32 %v511, %v1572
  %v1574 = vpop.f32.mrf.mxu0
  %1575 = vmatprep.mubr.f32.mxu0 0.0
  %1576 = vmatmul.mubr.f32.gmra.mxu0 %v1492
  %v1577 = vpop.f32.mrf.mxu0
  %v1578 = vadd.f32 %v511, %v1577
  %v1579 = vpop.f32.mrf.mxu0
  %1580 = vmatprep.mubr.f32.mxu0 0.0
  %1581 = vmatmul.mubr.f32.gmra.mxu0 %v1494
  %v1582 = vpop.f32.mrf.mxu0
  %v1583 = vadd.f32 %v511, %v1582
  %v1584 = vpop.f32.mrf.mxu0
  %1585 = vmatprep.mubr.f32.mxu0 0.0
  %1586 = vmatmul.mubr.f32.gmra.mxu0 %v1496
  %v1587 = vpop.f32.mrf.mxu0
  %v1588 = vadd.f32 %v511, %v1587
  %v1589 = vpop.f32.mrf.mxu0
  %1590 = vmatprep.mubr.f32.mxu0 0.0
  %1591 = vmatmul.mubr.f32.gmra.mxu0 %v1498
  %v1592 = vpop.f32.mrf.mxu0
  %v1593 = vadd.f32 %v511, %v1592
  %v1594 = vpop.f32.mrf.mxu0
  %1595 = vmatprep.mubr.f32.mxu0 0.0
  %1596 = vmatmul.mubr.f32.gmra.mxu0 %v1500
  %v1597 = vpop.f32.mrf.mxu0
  %v1598 = vadd.f32 %v511, %v1597
  %v1599 = vpop.f32.mrf.mxu0
  %1600 = vmatprep.mubr.f32.mxu0 0.0
  %1601 = vmatmul.mubr.f32.gmra.mxu0 %v1502
  %v1602 = vpop.f32.mrf.mxu0
  %v1603 = vadd.f32 %v511, %v1602
  %v1604 = vpop.f32.mrf.mxu0
  %1605 = vmatprep.mubr.f32.mxu0 0.0
  %1606 = vmatmul.mubr.f32.gmra.mxu0 %v1504
  %v1607 = vpop.f32.mrf.mxu0
  %v1608 = vadd.f32 %v511, %v1607
  %v1609 = vpop.f32.mrf.mxu0
  %1610 = vdwg.mxu0
  %v1611 = vand.u32 2147483647, %v1573
  %vm1612 = vcmp.le.f32.partialorder %v1611, 0.7853982
  %vm1613 = vcmp.lt.s32.totalorder %v1573, 0
  %v1614 = vand.u32 %v1573, 2139095040
  %v1615 = vshrl.u32 %v1614, 23
  %v1616 = vsub.s32 %v1615, 127
  %v1617 = vand.u32 2147483647, %v1573
  %v1618 = vand.u32 %v1617, 8388607
  %v1619 = vor.u32 %v1618, 8388608
  %v1620 = vsub.s32 0, %v1619
  %v1621 = vadd.s32 %v1616, 1
  %vm1622 = vcmp.gt.s32.totalorder %v1621, 0
  %v1623 = vsel %vm1622, %v1621, 0
  %v1624 = vshrl.u32 %v1623, 5
  %v1625 = vand.u32 %v1623, 31
  %v1626 = vsub.s32 32, %v1625
  %v1627 = vshrl.u32 683565275, %v1626
  %v1628 = vshll.u32 683565275, %v1625
  %v1629 = vshrl.u32 2475754826, %v1626
  %v1630 = vor.u32 %v1628, %v1629
  %v1631 = vshll.u32 2475754826, %v1625
  %v1632 = vshrl.u32 2131351028, %v1626
  %v1633 = vor.u32 %v1631, %v1632
  %v1634 = vshll.u32 2131351028, %v1625
  %v1635 = vshrl.u32 2102212464, %v1626
  %v1636 = vor.u32 %v1634, %v1635
  %v1637 = vshll.u32 2102212464, %v1625
  %v1638 = vshrl.u32 920167782, %v1626
  %v1639 = vor.u32 %v1637, %v1638
  %v1640 = vshll.u32 920167782, %v1625
  %v1641 = vshrl.u32 1326507024, %v1626
  %v1642 = vor.u32 %v1640, %v1641
  %vm1643 = vcmp.lt.s32.totalorder %v1624, 1
  %vm1644 = vcmp.lt.s32.totalorder %v1624, 2
  %vm1645 = vcmp.lt.s32.totalorder %v1624, 3
  %vm1646 = vcmp.lt.s32.totalorder %v1624, 4
  %v1647 = vsel %vm1643, %v1627, %v1630
  %v1648 = vsel %vm1646, %v1636, 2102212464
  %v1649 = vsel %vm1645, %v1633, %v1648
  %v1650 = vsel %vm1644, %v1647, %v1649
  %v1651 = vsel %vm1643, %v1630, %v1633
  %v1652 = vsel %vm1646, %v1639, 920167782
  %v1653 = vsel %vm1645, %v1636, %v1652
  %v1654 = vsel %vm1644, %v1651, %v1653
  %v1655 = vsel %vm1643, %v1633, %v1636
  %v1656 = vsel %vm1646, %v1642, 1326507024
  %v1657 = vsel %vm1645, %v1639, %v1656
  %v1658 = vsel %vm1644, %v1655, %v1657
  %v1659 = vshll.u32 %v1619, 8
  %v1660 = vmul.u32.u64.compose %v1659, %v1658
  %v1661 = vextract.low.u32 %v1660
  %v1662 = vextract.high.u32 %v1660
  %v1663 = vmul.u32.u64.compose %v1659, %v1654
  %v1664 = vextract.low.u32 %v1663
  %v1665 = vextract.high.u32 %v1663
  %v1666 = vmul.u32 %v1659, %v1650
  %v1667 = vadd.s32 %v1662, %v1664
  %vm1668 = vc.u32 %v1662, %v1664
  %v1669 = vadd.s32 %v1665, 1
  %v1670 = vsel %vm1668, %v1669, %v1665
  %v1671 = vadd.s32 %v1666, %v1670
  %v1672 = vadd.s32 %v1671, 536870912
  %v1673 = vshrl.u32 %v1672, 30
  %v1674 = vshll.u32 %v1673, 30
  %v1675 = vsub.s32 %v1671, %v1674
  %vm1676 = vcmp.lt.s32.totalorder %v1675, 0
  %v1677 = vsub.s32 0, %v1675
  %v1678 = vsel %vm1676, %v1677, %v1675
  %v1679 = vclz %v1678
  %v1680 = vsub.s32 %v1679, 2
  %vm1681 = vcmp.gt.s32.totalorder 0, %v1680
  %v1682 = vsel %vm1681, 0, %v1680
  %v1683 = vsub.s32 32, %v1682
  %v1684 = vshll.u32 %v1675, %v1682
  %v1685 = vshrl.u32 %v1667, %v1683
  %v1686 = vor.u32 %v1684, %v1685
  %v1687 = vsub.s32 4294967266, %v1682
  %v1688 = vadd.s32 %v1687, 127
  %v1689 = vshll.u32 %v1688, 23
  %v1690 = vor.u32 4788187, %v1689
  %v1691 = vand.u32 2147483647, %v1690
  %v1693 = vcvt.s32.f32 %v1686
  %v1694 = vmul.f32 %v1693, %v1691
  %v1695 = vxor.u32 %v1694, 2147483648
  %v1696 = vsel %vm1613, %v1695, %v1694
  %v1697 = vsub.s32 4, %v1673
  %v1698 = vsel %vm1613, %v1697, %v1673
  %v1699 = vsel %vm1612, %v1573, %v1696
  %v1700 = vsel %vm1612, 0, %v1698
  %v1701 = vcosq.f32.pop %v1699
  %v1702 = vsinq.f32.pop %v1699
  %vm1703 = vweird.f32 %v1573
  %v1704 = vand.u32 %v1700, 3
  %vm1705 = vcmp.lt.s32.totalorder %v1704, 2
  %vm1706 = vcmp.eq.s32.totalorder %v1704, 0
  %v1707 = vxor.u32 %v1702, 2147483648
  %v1708 = vsel %vm1706, %v1701, %v1707
  %vm1709 = vcmp.eq.s32.totalorder %v1704, 2
  %v1710 = vxor.u32 %v1701, 2147483648
  %v1711 = vsel %vm1709, %v1710, %v1702
  %v1712 = vsel %vm1705, %v1708, %v1711
  %v1713 = vsel %vm1703, nan, %v1712
  %v1714 = vand.u32 2147483647, %v1578
  %vm1715 = vcmp.le.f32.partialorder %v1714, 0.7853982
  %vm1716 = vcmp.lt.s32.totalorder %v1578, 0
  %v1717 = vand.u32 %v1578, 2139095040
  %v1718 = vshrl.u32 %v1717, 23
  %v1719 = vsub.s32 %v1718, 127
  %v1720 = vand.u32 2147483647, %v1578
  %v1721 = vand.u32 %v1720, 8388607
  %v1722 = vor.u32 %v1721, 8388608
  %v1723 = vsub.s32 0, %v1722
  %v1724 = vadd.s32 %v1719, 1
  %vm1725 = vcmp.gt.s32.totalorder %v1724, 0
  %v1726 = vsel %vm1725, %v1724, 0
  %v1727 = vshrl.u32 %v1726, 5
  %v1728 = vand.u32 %v1726, 31
  %v1729 = vsub.s32 32, %v1728
  %v1730 = vshrl.u32 683565275, %v1729
  %v1731 = vshll.u32 683565275, %v1728
  %v1732 = vshrl.u32 2475754826, %v1729
  %v1733 = vor.u32 %v1731, %v1732
  %v1734 = vshll.u32 2475754826, %v1728
  %v1735 = vshrl.u32 2131351028, %v1729
  %v1736 = vor.u32 %v1734, %v1735
  %v1737 = vshll.u32 2131351028, %v1728
  %v1738 = vshrl.u32 2102212464, %v1729
  %v1739 = vor.u32 %v1737, %v1738
  %v1740 = vshll.u32 2102212464, %v1728
  %v1741 = vshrl.u32 920167782, %v1729
  %v1742 = vor.u32 %v1740, %v1741
  %v1743 = vshll.u32 920167782, %v1728
  %v1744 = vshrl.u32 1326507024, %v1729
  %v1745 = vor.u32 %v1743, %v1744
  %vm1746 = vcmp.lt.s32.totalorder %v1727, 1
  %vm1747 = vcmp.lt.s32.totalorder %v1727, 2
  %vm1748 = vcmp.lt.s32.totalorder %v1727, 3
  %vm1749 = vcmp.lt.s32.totalorder %v1727, 4
  %v1750 = vsel %vm1746, %v1730, %v1733
  %v1751 = vsel %vm1749, %v1739, 2102212464
  %v1752 = vsel %vm1748, %v1736, %v1751
  %v1753 = vsel %vm1747, %v1750, %v1752
  %v1754 = vsel %vm1746, %v1733, %v1736
  %v1755 = vsel %vm1749, %v1742, 920167782
  %v1756 = vsel %vm1748, %v1739, %v1755
  %v1757 = vsel %vm1747, %v1754, %v1756
  %v1758 = vsel %vm1746, %v1736, %v1739
  %v1759 = vsel %vm1749, %v1745, 1326507024
  %v1760 = vsel %vm1748, %v1742, %v1759
  %v1761 = vsel %vm1747, %v1758, %v1760
  %v1762 = vshll.u32 %v1722, 8
  %v1763 = vmul.u32.u64.compose %v1762, %v1761
  %v1764 = vextract.low.u32 %v1763
  %v1765 = vextract.high.u32 %v1763
  %v1766 = vmul.u32.u64.compose %v1762, %v1757
  %v1767 = vextract.low.u32 %v1766
  %v1768 = vextract.high.u32 %v1766
  %v1769 = vmul.u32 %v1762, %v1753
  %v1770 = vadd.s32 %v1765, %v1767
  %vm1771 = vc.u32 %v1765, %v1767
  %v1772 = vadd.s32 %v1768, 1
  %v1773 = vsel %vm1771, %v1772, %v1768
  %v1774 = vadd.s32 %v1769, %v1773
  %v1775 = vadd.s32 %v1774, 536870912
  %v1776 = vshrl.u32 %v1775, 30
  %v1777 = vshll.u32 %v1776, 30
  %v1778 = vsub.s32 %v1774, %v1777
  %vm1779 = vcmp.lt.s32.totalorder %v1778, 0
  %v1780 = vsub.s32 0, %v1778
  %v1781 = vsel %vm1779, %v1780, %v1778
  %v1782 = vclz %v1781
  %v1783 = vsub.s32 %v1782, 2
  %vm1784 = vcmp.gt.s32.totalorder 0, %v1783
  %v1785 = vsel %vm1784, 0, %v1783
  %v1786 = vsub.s32 32, %v1785
  %v1787 = vshll.u32 %v1778, %v1785
  %v1788 = vshrl.u32 %v1770, %v1786
  %v1789 = vor.u32 %v1787, %v1788
  %v1790 = vsub.s32 4294967266, %v1785
  %v1791 = vadd.s32 %v1790, 127
  %v1792 = vshll.u32 %v1791, 23
  %v1793 = vor.u32 4788187, %v1792
  %v1794 = vand.u32 2147483647, %v1793
  %v1796 = vcvt.s32.f32 %v1789
  %v1797 = vmul.f32 %v1796, %v1794
  %v1798 = vxor.u32 %v1797, 2147483648
  %v1799 = vsel %vm1716, %v1798, %v1797
  %v1800 = vsub.s32 4, %v1776
  %v1801 = vsel %vm1716, %v1800, %v1776
  %v1802 = vsel %vm1715, %v1578, %v1799
  %v1803 = vsel %vm1715, 0, %v1801
  %v1804 = vcosq.f32.pop %v1802
  %v1805 = vsinq.f32.pop %v1802
  %vm1806 = vweird.f32 %v1578
  %v1807 = vand.u32 %v1803, 3
  %vm1808 = vcmp.lt.s32.totalorder %v1807, 2
  %vm1809 = vcmp.eq.s32.totalorder %v1807, 0
  %v1810 = vxor.u32 %v1805, 2147483648
  %v1811 = vsel %vm1809, %v1804, %v1810
  %vm1812 = vcmp.eq.s32.totalorder %v1807, 2
  %v1813 = vxor.u32 %v1804, 2147483648
  %v1814 = vsel %vm1812, %v1813, %v1805
  %v1815 = vsel %vm1808, %v1811, %v1814
  %v1816 = vsel %vm1806, nan, %v1815
  %v1817 = vand.u32 2147483647, %v1583
  %vm1818 = vcmp.le.f32.partialorder %v1817, 0.7853982
  %vm1819 = vcmp.lt.s32.totalorder %v1583, 0
  %v1820 = vand.u32 %v1583, 2139095040
  %v1821 = vshrl.u32 %v1820, 23
  %v1822 = vsub.s32 %v1821, 127
  %v1823 = vand.u32 2147483647, %v1583
  %v1824 = vand.u32 %v1823, 8388607
  %v1825 = vor.u32 %v1824, 8388608
  %v1826 = vsub.s32 0, %v1825
  %v1827 = vadd.s32 %v1822, 1
  %vm1828 = vcmp.gt.s32.totalorder %v1827, 0
  %v1829 = vsel %vm1828, %v1827, 0
  %v1830 = vshrl.u32 %v1829, 5
  %v1831 = vand.u32 %v1829, 31
  %v1832 = vsub.s32 32, %v1831
  %v1833 = vshrl.u32 683565275, %v1832
  %v1834 = vshll.u32 683565275, %v1831
  %v1835 = vshrl.u32 2475754826, %v1832
  %v1836 = vor.u32 %v1834, %v1835
  %v1837 = vshll.u32 2475754826, %v1831
  %v1838 = vshrl.u32 2131351028, %v1832
  %v1839 = vor.u32 %v1837, %v1838
  %v1840 = vshll.u32 2131351028, %v1831
  %v1841 = vshrl.u32 2102212464, %v1832
  %v1842 = vor.u32 %v1840, %v1841
  %v1843 = vshll.u32 2102212464, %v1831
  %v1844 = vshrl.u32 920167782, %v1832
  %v1845 = vor.u32 %v1843, %v1844
  %v1846 = vshll.u32 920167782, %v1831
  %v1847 = vshrl.u32 1326507024, %v1832
  %v1848 = vor.u32 %v1846, %v1847
  %vm1849 = vcmp.lt.s32.totalorder %v1830, 1
  %vm1850 = vcmp.lt.s32.totalorder %v1830, 2
  %vm1851 = vcmp.lt.s32.totalorder %v1830, 3
  %vm1852 = vcmp.lt.s32.totalorder %v1830, 4
  %v1853 = vsel %vm1849, %v1833, %v1836
  %v1854 = vsel %vm1852, %v1842, 2102212464
  %v1855 = vsel %vm1851, %v1839, %v1854
  %v1856 = vsel %vm1850, %v1853, %v1855
  %v1857 = vsel %vm1849, %v1836, %v1839
  %v1858 = vsel %vm1852, %v1845, 920167782
  %v1859 = vsel %vm1851, %v1842, %v1858
  %v1860 = vsel %vm1850, %v1857, %v1859
  %v1861 = vsel %vm1849, %v1839, %v1842
  %v1862 = vsel %vm1852, %v1848, 1326507024
  %v1863 = vsel %vm1851, %v1845, %v1862
  %v1864 = vsel %vm1850, %v1861, %v1863
  %v1865 = vshll.u32 %v1825, 8
  %v1866 = vmul.u32.u64.compose %v1865, %v1864
  %v1867 = vextract.low.u32 %v1866
  %v1868 = vextract.high.u32 %v1866
  %v1869 = vmul.u32.u64.compose %v1865, %v1860
  %v1870 = vextract.low.u32 %v1869
  %v1871 = vextract.high.u32 %v1869
  %v1872 = vmul.u32 %v1865, %v1856
  %v1873 = vadd.s32 %v1868, %v1870
  %vm1874 = vc.u32 %v1868, %v1870
  %v1875 = vadd.s32 %v1871, 1
  %v1876 = vsel %vm1874, %v1875, %v1871
  %v1877 = vadd.s32 %v1872, %v1876
  %v1878 = vadd.s32 %v1877, 536870912
  %v1879 = vshrl.u32 %v1878, 30
  %v1880 = vshll.u32 %v1879, 30
  %v1881 = vsub.s32 %v1877, %v1880
  %vm1882 = vcmp.lt.s32.totalorder %v1881, 0
  %v1883 = vsub.s32 0, %v1881
  %v1884 = vsel %vm1882, %v1883, %v1881
  %v1885 = vclz %v1884
  %v1886 = vsub.s32 %v1885, 2
  %vm1887 = vcmp.gt.s32.totalorder 0, %v1886
  %v1888 = vsel %vm1887, 0, %v1886
  %v1889 = vsub.s32 32, %v1888
  %v1890 = vshll.u32 %v1881, %v1888
  %v1891 = vshrl.u32 %v1873, %v1889
  %v1892 = vor.u32 %v1890, %v1891
  %v1893 = vsub.s32 4294967266, %v1888
  %v1894 = vadd.s32 %v1893, 127
  %v1895 = vshll.u32 %v1894, 23
  %v1896 = vor.u32 4788187, %v1895
  %v1897 = vand.u32 2147483647, %v1896
  %v1899 = vcvt.s32.f32 %v1892
  %v1900 = vmul.f32 %v1899, %v1897
  %v1901 = vxor.u32 %v1900, 2147483648
  %v1902 = vsel %vm1819, %v1901, %v1900
  %v1903 = vsub.s32 4, %v1879
  %v1904 = vsel %vm1819, %v1903, %v1879
  %v1905 = vsel %vm1818, %v1583, %v1902
  %v1906 = vsel %vm1818, 0, %v1904
  %v1907 = vcosq.f32.pop %v1905
  %v1908 = vsinq.f32.pop %v1905
  %vm1909 = vweird.f32 %v1583
  %v1910 = vand.u32 %v1906, 3
  %vm1911 = vcmp.lt.s32.totalorder %v1910, 2
  %vm1912 = vcmp.eq.s32.totalorder %v1910, 0
  %v1913 = vxor.u32 %v1908, 2147483648
  %v1914 = vsel %vm1912, %v1907, %v1913
  %vm1915 = vcmp.eq.s32.totalorder %v1910, 2
  %v1916 = vxor.u32 %v1907, 2147483648
  %v1917 = vsel %vm1915, %v1916, %v1908
  %v1918 = vsel %vm1911, %v1914, %v1917
  %v1919 = vsel %vm1909, nan, %v1918
  %v1920 = vand.u32 2147483647, %v1588
  %vm1921 = vcmp.le.f32.partialorder %v1920, 0.7853982
  %vm1922 = vcmp.lt.s32.totalorder %v1588, 0
  %v1923 = vand.u32 %v1588, 2139095040
  %v1924 = vshrl.u32 %v1923, 23
  %v1925 = vsub.s32 %v1924, 127
  %v1926 = vand.u32 2147483647, %v1588
  %v1927 = vand.u32 %v1926, 8388607
  %v1928 = vor.u32 %v1927, 8388608
  %v1929 = vsub.s32 0, %v1928
  %v1930 = vadd.s32 %v1925, 1
  %vm1931 = vcmp.gt.s32.totalorder %v1930, 0
  %v1932 = vsel %vm1931, %v1930, 0
  %v1933 = vshrl.u32 %v1932, 5
  %v1934 = vand.u32 %v1932, 31
  %v1935 = vsub.s32 32, %v1934
  %v1936 = vshrl.u32 683565275, %v1935
  %v1937 = vshll.u32 683565275, %v1934
  %v1938 = vshrl.u32 2475754826, %v1935
  %v1939 = vor.u32 %v1937, %v1938
  %v1940 = vshll.u32 2475754826, %v1934
  %v1941 = vshrl.u32 2131351028, %v1935
  %v1942 = vor.u32 %v1940, %v1941
  %v1943 = vshll.u32 2131351028, %v1934
  %v1944 = vshrl.u32 2102212464, %v1935
  %v1945 = vor.u32 %v1943, %v1944
  %v1946 = vshll.u32 2102212464, %v1934
  %v1947 = vshrl.u32 920167782, %v1935
  %v1948 = vor.u32 %v1946, %v1947
  %v1949 = vshll.u32 920167782, %v1934
  %v1950 = vshrl.u32 1326507024, %v1935
  %v1951 = vor.u32 %v1949, %v1950
  %vm1952 = vcmp.lt.s32.totalorder %v1933, 1
  %vm1953 = vcmp.lt.s32.totalorder %v1933, 2
  %vm1954 = vcmp.lt.s32.totalorder %v1933, 3
  %vm1955 = vcmp.lt.s32.totalorder %v1933, 4
  %v1956 = vsel %vm1952, %v1936, %v1939
  %v1957 = vsel %vm1955, %v1945, 2102212464
  %v1958 = vsel %vm1954, %v1942, %v1957
  %v1959 = vsel %vm1953, %v1956, %v1958
  %v1960 = vsel %vm1952, %v1939, %v1942
  %v1961 = vsel %vm1955, %v1948, 920167782
  %v1962 = vsel %vm1954, %v1945, %v1961
  %v1963 = vsel %vm1953, %v1960, %v1962
  %v1964 = vsel %vm1952, %v1942, %v1945
  %v1965 = vsel %vm1955, %v1951, 1326507024
  %v1966 = vsel %vm1954, %v1948, %v1965
  %v1967 = vsel %vm1953, %v1964, %v1966
  %v1968 = vshll.u32 %v1928, 8
  %v1969 = vmul.u32.u64.compose %v1968, %v1967
  %v1970 = vextract.low.u32 %v1969
  %v1971 = vextract.high.u32 %v1969
  %v1972 = vmul.u32.u64.compose %v1968, %v1963
  %v1973 = vextract.low.u32 %v1972
  %v1974 = vextract.high.u32 %v1972
  %v1975 = vmul.u32 %v1968, %v1959
  %v1976 = vadd.s32 %v1971, %v1973
  %vm1977 = vc.u32 %v1971, %v1973
  %v1978 = vadd.s32 %v1974, 1
  %v1979 = vsel %vm1977, %v1978, %v1974
  %v1980 = vadd.s32 %v1975, %v1979
  %v1981 = vadd.s32 %v1980, 536870912
  %v1982 = vshrl.u32 %v1981, 30
  %v1983 = vshll.u32 %v1982, 30
  %v1984 = vsub.s32 %v1980, %v1983
  %vm1985 = vcmp.lt.s32.totalorder %v1984, 0
  %v1986 = vsub.s32 0, %v1984
  %v1987 = vsel %vm1985, %v1986, %v1984
  %v1988 = vclz %v1987
  %v1989 = vsub.s32 %v1988, 2
  %vm1990 = vcmp.gt.s32.totalorder 0, %v1989
  %v1991 = vsel %vm1990, 0, %v1989
  %v1992 = vsub.s32 32, %v1991
  %v1993 = vshll.u32 %v1984, %v1991
  %v1994 = vshrl.u32 %v1976, %v1992
  %v1995 = vor.u32 %v1993, %v1994
  %v1996 = vsub.s32 4294967266, %v1991
  %v1997 = vadd.s32 %v1996, 127
  %v1998 = vshll.u32 %v1997, 23
  %v1999 = vor.u32 4788187, %v1998
  %v2000 = vand.u32 2147483647, %v1999
  %v2002 = vcvt.s32.f32 %v1995
  %v2003 = vmul.f32 %v2002, %v2000
  %v2004 = vxor.u32 %v2003, 2147483648
  %v2005 = vsel %vm1922, %v2004, %v2003
  %v2006 = vsub.s32 4, %v1982
  %v2007 = vsel %vm1922, %v2006, %v1982
  %v2008 = vsel %vm1921, %v1588, %v2005
  %v2009 = vsel %vm1921, 0, %v2007
  %v2010 = vcosq.f32.pop %v2008
  %v2011 = vsinq.f32.pop %v2008
  %vm2012 = vweird.f32 %v1588
  %v2013 = vand.u32 %v2009, 3
  %vm2014 = vcmp.lt.s32.totalorder %v2013, 2
  %vm2015 = vcmp.eq.s32.totalorder %v2013, 0
  %v2016 = vxor.u32 %v2011, 2147483648
  %v2017 = vsel %vm2015, %v2010, %v2016
  %vm2018 = vcmp.eq.s32.totalorder %v2013, 2
  %v2019 = vxor.u32 %v2010, 2147483648
  %v2020 = vsel %vm2018, %v2019, %v2011
  %v2021 = vsel %vm2014, %v2017, %v2020
  %v2022 = vsel %vm2012, nan, %v2021
  %v2023 = vand.u32 2147483647, %v1593
  %vm2024 = vcmp.le.f32.partialorder %v2023, 0.7853982
  %vm2025 = vcmp.lt.s32.totalorder %v1593, 0
  %v2026 = vand.u32 %v1593, 2139095040
  %v2027 = vshrl.u32 %v2026, 23
  %v2028 = vsub.s32 %v2027, 127
  %v2029 = vand.u32 2147483647, %v1593
  %v2030 = vand.u32 %v2029, 8388607
  %v2031 = vor.u32 %v2030, 8388608
  %v2032 = vsub.s32 0, %v2031
  %v2033 = vadd.s32 %v2028, 1
  %vm2034 = vcmp.gt.s32.totalorder %v2033, 0
  %v2035 = vsel %vm2034, %v2033, 0
  %v2036 = vshrl.u32 %v2035, 5
  %v2037 = vand.u32 %v2035, 31
  %v2038 = vsub.s32 32, %v2037
  %v2039 = vshrl.u32 683565275, %v2038
  %v2040 = vshll.u32 683565275, %v2037
  %v2041 = vshrl.u32 2475754826, %v2038
  %v2042 = vor.u32 %v2040, %v2041
  %v2043 = vshll.u32 2475754826, %v2037
  %v2044 = vshrl.u32 2131351028, %v2038
  %v2045 = vor.u32 %v2043, %v2044
  %v2046 = vshll.u32 2131351028, %v2037
  %v2047 = vshrl.u32 2102212464, %v2038
  %v2048 = vor.u32 %v2046, %v2047
  %v2049 = vshll.u32 2102212464, %v2037
  %v2050 = vshrl.u32 920167782, %v2038
  %v2051 = vor.u32 %v2049, %v2050
  %v2052 = vshll.u32 920167782, %v2037
  %v2053 = vshrl.u32 1326507024, %v2038
  %v2054 = vor.u32 %v2052, %v2053
  %vm2055 = vcmp.lt.s32.totalorder %v2036, 1
  %vm2056 = vcmp.lt.s32.totalorder %v2036, 2
  %vm2057 = vcmp.lt.s32.totalorder %v2036, 3
  %vm2058 = vcmp.lt.s32.totalorder %v2036, 4
  %v2059 = vsel %vm2055, %v2039, %v2042
  %v2060 = vsel %vm2058, %v2048, 2102212464
  %v2061 = vsel %vm2057, %v2045, %v2060
  %v2062 = vsel %vm2056, %v2059, %v2061
  %v2063 = vsel %vm2055, %v2042, %v2045
  %v2064 = vsel %vm2058, %v2051, 920167782
  %v2065 = vsel %vm2057, %v2048, %v2064
  %v2066 = vsel %vm2056, %v2063, %v2065
  %v2067 = vsel %vm2055, %v2045, %v2048
  %v2068 = vsel %vm2058, %v2054, 1326507024
  %v2069 = vsel %vm2057, %v2051, %v2068
  %v2070 = vsel %vm2056, %v2067, %v2069
  %v2071 = vshll.u32 %v2031, 8
  %v2072 = vmul.u32.u64.compose %v2071, %v2070
  %v2073 = vextract.low.u32 %v2072
  %v2074 = vextract.high.u32 %v2072
  %v2075 = vmul.u32.u64.compose %v2071, %v2066
  %v2076 = vextract.low.u32 %v2075
  %v2077 = vextract.high.u32 %v2075
  %v2078 = vmul.u32 %v2071, %v2062
  %v2079 = vadd.s32 %v2074, %v2076
  %vm2080 = vc.u32 %v2074, %v2076
  %v2081 = vadd.s32 %v2077, 1
  %v2082 = vsel %vm2080, %v2081, %v2077
  %v2083 = vadd.s32 %v2078, %v2082
  %v2084 = vadd.s32 %v2083, 536870912
  %v2085 = vshrl.u32 %v2084, 30
  %v2086 = vshll.u32 %v2085, 30
  %v2087 = vsub.s32 %v2083, %v2086
  %vm2088 = vcmp.lt.s32.totalorder %v2087, 0
  %v2089 = vsub.s32 0, %v2087
  %v2090 = vsel %vm2088, %v2089, %v2087
  %v2091 = vclz %v2090
  %v2092 = vsub.s32 %v2091, 2
  %vm2093 = vcmp.gt.s32.totalorder 0, %v2092
  %v2094 = vsel %vm2093, 0, %v2092
  %v2095 = vsub.s32 32, %v2094
  %v2096 = vshll.u32 %v2087, %v2094
  %v2097 = vshrl.u32 %v2079, %v2095
  %v2098 = vor.u32 %v2096, %v2097
  %v2099 = vsub.s32 4294967266, %v2094
  %v2100 = vadd.s32 %v2099, 127
  %v2101 = vshll.u32 %v2100, 23
  %v2102 = vor.u32 4788187, %v2101
  %v2103 = vand.u32 2147483647, %v2102
  %v2105 = vcvt.s32.f32 %v2098
  %v2106 = vmul.f32 %v2105, %v2103
  %v2107 = vxor.u32 %v2106, 2147483648
  %v2108 = vsel %vm2025, %v2107, %v2106
  %v2109 = vsub.s32 4, %v2085
  %v2110 = vsel %vm2025, %v2109, %v2085
  %v2111 = vsel %vm2024, %v1593, %v2108
  %v2112 = vsel %vm2024, 0, %v2110
  %v2113 = vcosq.f32.pop %v2111
  %v2114 = vsinq.f32.pop %v2111
  %vm2115 = vweird.f32 %v1593
  %v2116 = vand.u32 %v2112, 3
  %vm2117 = vcmp.lt.s32.totalorder %v2116, 2
  %vm2118 = vcmp.eq.s32.totalorder %v2116, 0
  %v2119 = vxor.u32 %v2114, 2147483648
  %v2120 = vsel %vm2118, %v2113, %v2119
  %vm2121 = vcmp.eq.s32.totalorder %v2116, 2
  %v2122 = vxor.u32 %v2113, 2147483648
  %v2123 = vsel %vm2121, %v2122, %v2114
  %v2124 = vsel %vm2117, %v2120, %v2123
  %v2125 = vsel %vm2115, nan, %v2124
  %v2126 = vand.u32 2147483647, %v1598
  %vm2127 = vcmp.le.f32.partialorder %v2126, 0.7853982
  %vm2128 = vcmp.lt.s32.totalorder %v1598, 0
  %v2129 = vand.u32 %v1598, 2139095040
  %v2130 = vshrl.u32 %v2129, 23
  %v2131 = vsub.s32 %v2130, 127
  %v2132 = vand.u32 2147483647, %v1598
  %v2133 = vand.u32 %v2132, 8388607
  %v2134 = vor.u32 %v2133, 8388608
  %v2135 = vsub.s32 0, %v2134
  %v2136 = vadd.s32 %v2131, 1
  %vm2137 = vcmp.gt.s32.totalorder %v2136, 0
  %v2138 = vsel %vm2137, %v2136, 0
  %v2139 = vshrl.u32 %v2138, 5
  %v2140 = vand.u32 %v2138, 31
  %v2141 = vsub.s32 32, %v2140
  %v2142 = vshrl.u32 683565275, %v2141
  %v2143 = vshll.u32 683565275, %v2140
  %v2144 = vshrl.u32 2475754826, %v2141
  %v2145 = vor.u32 %v2143, %v2144
  %v2146 = vshll.u32 2475754826, %v2140
  %v2147 = vshrl.u32 2131351028, %v2141
  %v2148 = vor.u32 %v2146, %v2147
  %v2149 = vshll.u32 2131351028, %v2140
  %v2150 = vshrl.u32 2102212464, %v2141
  %v2151 = vor.u32 %v2149, %v2150
  %v2152 = vshll.u32 2102212464, %v2140
  %v2153 = vshrl.u32 920167782, %v2141
  %v2154 = vor.u32 %v2152, %v2153
  %v2155 = vshll.u32 920167782, %v2140
  %v2156 = vshrl.u32 1326507024, %v2141
  %v2157 = vor.u32 %v2155, %v2156
  %vm2158 = vcmp.lt.s32.totalorder %v2139, 1
  %vm2159 = vcmp.lt.s32.totalorder %v2139, 2
  %vm2160 = vcmp.lt.s32.totalorder %v2139, 3
  %vm2161 = vcmp.lt.s32.totalorder %v2139, 4
  %v2162 = vsel %vm2158, %v2142, %v2145
  %v2163 = vsel %vm2161, %v2151, 2102212464
  %v2164 = vsel %vm2160, %v2148, %v2163
  %v2165 = vsel %vm2159, %v2162, %v2164
  %v2166 = vsel %vm2158, %v2145, %v2148
  %v2167 = vsel %vm2161, %v2154, 920167782
  %v2168 = vsel %vm2160, %v2151, %v2167
  %v2169 = vsel %vm2159, %v2166, %v2168
  %v2170 = vsel %vm2158, %v2148, %v2151
  %v2171 = vsel %vm2161, %v2157, 1326507024
  %v2172 = vsel %vm2160, %v2154, %v2171
  %v2173 = vsel %vm2159, %v2170, %v2172
  %v2174 = vshll.u32 %v2134, 8
  %v2175 = vmul.u32.u64.compose %v2174, %v2173
  %v2176 = vextract.low.u32 %v2175
  %v2177 = vextract.high.u32 %v2175
  %v2178 = vmul.u32.u64.compose %v2174, %v2169
  %v2179 = vextract.low.u32 %v2178
  %v2180 = vextract.high.u32 %v2178
  %v2181 = vmul.u32 %v2174, %v2165
  %v2182 = vadd.s32 %v2177, %v2179
  %vm2183 = vc.u32 %v2177, %v2179
  %v2184 = vadd.s32 %v2180, 1
  %v2185 = vsel %vm2183, %v2184, %v2180
  %v2186 = vadd.s32 %v2181, %v2185
  %v2187 = vadd.s32 %v2186, 536870912
  %v2188 = vshrl.u32 %v2187, 30
  %v2189 = vshll.u32 %v2188, 30
  %v2190 = vsub.s32 %v2186, %v2189
  %vm2191 = vcmp.lt.s32.totalorder %v2190, 0
  %v2192 = vsub.s32 0, %v2190
  %v2193 = vsel %vm2191, %v2192, %v2190
  %v2194 = vclz %v2193
  %v2195 = vsub.s32 %v2194, 2
  %vm2196 = vcmp.gt.s32.totalorder 0, %v2195
  %v2197 = vsel %vm2196, 0, %v2195
  %v2198 = vsub.s32 32, %v2197
  %v2199 = vshll.u32 %v2190, %v2197
  %v2200 = vshrl.u32 %v2182, %v2198
  %v2201 = vor.u32 %v2199, %v2200
  %v2202 = vsub.s32 4294967266, %v2197
  %v2203 = vadd.s32 %v2202, 127
  %v2204 = vshll.u32 %v2203, 23
  %v2205 = vor.u32 4788187, %v2204
  %v2206 = vand.u32 2147483647, %v2205
  %v2208 = vcvt.s32.f32 %v2201
  %v2209 = vmul.f32 %v2208, %v2206
  %v2210 = vxor.u32 %v2209, 2147483648
  %v2211 = vsel %vm2128, %v2210, %v2209
  %v2212 = vsub.s32 4, %v2188
  %v2213 = vsel %vm2128, %v2212, %v2188
  %v2214 = vsel %vm2127, %v1598, %v2211
  %v2215 = vsel %vm2127, 0, %v2213
  %v2216 = vcosq.f32.pop %v2214
  %v2217 = vsinq.f32.pop %v2214
  %vm2218 = vweird.f32 %v1598
  %v2219 = vand.u32 %v2215, 3
  %vm2220 = vcmp.lt.s32.totalorder %v2219, 2
  %vm2221 = vcmp.eq.s32.totalorder %v2219, 0
  %v2222 = vxor.u32 %v2217, 2147483648
  %v2223 = vsel %vm2221, %v2216, %v2222
  %vm2224 = vcmp.eq.s32.totalorder %v2219, 2
  %v2225 = vxor.u32 %v2216, 2147483648
  %v2226 = vsel %vm2224, %v2225, %v2217
  %v2227 = vsel %vm2220, %v2223, %v2226
  %v2228 = vsel %vm2218, nan, %v2227
  %v2229 = vand.u32 2147483647, %v1603
  %vm2230 = vcmp.le.f32.partialorder %v2229, 0.7853982
  %vm2231 = vcmp.lt.s32.totalorder %v1603, 0
  %v2232 = vand.u32 %v1603, 2139095040
  %v2233 = vshrl.u32 %v2232, 23
  %v2234 = vsub.s32 %v2233, 127
  %v2235 = vand.u32 2147483647, %v1603
  %v2236 = vand.u32 %v2235, 8388607
  %v2237 = vor.u32 %v2236, 8388608
  %v2238 = vsub.s32 0, %v2237
  %v2239 = vadd.s32 %v2234, 1
  %vm2240 = vcmp.gt.s32.totalorder %v2239, 0
  %v2241 = vsel %vm2240, %v2239, 0
  %v2242 = vshrl.u32 %v2241, 5
  %v2243 = vand.u32 %v2241, 31
  %v2244 = vsub.s32 32, %v2243
  %v2245 = vshrl.u32 683565275, %v2244
  %v2246 = vshll.u32 683565275, %v2243
  %v2247 = vshrl.u32 2475754826, %v2244
  %v2248 = vor.u32 %v2246, %v2247
  %v2249 = vshll.u32 2475754826, %v2243
  %v2250 = vshrl.u32 2131351028, %v2244
  %v2251 = vor.u32 %v2249, %v2250
  %v2252 = vshll.u32 2131351028, %v2243
  %v2253 = vshrl.u32 2102212464, %v2244
  %v2254 = vor.u32 %v2252, %v2253
  %v2255 = vshll.u32 2102212464, %v2243
  %v2256 = vshrl.u32 920167782, %v2244
  %v2257 = vor.u32 %v2255, %v2256
  %v2258 = vshll.u32 920167782, %v2243
  %v2259 = vshrl.u32 1326507024, %v2244
  %v2260 = vor.u32 %v2258, %v2259
  %vm2261 = vcmp.lt.s32.totalorder %v2242, 1
  %vm2262 = vcmp.lt.s32.totalorder %v2242, 2
  %vm2263 = vcmp.lt.s32.totalorder %v2242, 3
  %vm2264 = vcmp.lt.s32.totalorder %v2242, 4
  %v2265 = vsel %vm2261, %v2245, %v2248
  %v2266 = vsel %vm2264, %v2254, 2102212464
  %v2267 = vsel %vm2263, %v2251, %v2266
  %v2268 = vsel %vm2262, %v2265, %v2267
  %v2269 = vsel %vm2261, %v2248, %v2251
  %v2270 = vsel %vm2264, %v2257, 920167782
  %v2271 = vsel %vm2263, %v2254, %v2270
  %v2272 = vsel %vm2262, %v2269, %v2271
  %v2273 = vsel %vm2261, %v2251, %v2254
  %v2274 = vsel %vm2264, %v2260, 1326507024
  %v2275 = vsel %vm2263, %v2257, %v2274
  %v2276 = vsel %vm2262, %v2273, %v2275
  %v2277 = vshll.u32 %v2237, 8
  %v2278 = vmul.u32.u64.compose %v2277, %v2276
  %v2279 = vextract.low.u32 %v2278
  %v2280 = vextract.high.u32 %v2278
  %v2281 = vmul.u32.u64.compose %v2277, %v2272
  %v2282 = vextract.low.u32 %v2281
  %v2283 = vextract.high.u32 %v2281
  %v2284 = vmul.u32 %v2277, %v2268
  %v2285 = vadd.s32 %v2280, %v2282
  %vm2286 = vc.u32 %v2280, %v2282
  %v2287 = vadd.s32 %v2283, 1
  %v2288 = vsel %vm2286, %v2287, %v2283
  %v2289 = vadd.s32 %v2284, %v2288
  %v2290 = vadd.s32 %v2289, 536870912
  %v2291 = vshrl.u32 %v2290, 30
  %v2292 = vshll.u32 %v2291, 30
  %v2293 = vsub.s32 %v2289, %v2292
  %vm2294 = vcmp.lt.s32.totalorder %v2293, 0
  %v2295 = vsub.s32 0, %v2293
  %v2296 = vsel %vm2294, %v2295, %v2293
  %v2297 = vclz %v2296
  %v2298 = vsub.s32 %v2297, 2
  %vm2299 = vcmp.gt.s32.totalorder 0, %v2298
  %v2300 = vsel %vm2299, 0, %v2298
  %v2301 = vsub.s32 32, %v2300
  %v2302 = vshll.u32 %v2293, %v2300
  %v2303 = vshrl.u32 %v2285, %v2301
  %v2304 = vor.u32 %v2302, %v2303
  %v2305 = vsub.s32 4294967266, %v2300
  %v2306 = vadd.s32 %v2305, 127
  %v2307 = vshll.u32 %v2306, 23
  %v2308 = vor.u32 4788187, %v2307
  %v2309 = vand.u32 2147483647, %v2308
  %v2311 = vcvt.s32.f32 %v2304
  %v2312 = vmul.f32 %v2311, %v2309
  %v2313 = vxor.u32 %v2312, 2147483648
  %v2314 = vsel %vm2231, %v2313, %v2312
  %v2315 = vsub.s32 4, %v2291
  %v2316 = vsel %vm2231, %v2315, %v2291
  %v2317 = vsel %vm2230, %v1603, %v2314
  %v2318 = vsel %vm2230, 0, %v2316
  %v2319 = vcosq.f32.pop %v2317
  %v2320 = vsinq.f32.pop %v2317
  %vm2321 = vweird.f32 %v1603
  %v2322 = vand.u32 %v2318, 3
  %vm2323 = vcmp.lt.s32.totalorder %v2322, 2
  %vm2324 = vcmp.eq.s32.totalorder %v2322, 0
  %v2325 = vxor.u32 %v2320, 2147483648
  %v2326 = vsel %vm2324, %v2319, %v2325
  %vm2327 = vcmp.eq.s32.totalorder %v2322, 2
  %v2328 = vxor.u32 %v2319, 2147483648
  %v2329 = vsel %vm2327, %v2328, %v2320
  %v2330 = vsel %vm2323, %v2326, %v2329
  %v2331 = vsel %vm2321, nan, %v2330
  %v2332 = vand.u32 2147483647, %v1608
  %vm2333 = vcmp.le.f32.partialorder %v2332, 0.7853982
  %vm2334 = vcmp.lt.s32.totalorder %v1608, 0
  %v2335 = vand.u32 %v1608, 2139095040
  %v2336 = vshrl.u32 %v2335, 23
  %v2337 = vsub.s32 %v2336, 127
  %v2338 = vand.u32 2147483647, %v1608
  %v2339 = vand.u32 %v2338, 8388607
  %v2340 = vor.u32 %v2339, 8388608
  %v2341 = vsub.s32 0, %v2340
  %v2342 = vadd.s32 %v2337, 1
  %vm2343 = vcmp.gt.s32.totalorder %v2342, 0
  %v2344 = vsel %vm2343, %v2342, 0
  %v2345 = vshrl.u32 %v2344, 5
  %v2346 = vand.u32 %v2344, 31
  %v2347 = vsub.s32 32, %v2346
  %v2348 = vshrl.u32 683565275, %v2347
  %v2349 = vshll.u32 683565275, %v2346
  %v2350 = vshrl.u32 2475754826, %v2347
  %v2351 = vor.u32 %v2349, %v2350
  %v2352 = vshll.u32 2475754826, %v2346
  %v2353 = vshrl.u32 2131351028, %v2347
  %v2354 = vor.u32 %v2352, %v2353
  %v2355 = vshll.u32 2131351028, %v2346
  %v2356 = vshrl.u32 2102212464, %v2347
  %v2357 = vor.u32 %v2355, %v2356
  %v2358 = vshll.u32 2102212464, %v2346
  %v2359 = vshrl.u32 920167782, %v2347
  %v2360 = vor.u32 %v2358, %v2359
  %v2361 = vshll.u32 920167782, %v2346
  %v2362 = vshrl.u32 1326507024, %v2347
  %v2363 = vor.u32 %v2361, %v2362
  %vm2364 = vcmp.lt.s32.totalorder %v2345, 1
  %vm2365 = vcmp.lt.s32.totalorder %v2345, 2
  %vm2366 = vcmp.lt.s32.totalorder %v2345, 3
  %vm2367 = vcmp.lt.s32.totalorder %v2345, 4
  %v2368 = vsel %vm2364, %v2348, %v2351
  %v2369 = vsel %vm2367, %v2357, 2102212464
  %v2370 = vsel %vm2366, %v2354, %v2369
  %v2371 = vsel %vm2365, %v2368, %v2370
  %v2372 = vsel %vm2364, %v2351, %v2354
  %v2373 = vsel %vm2367, %v2360, 920167782
  %v2374 = vsel %vm2366, %v2357, %v2373
  %v2375 = vsel %vm2365, %v2372, %v2374
  %v2376 = vsel %vm2364, %v2354, %v2357
  %v2377 = vsel %vm2367, %v2363, 1326507024
  %v2378 = vsel %vm2366, %v2360, %v2377
  %v2379 = vsel %vm2365, %v2376, %v2378
  %v2380 = vshll.u32 %v2340, 8
  %v2381 = vmul.u32.u64.compose %v2380, %v2379
  %v2382 = vextract.low.u32 %v2381
  %v2383 = vextract.high.u32 %v2381
  %v2384 = vmul.u32.u64.compose %v2380, %v2375
  %v2385 = vextract.low.u32 %v2384
  %v2386 = vextract.high.u32 %v2384
  %v2387 = vmul.u32 %v2380, %v2371
  %v2388 = vadd.s32 %v2383, %v2385
  %vm2389 = vc.u32 %v2383, %v2385
  %v2390 = vadd.s32 %v2386, 1
  %v2391 = vsel %vm2389, %v2390, %v2386
  %v2392 = vadd.s32 %v2387, %v2391
  %v2393 = vadd.s32 %v2392, 536870912
  %v2394 = vshrl.u32 %v2393, 30
  %v2395 = vshll.u32 %v2394, 30
  %v2396 = vsub.s32 %v2392, %v2395
  %vm2397 = vcmp.lt.s32.totalorder %v2396, 0
  %v2398 = vsub.s32 0, %v2396
  %v2399 = vsel %vm2397, %v2398, %v2396
  %v2400 = vclz %v2399
  %v2401 = vsub.s32 %v2400, 2
  %vm2402 = vcmp.gt.s32.totalorder 0, %v2401
  %v2403 = vsel %vm2402, 0, %v2401
  %v2404 = vsub.s32 32, %v2403
  %v2405 = vshll.u32 %v2396, %v2403
  %v2406 = vshrl.u32 %v2388, %v2404
  %v2407 = vor.u32 %v2405, %v2406
  %v2408 = vsub.s32 4294967266, %v2403
  %v2409 = vadd.s32 %v2408, 127
  %v2410 = vshll.u32 %v2409, 23
  %v2411 = vor.u32 4788187, %v2410
  %v2412 = vand.u32 2147483647, %v2411
  %v2414 = vcvt.s32.f32 %v2407
  %v2415 = vmul.f32 %v2414, %v2412
  %v2416 = vxor.u32 %v2415, 2147483648
  %v2417 = vsel %vm2334, %v2416, %v2415
  %v2418 = vsub.s32 4, %v2394
  %v2419 = vsel %vm2334, %v2418, %v2394
  %v2420 = vsel %vm2333, %v1608, %v2417
  %v2421 = vsel %vm2333, 0, %v2419
  %v2422 = vcosq.f32.pop %v2420
  %v2423 = vsinq.f32.pop %v2420
  %vm2424 = vweird.f32 %v1608
  %v2425 = vand.u32 %v2421, 3
  %vm2426 = vcmp.lt.s32.totalorder %v2425, 2
  %vm2427 = vcmp.eq.s32.totalorder %v2425, 0
  %v2428 = vxor.u32 %v2423, 2147483648
  %v2429 = vsel %vm2427, %v2422, %v2428
  %vm2430 = vcmp.eq.s32.totalorder %v2425, 2
  %v2431 = vxor.u32 %v2422, 2147483648
  %v2432 = vsel %vm2430, %v2431, %v2423
  %v2433 = vsel %vm2426, %v2429, %v2432
  %v2434 = vsel %vm2424, nan, %v2433
  %v2435 = vmul.f32 %v1713, 0.25
  %v2436 = vmul.f32 %v1816, 0.25
  %v2437 = vmul.f32 %v1919, 0.25
  %v2438 = vmul.f32 %v2022, 0.25
  %v2439 = vmul.f32 %v2125, 0.25
  %v2440 = vmul.f32 %v2228, 0.25
  %v2441 = vmul.f32 %v2331, 0.25
  %v2442 = vmul.f32 %v2434, 0.25
  %v2444 = vsel %vm228, %v1466, 0
  %v2447 = vsel %vm228, %v2435, 0
  %2449 = vmatprep.subr.mxu0 0.0
  %2450 = vmatpush1.xpose.msra.mxu0 0.0
  %2451 = vmatprep.subr.mxu0 0.0
  %2452 = vmatpush1.xpose.msra.mxu0 0.0
  %2453 = vmatprep.subr.mxu0 0.0
  %2454 = vmatpush1.xpose.msra.mxu0 0.0
  %2455 = vmatprep.subr.mxu0 0.0
  %2456 = vmatpush1.xpose.msra.mxu0 0.0
  %2457 = vmatprep.subr.mxu0 0.0
  %2458 = vmatpush1.xpose.msra.mxu0 0.0
  %2459 = vmatprep.subr.mxu0 0.0
  %2460 = vmatpush1.xpose.msra.mxu0 0.0
  %2461 = vmatprep.subr.mxu0 0.0
  %2462 = vmatpush1.xpose.msra.mxu0 0.0
  %2463 = vmatprep.subr.mxu0 0.0
  %2464 = vmatpush1.xpose.msra.mxu0 0.0
  %2465 = vmatprep.subr.mxu0 0.0
  %2466 = vmatpush1.xpose.msra.mxu0 0.0
  %2467 = vmatprep.subr.mxu0 0.0
  %2468 = vmatpush1.xpose.msra.mxu0 0.0
  %2469 = vmatprep.subr.mxu0 0.0
  %2470 = vmatpush1.xpose.msra.mxu0 0.0
  %2471 = vmatprep.subr.mxu0 0.0
  %2472 = vmatpush1.xpose.msra.mxu0 0.0
  %2473 = vmatprep.subr.mxu0 0.0
  %2474 = vmatpush1.xpose.msra.mxu0 0.0
  %2475 = vmatprep.subr.mxu0 0.0
  %2476 = vmatpush1.xpose.msra.mxu0 0.0
  %2477 = vmatprep.subr.mxu0 0.0
  %2478 = vmatpush1.xpose.msra.mxu0 0.0
  %2479 = vmatprep.subr.mxu0 0.0
  %2480 = vmatpush1.xpose.msra.mxu0 %v2447
  %2481 = vmatprep.subr.mxu0 0.0
  %2482 = vmatpush2.xpose.msra.mxu0 0.0
  %2483 = vmatprep.subr.mxu0 0.0
  %2484 = vmatpush2.xpose.msra.mxu0 0.0
  %2485 = vmatprep.subr.mxu0 0.0
  %2486 = vmatpush2.xpose.msra.mxu0 0.0
  %2487 = vmatprep.subr.mxu0 0.0
  %2488 = vmatpush2.xpose.msra.mxu0 0.0
  %2489 = vmatprep.subr.mxu0 0.0
  %2490 = vmatpush2.xpose.msra.mxu0 0.0
  %2491 = vmatprep.subr.mxu0 0.0
  %2492 = vmatpush2.xpose.msra.mxu0 0.0
  %2493 = vmatprep.subr.mxu0 0.0
  %2494 = vmatpush2.xpose.msra.mxu0 0.0
  %2495 = vmatprep.subr.mxu0 0.0
  %2496 = vmatpush2.xpose.msra.mxu0 0.0
  %2497 = vmatprep.subr.mxu0 0.0
  %2498 = vmatpush2.xpose.msra.mxu0 0.0
  %2499 = vmatprep.subr.mxu0 0.0
  %2500 = vmatpush2.xpose.msra.mxu0 0.0
  %2501 = vmatprep.subr.mxu0 0.0
  %2502 = vmatpush2.xpose.msra.mxu0 0.0
  %2503 = vmatprep.subr.mxu0 0.0
  %2504 = vmatpush2.xpose.msra.mxu0 0.0
  %2505 = vmatprep.subr.mxu0 0.0
  %2506 = vmatpush2.xpose.msra.mxu0 0.0
  %2507 = vmatprep.subr.mxu0 0.0
  %2508 = vmatpush2.xpose.msra.mxu0 0.0
  %2509 = vmatprep.subr.mxu0 0.0
  %2510 = vmatpush2.xpose.msra.mxu0 0.0
  %2511 = vmatprep.subr.mxu0 0.0
  %2512 = vmatpush2.xpose.msra.mxu0 0.0
  %2513 = vmatprep.mubr.f32.mxu0 0.0
  %2514 = vmatmul.mubr.f32.gmra.mxu0 %v2444
  %v2515 = vpop.f32.mrf.mxu0
  %v2516 = vadd.f32 0.0, %v2515
  %v2517 = vpop.f32.mrf.mxu0
  %2518 = vdwg.mxu0
  %v2520 = vsel %vm228, %v1467, 0
  %v2523 = vsel %vm228, %v2436, 0
  %2525 = vmatprep.subr.mxu0 0.0
  %2526 = vmatpush1.xpose.msra.mxu0 0.0
  %2527 = vmatprep.subr.mxu0 0.0
  %2528 = vmatpush1.xpose.msra.mxu0 0.0
  %2529 = vmatprep.subr.mxu0 0.0
  %2530 = vmatpush1.xpose.msra.mxu0 0.0
  %2531 = vmatprep.subr.mxu0 0.0
  %2532 = vmatpush1.xpose.msra.mxu0 0.0
  %2533 = vmatprep.subr.mxu0 0.0
  %2534 = vmatpush1.xpose.msra.mxu0 0.0
  %2535 = vmatprep.subr.mxu0 0.0
  %2536 = vmatpush1.xpose.msra.mxu0 0.0
  %2537 = vmatprep.subr.mxu0 0.0
  %2538 = vmatpush1.xpose.msra.mxu0 0.0
  %2539 = vmatprep.subr.mxu0 0.0
  %2540 = vmatpush1.xpose.msra.mxu0 0.0
  %2541 = vmatprep.subr.mxu0 0.0
  %2542 = vmatpush1.xpose.msra.mxu0 0.0
  %2543 = vmatprep.subr.mxu0 0.0
  %2544 = vmatpush1.xpose.msra.mxu0 0.0
  %2545 = vmatprep.subr.mxu0 0.0
  %2546 = vmatpush1.xpose.msra.mxu0 0.0
  %2547 = vmatprep.subr.mxu0 0.0
  %2548 = vmatpush1.xpose.msra.mxu0 0.0
  %2549 = vmatprep.subr.mxu0 0.0
  %2550 = vmatpush1.xpose.msra.mxu0 0.0
  %2551 = vmatprep.subr.mxu0 0.0
  %2552 = vmatpush1.xpose.msra.mxu0 0.0
  %2553 = vmatprep.subr.mxu0 0.0
  %2554 = vmatpush1.xpose.msra.mxu0 0.0
  %2555 = vmatprep.subr.mxu0 0.0
  %2556 = vmatpush1.xpose.msra.mxu0 %v2523
  %2557 = vmatprep.subr.mxu0 0.0
  %2558 = vmatpush2.xpose.msra.mxu0 0.0
  %2559 = vmatprep.subr.mxu0 0.0
  %2560 = vmatpush2.xpose.msra.mxu0 0.0
  %2561 = vmatprep.subr.mxu0 0.0
  %2562 = vmatpush2.xpose.msra.mxu0 0.0
  %2563 = vmatprep.subr.mxu0 0.0
  %2564 = vmatpush2.xpose.msra.mxu0 0.0
  %2565 = vmatprep.subr.mxu0 0.0
  %2566 = vmatpush2.xpose.msra.mxu0 0.0
  %2567 = vmatprep.subr.mxu0 0.0
  %2568 = vmatpush2.xpose.msra.mxu0 0.0
  %2569 = vmatprep.subr.mxu0 0.0
  %2570 = vmatpush2.xpose.msra.mxu0 0.0
  %2571 = vmatprep.subr.mxu0 0.0
  %2572 = vmatpush2.xpose.msra.mxu0 0.0
  %2573 = vmatprep.subr.mxu0 0.0
  %2574 = vmatpush2.xpose.msra.mxu0 0.0
  %2575 = vmatprep.subr.mxu0 0.0
  %2576 = vmatpush2.xpose.msra.mxu0 0.0
  %2577 = vmatprep.subr.mxu0 0.0
  %2578 = vmatpush2.xpose.msra.mxu0 0.0
  %2579 = vmatprep.subr.mxu0 0.0
  %2580 = vmatpush2.xpose.msra.mxu0 0.0
  %2581 = vmatprep.subr.mxu0 0.0
  %2582 = vmatpush2.xpose.msra.mxu0 0.0
  %2583 = vmatprep.subr.mxu0 0.0
  %2584 = vmatpush2.xpose.msra.mxu0 0.0
  %2585 = vmatprep.subr.mxu0 0.0
  %2586 = vmatpush2.xpose.msra.mxu0 0.0
  %2587 = vmatprep.subr.mxu0 0.0
  %2588 = vmatpush2.xpose.msra.mxu0 0.0
  %2589 = vmatprep.mubr.f32.mxu0 0.0
  %2590 = vmatmul.mubr.f32.gmra.mxu0 %v2520
  %v2591 = vpop.f32.mrf.mxu0
  %v2592 = vadd.f32 0.0, %v2591
  %v2593 = vpop.f32.mrf.mxu0
  %2594 = vdwg.mxu0
  %v2596 = vsel %vm228, %v1468, 0
  %v2599 = vsel %vm228, %v2437, 0
  %2601 = vmatprep.subr.mxu0 0.0
  %2602 = vmatpush1.xpose.msra.mxu0 0.0
  %2603 = vmatprep.subr.mxu0 0.0
  %2604 = vmatpush1.xpose.msra.mxu0 0.0
  %2605 = vmatprep.subr.mxu0 0.0
  %2606 = vmatpush1.xpose.msra.mxu0 0.0
  %2607 = vmatprep.subr.mxu0 0.0
  %2608 = vmatpush1.xpose.msra.mxu0 0.0
  %2609 = vmatprep.subr.mxu0 0.0
  %2610 = vmatpush1.xpose.msra.mxu0 0.0
  %2611 = vmatprep.subr.mxu0 0.0
  %2612 = vmatpush1.xpose.msra.mxu0 0.0
  %2613 = vmatprep.subr.mxu0 0.0
  %2614 = vmatpush1.xpose.msra.mxu0 0.0
  %2615 = vmatprep.subr.mxu0 0.0
  %2616 = vmatpush1.xpose.msra.mxu0 0.0
  %2617 = vmatprep.subr.mxu0 0.0
  %2618 = vmatpush1.xpose.msra.mxu0 0.0
  %2619 = vmatprep.subr.mxu0 0.0
  %2620 = vmatpush1.xpose.msra.mxu0 0.0
  %2621 = vmatprep.subr.mxu0 0.0
  %2622 = vmatpush1.xpose.msra.mxu0 0.0
  %2623 = vmatprep.subr.mxu0 0.0
  %2624 = vmatpush1.xpose.msra.mxu0 0.0
  %2625 = vmatprep.subr.mxu0 0.0
  %2626 = vmatpush1.xpose.msra.mxu0 0.0
  %2627 = vmatprep.subr.mxu0 0.0
  %2628 = vmatpush1.xpose.msra.mxu0 0.0
  %2629 = vmatprep.subr.mxu0 0.0
  %2630 = vmatpush1.xpose.msra.mxu0 0.0
  %2631 = vmatprep.subr.mxu0 0.0
  %2632 = vmatpush1.xpose.msra.mxu0 %v2599
  %2633 = vmatprep.subr.mxu0 0.0
  %2634 = vmatpush2.xpose.msra.mxu0 0.0
  %2635 = vmatprep.subr.mxu0 0.0
  %2636 = vmatpush2.xpose.msra.mxu0 0.0
  %2637 = vmatprep.subr.mxu0 0.0
  %2638 = vmatpush2.xpose.msra.mxu0 0.0
  %2639 = vmatprep.subr.mxu0 0.0
  %2640 = vmatpush2.xpose.msra.mxu0 0.0
  %2641 = vmatprep.subr.mxu0 0.0
  %2642 = vmatpush2.xpose.msra.mxu0 0.0
  %2643 = vmatprep.subr.mxu0 0.0
  %2644 = vmatpush2.xpose.msra.mxu0 0.0
  %2645 = vmatprep.subr.mxu0 0.0
  %2646 = vmatpush2.xpose.msra.mxu0 0.0
  %2647 = vmatprep.subr.mxu0 0.0
  %2648 = vmatpush2.xpose.msra.mxu0 0.0
  %2649 = vmatprep.subr.mxu0 0.0
  %2650 = vmatpush2.xpose.msra.mxu0 0.0
  %2651 = vmatprep.subr.mxu0 0.0
  %2652 = vmatpush2.xpose.msra.mxu0 0.0
  %2653 = vmatprep.subr.mxu0 0.0
  %2654 = vmatpush2.xpose.msra.mxu0 0.0
  %2655 = vmatprep.subr.mxu0 0.0
  %2656 = vmatpush2.xpose.msra.mxu0 0.0
  %2657 = vmatprep.subr.mxu0 0.0
  %2658 = vmatpush2.xpose.msra.mxu0 0.0
  %2659 = vmatprep.subr.mxu0 0.0
  %2660 = vmatpush2.xpose.msra.mxu0 0.0
  %2661 = vmatprep.subr.mxu0 0.0
  %2662 = vmatpush2.xpose.msra.mxu0 0.0
  %2663 = vmatprep.subr.mxu0 0.0
  %2664 = vmatpush2.xpose.msra.mxu0 0.0
  %2665 = vmatprep.mubr.f32.mxu0 0.0
  %2666 = vmatmul.mubr.f32.gmra.mxu0 %v2596
  %v2667 = vpop.f32.mrf.mxu0
  %v2668 = vadd.f32 0.0, %v2667
  %v2669 = vpop.f32.mrf.mxu0
  %2670 = vdwg.mxu0
  %v2672 = vsel %vm228, %v1469, 0
  %v2675 = vsel %vm228, %v2438, 0
  %2677 = vmatprep.subr.mxu0 0.0
  %2678 = vmatpush1.xpose.msra.mxu0 0.0
  %2679 = vmatprep.subr.mxu0 0.0
  %2680 = vmatpush1.xpose.msra.mxu0 0.0
  %2681 = vmatprep.subr.mxu0 0.0
  %2682 = vmatpush1.xpose.msra.mxu0 0.0
  %2683 = vmatprep.subr.mxu0 0.0
  %2684 = vmatpush1.xpose.msra.mxu0 0.0
  %2685 = vmatprep.subr.mxu0 0.0
  %2686 = vmatpush1.xpose.msra.mxu0 0.0
  %2687 = vmatprep.subr.mxu0 0.0
  %2688 = vmatpush1.xpose.msra.mxu0 0.0
  %2689 = vmatprep.subr.mxu0 0.0
  %2690 = vmatpush1.xpose.msra.mxu0 0.0
  %2691 = vmatprep.subr.mxu0 0.0
  %2692 = vmatpush1.xpose.msra.mxu0 0.0
  %2693 = vmatprep.subr.mxu0 0.0
  %2694 = vmatpush1.xpose.msra.mxu0 0.0
  %2695 = vmatprep.subr.mxu0 0.0
  %2696 = vmatpush1.xpose.msra.mxu0 0.0
  %2697 = vmatprep.subr.mxu0 0.0
  %2698 = vmatpush1.xpose.msra.mxu0 0.0
  %2699 = vmatprep.subr.mxu0 0.0
  %2700 = vmatpush1.xpose.msra.mxu0 0.0
  %2701 = vmatprep.subr.mxu0 0.0
  %2702 = vmatpush1.xpose.msra.mxu0 0.0
  %2703 = vmatprep.subr.mxu0 0.0
  %2704 = vmatpush1.xpose.msra.mxu0 0.0
  %2705 = vmatprep.subr.mxu0 0.0
  %2706 = vmatpush1.xpose.msra.mxu0 0.0
  %2707 = vmatprep.subr.mxu0 0.0
  %2708 = vmatpush1.xpose.msra.mxu0 %v2675
  %2709 = vmatprep.subr.mxu0 0.0
  %2710 = vmatpush2.xpose.msra.mxu0 0.0
  %2711 = vmatprep.subr.mxu0 0.0
  %2712 = vmatpush2.xpose.msra.mxu0 0.0
  %2713 = vmatprep.subr.mxu0 0.0
  %2714 = vmatpush2.xpose.msra.mxu0 0.0
  %2715 = vmatprep.subr.mxu0 0.0
  %2716 = vmatpush2.xpose.msra.mxu0 0.0
  %2717 = vmatprep.subr.mxu0 0.0
  %2718 = vmatpush2.xpose.msra.mxu0 0.0
  %2719 = vmatprep.subr.mxu0 0.0
  %2720 = vmatpush2.xpose.msra.mxu0 0.0
  %2721 = vmatprep.subr.mxu0 0.0
  %2722 = vmatpush2.xpose.msra.mxu0 0.0
  %2723 = vmatprep.subr.mxu0 0.0
  %2724 = vmatpush2.xpose.msra.mxu0 0.0
  %2725 = vmatprep.subr.mxu0 0.0
  %2726 = vmatpush2.xpose.msra.mxu0 0.0
  %2727 = vmatprep.subr.mxu0 0.0
  %2728 = vmatpush2.xpose.msra.mxu0 0.0
  %2729 = vmatprep.subr.mxu0 0.0
  %2730 = vmatpush2.xpose.msra.mxu0 0.0
  %2731 = vmatprep.subr.mxu0 0.0
  %2732 = vmatpush2.xpose.msra.mxu0 0.0
  %2733 = vmatprep.subr.mxu0 0.0
  %2734 = vmatpush2.xpose.msra.mxu0 0.0
  %2735 = vmatprep.subr.mxu0 0.0
  %2736 = vmatpush2.xpose.msra.mxu0 0.0
  %2737 = vmatprep.subr.mxu0 0.0
  %2738 = vmatpush2.xpose.msra.mxu0 0.0
  %2739 = vmatprep.subr.mxu0 0.0
  %2740 = vmatpush2.xpose.msra.mxu0 0.0
  %2741 = vmatprep.mubr.f32.mxu0 0.0
  %2742 = vmatmul.mubr.f32.gmra.mxu0 %v2672
  %v2743 = vpop.f32.mrf.mxu0
  %v2744 = vadd.f32 0.0, %v2743
  %v2745 = vpop.f32.mrf.mxu0
  %2746 = vdwg.mxu0
  %v2748 = vsel %vm228, %v1470, 0
  %v2751 = vsel %vm228, %v2439, 0
  %2753 = vmatprep.subr.mxu0 0.0
  %2754 = vmatpush1.xpose.msra.mxu0 0.0
  %2755 = vmatprep.subr.mxu0 0.0
  %2756 = vmatpush1.xpose.msra.mxu0 0.0
  %2757 = vmatprep.subr.mxu0 0.0
  %2758 = vmatpush1.xpose.msra.mxu0 0.0
  %2759 = vmatprep.subr.mxu0 0.0
  %2760 = vmatpush1.xpose.msra.mxu0 0.0
  %2761 = vmatprep.subr.mxu0 0.0
  %2762 = vmatpush1.xpose.msra.mxu0 0.0
  %2763 = vmatprep.subr.mxu0 0.0
  %2764 = vmatpush1.xpose.msra.mxu0 0.0
  %2765 = vmatprep.subr.mxu0 0.0
  %2766 = vmatpush1.xpose.msra.mxu0 0.0
  %2767 = vmatprep.subr.mxu0 0.0
  %2768 = vmatpush1.xpose.msra.mxu0 0.0
  %2769 = vmatprep.subr.mxu0 0.0
  %2770 = vmatpush1.xpose.msra.mxu0 0.0
  %2771 = vmatprep.subr.mxu0 0.0
  %2772 = vmatpush1.xpose.msra.mxu0 0.0
  %2773 = vmatprep.subr.mxu0 0.0
  %2774 = vmatpush1.xpose.msra.mxu0 0.0
  %2775 = vmatprep.subr.mxu0 0.0
  %2776 = vmatpush1.xpose.msra.mxu0 0.0
  %2777 = vmatprep.subr.mxu0 0.0
  %2778 = vmatpush1.xpose.msra.mxu0 0.0
  %2779 = vmatprep.subr.mxu0 0.0
  %2780 = vmatpush1.xpose.msra.mxu0 0.0
  %2781 = vmatprep.subr.mxu0 0.0
  %2782 = vmatpush1.xpose.msra.mxu0 0.0
  %2783 = vmatprep.subr.mxu0 0.0
  %2784 = vmatpush1.xpose.msra.mxu0 %v2751
  %2785 = vmatprep.subr.mxu0 0.0
  %2786 = vmatpush2.xpose.msra.mxu0 0.0
  %2787 = vmatprep.subr.mxu0 0.0
  %2788 = vmatpush2.xpose.msra.mxu0 0.0
  %2789 = vmatprep.subr.mxu0 0.0
  %2790 = vmatpush2.xpose.msra.mxu0 0.0
  %2791 = vmatprep.subr.mxu0 0.0
  %2792 = vmatpush2.xpose.msra.mxu0 0.0
  %2793 = vmatprep.subr.mxu0 0.0
  %2794 = vmatpush2.xpose.msra.mxu0 0.0
  %2795 = vmatprep.subr.mxu0 0.0
  %2796 = vmatpush2.xpose.msra.mxu0 0.0
  %2797 = vmatprep.subr.mxu0 0.0
  %2798 = vmatpush2.xpose.msra.mxu0 0.0
  %2799 = vmatprep.subr.mxu0 0.0
  %2800 = vmatpush2.xpose.msra.mxu0 0.0
  %2801 = vmatprep.subr.mxu0 0.0
  %2802 = vmatpush2.xpose.msra.mxu0 0.0
  %2803 = vmatprep.subr.mxu0 0.0
  %2804 = vmatpush2.xpose.msra.mxu0 0.0
  %2805 = vmatprep.subr.mxu0 0.0
  %2806 = vmatpush2.xpose.msra.mxu0 0.0
  %2807 = vmatprep.subr.mxu0 0.0
  %2808 = vmatpush2.xpose.msra.mxu0 0.0
  %2809 = vmatprep.subr.mxu0 0.0
  %2810 = vmatpush2.xpose.msra.mxu0 0.0
  %2811 = vmatprep.subr.mxu0 0.0
  %2812 = vmatpush2.xpose.msra.mxu0 0.0
  %2813 = vmatprep.subr.mxu0 0.0
  %2814 = vmatpush2.xpose.msra.mxu0 0.0
  %2815 = vmatprep.subr.mxu0 0.0
  %2816 = vmatpush2.xpose.msra.mxu0 0.0
  %2817 = vmatprep.mubr.f32.mxu0 0.0
  %2818 = vmatmul.mubr.f32.gmra.mxu0 %v2748
  %v2819 = vpop.f32.mrf.mxu0
  %v2820 = vadd.f32 0.0, %v2819
  %v2821 = vpop.f32.mrf.mxu0
  %2822 = vdwg.mxu0
  %v2824 = vsel %vm228, %v1471, 0
  %v2827 = vsel %vm228, %v2440, 0
  %2829 = vmatprep.subr.mxu0 0.0
  %2830 = vmatpush1.xpose.msra.mxu0 0.0
  %2831 = vmatprep.subr.mxu0 0.0
  %2832 = vmatpush1.xpose.msra.mxu0 0.0
  %2833 = vmatprep.subr.mxu0 0.0
  %2834 = vmatpush1.xpose.msra.mxu0 0.0
  %2835 = vmatprep.subr.mxu0 0.0
  %2836 = vmatpush1.xpose.msra.mxu0 0.0
  %2837 = vmatprep.subr.mxu0 0.0
  %2838 = vmatpush1.xpose.msra.mxu0 0.0
  %2839 = vmatprep.subr.mxu0 0.0
  %2840 = vmatpush1.xpose.msra.mxu0 0.0
  %2841 = vmatprep.subr.mxu0 0.0
  %2842 = vmatpush1.xpose.msra.mxu0 0.0
  %2843 = vmatprep.subr.mxu0 0.0
  %2844 = vmatpush1.xpose.msra.mxu0 0.0
  %2845 = vmatprep.subr.mxu0 0.0
  %2846 = vmatpush1.xpose.msra.mxu0 0.0
  %2847 = vmatprep.subr.mxu0 0.0
  %2848 = vmatpush1.xpose.msra.mxu0 0.0
  %2849 = vmatprep.subr.mxu0 0.0
  %2850 = vmatpush1.xpose.msra.mxu0 0.0
  %2851 = vmatprep.subr.mxu0 0.0
  %2852 = vmatpush1.xpose.msra.mxu0 0.0
  %2853 = vmatprep.subr.mxu0 0.0
  %2854 = vmatpush1.xpose.msra.mxu0 0.0
  %2855 = vmatprep.subr.mxu0 0.0
  %2856 = vmatpush1.xpose.msra.mxu0 0.0
  %2857 = vmatprep.subr.mxu0 0.0
  %2858 = vmatpush1.xpose.msra.mxu0 0.0
  %2859 = vmatprep.subr.mxu0 0.0
  %2860 = vmatpush1.xpose.msra.mxu0 %v2827
  %2861 = vmatprep.subr.mxu0 0.0
  %2862 = vmatpush2.xpose.msra.mxu0 0.0
  %2863 = vmatprep.subr.mxu0 0.0
  %2864 = vmatpush2.xpose.msra.mxu0 0.0
  %2865 = vmatprep.subr.mxu0 0.0
  %2866 = vmatpush2.xpose.msra.mxu0 0.0
  %2867 = vmatprep.subr.mxu0 0.0
  %2868 = vmatpush2.xpose.msra.mxu0 0.0
  %2869 = vmatprep.subr.mxu0 0.0
  %2870 = vmatpush2.xpose.msra.mxu0 0.0
  %2871 = vmatprep.subr.mxu0 0.0
  %2872 = vmatpush2.xpose.msra.mxu0 0.0
  %2873 = vmatprep.subr.mxu0 0.0
  %2874 = vmatpush2.xpose.msra.mxu0 0.0
  %2875 = vmatprep.subr.mxu0 0.0
  %2876 = vmatpush2.xpose.msra.mxu0 0.0
  %2877 = vmatprep.subr.mxu0 0.0
  %2878 = vmatpush2.xpose.msra.mxu0 0.0
  %2879 = vmatprep.subr.mxu0 0.0
  %2880 = vmatpush2.xpose.msra.mxu0 0.0
  %2881 = vmatprep.subr.mxu0 0.0
  %2882 = vmatpush2.xpose.msra.mxu0 0.0
  %2883 = vmatprep.subr.mxu0 0.0
  %2884 = vmatpush2.xpose.msra.mxu0 0.0
  %2885 = vmatprep.subr.mxu0 0.0
  %2886 = vmatpush2.xpose.msra.mxu0 0.0
  %2887 = vmatprep.subr.mxu0 0.0
  %2888 = vmatpush2.xpose.msra.mxu0 0.0
  %2889 = vmatprep.subr.mxu0 0.0
  %2890 = vmatpush2.xpose.msra.mxu0 0.0
  %2891 = vmatprep.subr.mxu0 0.0
  %2892 = vmatpush2.xpose.msra.mxu0 0.0
  %2893 = vmatprep.mubr.f32.mxu0 0.0
  %2894 = vmatmul.mubr.f32.gmra.mxu0 %v2824
  %v2895 = vpop.f32.mrf.mxu0
  %v2896 = vadd.f32 0.0, %v2895
  %v2897 = vpop.f32.mrf.mxu0
  %2898 = vdwg.mxu0
  %v2900 = vsel %vm228, %v1472, 0
  %v2903 = vsel %vm228, %v2441, 0
  %2905 = vmatprep.subr.mxu0 0.0
  %2906 = vmatpush1.xpose.msra.mxu0 0.0
  %2907 = vmatprep.subr.mxu0 0.0
  %2908 = vmatpush1.xpose.msra.mxu0 0.0
  %2909 = vmatprep.subr.mxu0 0.0
  %2910 = vmatpush1.xpose.msra.mxu0 0.0
  %2911 = vmatprep.subr.mxu0 0.0
  %2912 = vmatpush1.xpose.msra.mxu0 0.0
  %2913 = vmatprep.subr.mxu0 0.0
  %2914 = vmatpush1.xpose.msra.mxu0 0.0
  %2915 = vmatprep.subr.mxu0 0.0
  %2916 = vmatpush1.xpose.msra.mxu0 0.0
  %2917 = vmatprep.subr.mxu0 0.0
  %2918 = vmatpush1.xpose.msra.mxu0 0.0
  %2919 = vmatprep.subr.mxu0 0.0
  %2920 = vmatpush1.xpose.msra.mxu0 0.0
  %2921 = vmatprep.subr.mxu0 0.0
  %2922 = vmatpush1.xpose.msra.mxu0 0.0
  %2923 = vmatprep.subr.mxu0 0.0
  %2924 = vmatpush1.xpose.msra.mxu0 0.0
  %2925 = vmatprep.subr.mxu0 0.0
  %2926 = vmatpush1.xpose.msra.mxu0 0.0
  %2927 = vmatprep.subr.mxu0 0.0
  %2928 = vmatpush1.xpose.msra.mxu0 0.0
  %2929 = vmatprep.subr.mxu0 0.0
  %2930 = vmatpush1.xpose.msra.mxu0 0.0
  %2931 = vmatprep.subr.mxu0 0.0
  %2932 = vmatpush1.xpose.msra.mxu0 0.0
  %2933 = vmatprep.subr.mxu0 0.0
  %2934 = vmatpush1.xpose.msra.mxu0 0.0
  %2935 = vmatprep.subr.mxu0 0.0
  %2936 = vmatpush1.xpose.msra.mxu0 %v2903
  %2937 = vmatprep.subr.mxu0 0.0
  %2938 = vmatpush2.xpose.msra.mxu0 0.0
  %2939 = vmatprep.subr.mxu0 0.0
  %2940 = vmatpush2.xpose.msra.mxu0 0.0
  %2941 = vmatprep.subr.mxu0 0.0
  %2942 = vmatpush2.xpose.msra.mxu0 0.0
  %2943 = vmatprep.subr.mxu0 0.0
  %2944 = vmatpush2.xpose.msra.mxu0 0.0
  %2945 = vmatprep.subr.mxu0 0.0
  %2946 = vmatpush2.xpose.msra.mxu0 0.0
  %2947 = vmatprep.subr.mxu0 0.0
  %2948 = vmatpush2.xpose.msra.mxu0 0.0
  %2949 = vmatprep.subr.mxu0 0.0
  %2950 = vmatpush2.xpose.msra.mxu0 0.0
  %2951 = vmatprep.subr.mxu0 0.0
  %2952 = vmatpush2.xpose.msra.mxu0 0.0
  %2953 = vmatprep.subr.mxu0 0.0
  %2954 = vmatpush2.xpose.msra.mxu0 0.0
  %2955 = vmatprep.subr.mxu0 0.0
  %2956 = vmatpush2.xpose.msra.mxu0 0.0
  %2957 = vmatprep.subr.mxu0 0.0
  %2958 = vmatpush2.xpose.msra.mxu0 0.0
  %2959 = vmatprep.subr.mxu0 0.0
  %2960 = vmatpush2.xpose.msra.mxu0 0.0
  %2961 = vmatprep.subr.mxu0 0.0
  %2962 = vmatpush2.xpose.msra.mxu0 0.0
  %2963 = vmatprep.subr.mxu0 0.0
  %2964 = vmatpush2.xpose.msra.mxu0 0.0
  %2965 = vmatprep.subr.mxu0 0.0
  %2966 = vmatpush2.xpose.msra.mxu0 0.0
  %2967 = vmatprep.subr.mxu0 0.0
  %2968 = vmatpush2.xpose.msra.mxu0 0.0
  %2969 = vmatprep.mubr.f32.mxu0 0.0
  %2970 = vmatmul.mubr.f32.gmra.mxu0 %v2900
  %v2971 = vpop.f32.mrf.mxu0
  %v2972 = vadd.f32 0.0, %v2971
  %v2973 = vpop.f32.mrf.mxu0
  %2974 = vdwg.mxu0
  %v2976 = vsel %vm228, %v1473, 0
  %v2979 = vsel %vm228, %v2442, 0
  %2981 = vmatprep.subr.mxu0 0.0
  %2982 = vmatpush1.xpose.msra.mxu0 0.0
  %2983 = vmatprep.subr.mxu0 0.0
  %2984 = vmatpush1.xpose.msra.mxu0 0.0
  %2985 = vmatprep.subr.mxu0 0.0
  %2986 = vmatpush1.xpose.msra.mxu0 0.0
  %2987 = vmatprep.subr.mxu0 0.0
  %2988 = vmatpush1.xpose.msra.mxu0 0.0
  %2989 = vmatprep.subr.mxu0 0.0
  %2990 = vmatpush1.xpose.msra.mxu0 0.0
  %2991 = vmatprep.subr.mxu0 0.0
  %2992 = vmatpush1.xpose.msra.mxu0 0.0
  %2993 = vmatprep.subr.mxu0 0.0
  %2994 = vmatpush1.xpose.msra.mxu0 0.0
  %2995 = vmatprep.subr.mxu0 0.0
  %2996 = vmatpush1.xpose.msra.mxu0 0.0
  %2997 = vmatprep.subr.mxu0 0.0
  %2998 = vmatpush1.xpose.msra.mxu0 0.0
  %2999 = vmatprep.subr.mxu0 0.0
  %3000 = vmatpush1.xpose.msra.mxu0 0.0
  %3001 = vmatprep.subr.mxu0 0.0
  %3002 = vmatpush1.xpose.msra.mxu0 0.0
  %3003 = vmatprep.subr.mxu0 0.0
  %3004 = vmatpush1.xpose.msra.mxu0 0.0
  %3005 = vmatprep.subr.mxu0 0.0
  %3006 = vmatpush1.xpose.msra.mxu0 0.0
  %3007 = vmatprep.subr.mxu0 0.0
  %3008 = vmatpush1.xpose.msra.mxu0 0.0
  %3009 = vmatprep.subr.mxu0 0.0
  %3010 = vmatpush1.xpose.msra.mxu0 0.0
  %3011 = vmatprep.subr.mxu0 0.0
  %3012 = vmatpush1.xpose.msra.mxu0 %v2979
  %3013 = vmatprep.subr.mxu0 0.0
  %3014 = vmatpush2.xpose.msra.mxu0 0.0
  %3015 = vmatprep.subr.mxu0 0.0
  %3016 = vmatpush2.xpose.msra.mxu0 0.0
  %3017 = vmatprep.subr.mxu0 0.0
  %3018 = vmatpush2.xpose.msra.mxu0 0.0
  %3019 = vmatprep.subr.mxu0 0.0
  %3020 = vmatpush2.xpose.msra.mxu0 0.0
  %3021 = vmatprep.subr.mxu0 0.0
  %3022 = vmatpush2.xpose.msra.mxu0 0.0
  %3023 = vmatprep.subr.mxu0 0.0
  %3024 = vmatpush2.xpose.msra.mxu0 0.0
  %3025 = vmatprep.subr.mxu0 0.0
  %3026 = vmatpush2.xpose.msra.mxu0 0.0
  %3027 = vmatprep.subr.mxu0 0.0
  %3028 = vmatpush2.xpose.msra.mxu0 0.0
  %3029 = vmatprep.subr.mxu0 0.0
  %3030 = vmatpush2.xpose.msra.mxu0 0.0
  %3031 = vmatprep.subr.mxu0 0.0
  %3032 = vmatpush2.xpose.msra.mxu0 0.0
  %3033 = vmatprep.subr.mxu0 0.0
  %3034 = vmatpush2.xpose.msra.mxu0 0.0
  %3035 = vmatprep.subr.mxu0 0.0
  %3036 = vmatpush2.xpose.msra.mxu0 0.0
  %3037 = vmatprep.subr.mxu0 0.0
  %3038 = vmatpush2.xpose.msra.mxu0 0.0
  %3039 = vmatprep.subr.mxu0 0.0
  %3040 = vmatpush2.xpose.msra.mxu0 0.0
  %3041 = vmatprep.subr.mxu0 0.0
  %3042 = vmatpush2.xpose.msra.mxu0 0.0
  %3043 = vmatprep.subr.mxu0 0.0
  %3044 = vmatpush2.xpose.msra.mxu0 0.0
  %3045 = vmatprep.mubr.f32.mxu0 0.0
  %3046 = vmatmul.mubr.f32.gmra.mxu0 %v2976
  %v3047 = vpop.f32.mrf.mxu0
  %v3048 = vadd.f32 0.0, %v3047
  %v3049 = vpop.f32.mrf.mxu0
  %3050 = vdwg.mxu0
  %v3051 = vmul.f32 %v2516, 0.17677669
  %v3052 = vmul.f32 %v2592, 0.17677669
  %v3053 = vmul.f32 %v2668, 0.17677669
  %v3054 = vmul.f32 %v2744, 0.17677669
  %v3055 = vmul.f32 %v2820, 0.17677669
  %v3056 = vmul.f32 %v2896, 0.17677669
  %v3057 = vmul.f32 %v2972, 0.17677669
  %v3058 = vmul.f32 %v3048, 0.17677669
  %vm3059 = vcmask 31744
  %v3060 = vsel %vm3059, %v3051, -inf
  %3061 = vmax.xlane.f32.xlu0 %v3060
  %v3062 = vpop.xlane.xlu0 %3061
  %v3063 = vsel %vm3059, %v3052, -inf
  %3064 = vmax.xlane.f32.xlu0 %v3063
  %v3065 = vpop.xlane.xlu0 %3064
  %v3066 = vsel %vm3059, %v3053, -inf
  %3067 = vmax.xlane.f32.xlu0 %v3066
  %v3068 = vpop.xlane.xlu0 %3067
  %v3069 = vsel %vm3059, %v3054, -inf
  %3070 = vmax.xlane.f32.xlu0 %v3069
  %v3071 = vpop.xlane.xlu0 %3070
  %v3072 = vsel %vm3059, %v3055, -inf
  %3073 = vmax.xlane.f32.xlu0 %v3072
  %v3074 = vpop.xlane.xlu0 %3073
  %v3075 = vsel %vm3059, %v3056, -inf
  %3076 = vmax.xlane.f32.xlu0 %v3075
  %v3077 = vpop.xlane.xlu0 %3076
  %v3078 = vsel %vm3059, %v3057, -inf
  %3079 = vmax.xlane.f32.xlu0 %v3078
  %v3080 = vpop.xlane.xlu0 %3079
  %v3081 = vsel %vm3059, %v3058, -inf
  %3082 = vmax.xlane.f32.xlu0 %v3081
  %v3083 = vpop.xlane.xlu0 %3082
  %v3084 = vsub.f32 %v3051, %v3062
  %v3085 = vsub.f32 %v3052, %v3065
  %v3086 = vsub.f32 %v3053, %v3068
  %v3087 = vsub.f32 %v3054, %v3071
  %v3088 = vsub.f32 %v3055, %v3074
  %v3089 = vsub.f32 %v3056, %v3077
  %v3090 = vsub.f32 %v3057, %v3080
  %v3091 = vsub.f32 %v3058, %v3083
  %v3092 = vmul.f32 %v3084, 1.442695
  %v3093 = vpow.pop %v3092
  %v3094 = vmul.f32 %v3085, 1.442695
  %v3095 = vpow.pop %v3094
  %v3096 = vmul.f32 %v3086, 1.442695
  %v3097 = vpow.pop %v3096
  %v3098 = vmul.f32 %v3087, 1.442695
  %v3099 = vpow.pop %v3098
  %v3100 = vmul.f32 %v3088, 1.442695
  %v3101 = vpow.pop %v3100
  %v3102 = vmul.f32 %v3089, 1.442695
  %v3103 = vpow.pop %v3102
  %v3104 = vmul.f32 %v3090, 1.442695
  %v3105 = vpow.pop %v3104
  %v3106 = vmul.f32 %v3091, 1.442695
  %v3107 = vpow.pop %v3106
  %v3108 = vsel %vm3059, %v3093, 0.0
  %3109 = vadd.xlane.f32.xlu0 %v3108
  %v3110 = vpop.xlane.xlu0 %3109
  %v3111 = vsel %vm3059, %v3095, 0.0
  %3112 = vadd.xlane.f32.xlu0 %v3111
  %v3113 = vpop.xlane.xlu0 %3112
  %v3114 = vsel %vm3059, %v3097, 0.0
  %3115 = vadd.xlane.f32.xlu0 %v3114
  %v3116 = vpop.xlane.xlu0 %3115
  %v3117 = vsel %vm3059, %v3099, 0.0
  %3118 = vadd.xlane.f32.xlu0 %v3117
  %v3119 = vpop.xlane.xlu0 %3118
  %v3120 = vsel %vm3059, %v3101, 0.0
  %3121 = vadd.xlane.f32.xlu0 %v3120
  %v3122 = vpop.xlane.xlu0 %3121
  %v3123 = vsel %vm3059, %v3103, 0.0
  %3124 = vadd.xlane.f32.xlu0 %v3123
  %v3125 = vpop.xlane.xlu0 %3124
  %v3126 = vsel %vm3059, %v3105, 0.0
  %3127 = vadd.xlane.f32.xlu0 %v3126
  %v3128 = vpop.xlane.xlu0 %3127
  %v3129 = vsel %vm3059, %v3107, 0.0
  %3130 = vadd.xlane.f32.xlu0 %v3129
  %v3131 = vpop.xlane.xlu0 %3130
  %v3132 = vrcp.pop %v3110
  %v3133 = vmul.f32 %v3093, %v3132
  %v3134 = vrcp.pop %v3113
  %v3135 = vmul.f32 %v3095, %v3134
  %v3136 = vrcp.pop %v3116
  %v3137 = vmul.f32 %v3097, %v3136
  %v3138 = vrcp.pop %v3119
  %v3139 = vmul.f32 %v3099, %v3138
  %v3140 = vrcp.pop %v3122
  %v3141 = vmul.f32 %v3101, %v3140
  %v3142 = vrcp.pop %v3125
  %v3143 = vmul.f32 %v3103, %v3142
  %v3144 = vrcp.pop %v3128
  %v3145 = vmul.f32 %v3105, %v3144
  %v3146 = vrcp.pop %v3131
  %v3147 = vmul.f32 %v3107, %v3146
  %3148 = vrot.lane.b32.xlu0 %v464, 64
  %v3149 = vpop.permute.xlu0 %3148
  %v3151 = vsel %vm3059, %v3133, 0
  %v3153 = vsel %vm117, %v3149, 0
  %3155 = vmatprep.subr.mxu0 0.0
  %3156 = vmatpush1.msra.mxu0 0.0
  %3157 = vmatprep.subr.mxu0 0.0
  %3158 = vmatpush1.msra.mxu0 0.0
  %3159 = vmatprep.subr.mxu0 0.0
  %3160 = vmatpush1.msra.mxu0 0.0
  %3161 = vmatprep.subr.mxu0 0.0
  %3162 = vmatpush1.msra.mxu0 0.0
  %3163 = vmatprep.subr.mxu0 0.0
  %3164 = vmatpush1.msra.mxu0 0.0
  %3165 = vmatprep.subr.mxu0 0.0
  %3166 = vmatpush1.msra.mxu0 0.0
  %3167 = vmatprep.subr.mxu0 0.0
  %3168 = vmatpush1.msra.mxu0 0.0
  %3169 = vmatprep.subr.mxu0 0.0
  %3170 = vmatpush1.msra.mxu0 0.0
  %3171 = vmatprep.subr.mxu0 0.0
  %3172 = vmatpush1.msra.mxu0 0.0
  %3173 = vmatprep.subr.mxu0 0.0
  %3174 = vmatpush1.msra.mxu0 0.0
  %3175 = vmatprep.subr.mxu0 0.0
  %3176 = vmatpush1.msra.mxu0 0.0
  %3177 = vmatprep.subr.mxu0 0.0
  %3178 = vmatpush1.msra.mxu0 0.0
  %3179 = vmatprep.subr.mxu0 0.0
  %3180 = vmatpush1.msra.mxu0 0.0
  %3181 = vmatprep.subr.mxu0 0.0
  %3182 = vmatpush1.msra.mxu0 0.0
  %3183 = vmatprep.subr.mxu0 0.0
  %3184 = vmatpush1.msra.mxu0 0.0
  %3185 = vmatprep.subr.mxu0 0.0
  %3186 = vmatpush1.msra.mxu0 %v3153
  %3187 = vmatprep.subr.mxu0 0.0
  %3188 = vmatpush2.msra.mxu0 0.0
  %3189 = vmatprep.subr.mxu0 0.0
  %3190 = vmatpush2.msra.mxu0 0.0
  %3191 = vmatprep.subr.mxu0 0.0
  %3192 = vmatpush2.msra.mxu0 0.0
  %3193 = vmatprep.subr.mxu0 0.0
  %3194 = vmatpush2.msra.mxu0 0.0
  %3195 = vmatprep.subr.mxu0 0.0
  %3196 = vmatpush2.msra.mxu0 0.0
  %3197 = vmatprep.subr.mxu0 0.0
  %3198 = vmatpush2.msra.mxu0 0.0
  %3199 = vmatprep.subr.mxu0 0.0
  %3200 = vmatpush2.msra.mxu0 0.0
  %3201 = vmatprep.subr.mxu0 0.0
  %3202 = vmatpush2.msra.mxu0 0.0
  %3203 = vmatprep.subr.mxu0 0.0
  %3204 = vmatpush2.msra.mxu0 0.0
  %3205 = vmatprep.subr.mxu0 0.0
  %3206 = vmatpush2.msra.mxu0 0.0
  %3207 = vmatprep.subr.mxu0 0.0
  %3208 = vmatpush2.msra.mxu0 0.0
  %3209 = vmatprep.subr.mxu0 0.0
  %3210 = vmatpush2.msra.mxu0 0.0
  %3211 = vmatprep.subr.mxu0 0.0
  %3212 = vmatpush2.msra.mxu0 0.0
  %3213 = vmatprep.subr.mxu0 0.0
  %3214 = vmatpush2.msra.mxu0 0.0
  %3215 = vmatprep.subr.mxu0 0.0
  %3216 = vmatpush2.msra.mxu0 0.0
  %3217 = vmatprep.subr.mxu0 0.0
  %3218 = vmatpush2.msra.mxu0 0.0
  %3219 = vmatprep.mubr.f32.mxu0 0.0
  %3220 = vmatmul.mubr.f32.gmra.mxu0 %v3151
  %v3221 = vpop.f32.mrf.mxu0
  %v3222 = vadd.f32 0.0, %v3221
  %v3223 = vpop.f32.mrf.mxu0
  %3224 = vdwg.mxu0
  %3225 = vrot.lane.b32.xlu0 %v469, 64
  %v3226 = vpop.permute.xlu0 %3225
  %v3228 = vsel %vm3059, %v3135, 0
  %v3230 = vsel %vm117, %v3226, 0
  %3232 = vmatprep.subr.mxu0 0.0
  %3233 = vmatpush1.msra.mxu0 0.0
  %3234 = vmatprep.subr.mxu0 0.0
  %3235 = vmatpush1.msra.mxu0 0.0
  %3236 = vmatprep.subr.mxu0 0.0
  %3237 = vmatpush1.msra.mxu0 0.0
  %3238 = vmatprep.subr.mxu0 0.0
  %3239 = vmatpush1.msra.mxu0 0.0
  %3240 = vmatprep.subr.mxu0 0.0
  %3241 = vmatpush1.msra.mxu0 0.0
  %3242 = vmatprep.subr.mxu0 0.0
  %3243 = vmatpush1.msra.mxu0 0.0
  %3244 = vmatprep.subr.mxu0 0.0
  %3245 = vmatpush1.msra.mxu0 0.0
  %3246 = vmatprep.subr.mxu0 0.0
  %3247 = vmatpush1.msra.mxu0 0.0
  %3248 = vmatprep.subr.mxu0 0.0
  %3249 = vmatpush1.msra.mxu0 0.0
  %3250 = vmatprep.subr.mxu0 0.0
  %3251 = vmatpush1.msra.mxu0 0.0
  %3252 = vmatprep.subr.mxu0 0.0
  %3253 = vmatpush1.msra.mxu0 0.0
  %3254 = vmatprep.subr.mxu0 0.0
  %3255 = vmatpush1.msra.mxu0 0.0
  %3256 = vmatprep.subr.mxu0 0.0
  %3257 = vmatpush1.msra.mxu0 0.0
  %3258 = vmatprep.subr.mxu0 0.0
  %3259 = vmatpush1.msra.mxu0 0.0
  %3260 = vmatprep.subr.mxu0 0.0
  %3261 = vmatpush1.msra.mxu0 0.0
  %3262 = vmatprep.subr.mxu0 0.0
  %3263 = vmatpush1.msra.mxu0 %v3230
  %3264 = vmatprep.subr.mxu0 0.0
  %3265 = vmatpush2.msra.mxu0 0.0
  %3266 = vmatprep.subr.mxu0 0.0
  %3267 = vmatpush2.msra.mxu0 0.0
  %3268 = vmatprep.subr.mxu0 0.0
  %3269 = vmatpush2.msra.mxu0 0.0
  %3270 = vmatprep.subr.mxu0 0.0
  %3271 = vmatpush2.msra.mxu0 0.0
  %3272 = vmatprep.subr.mxu0 0.0
  %3273 = vmatpush2.msra.mxu0 0.0
  %3274 = vmatprep.subr.mxu0 0.0
  %3275 = vmatpush2.msra.mxu0 0.0
  %3276 = vmatprep.subr.mxu0 0.0
  %3277 = vmatpush2.msra.mxu0 0.0
  %3278 = vmatprep.subr.mxu0 0.0
  %3279 = vmatpush2.msra.mxu0 0.0
  %3280 = vmatprep.subr.mxu0 0.0
  %3281 = vmatpush2.msra.mxu0 0.0
  %3282 = vmatprep.subr.mxu0 0.0
  %3283 = vmatpush2.msra.mxu0 0.0
  %3284 = vmatprep.subr.mxu0 0.0
  %3285 = vmatpush2.msra.mxu0 0.0
  %3286 = vmatprep.subr.mxu0 0.0
  %3287 = vmatpush2.msra.mxu0 0.0
  %3288 = vmatprep.subr.mxu0 0.0
  %3289 = vmatpush2.msra.mxu0 0.0
  %3290 = vmatprep.subr.mxu0 0.0
  %3291 = vmatpush2.msra.mxu0 0.0
  %3292 = vmatprep.subr.mxu0 0.0
  %3293 = vmatpush2.msra.mxu0 0.0
  %3294 = vmatprep.subr.mxu0 0.0
  %3295 = vmatpush2.msra.mxu0 0.0
  %3296 = vmatprep.mubr.f32.mxu0 0.0
  %3297 = vmatmul.mubr.f32.gmra.mxu0 %v3228
  %v3298 = vpop.f32.mrf.mxu0
  %v3299 = vadd.f32 0.0, %v3298
  %v3300 = vpop.f32.mrf.mxu0
  %3301 = vdwg.mxu0
  %3302 = vrot.lane.b32.xlu0 %v474, 64
  %v3303 = vpop.permute.xlu0 %3302
  %v3305 = vsel %vm3059, %v3137, 0
  %v3307 = vsel %vm117, %v3303, 0
  %3309 = vmatprep.subr.mxu0 0.0
  %3310 = vmatpush1.msra.mxu0 0.0
  %3311 = vmatprep.subr.mxu0 0.0
  %3312 = vmatpush1.msra.mxu0 0.0
  %3313 = vmatprep.subr.mxu0 0.0
  %3314 = vmatpush1.msra.mxu0 0.0
  %3315 = vmatprep.subr.mxu0 0.0
  %3316 = vmatpush1.msra.mxu0 0.0
  %3317 = vmatprep.subr.mxu0 0.0
  %3318 = vmatpush1.msra.mxu0 0.0
  %3319 = vmatprep.subr.mxu0 0.0
  %3320 = vmatpush1.msra.mxu0 0.0
  %3321 = vmatprep.subr.mxu0 0.0
  %3322 = vmatpush1.msra.mxu0 0.0
  %3323 = vmatprep.subr.mxu0 0.0
  %3324 = vmatpush1.msra.mxu0 0.0
  %3325 = vmatprep.subr.mxu0 0.0
  %3326 = vmatpush1.msra.mxu0 0.0
  %3327 = vmatprep.subr.mxu0 0.0
  %3328 = vmatpush1.msra.mxu0 0.0
  %3329 = vmatprep.subr.mxu0 0.0
  %3330 = vmatpush1.msra.mxu0 0.0
  %3331 = vmatprep.subr.mxu0 0.0
  %3332 = vmatpush1.msra.mxu0 0.0
  %3333 = vmatprep.subr.mxu0 0.0
  %3334 = vmatpush1.msra.mxu0 0.0
  %3335 = vmatprep.subr.mxu0 0.0
  %3336 = vmatpush1.msra.mxu0 0.0
  %3337 = vmatprep.subr.mxu0 0.0
  %3338 = vmatpush1.msra.mxu0 0.0
  %3339 = vmatprep.subr.mxu0 0.0
  %3340 = vmatpush1.msra.mxu0 %v3307
  %3341 = vmatprep.subr.mxu0 0.0
  %3342 = vmatpush2.msra.mxu0 0.0
  %3343 = vmatprep.subr.mxu0 0.0
  %3344 = vmatpush2.msra.mxu0 0.0
  %3345 = vmatprep.subr.mxu0 0.0
  %3346 = vmatpush2.msra.mxu0 0.0
  %3347 = vmatprep.subr.mxu0 0.0
  %3348 = vmatpush2.msra.mxu0 0.0
  %3349 = vmatprep.subr.mxu0 0.0
  %3350 = vmatpush2.msra.mxu0 0.0
  %3351 = vmatprep.subr.mxu0 0.0
  %3352 = vmatpush2.msra.mxu0 0.0
  %3353 = vmatprep.subr.mxu0 0.0
  %3354 = vmatpush2.msra.mxu0 0.0
  %3355 = vmatprep.subr.mxu0 0.0
  %3356 = vmatpush2.msra.mxu0 0.0
  %3357 = vmatprep.subr.mxu0 0.0
  %3358 = vmatpush2.msra.mxu0 0.0
  %3359 = vmatprep.subr.mxu0 0.0
  %3360 = vmatpush2.msra.mxu0 0.0
  %3361 = vmatprep.subr.mxu0 0.0
  %3362 = vmatpush2.msra.mxu0 0.0
  %3363 = vmatprep.subr.mxu0 0.0
  %3364 = vmatpush2.msra.mxu0 0.0
  %3365 = vmatprep.subr.mxu0 0.0
  %3366 = vmatpush2.msra.mxu0 0.0
  %3367 = vmatprep.subr.mxu0 0.0
  %3368 = vmatpush2.msra.mxu0 0.0
  %3369 = vmatprep.subr.mxu0 0.0
  %3370 = vmatpush2.msra.mxu0 0.0
  %3371 = vmatprep.subr.mxu0 0.0
  %3372 = vmatpush2.msra.mxu0 0.0
  %3373 = vmatprep.mubr.f32.mxu0 0.0
  %3374 = vmatmul.mubr.f32.gmra.mxu0 %v3305
  %v3375 = vpop.f32.mrf.mxu0
  %v3376 = vadd.f32 0.0, %v3375
  %v3377 = vpop.f32.mrf.mxu0
  %3378 = vdwg.mxu0
  %3379 = vrot.lane.b32.xlu0 %v479, 64
  %v3380 = vpop.permute.xlu0 %3379
  %v3382 = vsel %vm3059, %v3139, 0
  %v3384 = vsel %vm117, %v3380, 0
  %3386 = vmatprep.subr.mxu0 0.0
  %3387 = vmatpush1.msra.mxu0 0.0
  %3388 = vmatprep.subr.mxu0 0.0
  %3389 = vmatpush1.msra.mxu0 0.0
  %3390 = vmatprep.subr.mxu0 0.0
  %3391 = vmatpush1.msra.mxu0 0.0
  %3392 = vmatprep.subr.mxu0 0.0
  %3393 = vmatpush1.msra.mxu0 0.0
  %3394 = vmatprep.subr.mxu0 0.0
  %3395 = vmatpush1.msra.mxu0 0.0
  %3396 = vmatprep.subr.mxu0 0.0
  %3397 = vmatpush1.msra.mxu0 0.0
  %3398 = vmatprep.subr.mxu0 0.0
  %3399 = vmatpush1.msra.mxu0 0.0
  %3400 = vmatprep.subr.mxu0 0.0
  %3401 = vmatpush1.msra.mxu0 0.0
  %3402 = vmatprep.subr.mxu0 0.0
  %3403 = vmatpush1.msra.mxu0 0.0
  %3404 = vmatprep.subr.mxu0 0.0
  %3405 = vmatpush1.msra.mxu0 0.0
  %3406 = vmatprep.subr.mxu0 0.0
  %3407 = vmatpush1.msra.mxu0 0.0
  %3408 = vmatprep.subr.mxu0 0.0
  %3409 = vmatpush1.msra.mxu0 0.0
  %3410 = vmatprep.subr.mxu0 0.0
  %3411 = vmatpush1.msra.mxu0 0.0
  %3412 = vmatprep.subr.mxu0 0.0
  %3413 = vmatpush1.msra.mxu0 0.0
  %3414 = vmatprep.subr.mxu0 0.0
  %3415 = vmatpush1.msra.mxu0 0.0
  %3416 = vmatprep.subr.mxu0 0.0
  %3417 = vmatpush1.msra.mxu0 %v3384
  %3418 = vmatprep.subr.mxu0 0.0
  %3419 = vmatpush2.msra.mxu0 0.0
  %3420 = vmatprep.subr.mxu0 0.0
  %3421 = vmatpush2.msra.mxu0 0.0
  %3422 = vmatprep.subr.mxu0 0.0
  %3423 = vmatpush2.msra.mxu0 0.0
  %3424 = vmatprep.subr.mxu0 0.0
  %3425 = vmatpush2.msra.mxu0 0.0
  %3426 = vmatprep.subr.mxu0 0.0
  %3427 = vmatpush2.msra.mxu0 0.0
  %3428 = vmatprep.subr.mxu0 0.0
  %3429 = vmatpush2.msra.mxu0 0.0
  %3430 = vmatprep.subr.mxu0 0.0
  %3431 = vmatpush2.msra.mxu0 0.0
  %3432 = vmatprep.subr.mxu0 0.0
  %3433 = vmatpush2.msra.mxu0 0.0
  %3434 = vmatprep.subr.mxu0 0.0
  %3435 = vmatpush2.msra.mxu0 0.0
  %3436 = vmatprep.subr.mxu0 0.0
  %3437 = vmatpush2.msra.mxu0 0.0
  %3438 = vmatprep.subr.mxu0 0.0
  %3439 = vmatpush2.msra.mxu0 0.0
  %3440 = vmatprep.subr.mxu0 0.0
  %3441 = vmatpush2.msra.mxu0 0.0
  %3442 = vmatprep.subr.mxu0 0.0
  %3443 = vmatpush2.msra.mxu0 0.0
  %3444 = vmatprep.subr.mxu0 0.0
  %3445 = vmatpush2.msra.mxu0 0.0
  %3446 = vmatprep.subr.mxu0 0.0
  %3447 = vmatpush2.msra.mxu0 0.0
  %3448 = vmatprep.subr.mxu0 0.0
  %3449 = vmatpush2.msra.mxu0 0.0
  %3450 = vmatprep.mubr.f32.mxu0 0.0
  %3451 = vmatmul.mubr.f32.gmra.mxu0 %v3382
  %v3452 = vpop.f32.mrf.mxu0
  %v3453 = vadd.f32 0.0, %v3452
  %v3454 = vpop.f32.mrf.mxu0
  %3455 = vdwg.mxu0
  %3456 = vrot.lane.b32.xlu0 %v484, 64
  %v3457 = vpop.permute.xlu0 %3456
  %v3459 = vsel %vm3059, %v3141, 0
  %v3461 = vsel %vm117, %v3457, 0
  %3463 = vmatprep.subr.mxu0 0.0
  %3464 = vmatpush1.msra.mxu0 0.0
  %3465 = vmatprep.subr.mxu0 0.0
  %3466 = vmatpush1.msra.mxu0 0.0
  %3467 = vmatprep.subr.mxu0 0.0
  %3468 = vmatpush1.msra.mxu0 0.0
  %3469 = vmatprep.subr.mxu0 0.0
  %3470 = vmatpush1.msra.mxu0 0.0
  %3471 = vmatprep.subr.mxu0 0.0
  %3472 = vmatpush1.msra.mxu0 0.0
  %3473 = vmatprep.subr.mxu0 0.0
  %3474 = vmatpush1.msra.mxu0 0.0
  %3475 = vmatprep.subr.mxu0 0.0
  %3476 = vmatpush1.msra.mxu0 0.0
  %3477 = vmatprep.subr.mxu0 0.0
  %3478 = vmatpush1.msra.mxu0 0.0
  %3479 = vmatprep.subr.mxu0 0.0
  %3480 = vmatpush1.msra.mxu0 0.0
  %3481 = vmatprep.subr.mxu0 0.0
  %3482 = vmatpush1.msra.mxu0 0.0
  %3483 = vmatprep.subr.mxu0 0.0
  %3484 = vmatpush1.msra.mxu0 0.0
  %3485 = vmatprep.subr.mxu0 0.0
  %3486 = vmatpush1.msra.mxu0 0.0
  %3487 = vmatprep.subr.mxu0 0.0
  %3488 = vmatpush1.msra.mxu0 0.0
  %3489 = vmatprep.subr.mxu0 0.0
  %3490 = vmatpush1.msra.mxu0 0.0
  %3491 = vmatprep.subr.mxu0 0.0
  %3492 = vmatpush1.msra.mxu0 0.0
  %3493 = vmatprep.subr.mxu0 0.0
  %3494 = vmatpush1.msra.mxu0 %v3461
  %3495 = vmatprep.subr.mxu0 0.0
  %3496 = vmatpush2.msra.mxu0 0.0
  %3497 = vmatprep.subr.mxu0 0.0
  %3498 = vmatpush2.msra.mxu0 0.0
  %3499 = vmatprep.subr.mxu0 0.0
  %3500 = vmatpush2.msra.mxu0 0.0
  %3501 = vmatprep.subr.mxu0 0.0
  %3502 = vmatpush2.msra.mxu0 0.0
  %3503 = vmatprep.subr.mxu0 0.0
  %3504 = vmatpush2.msra.mxu0 0.0
  %3505 = vmatprep.subr.mxu0 0.0
  %3506 = vmatpush2.msra.mxu0 0.0
  %3507 = vmatprep.subr.mxu0 0.0
  %3508 = vmatpush2.msra.mxu0 0.0
  %3509 = vmatprep.subr.mxu0 0.0
  %3510 = vmatpush2.msra.mxu0 0.0
  %3511 = vmatprep.subr.mxu0 0.0
  %3512 = vmatpush2.msra.mxu0 0.0
  %3513 = vmatprep.subr.mxu0 0.0
  %3514 = vmatpush2.msra.mxu0 0.0
  %3515 = vmatprep.subr.mxu0 0.0
  %3516 = vmatpush2.msra.mxu0 0.0
  %3517 = vmatprep.subr.mxu0 0.0
  %3518 = vmatpush2.msra.mxu0 0.0
  %3519 = vmatprep.subr.mxu0 0.0
  %3520 = vmatpush2.msra.mxu0 0.0
  %3521 = vmatprep.subr.mxu0 0.0
  %3522 = vmatpush2.msra.mxu0 0.0
  %3523 = vmatprep.subr.mxu0 0.0
  %3524 = vmatpush2.msra.mxu0 0.0
  %3525 = vmatprep.subr.mxu0 0.0
  %3526 = vmatpush2.msra.mxu0 0.0
  %3527 = vmatprep.mubr.f32.mxu0 0.0
  %3528 = vmatmul.mubr.f32.gmra.mxu0 %v3459
  %v3529 = vpop.f32.mrf.mxu0
  %v3530 = vadd.f32 0.0, %v3529
  %v3531 = vpop.f32.mrf.mxu0
  %3532 = vdwg.mxu0
  %3533 = vrot.lane.b32.xlu0 %v489, 64
  %v3534 = vpop.permute.xlu0 %3533
  %v3536 = vsel %vm3059, %v3143, 0
  %v3538 = vsel %vm117, %v3534, 0
  %3540 = vmatprep.subr.mxu0 0.0
  %3541 = vmatpush1.msra.mxu0 0.0
  %3542 = vmatprep.subr.mxu0 0.0
  %3543 = vmatpush1.msra.mxu0 0.0
  %3544 = vmatprep.subr.mxu0 0.0
  %3545 = vmatpush1.msra.mxu0 0.0
  %3546 = vmatprep.subr.mxu0 0.0
  %3547 = vmatpush1.msra.mxu0 0.0
  %3548 = vmatprep.subr.mxu0 0.0
  %3549 = vmatpush1.msra.mxu0 0.0
  %3550 = vmatprep.subr.mxu0 0.0
  %3551 = vmatpush1.msra.mxu0 0.0
  %3552 = vmatprep.subr.mxu0 0.0
  %3553 = vmatpush1.msra.mxu0 0.0
  %3554 = vmatprep.subr.mxu0 0.0
  %3555 = vmatpush1.msra.mxu0 0.0
  %3556 = vmatprep.subr.mxu0 0.0
  %3557 = vmatpush1.msra.mxu0 0.0
  %3558 = vmatprep.subr.mxu0 0.0
  %3559 = vmatpush1.msra.mxu0 0.0
  %3560 = vmatprep.subr.mxu0 0.0
  %3561 = vmatpush1.msra.mxu0 0.0
  %3562 = vmatprep.subr.mxu0 0.0
  %3563 = vmatpush1.msra.mxu0 0.0
  %3564 = vmatprep.subr.mxu0 0.0
  %3565 = vmatpush1.msra.mxu0 0.0
  %3566 = vmatprep.subr.mxu0 0.0
  %3567 = vmatpush1.msra.mxu0 0.0
  %3568 = vmatprep.subr.mxu0 0.0
  %3569 = vmatpush1.msra.mxu0 0.0
  %3570 = vmatprep.subr.mxu0 0.0
  %3571 = vmatpush1.msra.mxu0 %v3538
  %3572 = vmatprep.subr.mxu0 0.0
  %3573 = vmatpush2.msra.mxu0 0.0
  %3574 = vmatprep.subr.mxu0 0.0
  %3575 = vmatpush2.msra.mxu0 0.0
  %3576 = vmatprep.subr.mxu0 0.0
  %3577 = vmatpush2.msra.mxu0 0.0
  %3578 = vmatprep.subr.mxu0 0.0
  %3579 = vmatpush2.msra.mxu0 0.0
  %3580 = vmatprep.subr.mxu0 0.0
  %3581 = vmatpush2.msra.mxu0 0.0
  %3582 = vmatprep.subr.mxu0 0.0
  %3583 = vmatpush2.msra.mxu0 0.0
  %3584 = vmatprep.subr.mxu0 0.0
  %3585 = vmatpush2.msra.mxu0 0.0
  %3586 = vmatprep.subr.mxu0 0.0
  %3587 = vmatpush2.msra.mxu0 0.0
  %3588 = vmatprep.subr.mxu0 0.0
  %3589 = vmatpush2.msra.mxu0 0.0
  %3590 = vmatprep.subr.mxu0 0.0
  %3591 = vmatpush2.msra.mxu0 0.0
  %3592 = vmatprep.subr.mxu0 0.0
  %3593 = vmatpush2.msra.mxu0 0.0
  %3594 = vmatprep.subr.mxu0 0.0
  %3595 = vmatpush2.msra.mxu0 0.0
  %3596 = vmatprep.subr.mxu0 0.0
  %3597 = vmatpush2.msra.mxu0 0.0
  %3598 = vmatprep.subr.mxu0 0.0
  %3599 = vmatpush2.msra.mxu0 0.0
  %3600 = vmatprep.subr.mxu0 0.0
  %3601 = vmatpush2.msra.mxu0 0.0
  %3602 = vmatprep.subr.mxu0 0.0
  %3603 = vmatpush2.msra.mxu0 0.0
  %3604 = vmatprep.mubr.f32.mxu0 0.0
  %3605 = vmatmul.mubr.f32.gmra.mxu0 %v3536
  %v3606 = vpop.f32.mrf.mxu0
  %v3607 = vadd.f32 0.0, %v3606
  %v3608 = vpop.f32.mrf.mxu0
  %3609 = vdwg.mxu0
  %3610 = vrot.lane.b32.xlu0 %v494, 64
  %v3611 = vpop.permute.xlu0 %3610
  %v3613 = vsel %vm3059, %v3145, 0
  %v3615 = vsel %vm117, %v3611, 0
  %3617 = vmatprep.subr.mxu0 0.0
  %3618 = vmatpush1.msra.mxu0 0.0
  %3619 = vmatprep.subr.mxu0 0.0
  %3620 = vmatpush1.msra.mxu0 0.0
  %3621 = vmatprep.subr.mxu0 0.0
  %3622 = vmatpush1.msra.mxu0 0.0
  %3623 = vmatprep.subr.mxu0 0.0
  %3624 = vmatpush1.msra.mxu0 0.0
  %3625 = vmatprep.subr.mxu0 0.0
  %3626 = vmatpush1.msra.mxu0 0.0
  %3627 = vmatprep.subr.mxu0 0.0
  %3628 = vmatpush1.msra.mxu0 0.0
  %3629 = vmatprep.subr.mxu0 0.0
  %3630 = vmatpush1.msra.mxu0 0.0
  %3631 = vmatprep.subr.mxu0 0.0
  %3632 = vmatpush1.msra.mxu0 0.0
  %3633 = vmatprep.subr.mxu0 0.0
  %3634 = vmatpush1.msra.mxu0 0.0
  %3635 = vmatprep.subr.mxu0 0.0
  %3636 = vmatpush1.msra.mxu0 0.0
  %3637 = vmatprep.subr.mxu0 0.0
  %3638 = vmatpush1.msra.mxu0 0.0
  %3639 = vmatprep.subr.mxu0 0.0
  %3640 = vmatpush1.msra.mxu0 0.0
  %3641 = vmatprep.subr.mxu0 0.0
  %3642 = vmatpush1.msra.mxu0 0.0
  %3643 = vmatprep.subr.mxu0 0.0
  %3644 = vmatpush1.msra.mxu0 0.0
  %3645 = vmatprep.subr.mxu0 0.0
  %3646 = vmatpush1.msra.mxu0 0.0
  %3647 = vmatprep.subr.mxu0 0.0
  %3648 = vmatpush1.msra.mxu0 %v3615
  %3649 = vmatprep.subr.mxu0 0.0
  %3650 = vmatpush2.msra.mxu0 0.0
  %3651 = vmatprep.subr.mxu0 0.0
  %3652 = vmatpush2.msra.mxu0 0.0
  %3653 = vmatprep.subr.mxu0 0.0
  %3654 = vmatpush2.msra.mxu0 0.0
  %3655 = vmatprep.subr.mxu0 0.0
  %3656 = vmatpush2.msra.mxu0 0.0
  %3657 = vmatprep.subr.mxu0 0.0
  %3658 = vmatpush2.msra.mxu0 0.0
  %3659 = vmatprep.subr.mxu0 0.0
  %3660 = vmatpush2.msra.mxu0 0.0
  %3661 = vmatprep.subr.mxu0 0.0
  %3662 = vmatpush2.msra.mxu0 0.0
  %3663 = vmatprep.subr.mxu0 0.0
  %3664 = vmatpush2.msra.mxu0 0.0
  %3665 = vmatprep.subr.mxu0 0.0
  %3666 = vmatpush2.msra.mxu0 0.0
  %3667 = vmatprep.subr.mxu0 0.0
  %3668 = vmatpush2.msra.mxu0 0.0
  %3669 = vmatprep.subr.mxu0 0.0
  %3670 = vmatpush2.msra.mxu0 0.0
  %3671 = vmatprep.subr.mxu0 0.0
  %3672 = vmatpush2.msra.mxu0 0.0
  %3673 = vmatprep.subr.mxu0 0.0
  %3674 = vmatpush2.msra.mxu0 0.0
  %3675 = vmatprep.subr.mxu0 0.0
  %3676 = vmatpush2.msra.mxu0 0.0
  %3677 = vmatprep.subr.mxu0 0.0
  %3678 = vmatpush2.msra.mxu0 0.0
  %3679 = vmatprep.subr.mxu0 0.0
  %3680 = vmatpush2.msra.mxu0 0.0
  %3681 = vmatprep.mubr.f32.mxu0 0.0
  %3682 = vmatmul.mubr.f32.gmra.mxu0 %v3613
  %v3683 = vpop.f32.mrf.mxu0
  %v3684 = vadd.f32 0.0, %v3683
  %v3685 = vpop.f32.mrf.mxu0
  %3686 = vdwg.mxu0
  %3687 = vrot.lane.b32.xlu0 %v499, 64
  %v3688 = vpop.permute.xlu0 %3687
  %v3690 = vsel %vm3059, %v3147, 0
  %v3692 = vsel %vm117, %v3688, 0
  %3694 = vmatprep.subr.mxu0 0.0
  %3695 = vmatpush1.msra.mxu0 0.0
  %3696 = vmatprep.subr.mxu0 0.0
  %3697 = vmatpush1.msra.mxu0 0.0
  %3698 = vmatprep.subr.mxu0 0.0
  %3699 = vmatpush1.msra.mxu0 0.0
  %3700 = vmatprep.subr.mxu0 0.0
  %3701 = vmatpush1.msra.mxu0 0.0
  %3702 = vmatprep.subr.mxu0 0.0
  %3703 = vmatpush1.msra.mxu0 0.0
  %3704 = vmatprep.subr.mxu0 0.0
  %3705 = vmatpush1.msra.mxu0 0.0
  %3706 = vmatprep.subr.mxu0 0.0
  %3707 = vmatpush1.msra.mxu0 0.0
  %3708 = vmatprep.subr.mxu0 0.0
  %3709 = vmatpush1.msra.mxu0 0.0
  %3710 = vmatprep.subr.mxu0 0.0
  %3711 = vmatpush1.msra.mxu0 0.0
  %3712 = vmatprep.subr.mxu0 0.0
  %3713 = vmatpush1.msra.mxu0 0.0
  %3714 = vmatprep.subr.mxu0 0.0
  %3715 = vmatpush1.msra.mxu0 0.0
  %3716 = vmatprep.subr.mxu0 0.0
  %3717 = vmatpush1.msra.mxu0 0.0
  %3718 = vmatprep.subr.mxu0 0.0
  %3719 = vmatpush1.msra.mxu0 0.0
  %3720 = vmatprep.subr.mxu0 0.0
  %3721 = vmatpush1.msra.mxu0 0.0
  %3722 = vmatprep.subr.mxu0 0.0
  %3723 = vmatpush1.msra.mxu0 0.0
  %3724 = vmatprep.subr.mxu0 0.0
  %3725 = vmatpush1.msra.mxu0 %v3692
  %3726 = vmatprep.subr.mxu0 0.0
  %3727 = vmatpush2.msra.mxu0 0.0
  %3728 = vmatprep.subr.mxu0 0.0
  %3729 = vmatpush2.msra.mxu0 0.0
  %3730 = vmatprep.subr.mxu0 0.0
  %3731 = vmatpush2.msra.mxu0 0.0
  %3732 = vmatprep.subr.mxu0 0.0
  %3733 = vmatpush2.msra.mxu0 0.0
  %3734 = vmatprep.subr.mxu0 0.0
  %3735 = vmatpush2.msra.mxu0 0.0
  %3736 = vmatprep.subr.mxu0 0.0
  %3737 = vmatpush2.msra.mxu0 0.0
  %3738 = vmatprep.subr.mxu0 0.0
  %3739 = vmatpush2.msra.mxu0 0.0
  %3740 = vmatprep.subr.mxu0 0.0
  %3741 = vmatpush2.msra.mxu0 0.0
  %3742 = vmatprep.subr.mxu0 0.0
  %3743 = vmatpush2.msra.mxu0 0.0
  %3744 = vmatprep.subr.mxu0 0.0
  %3745 = vmatpush2.msra.mxu0 0.0
  %3746 = vmatprep.subr.mxu0 0.0
  %3747 = vmatpush2.msra.mxu0 0.0
  %3748 = vmatprep.subr.mxu0 0.0
  %3749 = vmatpush2.msra.mxu0 0.0
  %3750 = vmatprep.subr.mxu0 0.0
  %3751 = vmatpush2.msra.mxu0 0.0
  %3752 = vmatprep.subr.mxu0 0.0
  %3753 = vmatpush2.msra.mxu0 0.0
  %3754 = vmatprep.subr.mxu0 0.0
  %3755 = vmatpush2.msra.mxu0 0.0
  %3756 = vmatprep.subr.mxu0 0.0
  %3757 = vmatpush2.msra.mxu0 0.0
  %3758 = vmatprep.mubr.f32.mxu0 0.0
  %3759 = vmatmul.mubr.f32.gmra.mxu0 %v3690
  %v3760 = vpop.f32.mrf.mxu0
  %v3761 = vadd.f32 0.0, %v3760
  %v3762 = vpop.f32.mrf.mxu0
  %3763 = vdwg.mxu0
  %3764 = vrot.lane.b32.xlu0 %v1466, 96
  %v3765 = vpop.permute.xlu0 %3764
  %3766 = vrot.lane.b32.xlu0 %v2435, 96
  %v3767 = vpop.permute.xlu0 %3766
  %v3768 = vsel %vm228, %v3765, 0
  %v3770 = vsel %vm228, %v3767, 0
  %3772 = vmatprep.subr.mxu0 0.0
  %3773 = vmatpush1.xpose.msra.mxu0 0.0
  %3774 = vmatprep.subr.mxu0 0.0
  %3775 = vmatpush1.xpose.msra.mxu0 0.0
  %3776 = vmatprep.subr.mxu0 0.0
  %3777 = vmatpush1.xpose.msra.mxu0 0.0
  %3778 = vmatprep.subr.mxu0 0.0
  %3779 = vmatpush1.xpose.msra.mxu0 0.0
  %3780 = vmatprep.subr.mxu0 0.0
  %3781 = vmatpush1.xpose.msra.mxu0 0.0
  %3782 = vmatprep.subr.mxu0 0.0
  %3783 = vmatpush1.xpose.msra.mxu0 0.0
  %3784 = vmatprep.subr.mxu0 0.0
  %3785 = vmatpush1.xpose.msra.mxu0 0.0
  %3786 = vmatprep.subr.mxu0 0.0
  %3787 = vmatpush1.xpose.msra.mxu0 0.0
  %3788 = vmatprep.subr.mxu0 0.0
  %3789 = vmatpush1.xpose.msra.mxu0 0.0
  %3790 = vmatprep.subr.mxu0 0.0
  %3791 = vmatpush1.xpose.msra.mxu0 0.0
  %3792 = vmatprep.subr.mxu0 0.0
  %3793 = vmatpush1.xpose.msra.mxu0 0.0
  %3794 = vmatprep.subr.mxu0 0.0
  %3795 = vmatpush1.xpose.msra.mxu0 0.0
  %3796 = vmatprep.subr.mxu0 0.0
  %3797 = vmatpush1.xpose.msra.mxu0 0.0
  %3798 = vmatprep.subr.mxu0 0.0
  %3799 = vmatpush1.xpose.msra.mxu0 0.0
  %3800 = vmatprep.subr.mxu0 0.0
  %3801 = vmatpush1.xpose.msra.mxu0 0.0
  %3802 = vmatprep.subr.mxu0 0.0
  %3803 = vmatpush1.xpose.msra.mxu0 %v3770
  %3804 = vmatprep.subr.mxu0 0.0
  %3805 = vmatpush2.xpose.msra.mxu0 0.0
  %3806 = vmatprep.subr.mxu0 0.0
  %3807 = vmatpush2.xpose.msra.mxu0 0.0
  %3808 = vmatprep.subr.mxu0 0.0
  %3809 = vmatpush2.xpose.msra.mxu0 0.0
  %3810 = vmatprep.subr.mxu0 0.0
  %3811 = vmatpush2.xpose.msra.mxu0 0.0
  %3812 = vmatprep.subr.mxu0 0.0
  %3813 = vmatpush2.xpose.msra.mxu0 0.0
  %3814 = vmatprep.subr.mxu0 0.0
  %3815 = vmatpush2.xpose.msra.mxu0 0.0
  %3816 = vmatprep.subr.mxu0 0.0
  %3817 = vmatpush2.xpose.msra.mxu0 0.0
  %3818 = vmatprep.subr.mxu0 0.0
  %3819 = vmatpush2.xpose.msra.mxu0 0.0
  %3820 = vmatprep.subr.mxu0 0.0
  %3821 = vmatpush2.xpose.msra.mxu0 0.0
  %3822 = vmatprep.subr.mxu0 0.0
  %3823 = vmatpush2.xpose.msra.mxu0 0.0
  %3824 = vmatprep.subr.mxu0 0.0
  %3825 = vmatpush2.xpose.msra.mxu0 0.0
  %3826 = vmatprep.subr.mxu0 0.0
  %3827 = vmatpush2.xpose.msra.mxu0 0.0
  %3828 = vmatprep.subr.mxu0 0.0
  %3829 = vmatpush2.xpose.msra.mxu0 0.0
  %3830 = vmatprep.subr.mxu0 0.0
  %3831 = vmatpush2.xpose.msra.mxu0 0.0
  %3832 = vmatprep.subr.mxu0 0.0
  %3833 = vmatpush2.xpose.msra.mxu0 0.0
  %3834 = vmatprep.subr.mxu0 0.0
  %3835 = vmatpush2.xpose.msra.mxu0 0.0
  %3836 = vmatprep.mubr.f32.mxu0 0.0
  %3837 = vmatmul.mubr.f32.gmra.mxu0 %v3768
  %v3838 = vpop.f32.mrf.mxu0
  %v3839 = vadd.f32 0.0, %v3838
  %v3840 = vpop.f32.mrf.mxu0
  %3841 = vdwg.mxu0
  %3842 = vrot.lane.b32.xlu0 %v1467, 96
  %v3843 = vpop.permute.xlu0 %3842
  %3844 = vrot.lane.b32.xlu0 %v2436, 96
  %v3845 = vpop.permute.xlu0 %3844
  %v3846 = vsel %vm228, %v3843, 0
  %v3848 = vsel %vm228, %v3845, 0
  %3850 = vmatprep.subr.mxu0 0.0
  %3851 = vmatpush1.xpose.msra.mxu0 0.0
  %3852 = vmatprep.subr.mxu0 0.0
  %3853 = vmatpush1.xpose.msra.mxu0 0.0
  %3854 = vmatprep.subr.mxu0 0.0
  %3855 = vmatpush1.xpose.msra.mxu0 0.0
  %3856 = vmatprep.subr.mxu0 0.0
  %3857 = vmatpush1.xpose.msra.mxu0 0.0
  %3858 = vmatprep.subr.mxu0 0.0
  %3859 = vmatpush1.xpose.msra.mxu0 0.0
  %3860 = vmatprep.subr.mxu0 0.0
  %3861 = vmatpush1.xpose.msra.mxu0 0.0
  %3862 = vmatprep.subr.mxu0 0.0
  %3863 = vmatpush1.xpose.msra.mxu0 0.0
  %3864 = vmatprep.subr.mxu0 0.0
  %3865 = vmatpush1.xpose.msra.mxu0 0.0
  %3866 = vmatprep.subr.mxu0 0.0
  %3867 = vmatpush1.xpose.msra.mxu0 0.0
  %3868 = vmatprep.subr.mxu0 0.0
  %3869 = vmatpush1.xpose.msra.mxu0 0.0
  %3870 = vmatprep.subr.mxu0 0.0
  %3871 = vmatpush1.xpose.msra.mxu0 0.0
  %3872 = vmatprep.subr.mxu0 0.0
  %3873 = vmatpush1.xpose.msra.mxu0 0.0
  %3874 = vmatprep.subr.mxu0 0.0
  %3875 = vmatpush1.xpose.msra.mxu0 0.0
  %3876 = vmatprep.subr.mxu0 0.0
  %3877 = vmatpush1.xpose.msra.mxu0 0.0
  %3878 = vmatprep.subr.mxu0 0.0
  %3879 = vmatpush1.xpose.msra.mxu0 0.0
  %3880 = vmatprep.subr.mxu0 0.0
  %3881 = vmatpush1.xpose.msra.mxu0 %v3848
  %3882 = vmatprep.subr.mxu0 0.0
  %3883 = vmatpush2.xpose.msra.mxu0 0.0
  %3884 = vmatprep.subr.mxu0 0.0
  %3885 = vmatpush2.xpose.msra.mxu0 0.0
  %3886 = vmatprep.subr.mxu0 0.0
  %3887 = vmatpush2.xpose.msra.mxu0 0.0
  %3888 = vmatprep.subr.mxu0 0.0
  %3889 = vmatpush2.xpose.msra.mxu0 0.0
  %3890 = vmatprep.subr.mxu0 0.0
  %3891 = vmatpush2.xpose.msra.mxu0 0.0
  %3892 = vmatprep.subr.mxu0 0.0
  %3893 = vmatpush2.xpose.msra.mxu0 0.0
  %3894 = vmatprep.subr.mxu0 0.0
  %3895 = vmatpush2.xpose.msra.mxu0 0.0
  %3896 = vmatprep.subr.mxu0 0.0
  %3897 = vmatpush2.xpose.msra.mxu0 0.0
  %3898 = vmatprep.subr.mxu0 0.0
  %3899 = vmatpush2.xpose.msra.mxu0 0.0
  %3900 = vmatprep.subr.mxu0 0.0
  %3901 = vmatpush2.xpose.msra.mxu0 0.0
  %3902 = vmatprep.subr.mxu0 0.0
  %3903 = vmatpush2.xpose.msra.mxu0 0.0
  %3904 = vmatprep.subr.mxu0 0.0
  %3905 = vmatpush2.xpose.msra.mxu0 0.0
  %3906 = vmatprep.subr.mxu0 0.0
  %3907 = vmatpush2.xpose.msra.mxu0 0.0
  %3908 = vmatprep.subr.mxu0 0.0
  %3909 = vmatpush2.xpose.msra.mxu0 0.0
  %3910 = vmatprep.subr.mxu0 0.0
  %3911 = vmatpush2.xpose.msra.mxu0 0.0
  %3912 = vmatprep.subr.mxu0 0.0
  %3913 = vmatpush2.xpose.msra.mxu0 0.0
  %3914 = vmatprep.mubr.f32.mxu0 0.0
  %3915 = vmatmul.mubr.f32.gmra.mxu0 %v3846
  %v3916 = vpop.f32.mrf.mxu0
  %v3917 = vadd.f32 0.0, %v3916
  %v3918 = vpop.f32.mrf.mxu0
  %3919 = vdwg.mxu0
  %3920 = vrot.lane.b32.xlu0 %v1468, 96
  %v3921 = vpop.permute.xlu0 %3920
  %3922 = vrot.lane.b32.xlu0 %v2437, 96
  %v3923 = vpop.permute.xlu0 %3922
  %v3924 = vsel %vm228, %v3921, 0
  %v3926 = vsel %vm228, %v3923, 0
  %3928 = vmatprep.subr.mxu0 0.0
  %3929 = vmatpush1.xpose.msra.mxu0 0.0
  %3930 = vmatprep.subr.mxu0 0.0
  %3931 = vmatpush1.xpose.msra.mxu0 0.0
  %3932 = vmatprep.subr.mxu0 0.0
  %3933 = vmatpush1.xpose.msra.mxu0 0.0
  %3934 = vmatprep.subr.mxu0 0.0
  %3935 = vmatpush1.xpose.msra.mxu0 0.0
  %3936 = vmatprep.subr.mxu0 0.0
  %3937 = vmatpush1.xpose.msra.mxu0 0.0
  %3938 = vmatprep.subr.mxu0 0.0
  %3939 = vmatpush1.xpose.msra.mxu0 0.0
  %3940 = vmatprep.subr.mxu0 0.0
  %3941 = vmatpush1.xpose.msra.mxu0 0.0
  %3942 = vmatprep.subr.mxu0 0.0
  %3943 = vmatpush1.xpose.msra.mxu0 0.0
  %3944 = vmatprep.subr.mxu0 0.0
  %3945 = vmatpush1.xpose.msra.mxu0 0.0
  %3946 = vmatprep.subr.mxu0 0.0
  %3947 = vmatpush1.xpose.msra.mxu0 0.0
  %3948 = vmatprep.subr.mxu0 0.0
  %3949 = vmatpush1.xpose.msra.mxu0 0.0
  %3950 = vmatprep.subr.mxu0 0.0
  %3951 = vmatpush1.xpose.msra.mxu0 0.0
  %3952 = vmatprep.subr.mxu0 0.0
  %3953 = vmatpush1.xpose.msra.mxu0 0.0
  %3954 = vmatprep.subr.mxu0 0.0
  %3955 = vmatpush1.xpose.msra.mxu0 0.0
  %3956 = vmatprep.subr.mxu0 0.0
  %3957 = vmatpush1.xpose.msra.mxu0 0.0
  %3958 = vmatprep.subr.mxu0 0.0
  %3959 = vmatpush1.xpose.msra.mxu0 %v3926
  %3960 = vmatprep.subr.mxu0 0.0
  %3961 = vmatpush2.xpose.msra.mxu0 0.0
  %3962 = vmatprep.subr.mxu0 0.0
  %3963 = vmatpush2.xpose.msra.mxu0 0.0
  %3964 = vmatprep.subr.mxu0 0.0
  %3965 = vmatpush2.xpose.msra.mxu0 0.0
  %3966 = vmatprep.subr.mxu0 0.0
  %3967 = vmatpush2.xpose.msra.mxu0 0.0
  %3968 = vmatprep.subr.mxu0 0.0
  %3969 = vmatpush2.xpose.msra.mxu0 0.0
  %3970 = vmatprep.subr.mxu0 0.0
  %3971 = vmatpush2.xpose.msra.mxu0 0.0
  %3972 = vmatprep.subr.mxu0 0.0
  %3973 = vmatpush2.xpose.msra.mxu0 0.0
  %3974 = vmatprep.subr.mxu0 0.0
  %3975 = vmatpush2.xpose.msra.mxu0 0.0
  %3976 = vmatprep.subr.mxu0 0.0
  %3977 = vmatpush2.xpose.msra.mxu0 0.0
  %3978 = vmatprep.subr.mxu0 0.0
  %3979 = vmatpush2.xpose.msra.mxu0 0.0
  %3980 = vmatprep.subr.mxu0 0.0
  %3981 = vmatpush2.xpose.msra.mxu0 0.0
  %3982 = vmatprep.subr.mxu0 0.0
  %3983 = vmatpush2.xpose.msra.mxu0 0.0
  %3984 = vmatprep.subr.mxu0 0.0
  %3985 = vmatpush2.xpose.msra.mxu0 0.0
  %3986 = vmatprep.subr.mxu0 0.0
  %3987 = vmatpush2.xpose.msra.mxu0 0.0
  %3988 = vmatprep.subr.mxu0 0.0
  %3989 = vmatpush2.xpose.msra.mxu0 0.0
  %3990 = vmatprep.subr.mxu0 0.0
  %3991 = vmatpush2.xpose.msra.mxu0 0.0
  %3992 = vmatprep.mubr.f32.mxu0 0.0
  %3993 = vmatmul.mubr.f32.gmra.mxu0 %v3924
  %v3994 = vpop.f32.mrf.mxu0
  %v3995 = vadd.f32 0.0, %v3994
  %v3996 = vpop.f32.mrf.mxu0
  %3997 = vdwg.mxu0
  %3998 = vrot.lane.b32.xlu0 %v1469, 96
  %v3999 = vpop.permute.xlu0 %3998
  %4000 = vrot.lane.b32.xlu0 %v2438, 96
  %v4001 = vpop.permute.xlu0 %4000
  %v4002 = vsel %vm228, %v3999, 0
  %v4004 = vsel %vm228, %v4001, 0
  %4006 = vmatprep.subr.mxu0 0.0
  %4007 = vmatpush1.xpose.msra.mxu0 0.0
  %4008 = vmatprep.subr.mxu0 0.0
  %4009 = vmatpush1.xpose.msra.mxu0 0.0
  %4010 = vmatprep.subr.mxu0 0.0
  %4011 = vmatpush1.xpose.msra.mxu0 0.0
  %4012 = vmatprep.subr.mxu0 0.0
  %4013 = vmatpush1.xpose.msra.mxu0 0.0
  %4014 = vmatprep.subr.mxu0 0.0
  %4015 = vmatpush1.xpose.msra.mxu0 0.0
  %4016 = vmatprep.subr.mxu0 0.0
  %4017 = vmatpush1.xpose.msra.mxu0 0.0
  %4018 = vmatprep.subr.mxu0 0.0
  %4019 = vmatpush1.xpose.msra.mxu0 0.0
  %4020 = vmatprep.subr.mxu0 0.0
  %4021 = vmatpush1.xpose.msra.mxu0 0.0
  %4022 = vmatprep.subr.mxu0 0.0
  %4023 = vmatpush1.xpose.msra.mxu0 0.0
  %4024 = vmatprep.subr.mxu0 0.0
  %4025 = vmatpush1.xpose.msra.mxu0 0.0
  %4026 = vmatprep.subr.mxu0 0.0
  %4027 = vmatpush1.xpose.msra.mxu0 0.0
  %4028 = vmatprep.subr.mxu0 0.0
  %4029 = vmatpush1.xpose.msra.mxu0 0.0
  %4030 = vmatprep.subr.mxu0 0.0
  %4031 = vmatpush1.xpose.msra.mxu0 0.0
  %4032 = vmatprep.subr.mxu0 0.0
  %4033 = vmatpush1.xpose.msra.mxu0 0.0
  %4034 = vmatprep.subr.mxu0 0.0
  %4035 = vmatpush1.xpose.msra.mxu0 0.0
  %4036 = vmatprep.subr.mxu0 0.0
  %4037 = vmatpush1.xpose.msra.mxu0 %v4004
  %4038 = vmatprep.subr.mxu0 0.0
  %4039 = vmatpush2.xpose.msra.mxu0 0.0
  %4040 = vmatprep.subr.mxu0 0.0
  %4041 = vmatpush2.xpose.msra.mxu0 0.0
  %4042 = vmatprep.subr.mxu0 0.0
  %4043 = vmatpush2.xpose.msra.mxu0 0.0
  %4044 = vmatprep.subr.mxu0 0.0
  %4045 = vmatpush2.xpose.msra.mxu0 0.0
  %4046 = vmatprep.subr.mxu0 0.0
  %4047 = vmatpush2.xpose.msra.mxu0 0.0
  %4048 = vmatprep.subr.mxu0 0.0
  %4049 = vmatpush2.xpose.msra.mxu0 0.0
  %4050 = vmatprep.subr.mxu0 0.0
  %4051 = vmatpush2.xpose.msra.mxu0 0.0
  %4052 = vmatprep.subr.mxu0 0.0
  %4053 = vmatpush2.xpose.msra.mxu0 0.0
  %4054 = vmatprep.subr.mxu0 0.0
  %4055 = vmatpush2.xpose.msra.mxu0 0.0
  %4056 = vmatprep.subr.mxu0 0.0
  %4057 = vmatpush2.xpose.msra.mxu0 0.0
  %4058 = vmatprep.subr.mxu0 0.0
  %4059 = vmatpush2.xpose.msra.mxu0 0.0
  %4060 = vmatprep.subr.mxu0 0.0
  %4061 = vmatpush2.xpose.msra.mxu0 0.0
  %4062 = vmatprep.subr.mxu0 0.0
  %4063 = vmatpush2.xpose.msra.mxu0 0.0
  %4064 = vmatprep.subr.mxu0 0.0
  %4065 = vmatpush2.xpose.msra.mxu0 0.0
  %4066 = vmatprep.subr.mxu0 0.0
  %4067 = vmatpush2.xpose.msra.mxu0 0.0
  %4068 = vmatprep.subr.mxu0 0.0
  %4069 = vmatpush2.xpose.msra.mxu0 0.0
  %4070 = vmatprep.mubr.f32.mxu0 0.0
  %4071 = vmatmul.mubr.f32.gmra.mxu0 %v4002
  %v4072 = vpop.f32.mrf.mxu0
  %v4073 = vadd.f32 0.0, %v4072
  %v4074 = vpop.f32.mrf.mxu0
  %4075 = vdwg.mxu0
  %4076 = vrot.lane.b32.xlu0 %v1470, 96
  %v4077 = vpop.permute.xlu0 %4076
  %4078 = vrot.lane.b32.xlu0 %v2439, 96
  %v4079 = vpop.permute.xlu0 %4078
  %v4080 = vsel %vm228, %v4077, 0
  %v4082 = vsel %vm228, %v4079, 0
  %4084 = vmatprep.subr.mxu0 0.0
  %4085 = vmatpush1.xpose.msra.mxu0 0.0
  %4086 = vmatprep.subr.mxu0 0.0
  %4087 = vmatpush1.xpose.msra.mxu0 0.0
  %4088 = vmatprep.subr.mxu0 0.0
  %4089 = vmatpush1.xpose.msra.mxu0 0.0
  %4090 = vmatprep.subr.mxu0 0.0
  %4091 = vmatpush1.xpose.msra.mxu0 0.0
  %4092 = vmatprep.subr.mxu0 0.0
  %4093 = vmatpush1.xpose.msra.mxu0 0.0
  %4094 = vmatprep.subr.mxu0 0.0
  %4095 = vmatpush1.xpose.msra.mxu0 0.0
  %4096 = vmatprep.subr.mxu0 0.0
  %4097 = vmatpush1.xpose.msra.mxu0 0.0
  %4098 = vmatprep.subr.mxu0 0.0
  %4099 = vmatpush1.xpose.msra.mxu0 0.0
  %4100 = vmatprep.subr.mxu0 0.0
  %4101 = vmatpush1.xpose.msra.mxu0 0.0
  %4102 = vmatprep.subr.mxu0 0.0
  %4103 = vmatpush1.xpose.msra.mxu0 0.0
  %4104 = vmatprep.subr.mxu0 0.0
  %4105 = vmatpush1.xpose.msra.mxu0 0.0
  %4106 = vmatprep.subr.mxu0 0.0
  %4107 = vmatpush1.xpose.msra.mxu0 0.0
  %4108 = vmatprep.subr.mxu0 0.0
  %4109 = vmatpush1.xpose.msra.mxu0 0.0
  %4110 = vmatprep.subr.mxu0 0.0
  %4111 = vmatpush1.xpose.msra.mxu0 0.0
  %4112 = vmatprep.subr.mxu0 0.0
  %4113 = vmatpush1.xpose.msra.mxu0 0.0
  %4114 = vmatprep.subr.mxu0 0.0
  %4115 = vmatpush1.xpose.msra.mxu0 %v4082
  %4116 = vmatprep.subr.mxu0 0.0
  %4117 = vmatpush2.xpose.msra.mxu0 0.0
  %4118 = vmatprep.subr.mxu0 0.0
  %4119 = vmatpush2.xpose.msra.mxu0 0.0
  %4120 = vmatprep.subr.mxu0 0.0
  %4121 = vmatpush2.xpose.msra.mxu0 0.0
  %4122 = vmatprep.subr.mxu0 0.0
  %4123 = vmatpush2.xpose.msra.mxu0 0.0
  %4124 = vmatprep.subr.mxu0 0.0
  %4125 = vmatpush2.xpose.msra.mxu0 0.0
  %4126 = vmatprep.subr.mxu0 0.0
  %4127 = vmatpush2.xpose.msra.mxu0 0.0
  %4128 = vmatprep.subr.mxu0 0.0
  %4129 = vmatpush2.xpose.msra.mxu0 0.0
  %4130 = vmatprep.subr.mxu0 0.0
  %4131 = vmatpush2.xpose.msra.mxu0 0.0
  %4132 = vmatprep.subr.mxu0 0.0
  %4133 = vmatpush2.xpose.msra.mxu0 0.0
  %4134 = vmatprep.subr.mxu0 0.0
  %4135 = vmatpush2.xpose.msra.mxu0 0.0
  %4136 = vmatprep.subr.mxu0 0.0
  %4137 = vmatpush2.xpose.msra.mxu0 0.0
  %4138 = vmatprep.subr.mxu0 0.0
  %4139 = vmatpush2.xpose.msra.mxu0 0.0
  %4140 = vmatprep.subr.mxu0 0.0
  %4141 = vmatpush2.xpose.msra.mxu0 0.0
  %4142 = vmatprep.subr.mxu0 0.0
  %4143 = vmatpush2.xpose.msra.mxu0 0.0
  %4144 = vmatprep.subr.mxu0 0.0
  %4145 = vmatpush2.xpose.msra.mxu0 0.0
  %4146 = vmatprep.subr.mxu0 0.0
  %4147 = vmatpush2.xpose.msra.mxu0 0.0
  %4148 = vmatprep.mubr.f32.mxu0 0.0
  %4149 = vmatmul.mubr.f32.gmra.mxu0 %v4080
  %v4150 = vpop.f32.mrf.mxu0
  %v4151 = vadd.f32 0.0, %v4150
  %v4152 = vpop.f32.mrf.mxu0
  %4153 = vdwg.mxu0
  %4154 = vrot.lane.b32.xlu0 %v1471, 96
  %v4155 = vpop.permute.xlu0 %4154
  %4156 = vrot.lane.b32.xlu0 %v2440, 96
  %v4157 = vpop.permute.xlu0 %4156
  %v4158 = vsel %vm228, %v4155, 0
  %v4160 = vsel %vm228, %v4157, 0
  %4162 = vmatprep.subr.mxu0 0.0
  %4163 = vmatpush1.xpose.msra.mxu0 0.0
  %4164 = vmatprep.subr.mxu0 0.0
  %4165 = vmatpush1.xpose.msra.mxu0 0.0
  %4166 = vmatprep.subr.mxu0 0.0
  %4167 = vmatpush1.xpose.msra.mxu0 0.0
  %4168 = vmatprep.subr.mxu0 0.0
  %4169 = vmatpush1.xpose.msra.mxu0 0.0
  %4170 = vmatprep.subr.mxu0 0.0
  %4171 = vmatpush1.xpose.msra.mxu0 0.0
  %4172 = vmatprep.subr.mxu0 0.0
  %4173 = vmatpush1.xpose.msra.mxu0 0.0
  %4174 = vmatprep.subr.mxu0 0.0
  %4175 = vmatpush1.xpose.msra.mxu0 0.0
  %4176 = vmatprep.subr.mxu0 0.0
  %4177 = vmatpush1.xpose.msra.mxu0 0.0
  %4178 = vmatprep.subr.mxu0 0.0
  %4179 = vmatpush1.xpose.msra.mxu0 0.0
  %4180 = vmatprep.subr.mxu0 0.0
  %4181 = vmatpush1.xpose.msra.mxu0 0.0
  %4182 = vmatprep.subr.mxu0 0.0
  %4183 = vmatpush1.xpose.msra.mxu0 0.0
  %4184 = vmatprep.subr.mxu0 0.0
  %4185 = vmatpush1.xpose.msra.mxu0 0.0
  %4186 = vmatprep.subr.mxu0 0.0
  %4187 = vmatpush1.xpose.msra.mxu0 0.0
  %4188 = vmatprep.subr.mxu0 0.0
  %4189 = vmatpush1.xpose.msra.mxu0 0.0
  %4190 = vmatprep.subr.mxu0 0.0
  %4191 = vmatpush1.xpose.msra.mxu0 0.0
  %4192 = vmatprep.subr.mxu0 0.0
  %4193 = vmatpush1.xpose.msra.mxu0 %v4160
  %4194 = vmatprep.subr.mxu0 0.0
  %4195 = vmatpush2.xpose.msra.mxu0 0.0
  %4196 = vmatprep.subr.mxu0 0.0
  %4197 = vmatpush2.xpose.msra.mxu0 0.0
  %4198 = vmatprep.subr.mxu0 0.0
  %4199 = vmatpush2.xpose.msra.mxu0 0.0
  %4200 = vmatprep.subr.mxu0 0.0
  %4201 = vmatpush2.xpose.msra.mxu0 0.0
  %4202 = vmatprep.subr.mxu0 0.0
  %4203 = vmatpush2.xpose.msra.mxu0 0.0
  %4204 = vmatprep.subr.mxu0 0.0
  %4205 = vmatpush2.xpose.msra.mxu0 0.0
  %4206 = vmatprep.subr.mxu0 0.0
  %4207 = vmatpush2.xpose.msra.mxu0 0.0
  %4208 = vmatprep.subr.mxu0 0.0
  %4209 = vmatpush2.xpose.msra.mxu0 0.0
  %4210 = vmatprep.subr.mxu0 0.0
  %4211 = vmatpush2.xpose.msra.mxu0 0.0
  %4212 = vmatprep.subr.mxu0 0.0
  %4213 = vmatpush2.xpose.msra.mxu0 0.0
  %4214 = vmatprep.subr.mxu0 0.0
  %4215 = vmatpush2.xpose.msra.mxu0 0.0
  %4216 = vmatprep.subr.mxu0 0.0
  %4217 = vmatpush2.xpose.msra.mxu0 0.0
  %4218 = vmatprep.subr.mxu0 0.0
  %4219 = vmatpush2.xpose.msra.mxu0 0.0
  %4220 = vmatprep.subr.mxu0 0.0
  %4221 = vmatpush2.xpose.msra.mxu0 0.0
  %4222 = vmatprep.subr.mxu0 0.0
  %4223 = vmatpush2.xpose.msra.mxu0 0.0
  %4224 = vmatprep.subr.mxu0 0.0
  %4225 = vmatpush2.xpose.msra.mxu0 0.0
  %4226 = vmatprep.mubr.f32.mxu0 0.0
  %4227 = vmatmul.mubr.f32.gmra.mxu0 %v4158
  %v4228 = vpop.f32.mrf.mxu0
  %v4229 = vadd.f32 0.0, %v4228
  %v4230 = vpop.f32.mrf.mxu0
  %4231 = vdwg.mxu0
  %4232 = vrot.lane.b32.xlu0 %v1472, 96
  %v4233 = vpop.permute.xlu0 %4232
  %4234 = vrot.lane.b32.xlu0 %v2441, 96
  %v4235 = vpop.permute.xlu0 %4234
  %v4236 = vsel %vm228, %v4233, 0
  %v4238 = vsel %vm228, %v4235, 0
  %4240 = vmatprep.subr.mxu0 0.0
  %4241 = vmatpush1.xpose.msra.mxu0 0.0
  %4242 = vmatprep.subr.mxu0 0.0
  %4243 = vmatpush1.xpose.msra.mxu0 0.0
  %4244 = vmatprep.subr.mxu0 0.0
  %4245 = vmatpush1.xpose.msra.mxu0 0.0
  %4246 = vmatprep.subr.mxu0 0.0
  %4247 = vmatpush1.xpose.msra.mxu0 0.0
  %4248 = vmatprep.subr.mxu0 0.0
  %4249 = vmatpush1.xpose.msra.mxu0 0.0
  %4250 = vmatprep.subr.mxu0 0.0
  %4251 = vmatpush1.xpose.msra.mxu0 0.0
  %4252 = vmatprep.subr.mxu0 0.0
  %4253 = vmatpush1.xpose.msra.mxu0 0.0
  %4254 = vmatprep.subr.mxu0 0.0
  %4255 = vmatpush1.xpose.msra.mxu0 0.0
  %4256 = vmatprep.subr.mxu0 0.0
  %4257 = vmatpush1.xpose.msra.mxu0 0.0
  %4258 = vmatprep.subr.mxu0 0.0
  %4259 = vmatpush1.xpose.msra.mxu0 0.0
  %4260 = vmatprep.subr.mxu0 0.0
  %4261 = vmatpush1.xpose.msra.mxu0 0.0
  %4262 = vmatprep.subr.mxu0 0.0
  %4263 = vmatpush1.xpose.msra.mxu0 0.0
  %4264 = vmatprep.subr.mxu0 0.0
  %4265 = vmatpush1.xpose.msra.mxu0 0.0
  %4266 = vmatprep.subr.mxu0 0.0
  %4267 = vmatpush1.xpose.msra.mxu0 0.0
  %4268 = vmatprep.subr.mxu0 0.0
  %4269 = vmatpush1.xpose.msra.mxu0 0.0
  %4270 = vmatprep.subr.mxu0 0.0
  %4271 = vmatpush1.xpose.msra.mxu0 %v4238
  %4272 = vmatprep.subr.mxu0 0.0
  %4273 = vmatpush2.xpose.msra.mxu0 0.0
  %4274 = vmatprep.subr.mxu0 0.0
  %4275 = vmatpush2.xpose.msra.mxu0 0.0
  %4276 = vmatprep.subr.mxu0 0.0
  %4277 = vmatpush2.xpose.msra.mxu0 0.0
  %4278 = vmatprep.subr.mxu0 0.0
  %4279 = vmatpush2.xpose.msra.mxu0 0.0
  %4280 = vmatprep.subr.mxu0 0.0
  %4281 = vmatpush2.xpose.msra.mxu0 0.0
  %4282 = vmatprep.subr.mxu0 0.0
  %4283 = vmatpush2.xpose.msra.mxu0 0.0
  %4284 = vmatprep.subr.mxu0 0.0
  %4285 = vmatpush2.xpose.msra.mxu0 0.0
  %4286 = vmatprep.subr.mxu0 0.0
  %4287 = vmatpush2.xpose.msra.mxu0 0.0
  %4288 = vmatprep.subr.mxu0 0.0
  %4289 = vmatpush2.xpose.msra.mxu0 0.0
  %4290 = vmatprep.subr.mxu0 0.0
  %4291 = vmatpush2.xpose.msra.mxu0 0.0
  %4292 = vmatprep.subr.mxu0 0.0
  %4293 = vmatpush2.xpose.msra.mxu0 0.0
  %4294 = vmatprep.subr.mxu0 0.0
  %4295 = vmatpush2.xpose.msra.mxu0 0.0
  %4296 = vmatprep.subr.mxu0 0.0
  %4297 = vmatpush2.xpose.msra.mxu0 0.0
  %4298 = vmatprep.subr.mxu0 0.0
  %4299 = vmatpush2.xpose.msra.mxu0 0.0
  %4300 = vmatprep.subr.mxu0 0.0
  %4301 = vmatpush2.xpose.msra.mxu0 0.0
  %4302 = vmatprep.subr.mxu0 0.0
  %4303 = vmatpush2.xpose.msra.mxu0 0.0
  %4304 = vmatprep.mubr.f32.mxu0 0.0
  %4305 = vmatmul.mubr.f32.gmra.mxu0 %v4236
  %v4306 = vpop.f32.mrf.mxu0
  %v4307 = vadd.f32 0.0, %v4306
  %v4308 = vpop.f32.mrf.mxu0
  %4309 = vdwg.mxu0
  %4310 = vrot.lane.b32.xlu0 %v1473, 96
  %v4311 = vpop.permute.xlu0 %4310
  %4312 = vrot.lane.b32.xlu0 %v2442, 96
  %v4313 = vpop.permute.xlu0 %4312
  %v4314 = vsel %vm228, %v4311, 0
  %v4316 = vsel %vm228, %v4313, 0
  %4318 = vmatprep.subr.mxu0 0.0
  %4319 = vmatpush1.xpose.msra.mxu0 0.0
  %4320 = vmatprep.subr.mxu0 0.0
  %4321 = vmatpush1.xpose.msra.mxu0 0.0
  %4322 = vmatprep.subr.mxu0 0.0
  %4323 = vmatpush1.xpose.msra.mxu0 0.0
  %4324 = vmatprep.subr.mxu0 0.0
  %4325 = vmatpush1.xpose.msra.mxu0 0.0
  %4326 = vmatprep.subr.mxu0 0.0
  %4327 = vmatpush1.xpose.msra.mxu0 0.0
  %4328 = vmatprep.subr.mxu0 0.0
  %4329 = vmatpush1.xpose.msra.mxu0 0.0
  %4330 = vmatprep.subr.mxu0 0.0
  %4331 = vmatpush1.xpose.msra.mxu0 0.0
  %4332 = vmatprep.subr.mxu0 0.0
  %4333 = vmatpush1.xpose.msra.mxu0 0.0
  %4334 = vmatprep.subr.mxu0 0.0
  %4335 = vmatpush1.xpose.msra.mxu0 0.0
  %4336 = vmatprep.subr.mxu0 0.0
  %4337 = vmatpush1.xpose.msra.mxu0 0.0
  %4338 = vmatprep.subr.mxu0 0.0
  %4339 = vmatpush1.xpose.msra.mxu0 0.0
  %4340 = vmatprep.subr.mxu0 0.0
  %4341 = vmatpush1.xpose.msra.mxu0 0.0
  %4342 = vmatprep.subr.mxu0 0.0
  %4343 = vmatpush1.xpose.msra.mxu0 0.0
  %4344 = vmatprep.subr.mxu0 0.0
  %4345 = vmatpush1.xpose.msra.mxu0 0.0
  %4346 = vmatprep.subr.mxu0 0.0
  %4347 = vmatpush1.xpose.msra.mxu0 0.0
  %4348 = vmatprep.subr.mxu0 0.0
  %4349 = vmatpush1.xpose.msra.mxu0 %v4316
  %4350 = vmatprep.subr.mxu0 0.0
  %4351 = vmatpush2.xpose.msra.mxu0 0.0
  %4352 = vmatprep.subr.mxu0 0.0
  %4353 = vmatpush2.xpose.msra.mxu0 0.0
  %4354 = vmatprep.subr.mxu0 0.0
  %4355 = vmatpush2.xpose.msra.mxu0 0.0
  %4356 = vmatprep.subr.mxu0 0.0
  %4357 = vmatpush2.xpose.msra.mxu0 0.0
  %4358 = vmatprep.subr.mxu0 0.0
  %4359 = vmatpush2.xpose.msra.mxu0 0.0
  %4360 = vmatprep.subr.mxu0 0.0
  %4361 = vmatpush2.xpose.msra.mxu0 0.0
  %4362 = vmatprep.subr.mxu0 0.0
  %4363 = vmatpush2.xpose.msra.mxu0 0.0
  %4364 = vmatprep.subr.mxu0 0.0
  %4365 = vmatpush2.xpose.msra.mxu0 0.0
  %4366 = vmatprep.subr.mxu0 0.0
  %4367 = vmatpush2.xpose.msra.mxu0 0.0
  %4368 = vmatprep.subr.mxu0 0.0
  %4369 = vmatpush2.xpose.msra.mxu0 0.0
  %4370 = vmatprep.subr.mxu0 0.0
  %4371 = vmatpush2.xpose.msra.mxu0 0.0
  %4372 = vmatprep.subr.mxu0 0.0
  %4373 = vmatpush2.xpose.msra.mxu0 0.0
  %4374 = vmatprep.subr.mxu0 0.0
  %4375 = vmatpush2.xpose.msra.mxu0 0.0
  %4376 = vmatprep.subr.mxu0 0.0
  %4377 = vmatpush2.xpose.msra.mxu0 0.0
  %4378 = vmatprep.subr.mxu0 0.0
  %4379 = vmatpush2.xpose.msra.mxu0 0.0
  %4380 = vmatprep.subr.mxu0 0.0
  %4381 = vmatpush2.xpose.msra.mxu0 0.0
  %4382 = vmatprep.mubr.f32.mxu0 0.0
  %4383 = vmatmul.mubr.f32.gmra.mxu0 %v4314
  %v4384 = vpop.f32.mrf.mxu0
  %v4385 = vadd.f32 0.0, %v4384
  %v4386 = vpop.f32.mrf.mxu0
  %4387 = vdwg.mxu0
  %v4388 = vmul.f32 %v3839, 0.17677669
  %v4389 = vmul.f32 %v3917, 0.17677669
  %v4390 = vmul.f32 %v3995, 0.17677669
  %v4391 = vmul.f32 %v4073, 0.17677669
  %v4392 = vmul.f32 %v4151, 0.17677669
  %v4393 = vmul.f32 %v4229, 0.17677669
  %v4394 = vmul.f32 %v4307, 0.17677669
  %v4395 = vmul.f32 %v4385, 0.17677669
  %v4396 = vsel %vm3059, %v4388, -inf
  %4397 = vmax.xlane.f32.xlu0 %v4396
  %v4398 = vpop.xlane.xlu0 %4397
  %v4399 = vsel %vm3059, %v4389, -inf
  %4400 = vmax.xlane.f32.xlu0 %v4399
  %v4401 = vpop.xlane.xlu0 %4400
  %v4402 = vsel %vm3059, %v4390, -inf
  %4403 = vmax.xlane.f32.xlu0 %v4402
  %v4404 = vpop.xlane.xlu0 %4403
  %v4405 = vsel %vm3059, %v4391, -inf
  %4406 = vmax.xlane.f32.xlu0 %v4405
  %v4407 = vpop.xlane.xlu0 %4406
  %v4408 = vsel %vm3059, %v4392, -inf
  %4409 = vmax.xlane.f32.xlu0 %v4408
  %v4410 = vpop.xlane.xlu0 %4409
  %v4411 = vsel %vm3059, %v4393, -inf
  %4412 = vmax.xlane.f32.xlu0 %v4411
  %v4413 = vpop.xlane.xlu0 %4412
  %v4414 = vsel %vm3059, %v4394, -inf
  %4415 = vmax.xlane.f32.xlu0 %v4414
  %v4416 = vpop.xlane.xlu0 %4415
  %v4417 = vsel %vm3059, %v4395, -inf
  %4418 = vmax.xlane.f32.xlu0 %v4417
  %v4419 = vpop.xlane.xlu0 %4418
  %v4420 = vsub.f32 %v4388, %v4398
  %v4421 = vsub.f32 %v4389, %v4401
  %v4422 = vsub.f32 %v4390, %v4404
  %v4423 = vsub.f32 %v4391, %v4407
  %v4424 = vsub.f32 %v4392, %v4410
  %v4425 = vsub.f32 %v4393, %v4413
  %v4426 = vsub.f32 %v4394, %v4416
  %v4427 = vsub.f32 %v4395, %v4419
  %v4428 = vmul.f32 %v4420, 1.442695
  %v4429 = vpow.pop %v4428
  %v4430 = vmul.f32 %v4421, 1.442695
  %v4431 = vpow.pop %v4430
  %v4432 = vmul.f32 %v4422, 1.442695
  %v4433 = vpow.pop %v4432
  %v4434 = vmul.f32 %v4423, 1.442695
  %v4435 = vpow.pop %v4434
  %v4436 = vmul.f32 %v4424, 1.442695
  %v4437 = vpow.pop %v4436
  %v4438 = vmul.f32 %v4425, 1.442695
  %v4439 = vpow.pop %v4438
  %v4440 = vmul.f32 %v4426, 1.442695
  %v4441 = vpow.pop %v4440
  %v4442 = vmul.f32 %v4427, 1.442695
  %v4443 = vpow.pop %v4442
  %v4444 = vsel %vm3059, %v4429, 0.0
  %4445 = vadd.xlane.f32.xlu0 %v4444
  %v4446 = vpop.xlane.xlu0 %4445
  %v4447 = vsel %vm3059, %v4431, 0.0
  %4448 = vadd.xlane.f32.xlu0 %v4447
  %v4449 = vpop.xlane.xlu0 %4448
  %v4450 = vsel %vm3059, %v4433, 0.0
  %4451 = vadd.xlane.f32.xlu0 %v4450
  %v4452 = vpop.xlane.xlu0 %4451
  %v4453 = vsel %vm3059, %v4435, 0.0
  %4454 = vadd.xlane.f32.xlu0 %v4453
  %v4455 = vpop.xlane.xlu0 %4454
  %v4456 = vsel %vm3059, %v4437, 0.0
  %4457 = vadd.xlane.f32.xlu0 %v4456
  %v4458 = vpop.xlane.xlu0 %4457
  %v4459 = vsel %vm3059, %v4439, 0.0
  %4460 = vadd.xlane.f32.xlu0 %v4459
  %v4461 = vpop.xlane.xlu0 %4460
  %v4462 = vsel %vm3059, %v4441, 0.0
  %4463 = vadd.xlane.f32.xlu0 %v4462
  %v4464 = vpop.xlane.xlu0 %4463
  %v4465 = vsel %vm3059, %v4443, 0.0
  %4466 = vadd.xlane.f32.xlu0 %v4465
  %v4467 = vpop.xlane.xlu0 %4466
  %v4468 = vrcp.pop %v4446
  %v4469 = vmul.f32 %v4429, %v4468
  %v4470 = vrcp.pop %v4449
  %v4471 = vmul.f32 %v4431, %v4470
  %v4472 = vrcp.pop %v4452
  %v4473 = vmul.f32 %v4433, %v4472
  %v4474 = vrcp.pop %v4455
  %v4475 = vmul.f32 %v4435, %v4474
  %v4476 = vrcp.pop %v4458
  %v4477 = vmul.f32 %v4437, %v4476
  %v4478 = vrcp.pop %v4461
  %v4479 = vmul.f32 %v4439, %v4478
  %v4480 = vrcp.pop %v4464
  %v4481 = vmul.f32 %v4441, %v4480
  %v4482 = vrcp.pop %v4467
  %v4483 = vmul.f32 %v4443, %v4482
  %4484 = vrot.lane.b32.xlu0 %v464, 48
  %v4485 = vpop.permute.xlu0 %4484
  %v4487 = vsel %vm3059, %v4469, 0
  %v4489 = vsel %vm117, %v4485, 0
  %4491 = vmatprep.subr.mxu0 0.0
  %4492 = vmatpush1.msra.mxu0 0.0
  %4493 = vmatprep.subr.mxu0 0.0
  %4494 = vmatpush1.msra.mxu0 0.0
  %4495 = vmatprep.subr.mxu0 0.0
  %4496 = vmatpush1.msra.mxu0 0.0
  %4497 = vmatprep.subr.mxu0 0.0
  %4498 = vmatpush1.msra.mxu0 0.0
  %4499 = vmatprep.subr.mxu0 0.0
  %4500 = vmatpush1.msra.mxu0 0.0
  %4501 = vmatprep.subr.mxu0 0.0
  %4502 = vmatpush1.msra.mxu0 0.0
  %4503 = vmatprep.subr.mxu0 0.0
  %4504 = vmatpush1.msra.mxu0 0.0
  %4505 = vmatprep.subr.mxu0 0.0
  %4506 = vmatpush1.msra.mxu0 0.0
  %4507 = vmatprep.subr.mxu0 0.0
  %4508 = vmatpush1.msra.mxu0 0.0
  %4509 = vmatprep.subr.mxu0 0.0
  %4510 = vmatpush1.msra.mxu0 0.0
  %4511 = vmatprep.subr.mxu0 0.0
  %4512 = vmatpush1.msra.mxu0 0.0
  %4513 = vmatprep.subr.mxu0 0.0
  %4514 = vmatpush1.msra.mxu0 0.0
  %4515 = vmatprep.subr.mxu0 0.0
  %4516 = vmatpush1.msra.mxu0 0.0
  %4517 = vmatprep.subr.mxu0 0.0
  %4518 = vmatpush1.msra.mxu0 0.0
  %4519 = vmatprep.subr.mxu0 0.0
  %4520 = vmatpush1.msra.mxu0 0.0
  %4521 = vmatprep.subr.mxu0 0.0
  %4522 = vmatpush1.msra.mxu0 %v4489
  %4523 = vmatprep.subr.mxu0 0.0
  %4524 = vmatpush2.msra.mxu0 0.0
  %4525 = vmatprep.subr.mxu0 0.0
  %4526 = vmatpush2.msra.mxu0 0.0
  %4527 = vmatprep.subr.mxu0 0.0
  %4528 = vmatpush2.msra.mxu0 0.0
  %4529 = vmatprep.subr.mxu0 0.0
  %4530 = vmatpush2.msra.mxu0 0.0
  %4531 = vmatprep.subr.mxu0 0.0
  %4532 = vmatpush2.msra.mxu0 0.0
  %4533 = vmatprep.subr.mxu0 0.0
  %4534 = vmatpush2.msra.mxu0 0.0
  %4535 = vmatprep.subr.mxu0 0.0
  %4536 = vmatpush2.msra.mxu0 0.0
  %4537 = vmatprep.subr.mxu0 0.0
  %4538 = vmatpush2.msra.mxu0 0.0
  %4539 = vmatprep.subr.mxu0 0.0
  %4540 = vmatpush2.msra.mxu0 0.0
  %4541 = vmatprep.subr.mxu0 0.0
  %4542 = vmatpush2.msra.mxu0 0.0
  %4543 = vmatprep.subr.mxu0 0.0
  %4544 = vmatpush2.msra.mxu0 0.0
  %4545 = vmatprep.subr.mxu0 0.0
  %4546 = vmatpush2.msra.mxu0 0.0
  %4547 = vmatprep.subr.mxu0 0.0
  %4548 = vmatpush2.msra.mxu0 0.0
  %4549 = vmatprep.subr.mxu0 0.0
  %4550 = vmatpush2.msra.mxu0 0.0
  %4551 = vmatprep.subr.mxu0 0.0
  %4552 = vmatpush2.msra.mxu0 0.0
  %4553 = vmatprep.subr.mxu0 0.0
  %4554 = vmatpush2.msra.mxu0 0.0
  %4555 = vmatprep.mubr.f32.mxu0 0.0
  %4556 = vmatmul.mubr.f32.gmra.mxu0 %v4487
  %v4557 = vpop.f32.mrf.mxu0
  %v4558 = vadd.f32 0.0, %v4557
  %v4559 = vpop.f32.mrf.mxu0
  %4560 = vdwg.mxu0
  %4561 = vrot.lane.b32.xlu0 %v469, 48
  %v4562 = vpop.permute.xlu0 %4561
  %v4564 = vsel %vm3059, %v4471, 0
  %v4566 = vsel %vm117, %v4562, 0
  %4568 = vmatprep.subr.mxu0 0.0
  %4569 = vmatpush1.msra.mxu0 0.0
  %4570 = vmatprep.subr.mxu0 0.0
  %4571 = vmatpush1.msra.mxu0 0.0
  %4572 = vmatprep.subr.mxu0 0.0
  %4573 = vmatpush1.msra.mxu0 0.0
  %4574 = vmatprep.subr.mxu0 0.0
  %4575 = vmatpush1.msra.mxu0 0.0
  %4576 = vmatprep.subr.mxu0 0.0
  %4577 = vmatpush1.msra.mxu0 0.0
  %4578 = vmatprep.subr.mxu0 0.0
  %4579 = vmatpush1.msra.mxu0 0.0
  %4580 = vmatprep.subr.mxu0 0.0
  %4581 = vmatpush1.msra.mxu0 0.0
  %4582 = vmatprep.subr.mxu0 0.0
  %4583 = vmatpush1.msra.mxu0 0.0
  %4584 = vmatprep.subr.mxu0 0.0
  %4585 = vmatpush1.msra.mxu0 0.0
  %4586 = vmatprep.subr.mxu0 0.0
  %4587 = vmatpush1.msra.mxu0 0.0
  %4588 = vmatprep.subr.mxu0 0.0
  %4589 = vmatpush1.msra.mxu0 0.0
  %4590 = vmatprep.subr.mxu0 0.0
  %4591 = vmatpush1.msra.mxu0 0.0
  %4592 = vmatprep.subr.mxu0 0.0
  %4593 = vmatpush1.msra.mxu0 0.0
  %4594 = vmatprep.subr.mxu0 0.0
  %4595 = vmatpush1.msra.mxu0 0.0
  %4596 = vmatprep.subr.mxu0 0.0
  %4597 = vmatpush1.msra.mxu0 0.0
  %4598 = vmatprep.subr.mxu0 0.0
  %4599 = vmatpush1.msra.mxu0 %v4566
  %4600 = vmatprep.subr.mxu0 0.0
  %4601 = vmatpush2.msra.mxu0 0.0
  %4602 = vmatprep.subr.mxu0 0.0
  %4603 = vmatpush2.msra.mxu0 0.0
  %4604 = vmatprep.subr.mxu0 0.0
  %4605 = vmatpush2.msra.mxu0 0.0
  %4606 = vmatprep.subr.mxu0 0.0
  %4607 = vmatpush2.msra.mxu0 0.0
  %4608 = vmatprep.subr.mxu0 0.0
  %4609 = vmatpush2.msra.mxu0 0.0
  %4610 = vmatprep.subr.mxu0 0.0
  %4611 = vmatpush2.msra.mxu0 0.0
  %4612 = vmatprep.subr.mxu0 0.0
  %4613 = vmatpush2.msra.mxu0 0.0
  %4614 = vmatprep.subr.mxu0 0.0
  %4615 = vmatpush2.msra.mxu0 0.0
  %4616 = vmatprep.subr.mxu0 0.0
  %4617 = vmatpush2.msra.mxu0 0.0
  %4618 = vmatprep.subr.mxu0 0.0
  %4619 = vmatpush2.msra.mxu0 0.0
  %4620 = vmatprep.subr.mxu0 0.0
  %4621 = vmatpush2.msra.mxu0 0.0
  %4622 = vmatprep.subr.mxu0 0.0
  %4623 = vmatpush2.msra.mxu0 0.0
  %4624 = vmatprep.subr.mxu0 0.0
  %4625 = vmatpush2.msra.mxu0 0.0
  %4626 = vmatprep.subr.mxu0 0.0
  %4627 = vmatpush2.msra.mxu0 0.0
  %4628 = vmatprep.subr.mxu0 0.0
  %4629 = vmatpush2.msra.mxu0 0.0
  %4630 = vmatprep.subr.mxu0 0.0
  %4631 = vmatpush2.msra.mxu0 0.0
  %4632 = vmatprep.mubr.f32.mxu0 0.0
  %4633 = vmatmul.mubr.f32.gmra.mxu0 %v4564
  %v4634 = vpop.f32.mrf.mxu0
  %v4635 = vadd.f32 0.0, %v4634
  %v4636 = vpop.f32.mrf.mxu0
  %4637 = vdwg.mxu0
  %4638 = vrot.lane.b32.xlu0 %v474, 48
  %v4639 = vpop.permute.xlu0 %4638
  %v4641 = vsel %vm3059, %v4473, 0
  %v4643 = vsel %vm117, %v4639, 0
  %4645 = vmatprep.subr.mxu0 0.0
  %4646 = vmatpush1.msra.mxu0 0.0
  %4647 = vmatprep.subr.mxu0 0.0
  %4648 = vmatpush1.msra.mxu0 0.0
  %4649 = vmatprep.subr.mxu0 0.0
  %4650 = vmatpush1.msra.mxu0 0.0
  %4651 = vmatprep.subr.mxu0 0.0
  %4652 = vmatpush1.msra.mxu0 0.0
  %4653 = vmatprep.subr.mxu0 0.0
  %4654 = vmatpush1.msra.mxu0 0.0
  %4655 = vmatprep.subr.mxu0 0.0
  %4656 = vmatpush1.msra.mxu0 0.0
  %4657 = vmatprep.subr.mxu0 0.0
  %4658 = vmatpush1.msra.mxu0 0.0
  %4659 = vmatprep.subr.mxu0 0.0
  %4660 = vmatpush1.msra.mxu0 0.0
  %4661 = vmatprep.subr.mxu0 0.0
  %4662 = vmatpush1.msra.mxu0 0.0
  %4663 = vmatprep.subr.mxu0 0.0
  %4664 = vmatpush1.msra.mxu0 0.0
  %4665 = vmatprep.subr.mxu0 0.0
  %4666 = vmatpush1.msra.mxu0 0.0
  %4667 = vmatprep.subr.mxu0 0.0
  %4668 = vmatpush1.msra.mxu0 0.0
  %4669 = vmatprep.subr.mxu0 0.0
  %4670 = vmatpush1.msra.mxu0 0.0
  %4671 = vmatprep.subr.mxu0 0.0
  %4672 = vmatpush1.msra.mxu0 0.0
  %4673 = vmatprep.subr.mxu0 0.0
  %4674 = vmatpush1.msra.mxu0 0.0
  %4675 = vmatprep.subr.mxu0 0.0
  %4676 = vmatpush1.msra.mxu0 %v4643
  %4677 = vmatprep.subr.mxu0 0.0
  %4678 = vmatpush2.msra.mxu0 0.0
  %4679 = vmatprep.subr.mxu0 0.0
  %4680 = vmatpush2.msra.mxu0 0.0
  %4681 = vmatprep.subr.mxu0 0.0
  %4682 = vmatpush2.msra.mxu0 0.0
  %4683 = vmatprep.subr.mxu0 0.0
  %4684 = vmatpush2.msra.mxu0 0.0
  %4685 = vmatprep.subr.mxu0 0.0
  %4686 = vmatpush2.msra.mxu0 0.0
  %4687 = vmatprep.subr.mxu0 0.0
  %4688 = vmatpush2.msra.mxu0 0.0
  %4689 = vmatprep.subr.mxu0 0.0
  %4690 = vmatpush2.msra.mxu0 0.0
  %4691 = vmatprep.subr.mxu0 0.0
  %4692 = vmatpush2.msra.mxu0 0.0
  %4693 = vmatprep.subr.mxu0 0.0
  %4694 = vmatpush2.msra.mxu0 0.0
  %4695 = vmatprep.subr.mxu0 0.0
  %4696 = vmatpush2.msra.mxu0 0.0
  %4697 = vmatprep.subr.mxu0 0.0
  %4698 = vmatpush2.msra.mxu0 0.0
  %4699 = vmatprep.subr.mxu0 0.0
  %4700 = vmatpush2.msra.mxu0 0.0
  %4701 = vmatprep.subr.mxu0 0.0
  %4702 = vmatpush2.msra.mxu0 0.0
  %4703 = vmatprep.subr.mxu0 0.0
  %4704 = vmatpush2.msra.mxu0 0.0
  %4705 = vmatprep.subr.mxu0 0.0
  %4706 = vmatpush2.msra.mxu0 0.0
  %4707 = vmatprep.subr.mxu0 0.0
  %4708 = vmatpush2.msra.mxu0 0.0
  %4709 = vmatprep.mubr.f32.mxu0 0.0
  %4710 = vmatmul.mubr.f32.gmra.mxu0 %v4641
  %v4711 = vpop.f32.mrf.mxu0
  %v4712 = vadd.f32 0.0, %v4711
  %v4713 = vpop.f32.mrf.mxu0
  %4714 = vdwg.mxu0
  %4715 = vrot.lane.b32.xlu0 %v479, 48
  %v4716 = vpop.permute.xlu0 %4715
  %v4718 = vsel %vm3059, %v4475, 0
  %v4720 = vsel %vm117, %v4716, 0
  %4722 = vmatprep.subr.mxu0 0.0
  %4723 = vmatpush1.msra.mxu0 0.0
  %4724 = vmatprep.subr.mxu0 0.0
  %4725 = vmatpush1.msra.mxu0 0.0
  %4726 = vmatprep.subr.mxu0 0.0
  %4727 = vmatpush1.msra.mxu0 0.0
  %4728 = vmatprep.subr.mxu0 0.0
  %4729 = vmatpush1.msra.mxu0 0.0
  %4730 = vmatprep.subr.mxu0 0.0
  %4731 = vmatpush1.msra.mxu0 0.0
  %4732 = vmatprep.subr.mxu0 0.0
  %4733 = vmatpush1.msra.mxu0 0.0
  %4734 = vmatprep.subr.mxu0 0.0
  %4735 = vmatpush1.msra.mxu0 0.0
  %4736 = vmatprep.subr.mxu0 0.0
  %4737 = vmatpush1.msra.mxu0 0.0
  %4738 = vmatprep.subr.mxu0 0.0
  %4739 = vmatpush1.msra.mxu0 0.0
  %4740 = vmatprep.subr.mxu0 0.0
  %4741 = vmatpush1.msra.mxu0 0.0
  %4742 = vmatprep.subr.mxu0 0.0
  %4743 = vmatpush1.msra.mxu0 0.0
  %4744 = vmatprep.subr.mxu0 0.0
  %4745 = vmatpush1.msra.mxu0 0.0
  %4746 = vmatprep.subr.mxu0 0.0
  %4747 = vmatpush1.msra.mxu0 0.0
  %4748 = vmatprep.subr.mxu0 0.0
  %4749 = vmatpush1.msra.mxu0 0.0
  %4750 = vmatprep.subr.mxu0 0.0
  %4751 = vmatpush1.msra.mxu0 0.0
  %4752 = vmatprep.subr.mxu0 0.0
  %4753 = vmatpush1.msra.mxu0 %v4720
  %4754 = vmatprep.subr.mxu0 0.0
  %4755 = vmatpush2.msra.mxu0 0.0
  %4756 = vmatprep.subr.mxu0 0.0
  %4757 = vmatpush2.msra.mxu0 0.0
  %4758 = vmatprep.subr.mxu0 0.0
  %4759 = vmatpush2.msra.mxu0 0.0
  %4760 = vmatprep.subr.mxu0 0.0
  %4761 = vmatpush2.msra.mxu0 0.0
  %4762 = vmatprep.subr.mxu0 0.0
  %4763 = vmatpush2.msra.mxu0 0.0
  %4764 = vmatprep.subr.mxu0 0.0
  %4765 = vmatpush2.msra.mxu0 0.0
  %4766 = vmatprep.subr.mxu0 0.0
  %4767 = vmatpush2.msra.mxu0 0.0
  %4768 = vmatprep.subr.mxu0 0.0
  %4769 = vmatpush2.msra.mxu0 0.0
  %4770 = vmatprep.subr.mxu0 0.0
  %4771 = vmatpush2.msra.mxu0 0.0
  %4772 = vmatprep.subr.mxu0 0.0
  %4773 = vmatpush2.msra.mxu0 0.0
  %4774 = vmatprep.subr.mxu0 0.0
  %4775 = vmatpush2.msra.mxu0 0.0
  %4776 = vmatprep.subr.mxu0 0.0
  %4777 = vmatpush2.msra.mxu0 0.0
  %4778 = vmatprep.subr.mxu0 0.0
  %4779 = vmatpush2.msra.mxu0 0.0
  %4780 = vmatprep.subr.mxu0 0.0
  %4781 = vmatpush2.msra.mxu0 0.0
  %4782 = vmatprep.subr.mxu0 0.0
  %4783 = vmatpush2.msra.mxu0 0.0
  %4784 = vmatprep.subr.mxu0 0.0
  %4785 = vmatpush2.msra.mxu0 0.0
  %4786 = vmatprep.mubr.f32.mxu0 0.0
  %4787 = vmatmul.mubr.f32.gmra.mxu0 %v4718
  %v4788 = vpop.f32.mrf.mxu0
  %v4789 = vadd.f32 0.0, %v4788
  %v4790 = vpop.f32.mrf.mxu0
  %4791 = vdwg.mxu0
  %4792 = vrot.lane.b32.xlu0 %v484, 48
  %v4793 = vpop.permute.xlu0 %4792
  %v4795 = vsel %vm3059, %v4477, 0
  %v4797 = vsel %vm117, %v4793, 0
  %4799 = vmatprep.subr.mxu0 0.0
  %4800 = vmatpush1.msra.mxu0 0.0
  %4801 = vmatprep.subr.mxu0 0.0
  %4802 = vmatpush1.msra.mxu0 0.0
  %4803 = vmatprep.subr.mxu0 0.0
  %4804 = vmatpush1.msra.mxu0 0.0
  %4805 = vmatprep.subr.mxu0 0.0
  %4806 = vmatpush1.msra.mxu0 0.0
  %4807 = vmatprep.subr.mxu0 0.0
  %4808 = vmatpush1.msra.mxu0 0.0
  %4809 = vmatprep.subr.mxu0 0.0
  %4810 = vmatpush1.msra.mxu0 0.0
  %4811 = vmatprep.subr.mxu0 0.0
  %4812 = vmatpush1.msra.mxu0 0.0
  %4813 = vmatprep.subr.mxu0 0.0
  %4814 = vmatpush1.msra.mxu0 0.0
  %4815 = vmatprep.subr.mxu0 0.0
  %4816 = vmatpush1.msra.mxu0 0.0
  %4817 = vmatprep.subr.mxu0 0.0
  %4818 = vmatpush1.msra.mxu0 0.0
  %4819 = vmatprep.subr.mxu0 0.0
  %4820 = vmatpush1.msra.mxu0 0.0
  %4821 = vmatprep.subr.mxu0 0.0
  %4822 = vmatpush1.msra.mxu0 0.0
  %4823 = vmatprep.subr.mxu0 0.0
  %4824 = vmatpush1.msra.mxu0 0.0
  %4825 = vmatprep.subr.mxu0 0.0
  %4826 = vmatpush1.msra.mxu0 0.0
  %4827 = vmatprep.subr.mxu0 0.0
  %4828 = vmatpush1.msra.mxu0 0.0
  %4829 = vmatprep.subr.mxu0 0.0
  %4830 = vmatpush1.msra.mxu0 %v4797
  %4831 = vmatprep.subr.mxu0 0.0
  %4832 = vmatpush2.msra.mxu0 0.0
  %4833 = vmatprep.subr.mxu0 0.0
  %4834 = vmatpush2.msra.mxu0 0.0
  %4835 = vmatprep.subr.mxu0 0.0
  %4836 = vmatpush2.msra.mxu0 0.0
  %4837 = vmatprep.subr.mxu0 0.0
  %4838 = vmatpush2.msra.mxu0 0.0
  %4839 = vmatprep.subr.mxu0 0.0
  %4840 = vmatpush2.msra.mxu0 0.0
  %4841 = vmatprep.subr.mxu0 0.0
  %4842 = vmatpush2.msra.mxu0 0.0
  %4843 = vmatprep.subr.mxu0 0.0
  %4844 = vmatpush2.msra.mxu0 0.0
  %4845 = vmatprep.subr.mxu0 0.0
  %4846 = vmatpush2.msra.mxu0 0.0
  %4847 = vmatprep.subr.mxu0 0.0
  %4848 = vmatpush2.msra.mxu0 0.0
  %4849 = vmatprep.subr.mxu0 0.0
  %4850 = vmatpush2.msra.mxu0 0.0
  %4851 = vmatprep.subr.mxu0 0.0
  %4852 = vmatpush2.msra.mxu0 0.0
  %4853 = vmatprep.subr.mxu0 0.0
  %4854 = vmatpush2.msra.mxu0 0.0
  %4855 = vmatprep.subr.mxu0 0.0
  %4856 = vmatpush2.msra.mxu0 0.0
  %4857 = vmatprep.subr.mxu0 0.0
  %4858 = vmatpush2.msra.mxu0 0.0
  %4859 = vmatprep.subr.mxu0 0.0
  %4860 = vmatpush2.msra.mxu0 0.0
  %4861 = vmatprep.subr.mxu0 0.0
  %4862 = vmatpush2.msra.mxu0 0.0
  %4863 = vmatprep.mubr.f32.mxu0 0.0
  %4864 = vmatmul.mubr.f32.gmra.mxu0 %v4795
  %v4865 = vpop.f32.mrf.mxu0
  %v4866 = vadd.f32 0.0, %v4865
  %v4867 = vpop.f32.mrf.mxu0
  %4868 = vdwg.mxu0
  %4869 = vrot.lane.b32.xlu0 %v489, 48
  %v4870 = vpop.permute.xlu0 %4869
  %v4872 = vsel %vm3059, %v4479, 0
  %v4874 = vsel %vm117, %v4870, 0
  %4876 = vmatprep.subr.mxu0 0.0
  %4877 = vmatpush1.msra.mxu0 0.0
  %4878 = vmatprep.subr.mxu0 0.0
  %4879 = vmatpush1.msra.mxu0 0.0
  %4880 = vmatprep.subr.mxu0 0.0
  %4881 = vmatpush1.msra.mxu0 0.0
  %4882 = vmatprep.subr.mxu0 0.0
  %4883 = vmatpush1.msra.mxu0 0.0
  %4884 = vmatprep.subr.mxu0 0.0
  %4885 = vmatpush1.msra.mxu0 0.0
  %4886 = vmatprep.subr.mxu0 0.0
  %4887 = vmatpush1.msra.mxu0 0.0
  %4888 = vmatprep.subr.mxu0 0.0
  %4889 = vmatpush1.msra.mxu0 0.0
  %4890 = vmatprep.subr.mxu0 0.0
  %4891 = vmatpush1.msra.mxu0 0.0
  %4892 = vmatprep.subr.mxu0 0.0
  %4893 = vmatpush1.msra.mxu0 0.0
  %4894 = vmatprep.subr.mxu0 0.0
  %4895 = vmatpush1.msra.mxu0 0.0
  %4896 = vmatprep.subr.mxu0 0.0
  %4897 = vmatpush1.msra.mxu0 0.0
  %4898 = vmatprep.subr.mxu0 0.0
  %4899 = vmatpush1.msra.mxu0 0.0
  %4900 = vmatprep.subr.mxu0 0.0
  %4901 = vmatpush1.msra.mxu0 0.0
  %4902 = vmatprep.subr.mxu0 0.0
  %4903 = vmatpush1.msra.mxu0 0.0
  %4904 = vmatprep.subr.mxu0 0.0
  %4905 = vmatpush1.msra.mxu0 0.0
  %4906 = vmatprep.subr.mxu0 0.0
  %4907 = vmatpush1.msra.mxu0 %v4874
  %4908 = vmatprep.subr.mxu0 0.0
  %4909 = vmatpush2.msra.mxu0 0.0
  %4910 = vmatprep.subr.mxu0 0.0
  %4911 = vmatpush2.msra.mxu0 0.0
  %4912 = vmatprep.subr.mxu0 0.0
  %4913 = vmatpush2.msra.mxu0 0.0
  %4914 = vmatprep.subr.mxu0 0.0
  %4915 = vmatpush2.msra.mxu0 0.0
  %4916 = vmatprep.subr.mxu0 0.0
  %4917 = vmatpush2.msra.mxu0 0.0
  %4918 = vmatprep.subr.mxu0 0.0
  %4919 = vmatpush2.msra.mxu0 0.0
  %4920 = vmatprep.subr.mxu0 0.0
  %4921 = vmatpush2.msra.mxu0 0.0
  %4922 = vmatprep.subr.mxu0 0.0
  %4923 = vmatpush2.msra.mxu0 0.0
  %4924 = vmatprep.subr.mxu0 0.0
  %4925 = vmatpush2.msra.mxu0 0.0
  %4926 = vmatprep.subr.mxu0 0.0
  %4927 = vmatpush2.msra.mxu0 0.0
  %4928 = vmatprep.subr.mxu0 0.0
  %4929 = vmatpush2.msra.mxu0 0.0
  %4930 = vmatprep.subr.mxu0 0.0
  %4931 = vmatpush2.msra.mxu0 0.0
  %4932 = vmatprep.subr.mxu0 0.0
  %4933 = vmatpush2.msra.mxu0 0.0
  %4934 = vmatprep.subr.mxu0 0.0
  %4935 = vmatpush2.msra.mxu0 0.0
  %4936 = vmatprep.subr.mxu0 0.0
  %4937 = vmatpush2.msra.mxu0 0.0
  %4938 = vmatprep.subr.mxu0 0.0
  %4939 = vmatpush2.msra.mxu0 0.0
  %4940 = vmatprep.mubr.f32.mxu0 0.0
  %4941 = vmatmul.mubr.f32.gmra.mxu0 %v4872
  %v4942 = vpop.f32.mrf.mxu0
  %v4943 = vadd.f32 0.0, %v4942
  %v4944 = vpop.f32.mrf.mxu0
  %4945 = vdwg.mxu0
  %4946 = vrot.lane.b32.xlu0 %v494, 48
  %v4947 = vpop.permute.xlu0 %4946
  %v4949 = vsel %vm3059, %v4481, 0
  %v4951 = vsel %vm117, %v4947, 0
  %4953 = vmatprep.subr.mxu0 0.0
  %4954 = vmatpush1.msra.mxu0 0.0
  %4955 = vmatprep.subr.mxu0 0.0
  %4956 = vmatpush1.msra.mxu0 0.0
  %4957 = vmatprep.subr.mxu0 0.0
  %4958 = vmatpush1.msra.mxu0 0.0
  %4959 = vmatprep.subr.mxu0 0.0
  %4960 = vmatpush1.msra.mxu0 0.0
  %4961 = vmatprep.subr.mxu0 0.0
  %4962 = vmatpush1.msra.mxu0 0.0
  %4963 = vmatprep.subr.mxu0 0.0
  %4964 = vmatpush1.msra.mxu0 0.0
  %4965 = vmatprep.subr.mxu0 0.0
  %4966 = vmatpush1.msra.mxu0 0.0
  %4967 = vmatprep.subr.mxu0 0.0
  %4968 = vmatpush1.msra.mxu0 0.0
  %4969 = vmatprep.subr.mxu0 0.0
  %4970 = vmatpush1.msra.mxu0 0.0
  %4971 = vmatprep.subr.mxu0 0.0
  %4972 = vmatpush1.msra.mxu0 0.0
  %4973 = vmatprep.subr.mxu0 0.0
  %4974 = vmatpush1.msra.mxu0 0.0
  %4975 = vmatprep.subr.mxu0 0.0
  %4976 = vmatpush1.msra.mxu0 0.0
  %4977 = vmatprep.subr.mxu0 0.0
  %4978 = vmatpush1.msra.mxu0 0.0
  %4979 = vmatprep.subr.mxu0 0.0
  %4980 = vmatpush1.msra.mxu0 0.0
  %4981 = vmatprep.subr.mxu0 0.0
  %4982 = vmatpush1.msra.mxu0 0.0
  %4983 = vmatprep.subr.mxu0 0.0
  %4984 = vmatpush1.msra.mxu0 %v4951
  %4985 = vmatprep.subr.mxu0 0.0
  %4986 = vmatpush2.msra.mxu0 0.0
  %4987 = vmatprep.subr.mxu0 0.0
  %4988 = vmatpush2.msra.mxu0 0.0
  %4989 = vmatprep.subr.mxu0 0.0
  %4990 = vmatpush2.msra.mxu0 0.0
  %4991 = vmatprep.subr.mxu0 0.0
  %4992 = vmatpush2.msra.mxu0 0.0
  %4993 = vmatprep.subr.mxu0 0.0
  %4994 = vmatpush2.msra.mxu0 0.0
  %4995 = vmatprep.subr.mxu0 0.0
  %4996 = vmatpush2.msra.mxu0 0.0
  %4997 = vmatprep.subr.mxu0 0.0
  %4998 = vmatpush2.msra.mxu0 0.0
  %4999 = vmatprep.subr.mxu0 0.0
  %5000 = vmatpush2.msra.mxu0 0.0
  %5001 = vmatprep.subr.mxu0 0.0
  %5002 = vmatpush2.msra.mxu0 0.0
  %5003 = vmatprep.subr.mxu0 0.0
  %5004 = vmatpush2.msra.mxu0 0.0
  %5005 = vmatprep.subr.mxu0 0.0
  %5006 = vmatpush2.msra.mxu0 0.0
  %5007 = vmatprep.subr.mxu0 0.0
  %5008 = vmatpush2.msra.mxu0 0.0
  %5009 = vmatprep.subr.mxu0 0.0
  %5010 = vmatpush2.msra.mxu0 0.0
  %5011 = vmatprep.subr.mxu0 0.0
  %5012 = vmatpush2.msra.mxu0 0.0
  %5013 = vmatprep.subr.mxu0 0.0
  %5014 = vmatpush2.msra.mxu0 0.0
  %5015 = vmatprep.subr.mxu0 0.0
  %5016 = vmatpush2.msra.mxu0 0.0
  %5017 = vmatprep.mubr.f32.mxu0 0.0
  %5018 = vmatmul.mubr.f32.gmra.mxu0 %v4949
  %v5019 = vpop.f32.mrf.mxu0
  %v5020 = vadd.f32 0.0, %v5019
  %v5021 = vpop.f32.mrf.mxu0
  %5022 = vdwg.mxu0
  %5023 = vrot.lane.b32.xlu0 %v499, 48
  %v5024 = vpop.permute.xlu0 %5023
  %v5026 = vsel %vm3059, %v4483, 0
  %v5028 = vsel %vm117, %v5024, 0
  %5030 = vmatprep.subr.mxu0 0.0
  %5031 = vmatpush1.msra.mxu0 0.0
  %5032 = vmatprep.subr.mxu0 0.0
  %5033 = vmatpush1.msra.mxu0 0.0
  %5034 = vmatprep.subr.mxu0 0.0
  %5035 = vmatpush1.msra.mxu0 0.0
  %5036 = vmatprep.subr.mxu0 0.0
  %5037 = vmatpush1.msra.mxu0 0.0
  %5038 = vmatprep.subr.mxu0 0.0
  %5039 = vmatpush1.msra.mxu0 0.0
  %5040 = vmatprep.subr.mxu0 0.0
  %5041 = vmatpush1.msra.mxu0 0.0
  %5042 = vmatprep.subr.mxu0 0.0
  %5043 = vmatpush1.msra.mxu0 0.0
  %5044 = vmatprep.subr.mxu0 0.0
  %5045 = vmatpush1.msra.mxu0 0.0
  %5046 = vmatprep.subr.mxu0 0.0
  %5047 = vmatpush1.msra.mxu0 0.0
  %5048 = vmatprep.subr.mxu0 0.0
  %5049 = vmatpush1.msra.mxu0 0.0
  %5050 = vmatprep.subr.mxu0 0.0
  %5051 = vmatpush1.msra.mxu0 0.0
  %5052 = vmatprep.subr.mxu0 0.0
  %5053 = vmatpush1.msra.mxu0 0.0
  %5054 = vmatprep.subr.mxu0 0.0
  %5055 = vmatpush1.msra.mxu0 0.0
  %5056 = vmatprep.subr.mxu0 0.0
  %5057 = vmatpush1.msra.mxu0 0.0
  %5058 = vmatprep.subr.mxu0 0.0
  %5059 = vmatpush1.msra.mxu0 0.0
  %5060 = vmatprep.subr.mxu0 0.0
  %5061 = vmatpush1.msra.mxu0 %v5028
  %5062 = vmatprep.subr.mxu0 0.0
  %5063 = vmatpush2.msra.mxu0 0.0
  %5064 = vmatprep.subr.mxu0 0.0
  %5065 = vmatpush2.msra.mxu0 0.0
  %5066 = vmatprep.subr.mxu0 0.0
  %5067 = vmatpush2.msra.mxu0 0.0
  %5068 = vmatprep.subr.mxu0 0.0
  %5069 = vmatpush2.msra.mxu0 0.0
  %5070 = vmatprep.subr.mxu0 0.0
  %5071 = vmatpush2.msra.mxu0 0.0
  %5072 = vmatprep.subr.mxu0 0.0
  %5073 = vmatpush2.msra.mxu0 0.0
  %5074 = vmatprep.subr.mxu0 0.0
  %5075 = vmatpush2.msra.mxu0 0.0
  %5076 = vmatprep.subr.mxu0 0.0
  %5077 = vmatpush2.msra.mxu0 0.0
  %5078 = vmatprep.subr.mxu0 0.0
  %5079 = vmatpush2.msra.mxu0 0.0
  %5080 = vmatprep.subr.mxu0 0.0
  %5081 = vmatpush2.msra.mxu0 0.0
  %5082 = vmatprep.subr.mxu0 0.0
  %5083 = vmatpush2.msra.mxu0 0.0
  %5084 = vmatprep.subr.mxu0 0.0
  %5085 = vmatpush2.msra.mxu0 0.0
  %5086 = vmatprep.subr.mxu0 0.0
  %5087 = vmatpush2.msra.mxu0 0.0
  %5088 = vmatprep.subr.mxu0 0.0
  %5089 = vmatpush2.msra.mxu0 0.0
  %5090 = vmatprep.subr.mxu0 0.0
  %5091 = vmatpush2.msra.mxu0 0.0
  %5092 = vmatprep.subr.mxu0 0.0
  %5093 = vmatpush2.msra.mxu0 0.0
  %5094 = vmatprep.mubr.f32.mxu0 0.0
  %5095 = vmatmul.mubr.f32.gmra.mxu0 %v5026
  %v5096 = vpop.f32.mrf.mxu0
  %v5097 = vadd.f32 0.0, %v5096
  %v5098 = vpop.f32.mrf.mxu0
  %5099 = vdwg.mxu0
  %5108 = vrot.lane.b32.xlu0 %v4558, 16
  %v5109 = vpop.permute.xlu0 %5108
  %5110 = vrot.lane.b32.xlu0 %v4635, 16
  %v5111 = vpop.permute.xlu0 %5110
  %5112 = vrot.lane.b32.xlu0 %v4712, 16
  %v5113 = vpop.permute.xlu0 %5112
  %5114 = vrot.lane.b32.xlu0 %v4789, 16
  %v5115 = vpop.permute.xlu0 %5114
  %5116 = vrot.lane.b32.xlu0 %v4866, 16
  %v5117 = vpop.permute.xlu0 %5116
  %5118 = vrot.lane.b32.xlu0 %v4943, 16
  %v5119 = vpop.permute.xlu0 %5118
  %5120 = vrot.lane.b32.xlu0 %v5020, 16
  %v5121 = vpop.permute.xlu0 %5120
  %5122 = vrot.lane.b32.xlu0 %v5097, 16
  %v5123 = vpop.permute.xlu0 %5122
  %vm5132 = vcmask 130048
  %v5133 = vsel %vm5132, %v3222, %v5109
  %v5134 = vsel %vm5132, %v3299, %v5111
  %v5135 = vsel %vm5132, %v3376, %v5113
  %v5136 = vsel %vm5132, %v3453, %v5115
  %v5137 = vsel %vm5132, %v3530, %v5117
  %v5138 = vsel %vm5132, %v3607, %v5119
  %v5139 = vsel %vm5132, %v3684, %v5121
  %v5140 = vsel %vm5132, %v3761, %v5123
  %v5141 = vld [vmem:[%s9] sm:$0xff]
  %v5142 = vld [vmem:[%s9 + $0x8] sm:$0xff]
  %v5143 = vld [vmem:[%s9 + $0x10] sm:$0xff]
  %v5144 = vld [vmem:[%s9 + $0x18] sm:$0xff]
  %v5145 = vld [vmem:[%s10] sm:$0x1]
  %v5147 = vlaneseq
  %v5148 = vshrl.u32 %v5147, 7
  %v5149 = vsub.s32 0, %v5148
  %v5150 = vrot.slane %v5145, %v5149
  %v5153 = vsel %vm228, %v5133, 0
  %v5156 = vsel %vm228, %v5134, 0
  %v5159 = vsel %vm228, %v5135, 0
  %v5162 = vsel %vm228, %v5136, 0
  %v5165 = vsel %vm228, %v5137, 0
  %v5168 = vsel %vm228, %v5138, 0
  %v5171 = vsel %vm228, %v5139, 0
  %v5174 = vsel %vm228, %v5140, 0
  %5176 = vmatprep.subr.mxu0 0.0
  %5177 = vmatpush1.msra.mxu0 0.0
  %5178 = vmatprep.subr.mxu0 0.0
  %5179 = vmatpush1.msra.mxu0 0.0
  %5180 = vmatprep.subr.mxu0 0.0
  %5181 = vmatpush1.msra.mxu0 0.0
  %5182 = vmatprep.subr.mxu0 0.0
  %5183 = vmatpush1.msra.mxu0 0.0
  %5184 = vmatprep.subr.mxu0 0.0
  %5185 = vmatpush1.msra.mxu0 0.0
  %5186 = vmatprep.subr.mxu0 0.0
  %5187 = vmatpush1.msra.mxu0 0.0
  %5188 = vmatprep.subr.mxu0 0.0
  %5189 = vmatpush1.msra.mxu0 0.0
  %5190 = vmatprep.subr.mxu0 0.0
  %5191 = vmatpush1.msra.mxu0 0.0
  %5192 = vmatprep.subr.mxu0 0.0
  %5193 = vmatpush1.msra.mxu0 0.0
  %5194 = vmatprep.subr.mxu0 0.0
  %5195 = vmatpush1.msra.mxu0 0.0
  %5196 = vmatprep.subr.mxu0 0.0
  %5197 = vmatpush1.msra.mxu0 0.0
  %5198 = vmatprep.subr.mxu0 0.0
  %5199 = vmatpush1.msra.mxu0 0.0
  %5200 = vmatprep.subr.mxu0 0.0
  %5201 = vmatpush1.msra.mxu0 %v5144
  %5202 = vmatprep.subr.mxu0 0.0
  %5203 = vmatpush1.msra.mxu0 %v5143
  %5204 = vmatprep.subr.mxu0 0.0
  %5205 = vmatpush1.msra.mxu0 %v5142
  %5206 = vmatprep.subr.mxu0 0.0
  %5207 = vmatpush1.msra.mxu0 %v5141
  %5208 = vmatprep.subr.mxu0 0.0
  %5209 = vmatpush2.msra.mxu0 0.0
  %5210 = vmatprep.subr.mxu0 0.0
  %5211 = vmatpush2.msra.mxu0 0.0
  %5212 = vmatprep.subr.mxu0 0.0
  %5213 = vmatpush2.msra.mxu0 0.0
  %5214 = vmatprep.subr.mxu0 0.0
  %5215 = vmatpush2.msra.mxu0 0.0
  %5216 = vmatprep.subr.mxu0 0.0
  %5217 = vmatpush2.msra.mxu0 0.0
  %5218 = vmatprep.subr.mxu0 0.0
  %5219 = vmatpush2.msra.mxu0 0.0
  %5220 = vmatprep.subr.mxu0 0.0
  %5221 = vmatpush2.msra.mxu0 0.0
  %5222 = vmatprep.subr.mxu0 0.0
  %5223 = vmatpush2.msra.mxu0 0.0
  %5224 = vmatprep.subr.mxu0 0.0
  %5225 = vmatpush2.msra.mxu0 0.0
  %5226 = vmatprep.subr.mxu0 0.0
  %5227 = vmatpush2.msra.mxu0 0.0
  %5228 = vmatprep.subr.mxu0 0.0
  %5229 = vmatpush2.msra.mxu0 0.0
  %5230 = vmatprep.subr.mxu0 0.0
  %5231 = vmatpush2.msra.mxu0 0.0
  %5232 = vmatprep.subr.mxu0 0.0
  %5233 = vmatpush2.msra.mxu0 0.0
  %5234 = vmatprep.subr.mxu0 0.0
  %5235 = vmatpush2.msra.mxu0 0.0
  %5236 = vmatprep.subr.mxu0 0.0
  %5237 = vmatpush2.msra.mxu0 0.0
  %5238 = vmatprep.subr.mxu0 0.0
  %5239 = vmatpush2.msra.mxu0 0.0
  %5240 = vmatprep.mubr.f32.mxu0 0.0
  %5241 = vmatmul.mubr.f32.gmra.mxu0 %v5153
  %v5242 = vpop.f32.mrf.mxu0
  %v5243 = vadd.f32 %v5150, %v5242
  %v5244 = vpop.f32.mrf.mxu0
  %5245 = vmatprep.mubr.f32.mxu0 0.0
  %5246 = vmatmul.mubr.f32.gmra.mxu0 %v5156
  %v5247 = vpop.f32.mrf.mxu0
  %v5248 = vadd.f32 %v5150, %v5247
  %v5249 = vpop.f32.mrf.mxu0
  %5250 = vmatprep.mubr.f32.mxu0 0.0
  %5251 = vmatmul.mubr.f32.gmra.mxu0 %v5159
  %v5252 = vpop.f32.mrf.mxu0
  %v5253 = vadd.f32 %v5150, %v5252
  %v5254 = vpop.f32.mrf.mxu0
  %5255 = vmatprep.mubr.f32.mxu0 0.0
  %5256 = vmatmul.mubr.f32.gmra.mxu0 %v5162
  %v5257 = vpop.f32.mrf.mxu0
  %v5258 = vadd.f32 %v5150, %v5257
  %v5259 = vpop.f32.mrf.mxu0
  %5260 = vmatprep.mubr.f32.mxu0 0.0
  %5261 = vmatmul.mubr.f32.gmra.mxu0 %v5165
  %v5262 = vpop.f32.mrf.mxu0
  %v5263 = vadd.f32 %v5150, %v5262
  %v5264 = vpop.f32.mrf.mxu0
  %5265 = vmatprep.mubr.f32.mxu0 0.0
  %5266 = vmatmul.mubr.f32.gmra.mxu0 %v5168
  %v5267 = vpop.f32.mrf.mxu0
  %v5268 = vadd.f32 %v5150, %v5267
  %v5269 = vpop.f32.mrf.mxu0
  %5270 = vmatprep.mubr.f32.mxu0 0.0
  %5271 = vmatmul.mubr.f32.gmra.mxu0 %v5171
  %v5272 = vpop.f32.mrf.mxu0
  %v5273 = vadd.f32 %v5150, %v5272
  %v5274 = vpop.f32.mrf.mxu0
  %5275 = vmatprep.mubr.f32.mxu0 0.0
  %5276 = vmatmul.mubr.f32.gmra.mxu0 %v5174
  %v5277 = vpop.f32.mrf.mxu0
  %v5278 = vadd.f32 %v5150, %v5277
  %v5279 = vpop.f32.mrf.mxu0
  %5280 = vdwg.mxu0
  %v5281 = vadd.f32 %v188, %v5243
  %v5282 = vadd.f32 %v193, %v5248
  %v5283 = vadd.f32 %v198, %v5253
  %v5284 = vadd.f32 %v203, %v5258
  %v5285 = vadd.f32 %v208, %v5263
  %v5286 = vadd.f32 %v213, %v5268
  %v5287 = vadd.f32 %v218, %v5273
  %v5288 = vadd.f32 %v223, %v5278
  %v5289 = vld [vmem:[%s11] sm:$0x1]
  %v5290 = vld [vmem:[%s12] sm:$0x1]
  %v5291 = vsel %vm228, %v5281, 0.0
  %5292 = vadd.xlane.f32.xlu0 %v5291
  %v5293 = vpop.xlane.xlu0 %5292
  %v5294 = vsel %vm228, %v5282, 0.0
  %5295 = vadd.xlane.f32.xlu0 %v5294
  %v5296 = vpop.xlane.xlu0 %5295
  %v5297 = vsel %vm228, %v5283, 0.0
  %5298 = vadd.xlane.f32.xlu0 %v5297
  %v5299 = vpop.xlane.xlu0 %5298
  %v5300 = vsel %vm228, %v5284, 0.0
  %5301 = vadd.xlane.f32.xlu0 %v5300
  %v5302 = vpop.xlane.xlu0 %5301
  %v5303 = vsel %vm228, %v5285, 0.0
  %5304 = vadd.xlane.f32.xlu0 %v5303
  %v5305 = vpop.xlane.xlu0 %5304
  %v5306 = vsel %vm228, %v5286, 0.0
  %5307 = vadd.xlane.f32.xlu0 %v5306
  %v5308 = vpop.xlane.xlu0 %5307
  %v5309 = vsel %vm228, %v5287, 0.0
  %5310 = vadd.xlane.f32.xlu0 %v5309
  %v5311 = vpop.xlane.xlu0 %5310
  %v5312 = vsel %vm228, %v5288, 0.0
  %5313 = vadd.xlane.f32.xlu0 %v5312
  %v5314 = vpop.xlane.xlu0 %5313
  %v5315 = vmul.f32 %v5293, %v253
  %v5316 = vmul.f32 %v5296, %v253
  %v5317 = vmul.f32 %v5299, %v253
  %v5318 = vmul.f32 %v5302, %v253
  %v5319 = vmul.f32 %v5305, %v253
  %v5320 = vmul.f32 %v5308, %v253
  %v5321 = vmul.f32 %v5311, %v253
  %v5322 = vmul.f32 %v5314, %v253
  %v5323 = vsub.f32 %v5281, %v5315
  %v5324 = vsub.f32 %v5282, %v5316
  %v5325 = vsub.f32 %v5283, %v5317
  %v5326 = vsub.f32 %v5284, %v5318
  %v5327 = vsub.f32 %v5285, %v5319
  %v5328 = vsub.f32 %v5286, %v5320
  %v5329 = vsub.f32 %v5287, %v5321
  %v5330 = vsub.f32 %v5288, %v5322
  %v5331 = vmul.f32 %v5323, %v5323
  %v5332 = vmul.f32 %v5324, %v5324
  %v5333 = vmul.f32 %v5325, %v5325
  %v5334 = vmul.f32 %v5326, %v5326
  %v5335 = vmul.f32 %v5327, %v5327
  %v5336 = vmul.f32 %v5328, %v5328
  %v5337 = vmul.f32 %v5329, %v5329
  %v5338 = vmul.f32 %v5330, %v5330
  %v5339 = vsel %vm228, %v5331, 0.0
  %5340 = vadd.xlane.f32.xlu0 %v5339
  %v5341 = vpop.xlane.xlu0 %5340
  %v5342 = vsel %vm228, %v5332, 0.0
  %5343 = vadd.xlane.f32.xlu0 %v5342
  %v5344 = vpop.xlane.xlu0 %5343
  %v5345 = vsel %vm228, %v5333, 0.0
  %5346 = vadd.xlane.f32.xlu0 %v5345
  %v5347 = vpop.xlane.xlu0 %5346
  %v5348 = vsel %vm228, %v5334, 0.0
  %5349 = vadd.xlane.f32.xlu0 %v5348
  %v5350 = vpop.xlane.xlu0 %5349
  %v5351 = vsel %vm228, %v5335, 0.0
  %5352 = vadd.xlane.f32.xlu0 %v5351
  %v5353 = vpop.xlane.xlu0 %5352
  %v5354 = vsel %vm228, %v5336, 0.0
  %5355 = vadd.xlane.f32.xlu0 %v5354
  %v5356 = vpop.xlane.xlu0 %5355
  %v5357 = vsel %vm228, %v5337, 0.0
  %5358 = vadd.xlane.f32.xlu0 %v5357
  %v5359 = vpop.xlane.xlu0 %5358
  %v5360 = vsel %vm228, %v5338, 0.0
  %5361 = vadd.xlane.f32.xlu0 %v5360
  %v5362 = vpop.xlane.xlu0 %5361
  %v5363 = vmul.f32 %v5341, %v253
  %v5364 = vmul.f32 %v5344, %v253
  %v5365 = vmul.f32 %v5347, %v253
  %v5366 = vmul.f32 %v5350, %v253
  %v5367 = vmul.f32 %v5353, %v253
  %v5368 = vmul.f32 %v5356, %v253
  %v5369 = vmul.f32 %v5359, %v253
  %v5370 = vmul.f32 %v5362, %v253
  %v5371 = vadd.f32 %v5363, 1e-05
  %v5372 = vadd.f32 %v5364, 1e-05
  %v5373 = vadd.f32 %v5365, 1e-05
  %v5374 = vadd.f32 %v5366, 1e-05
  %v5375 = vadd.f32 %v5367, 1e-05
  %v5376 = vadd.f32 %v5368, 1e-05
  %v5377 = vadd.f32 %v5369, 1e-05
  %v5378 = vadd.f32 %v5370, 1e-05
  %v5379 = vrsqrt.pop %v5371
  %v5380 = vrsqrt.pop %v5372
  %v5381 = vrsqrt.pop %v5373
  %v5382 = vrsqrt.pop %v5374
  %v5383 = vrsqrt.pop %v5375
  %v5384 = vrsqrt.pop %v5376
  %v5385 = vrsqrt.pop %v5377
  %v5386 = vrsqrt.pop %v5378
  %v5387 = vmul.f32 %v5323, %v5379
  %v5388 = vmul.f32 %v5324, %v5380
  %v5389 = vmul.f32 %v5325, %v5381
  %v5390 = vmul.f32 %v5326, %v5382
  %v5391 = vmul.f32 %v5327, %v5383
  %v5392 = vmul.f32 %v5328, %v5384
  %v5393 = vmul.f32 %v5329, %v5385
  %v5394 = vmul.f32 %v5330, %v5386
  %v5396 = vlaneseq
  %v5397 = vshrl.u32 %v5396, 7
  %v5398 = vsub.s32 0, %v5397
  %v5399 = vrot.slane %v5289, %v5398
  %v5401 = vmul.f32 %v5387, %v5399
  %v5402 = vmul.f32 %v5388, %v5399
  %v5403 = vmul.f32 %v5389, %v5399
  %v5404 = vmul.f32 %v5390, %v5399
  %v5405 = vmul.f32 %v5391, %v5399
  %v5406 = vmul.f32 %v5392, %v5399
  %v5407 = vmul.f32 %v5393, %v5399
  %v5408 = vmul.f32 %v5394, %v5399
  %v5410 = vlaneseq
  %v5411 = vshrl.u32 %v5410, 7
  %v5412 = vsub.s32 0, %v5411
  %v5413 = vrot.slane %v5290, %v5412
  %v5415 = vadd.f32 %v5401, %v5413
  %v5416 = vadd.f32 %v5402, %v5413
  %v5417 = vadd.f32 %v5403, %v5413
  %v5418 = vadd.f32 %v5404, %v5413
  %v5419 = vadd.f32 %v5405, %v5413
  %v5420 = vadd.f32 %v5406, %v5413
  %v5421 = vadd.f32 %v5407, %v5413
  %v5422 = vadd.f32 %v5408, %v5413
  %v5423 = vld [vmem:[%s13] sm:$0xff]
  %v5424 = vld [vmem:[%s13 + $0x8] sm:$0xff]
  %v5425 = vld [vmem:[%s13 + $0x10] sm:$0xff]
  %v5426 = vld [vmem:[%s13 + $0x18] sm:$0xff]
  %v5427 = vld [vmem:[%s14] sm:$0x1]
  %v5429 = vlaneseq
  %v5430 = vshrl.u32 %v5429, 7
  %v5431 = vsub.s32 0, %v5430
  %v5432 = vrot.slane %v5427, %v5431
  %v5435 = vsel %vm228, %v5415, 0
  %v5438 = vsel %vm228, %v5416, 0
  %v5441 = vsel %vm228, %v5417, 0
  %v5444 = vsel %vm228, %v5418, 0
  %v5447 = vsel %vm228, %v5419, 0
  %v5450 = vsel %vm228, %v5420, 0
  %v5453 = vsel %vm228, %v5421, 0
  %v5456 = vsel %vm228, %v5422, 0
  %5458 = vmatprep.subr.mxu0 0.0
  %5459 = vmatpush1.msra.mxu0 0.0
  %5460 = vmatprep.subr.mxu0 0.0
  %5461 = vmatpush1.msra.mxu0 0.0
  %5462 = vmatprep.subr.mxu0 0.0
  %5463 = vmatpush1.msra.mxu0 0.0
  %5464 = vmatprep.subr.mxu0 0.0
  %5465 = vmatpush1.msra.mxu0 0.0
  %5466 = vmatprep.subr.mxu0 0.0
  %5467 = vmatpush1.msra.mxu0 0.0
  %5468 = vmatprep.subr.mxu0 0.0
  %5469 = vmatpush1.msra.mxu0 0.0
  %5470 = vmatprep.subr.mxu0 0.0
  %5471 = vmatpush1.msra.mxu0 0.0
  %5472 = vmatprep.subr.mxu0 0.0
  %5473 = vmatpush1.msra.mxu0 0.0
  %5474 = vmatprep.subr.mxu0 0.0
  %5475 = vmatpush1.msra.mxu0 0.0
  %5476 = vmatprep.subr.mxu0 0.0
  %5477 = vmatpush1.msra.mxu0 0.0
  %5478 = vmatprep.subr.mxu0 0.0
  %5479 = vmatpush1.msra.mxu0 0.0
  %5480 = vmatprep.subr.mxu0 0.0
  %5481 = vmatpush1.msra.mxu0 0.0
  %5482 = vmatprep.subr.mxu0 0.0
  %5483 = vmatpush1.msra.mxu0 %v5426
  %5484 = vmatprep.subr.mxu0 0.0
  %5485 = vmatpush1.msra.mxu0 %v5425
  %5486 = vmatprep.subr.mxu0 0.0
  %5487 = vmatpush1.msra.mxu0 %v5424
  %5488 = vmatprep.subr.mxu0 0.0
  %5489 = vmatpush1.msra.mxu0 %v5423
  %5490 = vmatprep.subr.mxu0 0.0
  %5491 = vmatpush2.msra.mxu0 0.0
  %5492 = vmatprep.subr.mxu0 0.0
  %5493 = vmatpush2.msra.mxu0 0.0
  %5494 = vmatprep.subr.mxu0 0.0
  %5495 = vmatpush2.msra.mxu0 0.0
  %5496 = vmatprep.subr.mxu0 0.0
  %5497 = vmatpush2.msra.mxu0 0.0
  %5498 = vmatprep.subr.mxu0 0.0
  %5499 = vmatpush2.msra.mxu0 0.0
  %5500 = vmatprep.subr.mxu0 0.0
  %5501 = vmatpush2.msra.mxu0 0.0
  %5502 = vmatprep.subr.mxu0 0.0
  %5503 = vmatpush2.msra.mxu0 0.0
  %5504 = vmatprep.subr.mxu0 0.0
  %5505 = vmatpush2.msra.mxu0 0.0
  %5506 = vmatprep.subr.mxu0 0.0
  %5507 = vmatpush2.msra.mxu0 0.0
  %5508 = vmatprep.subr.mxu0 0.0
  %5509 = vmatpush2.msra.mxu0 0.0
  %5510 = vmatprep.subr.mxu0 0.0
  %5511 = vmatpush2.msra.mxu0 0.0
  %5512 = vmatprep.subr.mxu0 0.0
  %5513 = vmatpush2.msra.mxu0 0.0
  %5514 = vmatprep.subr.mxu0 0.0
  %5515 = vmatpush2.msra.mxu0 0.0
  %5516 = vmatprep.subr.mxu0 0.0
  %5517 = vmatpush2.msra.mxu0 0.0
  %5518 = vmatprep.subr.mxu0 0.0
  %5519 = vmatpush2.msra.mxu0 0.0
  %5520 = vmatprep.subr.mxu0 0.0
  %5521 = vmatpush2.msra.mxu0 0.0
  %5522 = vmatprep.mubr.f32.mxu0 0.0
  %5523 = vmatmul.mubr.f32.gmra.mxu0 %v5435
  %v5524 = vpop.f32.mrf.mxu0
  %v5525 = vadd.f32 %v5432, %v5524
  %v5526 = vpop.f32.mrf.mxu0
  %5527 = vmatprep.mubr.f32.mxu0 0.0
  %5528 = vmatmul.mubr.f32.gmra.mxu0 %v5438
  %v5529 = vpop.f32.mrf.mxu0
  %v5530 = vadd.f32 %v5432, %v5529
  %v5531 = vpop.f32.mrf.mxu0
  %5532 = vmatprep.mubr.f32.mxu0 0.0
  %5533 = vmatmul.mubr.f32.gmra.mxu0 %v5441
  %v5534 = vpop.f32.mrf.mxu0
  %v5535 = vadd.f32 %v5432, %v5534
  %v5536 = vpop.f32.mrf.mxu0
  %5537 = vmatprep.mubr.f32.mxu0 0.0
  %5538 = vmatmul.mubr.f32.gmra.mxu0 %v5444
  %v5539 = vpop.f32.mrf.mxu0
  %v5540 = vadd.f32 %v5432, %v5539
  %v5541 = vpop.f32.mrf.mxu0
  %5542 = vmatprep.mubr.f32.mxu0 0.0
  %5543 = vmatmul.mubr.f32.gmra.mxu0 %v5447
  %v5544 = vpop.f32.mrf.mxu0
  %v5545 = vadd.f32 %v5432, %v5544
  %v5546 = vpop.f32.mrf.mxu0
  %5547 = vmatprep.mubr.f32.mxu0 0.0
  %5548 = vmatmul.mubr.f32.gmra.mxu0 %v5450
  %v5549 = vpop.f32.mrf.mxu0
  %v5550 = vadd.f32 %v5432, %v5549
  %v5551 = vpop.f32.mrf.mxu0
  %5552 = vmatprep.mubr.f32.mxu0 0.0
  %5553 = vmatmul.mubr.f32.gmra.mxu0 %v5453
  %v5554 = vpop.f32.mrf.mxu0
  %v5555 = vadd.f32 %v5432, %v5554
  %v5556 = vpop.f32.mrf.mxu0
  %5557 = vmatprep.mubr.f32.mxu0 0.0
  %5558 = vmatmul.mubr.f32.gmra.mxu0 %v5456
  %v5559 = vpop.f32.mrf.mxu0
  %v5560 = vadd.f32 %v5432, %v5559
  %v5561 = vpop.f32.mrf.mxu0
  %5562 = vdwg.mxu0
  %v5563 = vmax.f32 %v5525, 0.0
  %v5564 = vmax.f32 %v5530, 0.0
  %v5565 = vmax.f32 %v5535, 0.0
  %v5566 = vmax.f32 %v5540, 0.0
  %v5567 = vmax.f32 %v5545, 0.0
  %v5568 = vmax.f32 %v5550, 0.0
  %v5569 = vmax.f32 %v5555, 0.0
  %v5570 = vmax.f32 %v5560, 0.0
  %v5571 = vld [vmem:[%s15] sm:$0xff]
  %v5572 = vld [vmem:[%s15 + $0x8] sm:$0xff]
  %v5573 = vld [vmem:[%s15 + $0x10] sm:$0xff]
  %v5574 = vld [vmem:[%s15 + $0x18] sm:$0xff]
  %v5575 = vld [vmem:[%s15 + $0x20] sm:$0xff]
  %v5576 = vld [vmem:[%s15 + $0x28] sm:$0xff]
  %v5577 = vld [vmem:[%s15 + $0x30] sm:$0xff]
  %v5578 = vld [vmem:[%s15 + $0x38] sm:$0xff]
  %v5579 = vld [vmem:[%s16] sm:$0x1]
  %v5581 = vlaneseq
  %v5582 = vshrl.u32 %v5581, 7
  %v5583 = vsub.s32 0, %v5582
  %v5584 = vrot.slane %v5579, %v5583
  %vm5586 = vcmask 523264
  %v5588 = vsel %vm5586, %v5563, 0
  %v5591 = vsel %vm5586, %v5564, 0
  %v5594 = vsel %vm5586, %v5565, 0
  %v5597 = vsel %vm5586, %v5566, 0
  %v5600 = vsel %vm5586, %v5567, 0
  %v5603 = vsel %vm5586, %v5568, 0
  %v5606 = vsel %vm5586, %v5569, 0
  %v5609 = vsel %vm5586, %v5570, 0
  %5611 = vmatprep.subr.mxu0 0.0
  %5612 = vmatpush1.msra.mxu0 0.0
  %5613 = vmatprep.subr.mxu0 0.0
  %5614 = vmatpush1.msra.mxu0 0.0
  %5615 = vmatprep.subr.mxu0 0.0
  %5616 = vmatpush1.msra.mxu0 0.0
  %5617 = vmatprep.subr.mxu0 0.0
  %5618 = vmatpush1.msra.mxu0 0.0
  %5619 = vmatprep.subr.mxu0 0.0
  %5620 = vmatpush1.msra.mxu0 0.0
  %5621 = vmatprep.subr.mxu0 0.0
  %5622 = vmatpush1.msra.mxu0 0.0
  %5623 = vmatprep.subr.mxu0 0.0
  %5624 = vmatpush1.msra.mxu0 0.0
  %5625 = vmatprep.subr.mxu0 0.0
  %5626 = vmatpush1.msra.mxu0 0.0
  %5627 = vmatprep.subr.mxu0 0.0
  %5628 = vmatpush1.msra.mxu0 %v5578
  %5629 = vmatprep.subr.mxu0 0.0
  %5630 = vmatpush1.msra.mxu0 %v5577
  %5631 = vmatprep.subr.mxu0 0.0
  %5632 = vmatpush1.msra.mxu0 %v5576
  %5633 = vmatprep.subr.mxu0 0.0
  %5634 = vmatpush1.msra.mxu0 %v5575
  %5635 = vmatprep.subr.mxu0 0.0
  %5636 = vmatpush1.msra.mxu0 %v5574
  %5637 = vmatprep.subr.mxu0 0.0
  %5638 = vmatpush1.msra.mxu0 %v5573
  %5639 = vmatprep.subr.mxu0 0.0
  %5640 = vmatpush1.msra.mxu0 %v5572
  %5641 = vmatprep.subr.mxu0 0.0
  %5642 = vmatpush1.msra.mxu0 %v5571
  %5643 = vmatprep.subr.mxu0 0.0
  %5644 = vmatpush2.msra.mxu0 0.0
  %5645 = vmatprep.subr.mxu0 0.0
  %5646 = vmatpush2.msra.mxu0 0.0
  %5647 = vmatprep.subr.mxu0 0.0
  %5648 = vmatpush2.msra.mxu0 0.0
  %5649 = vmatprep.subr.mxu0 0.0
  %5650 = vmatpush2.msra.mxu0 0.0
  %5651 = vmatprep.subr.mxu0 0.0
  %5652 = vmatpush2.msra.mxu0 0.0
  %5653 = vmatprep.subr.mxu0 0.0
  %5654 = vmatpush2.msra.mxu0 0.0
  %5655 = vmatprep.subr.mxu0 0.0
  %5656 = vmatpush2.msra.mxu0 0.0
  %5657 = vmatprep.subr.mxu0 0.0
  %5658 = vmatpush2.msra.mxu0 0.0
  %5659 = vmatprep.subr.mxu0 0.0
  %5660 = vmatpush2.msra.mxu0 0.0
  %5661 = vmatprep.subr.mxu0 0.0
  %5662 = vmatpush2.msra.mxu0 0.0
  %5663 = vmatprep.subr.mxu0 0.0
  %5664 = vmatpush2.msra.mxu0 0.0
  %5665 = vmatprep.subr.mxu0 0.0
  %5666 = vmatpush2.msra.mxu0 0.0
  %5667 = vmatprep.subr.mxu0 0.0
  %5668 = vmatpush2.msra.mxu0 0.0
  %5669 = vmatprep.subr.mxu0 0.0
  %5670 = vmatpush2.msra.mxu0 0.0
  %5671 = vmatprep.subr.mxu0 0.0
  %5672 = vmatpush2.msra.mxu0 0.0
  %5673 = vmatprep.subr.mxu0 0.0
  %5674 = vmatpush2.msra.mxu0 0.0
  %5675 = vmatprep.mubr.f32.mxu0 0.0
  %5676 = vmatmul.mubr.f32.gmra.mxu0 %v5588
  %v5677 = vpop.f32.mrf.mxu0
  %v5678 = vadd.f32 %v5584, %v5677
  %v5679 = vpop.f32.mrf.mxu0
  %5680 = vmatprep.mubr.f32.mxu0 0.0
  %5681 = vmatmul.mubr.f32.gmra.mxu0 %v5591
  %v5682 = vpop.f32.mrf.mxu0
  %v5683 = vadd.f32 %v5584, %v5682
  %v5684 = vpop.f32.mrf.mxu0
  %5685 = vmatprep.mubr.f32.mxu0 0.0
  %5686 = vmatmul.mubr.f32.gmra.mxu0 %v5594
  %v5687 = vpop.f32.mrf.mxu0
  %v5688 = vadd.f32 %v5584, %v5687
  %v5689 = vpop.f32.mrf.mxu0
  %5690 = vmatprep.mubr.f32.mxu0 0.0
  %5691 = vmatmul.mubr.f32.gmra.mxu0 %v5597
  %v5692 = vpop.f32.mrf.mxu0
  %v5693 = vadd.f32 %v5584, %v5692
  %v5694 = vpop.f32.mrf.mxu0
  %5695 = vmatprep.mubr.f32.mxu0 0.0
  %5696 = vmatmul.mubr.f32.gmra.mxu0 %v5600
  %v5697 = vpop.f32.mrf.mxu0
  %v5698 = vadd.f32 %v5584, %v5697
  %v5699 = vpop.f32.mrf.mxu0
  %5700 = vmatprep.mubr.f32.mxu0 0.0
  %5701 = vmatmul.mubr.f32.gmra.mxu0 %v5603
  %v5702 = vpop.f32.mrf.mxu0
  %v5703 = vadd.f32 %v5584, %v5702
  %v5704 = vpop.f32.mrf.mxu0
  %5705 = vmatprep.mubr.f32.mxu0 0.0
  %5706 = vmatmul.mubr.f32.gmra.mxu0 %v5606
  %v5707 = vpop.f32.mrf.mxu0
  %v5708 = vadd.f32 %v5584, %v5707
  %v5709 = vpop.f32.mrf.mxu0
  %5710 = vmatprep.mubr.f32.mxu0 0.0
  %5711 = vmatmul.mubr.f32.gmra.mxu0 %v5609
  %v5712 = vpop.f32.mrf.mxu0
  %v5713 = vadd.f32 %v5584, %v5712
  %v5714 = vpop.f32.mrf.mxu0
  %5715 = vdwg.mxu0
  %v5716 = vadd.f32 %v5281, %v5678
  %v5717 = vadd.f32 %v5282, %v5683
  %v5718 = vadd.f32 %v5283, %v5688
  %v5719 = vadd.f32 %v5284, %v5693
  %v5720 = vadd.f32 %v5285, %v5698
  %v5721 = vadd.f32 %v5286, %v5703
  %v5722 = vadd.f32 %v5287, %v5708
  %v5723 = vadd.f32 %v5288, %v5713
  %v5724 = vsel %vm228, %v5716, 0.0
  %v5725 = vrot.slane %v5724, 4
  %v5726 = vadd.f32 %v5724, %v5725
  %v5727 = vrot.slane %v5726, 2
  %v5728 = vadd.f32 %v5726, %v5727
  %v5729 = vrot.slane %v5728, 1
  %v5730 = vadd.f32 %v5728, %v5729
  %v5731 = vsel %vm228, %v5717, 0.0
  %v5732 = vrot.slane %v5731, 4
  %v5733 = vadd.f32 %v5731, %v5732
  %v5734 = vrot.slane %v5733, 2
  %v5735 = vadd.f32 %v5733, %v5734
  %v5736 = vrot.slane %v5735, 1
  %v5737 = vadd.f32 %v5735, %v5736
  %v5738 = vsel %vm228, %v5718, 0.0
  %v5739 = vrot.slane %v5738, 4
  %v5740 = vadd.f32 %v5738, %v5739
  %v5741 = vrot.slane %v5740, 2
  %v5742 = vadd.f32 %v5740, %v5741
  %v5743 = vrot.slane %v5742, 1
  %v5744 = vadd.f32 %v5742, %v5743
  %v5745 = vsel %vm228, %v5719, 0.0
  %v5746 = vrot.slane %v5745, 4
  %v5747 = vadd.f32 %v5745, %v5746
  %v5748 = vrot.slane %v5747, 2
  %v5749 = vadd.f32 %v5747, %v5748
  %v5750 = vrot.slane %v5749, 1
  %v5751 = vadd.f32 %v5749, %v5750
  %v5752 = vsel %vm228, %v5720, 0.0
  %v5753 = vrot.slane %v5752, 4
  %v5754 = vadd.f32 %v5752, %v5753
  %v5755 = vrot.slane %v5754, 2
  %v5756 = vadd.f32 %v5754, %v5755
  %v5757 = vrot.slane %v5756, 1
  %v5758 = vadd.f32 %v5756, %v5757
  %v5759 = vsel %vm228, %v5721, 0.0
  %v5760 = vrot.slane %v5759, 4
  %v5761 = vadd.f32 %v5759, %v5760
  %v5762 = vrot.slane %v5761, 2
  %v5763 = vadd.f32 %v5761, %v5762
  %v5764 = vrot.slane %v5763, 1
  %v5765 = vadd.f32 %v5763, %v5764
  %v5766 = vsel %vm228, %v5722, 0.0
  %v5767 = vrot.slane %v5766, 4
  %v5768 = vadd.f32 %v5766, %v5767
  %v5769 = vrot.slane %v5768, 2
  %v5770 = vadd.f32 %v5768, %v5769
  %v5771 = vrot.slane %v5770, 1
  %v5772 = vadd.f32 %v5770, %v5771
  %v5773 = vsel %vm228, %v5723, 0.0
  %v5774 = vrot.slane %v5773, 4
  %v5775 = vadd.f32 %v5773, %v5774
  %v5776 = vrot.slane %v5775, 2
  %v5777 = vadd.f32 %v5775, %v5776
  %v5778 = vrot.slane %v5777, 1
  %v5779 = vadd.f32 %v5777, %v5778
  %v5780 = vrcp.pop 8.0
  %v5781 = vmul.f32 %v5730, %v5780
  %v5782 = vmul.f32 %v5737, %v5780
  %v5783 = vmul.f32 %v5744, %v5780
  %v5784 = vmul.f32 %v5751, %v5780
  %v5785 = vmul.f32 %v5758, %v5780
  %v5786 = vmul.f32 %v5765, %v5780
  %v5787 = vmul.f32 %v5772, %v5780
  %v5788 = vmul.f32 %v5779, %v5780
  %v5789 = vld [vmem:[%s17] sm:$0xff]
  %v5790 = vld [vmem:[%s17 + $0x8] sm:$0xff]
  %v5791 = vld [vmem:[%s17 + $0x10] sm:$0xff]
  %v5792 = vld [vmem:[%s17 + $0x18] sm:$0xff]
  %v5793 = vld [vmem:[%s18] sm:$0x1]
  %v5795 = vlaneseq
  %v5796 = vshrl.u32 %v5795, 7
  %v5797 = vsub.s32 0, %v5796
  %v5798 = vrot.slane %v5793, %v5797
  %vm5808 = vcmask 1041409
  %v5809 = vsel %vm5808, %v5782, %v5781
  %vm5810 = vcmask 1042434
  %v5811 = vsel %vm5810, %v5783, %v5809
  %vm5812 = vcmask 1043459
  %v5813 = vsel %vm5812, %v5784, %v5811
  %vm5814 = vcmask 1044484
  %v5815 = vsel %vm5814, %v5785, %v5813
  %vm5816 = vcmask 1045509
  %v5817 = vsel %vm5816, %v5786, %v5815
  %vm5818 = vcmask 1046534
  %v5819 = vsel %vm5818, %v5787, %v5817
  %vm5820 = vcmask 1047559
  %v5821 = vsel %vm5820, %v5788, %v5819
  %v5822 = vsel %vm228, %v5821, 0
  %5824 = vmatprep.subr.mxu0 0.0
  %5825 = vmatpush1.msra.mxu0 0.0
  %5826 = vmatprep.subr.mxu0 0.0
  %5827 = vmatpush1.msra.mxu0 0.0
  %5828 = vmatprep.subr.mxu0 0.0
  %5829 = vmatpush1.msra.mxu0 0.0
  %5830 = vmatprep.subr.mxu0 0.0
  %5831 = vmatpush1.msra.mxu0 0.0
  %5832 = vmatprep.subr.mxu0 0.0
  %5833 = vmatpush1.msra.mxu0 0.0
  %5834 = vmatprep.subr.mxu0 0.0
  %5835 = vmatpush1.msra.mxu0 0.0
  %5836 = vmatprep.subr.mxu0 0.0
  %5837 = vmatpush1.msra.mxu0 0.0
  %5838 = vmatprep.subr.mxu0 0.0
  %5839 = vmatpush1.msra.mxu0 0.0
  %5840 = vmatprep.subr.mxu0 0.0
  %5841 = vmatpush1.msra.mxu0 0.0
  %5842 = vmatprep.subr.mxu0 0.0
  %5843 = vmatpush1.msra.mxu0 0.0
  %5844 = vmatprep.subr.mxu0 0.0
  %5845 = vmatpush1.msra.mxu0 0.0
  %5846 = vmatprep.subr.mxu0 0.0
  %5847 = vmatpush1.msra.mxu0 0.0
  %5848 = vmatprep.subr.mxu0 0.0
  %5849 = vmatpush1.msra.mxu0 %v5792
  %5850 = vmatprep.subr.mxu0 0.0
  %5851 = vmatpush1.msra.mxu0 %v5791
  %5852 = vmatprep.subr.mxu0 0.0
  %5853 = vmatpush1.msra.mxu0 %v5790
  %5854 = vmatprep.subr.mxu0 0.0
  %5855 = vmatpush1.msra.mxu0 %v5789
  %5856 = vmatprep.subr.mxu0 0.0
  %5857 = vmatpush2.msra.mxu0 0.0
  %5858 = vmatprep.subr.mxu0 0.0
  %5859 = vmatpush2.msra.mxu0 0.0
  %5860 = vmatprep.subr.mxu0 0.0
  %5861 = vmatpush2.msra.mxu0 0.0
  %5862 = vmatprep.subr.mxu0 0.0
  %5863 = vmatpush2.msra.mxu0 0.0
  %5864 = vmatprep.subr.mxu0 0.0
  %5865 = vmatpush2.msra.mxu0 0.0
  %5866 = vmatprep.subr.mxu0 0.0
  %5867 = vmatpush2.msra.mxu0 0.0
  %5868 = vmatprep.subr.mxu0 0.0
  %5869 = vmatpush2.msra.mxu0 0.0
  %5870 = vmatprep.subr.mxu0 0.0
  %5871 = vmatpush2.msra.mxu0 0.0
  %5872 = vmatprep.subr.mxu0 0.0
  %5873 = vmatpush2.msra.mxu0 0.0
  %5874 = vmatprep.subr.mxu0 0.0
  %5875 = vmatpush2.msra.mxu0 0.0
  %5876 = vmatprep.subr.mxu0 0.0
  %5877 = vmatpush2.msra.mxu0 0.0
  %5878 = vmatprep.subr.mxu0 0.0
  %5879 = vmatpush2.msra.mxu0 0.0
  %5880 = vmatprep.subr.mxu0 0.0
  %5881 = vmatpush2.msra.mxu0 0.0
  %5882 = vmatprep.subr.mxu0 0.0
  %5883 = vmatpush2.msra.mxu0 0.0
  %5884 = vmatprep.subr.mxu0 0.0
  %5885 = vmatpush2.msra.mxu0 0.0
  %5886 = vmatprep.subr.mxu0 0.0
  %5887 = vmatpush2.msra.mxu0 0.0
  %5888 = vmatprep.mubr.f32.mxu0 0.0
  %5889 = vmatmul.mubr.f32.gmra.mxu0 %v5822
  %v5890 = vpop.f32.mrf.mxu0
  %v5891 = vadd.f32 %v5798, %v5890
  %v5892 = vpop.f32.mrf.mxu0
  %5893 = vdwg.mxu0
  %v5894 = vmax.f32 %v5891, 0.0
  %v5895 = vld [vmem:[%s19] sm:$0xff]
  %v5896 = vld [vmem:[%s19 + $0x8] sm:$0xff]
  %v5897 = vld [vmem:[%s19 + $0x10] sm:$0xff]
  %v5898 = vld [vmem:[%s19 + $0x18] sm:$0xff]
  %v5899 = vld [vmem:[%s19 + $0x20] sm:$0xff]
  %v5900 = vld [vmem:[%s19 + $0x28] sm:$0xff]
  %v5901 = vld [vmem:[%s19 + $0x30] sm:$0xff]
  %v5902 = vld [vmem:[%s19 + $0x38] sm:$0xff]
  %v5903 = vld [vmem:[%s20] sm:$0x1]
  %v5905 = vlaneseq
  %v5906 = vshrl.u32 %v5905, 7
  %v5907 = vsub.s32 0, %v5906
  %v5908 = vrot.slane %v5903, %v5907
  %v5911 = vsel %vm5586, %v5894, 0
  %5913 = vmatprep.subr.mxu0 0.0
  %5914 = vmatpush1.msra.mxu0 0.0
  %5915 = vmatprep.subr.mxu0 0.0
  %5916 = vmatpush1.msra.mxu0 0.0
  %5917 = vmatprep.subr.mxu0 0.0
  %5918 = vmatpush1.msra.mxu0 0.0
  %5919 = vmatprep.subr.mxu0 0.0
  %5920 = vmatpush1.msra.mxu0 0.0
  %5921 = vmatprep.subr.mxu0 0.0
  %5922 = vmatpush1.msra.mxu0 0.0
  %5923 = vmatprep.subr.mxu0 0.0
  %5924 = vmatpush1.msra.mxu0 0.0
  %5925 = vmatprep.subr.mxu0 0.0
  %5926 = vmatpush1.msra.mxu0 0.0
  %5927 = vmatprep.subr.mxu0 0.0
  %5928 = vmatpush1.msra.mxu0 0.0
  %5929 = vmatprep.subr.mxu0 0.0
  %5930 = vmatpush1.msra.mxu0 %v5902
  %5931 = vmatprep.subr.mxu0 0.0
  %5932 = vmatpush1.msra.mxu0 %v5901
  %5933 = vmatprep.subr.mxu0 0.0
  %5934 = vmatpush1.msra.mxu0 %v5900
  %5935 = vmatprep.subr.mxu0 0.0
  %5936 = vmatpush1.msra.mxu0 %v5899
  %5937 = vmatprep.subr.mxu0 0.0
  %5938 = vmatpush1.msra.mxu0 %v5898
  %5939 = vmatprep.subr.mxu0 0.0
  %5940 = vmatpush1.msra.mxu0 %v5897
  %5941 = vmatprep.subr.mxu0 0.0
  %5942 = vmatpush1.msra.mxu0 %v5896
  %5943 = vmatprep.subr.mxu0 0.0
  %5944 = vmatpush1.msra.mxu0 %v5895
  %5945 = vmatprep.subr.mxu0 0.0
  %5946 = vmatpush2.msra.mxu0 0.0
  %5947 = vmatprep.subr.mxu0 0.0
  %5948 = vmatpush2.msra.mxu0 0.0
  %5949 = vmatprep.subr.mxu0 0.0
  %5950 = vmatpush2.msra.mxu0 0.0
  %5951 = vmatprep.subr.mxu0 0.0
  %5952 = vmatpush2.msra.mxu0 0.0
  %5953 = vmatprep.subr.mxu0 0.0
  %5954 = vmatpush2.msra.mxu0 0.0
  %5955 = vmatprep.subr.mxu0 0.0
  %5956 = vmatpush2.msra.mxu0 0.0
  %5957 = vmatprep.subr.mxu0 0.0
  %5958 = vmatpush2.msra.mxu0 0.0
  %5959 = vmatprep.subr.mxu0 0.0
  %5960 = vmatpush2.msra.mxu0 0.0
  %5961 = vmatprep.subr.mxu0 0.0
  %5962 = vmatpush2.msra.mxu0 0.0
  %5963 = vmatprep.subr.mxu0 0.0
  %5964 = vmatpush2.msra.mxu0 0.0
  %5965 = vmatprep.subr.mxu0 0.0
  %5966 = vmatpush2.msra.mxu0 0.0
  %5967 = vmatprep.subr.mxu0 0.0
  %5968 = vmatpush2.msra.mxu0 0.0
  %5969 = vmatprep.subr.mxu0 0.0
  %5970 = vmatpush2.msra.mxu0 0.0
  %5971 = vmatprep.subr.mxu0 0.0
  %5972 = vmatpush2.msra.mxu0 0.0
  %5973 = vmatprep.subr.mxu0 0.0
  %5974 = vmatpush2.msra.mxu0 0.0
  %5975 = vmatprep.subr.mxu0 0.0
  %5976 = vmatpush2.msra.mxu0 0.0
  %5977 = vmatprep.mubr.f32.mxu0 0.0
  %5978 = vmatmul.mubr.f32.gmra.mxu0 %v5911
  %v5979 = vpop.f32.mrf.mxu0
  %v5980 = vadd.f32 %v5908, %v5979
  %v5981 = vpop.f32.mrf.mxu0
  %5982 = vdwg.mxu0
  %v5983 = vmax.f32 %v5980, 0.0
  %v5984 = vld [vmem:[%s21] sm:$0xff]
  %v5985 = vld [vmem:[%s21 + $0x8] sm:$0xff]
  %v5986 = vld [vmem:[%s21 + $0x10] sm:$0xff]
  %v5987 = vld [vmem:[%s21 + $0x18] sm:$0xff]
  %v5988 = vld [vmem:[%s21 + $0x20] sm:$0xff]
  %v5989 = vld [vmem:[%s21 + $0x28] sm:$0xff]
  %v5990 = vld [vmem:[%s21 + $0x30] sm:$0xff]
  %v5991 = vld [vmem:[%s21 + $0x38] sm:$0xff]
  %v5992 = vld [vmem:[%s22] sm:$0x1]
  %v5994 = vlaneseq
  %v5995 = vshrl.u32 %v5994, 7
  %v5996 = vsub.s32 0, %v5995
  %v5997 = vrot.slane %v5992, %v5996
  %v6000 = vsel %vm5586, %v5983, 0
  %6002 = vmatprep.subr.mxu0 0.0
  %6003 = vmatpush1.msra.mxu0 0.0
  %6004 = vmatprep.subr.mxu0 0.0
  %6005 = vmatpush1.msra.mxu0 0.0
  %6006 = vmatprep.subr.mxu0 0.0
  %6007 = vmatpush1.msra.mxu0 0.0
  %6008 = vmatprep.subr.mxu0 0.0
  %6009 = vmatpush1.msra.mxu0 0.0
  %6010 = vmatprep.subr.mxu0 0.0
  %6011 = vmatpush1.msra.mxu0 0.0
  %6012 = vmatprep.subr.mxu0 0.0
  %6013 = vmatpush1.msra.mxu0 0.0
  %6014 = vmatprep.subr.mxu0 0.0
  %6015 = vmatpush1.msra.mxu0 0.0
  %6016 = vmatprep.subr.mxu0 0.0
  %6017 = vmatpush1.msra.mxu0 0.0
  %6018 = vmatprep.subr.mxu0 0.0
  %6019 = vmatpush1.msra.mxu0 %v5991
  %6020 = vmatprep.subr.mxu0 0.0
  %6021 = vmatpush1.msra.mxu0 %v5990
  %6022 = vmatprep.subr.mxu0 0.0
  %6023 = vmatpush1.msra.mxu0 %v5989
  %6024 = vmatprep.subr.mxu0 0.0
  %6025 = vmatpush1.msra.mxu0 %v5988
  %6026 = vmatprep.subr.mxu0 0.0
  %6027 = vmatpush1.msra.mxu0 %v5987
  %6028 = vmatprep.subr.mxu0 0.0
  %6029 = vmatpush1.msra.mxu0 %v5986
  %6030 = vmatprep.subr.mxu0 0.0
  %6031 = vmatpush1.msra.mxu0 %v5985
  %6032 = vmatprep.subr.mxu0 0.0
  %6033 = vmatpush1.msra.mxu0 %v5984
  %6034 = vmatprep.subr.mxu0 0.0
  %6035 = vmatpush2.msra.mxu0 0.0
  %6036 = vmatprep.subr.mxu0 0.0
  %6037 = vmatpush2.msra.mxu0 0.0
  %6038 = vmatprep.subr.mxu0 0.0
  %6039 = vmatpush2.msra.mxu0 0.0
  %6040 = vmatprep.subr.mxu0 0.0
  %6041 = vmatpush2.msra.mxu0 0.0
  %6042 = vmatprep.subr.mxu0 0.0
  %6043 = vmatpush2.msra.mxu0 0.0
  %6044 = vmatprep.subr.mxu0 0.0
  %6045 = vmatpush2.msra.mxu0 0.0
  %6046 = vmatprep.subr.mxu0 0.0
  %6047 = vmatpush2.msra.mxu0 0.0
  %6048 = vmatprep.subr.mxu0 0.0
  %6049 = vmatpush2.msra.mxu0 0.0
  %6050 = vmatprep.subr.mxu0 0.0
  %6051 = vmatpush2.msra.mxu0 0.0
  %6052 = vmatprep.subr.mxu0 0.0
  %6053 = vmatpush2.msra.mxu0 0.0
  %6054 = vmatprep.subr.mxu0 0.0
  %6055 = vmatpush2.msra.mxu0 0.0
  %6056 = vmatprep.subr.mxu0 0.0
  %6057 = vmatpush2.msra.mxu0 0.0
  %6058 = vmatprep.subr.mxu0 0.0
  %6059 = vmatpush2.msra.mxu0 0.0
  %6060 = vmatprep.subr.mxu0 0.0
  %6061 = vmatpush2.msra.mxu0 0.0
  %6062 = vmatprep.subr.mxu0 0.0
  %6063 = vmatpush2.msra.mxu0 0.0
  %6064 = vmatprep.subr.mxu0 0.0
  %6065 = vmatpush2.msra.mxu0 0.0
  %6066 = vmatprep.mubr.f32.mxu0 0.0
  %6067 = vmatmul.mubr.f32.gmra.mxu0 %v6000
  %v6068 = vpop.f32.mrf.mxu0
  %v6069 = vadd.f32 %v5997, %v6068
  %v6070 = vpop.f32.mrf.mxu0
  %6071 = vdwg.mxu0
  %v6072 = vlaneseq
  %v6073 = vand.u32 %v6072, 127
  %vm6074 = vcmp.ge.s32.totalorder %v6073, 6
  %vm6075 = vcmp.lt.s32.totalorder %v6073, 12
  %vm6076 = vmand %vm6074, %vm6075
  %v6077 = vmax.f32 %v6069, -20.0
  %v6078 = vmin.f32 %v6077, 2.0
  %v6079 = vmul.f32 %v6078, 1.442695
  %v6080 = vpow.pop %v6079
  %v6081 = vsel %vm6076, %v6080, %v6069
  %6082 = vst [vmem:[%s23] sm:$0xff] %v6081
  // Predicated region
  $region94: #{policy_forward.1} parent=0 // pred_check
    _
  $region95: #{policy_forward.1} parent=0 // pred_check_branch
    %6084 = sbr.rel (0) target = $region97
  $region96: #{policy_forward.1} parent=0 // pred_region
    _
  $region97: #{policy_forward.1} parent=0 // pred_fallthru
    _
  // Predicated region
  $region98: #{policy_forward.1} parent=0 // pred_check
    _
  $region99: #{policy_forward.1} parent=0 // pred_check_branch
    %6086 = sbr.rel (0) target = $region101
  $region100: #{policy_forward.1} parent=0 // pred_region
    _
  $region101: #{policy_forward.1} parent=0 // pred_fallthru
    _

</llo_original>
